<compile_context>
chip_gen: v6e
topology: v6e:2x2x1
jax: 0.10.0
libtpu: 0.0.40
codegen_flags: <defaults>
</compile_context>

<pallas_src>
import math

import jax
import jax.numpy as jnp
from jax.experimental import pallas as pl
from jax.experimental.pallas import tpu as pltpu


# ---------------------------------------------------------------------------
# Pallas kernels
# ---------------------------------------------------------------------------

def conv_relu_pool_kernel(p_ref, w_ref, b_ref, o_ref):
    """Fused im2col-conv + bias + ReLU + 2x2 max-pool for one row tile.

    p_ref: [4, TM, K] bf16  (4 = 2x2 pool-window offsets, TM = row tile of
           B * Ho/2 * Wo/2),  w_ref: [K, N] bf16,  b_ref: [1, N] f32,
    o_ref: [TM, N] f32.

    One MXU dot: fold the offset axis into rows, matmul (f32 accumulate),
    max-reduce over the 4 offsets, then a single bias + ReLU.
    """
    T, TM, K = p_ref.shape
    N = o_ref.shape[-1]
    p = p_ref[...].reshape(T * TM, K)
    y = jnp.dot(p, w_ref[...], preferred_element_type=jnp.float32)  # [4*TM, N]
    y = jnp.max(y.reshape(T, TM, N), axis=0)                        # [TM, N]
    o_ref[...] = jnp.maximum(y + b_ref[...], 0.0)


def fc_head_kernel(x_ref, w3_ref, b3_ref, w4_ref, b4_ref, o_ref):
    """Fused fc1 + ReLU + fc2 + log_softmax for one batch tile.

    x_ref: [TB, 800] f32 (NHWC-flattened pooled features),
    w3_ref: [800, 500] bf16, b3_ref: [1, 500] f32,
    w4_ref: [500, C] bf16,   b4_ref: [1, C] f32,  o_ref: [TB, C] f32.
    The [TB, 500] hidden activation never leaves VMEM.
    """
    h = jnp.dot(x_ref[...].astype(jnp.bfloat16), w3_ref[...],
                preferred_element_type=jnp.float32) + b3_ref[...]
    h = jnp.maximum(h, 0.0)
    z = jnp.dot(h.astype(jnp.bfloat16), w4_ref[...],
                preferred_element_type=jnp.float32) + b4_ref[...]
    m = jnp.max(z, axis=-1, keepdims=True)
    s = z - m
    lse = jnp.log(jnp.sum(jnp.exp(s), axis=-1, keepdims=True))
    o_ref[...] = s - lse


# ---------------------------------------------------------------------------
# pallas_call wrappers (row-tiled grids, weights/bias resident full blocks)
# ---------------------------------------------------------------------------

def _conv_relu_pool(patches4, w, b, *, tm=576):
    """patches4: [4, M, K] bf16; w: [K, N] bf16; b: [1, N] f32 -> [M, N] f32."""
    T, M, K = patches4.shape
    N = w.shape[1]
    TM = M if M <= tm else tm          # tm is a multiple of 8 (f32/bf16 safe)
    return pl.pallas_call(
        conv_relu_pool_kernel,
        out_shape=jax.ShapeDtypeStruct((M, N), jnp.float32),
        grid=(pl.cdiv(M, TM),),
        in_specs=[
            pl.BlockSpec((T, TM, K), lambda i: (0, i, 0)),
            pl.BlockSpec((K, N), lambda i: (0, 0)),
            pl.BlockSpec((1, N), lambda i: (0, 0)),
        ],
        out_specs=pl.BlockSpec((TM, N), lambda i: (i, 0)),
        compiler_params=pltpu.CompilerParams(
            dimension_semantics=("parallel",)),
    )(patches4, w, b)


def _fc_head(x, w3, b3, w4, b4, *, tb=256):
    """x: [B, 800] f32 -> log-probs [B, C] f32 (fc1+ReLU+fc2+log_softmax)."""
    B, K = x.shape
    H = w3.shape[1]
    C = w4.shape[1]
    TB = B if B <= tb else tb          # tb is a multiple of 8
    return pl.pallas_call(
        fc_head_kernel,
        out_shape=jax.ShapeDtypeStruct((B, C), jnp.float32),
        grid=(pl.cdiv(B, TB),),
        in_specs=[
            pl.BlockSpec((TB, K), lambda i: (i, 0)),
            pl.BlockSpec((K, H), lambda i: (0, 0)),
            pl.BlockSpec((1, H), lambda i: (0, 0)),
            pl.BlockSpec((H, C), lambda i: (0, 0)),
            pl.BlockSpec((1, C), lambda i: (0, 0)),
        ],
        out_specs=pl.BlockSpec((TB, C), lambda i: (i, 0)),
        compiler_params=pltpu.CompilerParams(
            dimension_semantics=("parallel",)),
    )(x, w3, b3, w4, b4)


# ---------------------------------------------------------------------------
# Glue: im2col with pool-window offsets on the leading axis (plain JAX, bf16)
# ---------------------------------------------------------------------------

def _im2col_pooled(x, k):
    """x: [B, H, W, C] -> [4, B*(Ho//2)*(Wo//2), k*k*C] bf16.

    Feature ordering is (kh, kw, Cin), matching HWIO-flattened weights.
    Leading axis enumerates the 2x2 max-pool window offsets (a, b).
    Emitted in bf16 to halve the expanded patch tensor's HBM traffic.
    (Assumes even Ho/Wo, which holds for 28x28 inputs.)
    """
    B, H, W, C = x.shape
    Ho, Wo = H - k + 1, W - k + 1
    cols = []
    for di in range(k):
        for dj in range(k):
            cols.append(x[:, di:di + Ho, dj:dj + Wo, :])
    patches = jnp.concatenate(cols, axis=-1)          # [B, Ho, Wo, k*k*C]
    Ho2, Wo2 = Ho // 2, Wo // 2
    slabs = []
    for a in range(2):
        for b in range(2):
            slabs.append(
                patches[:, a::2, b::2, :].reshape(B * Ho2 * Wo2, k * k * C))
    return jnp.stack(slabs, axis=0).astype(jnp.bfloat16)   # [4, M, k*k*C]


def _chw_rows_to_hwc_rows(w_chw, C, H, W):
    """Permute fc-weight rows from PyTorch's NCHW-flatten order to the NHWC
    flatten order produced by the pooled feature map, so the forward pass
    needs no runtime transpose before fc1."""
    idx = jnp.arange(H * W * C)
    h = idx // (W * C)
    rem = idx % (W * C)
    w = rem // C
    c = rem % C
    return w_chw[c * (H * W) + h * W + w, :]


# ---------------------------------------------------------------------------
# Parameter init (deterministic, mirrors the shapes of MLmodelCNN.__init__)
# ---------------------------------------------------------------------------

def init_params(classes=10, seed=1):
    key = jax.random.PRNGKey(seed)
    ks = jax.random.split(key, 8)

    def xavier_uniform(k, kh, kw, cin, cout):
        fan_in, fan_out = cin * kh * kw, cout * kh * kw
        bound = math.sqrt(6.0 / (fan_in + fan_out))
        # HWIO, flattened to [kh*kw*cin, cout] to match im2col feature order.
        w = jax.random.uniform(k, (kh, kw, cin, cout), jnp.float32,
                               -bound, bound)
        return w.reshape(kh * kw * cin, cout)

    def uniform_fan_in(k, shape, fan_in):
        bound = 1.0 / math.sqrt(fan_in)
        return jax.random.uniform(k, shape, jnp.float32, -bound, bound)

    # fc1 weight is generated in PyTorch's NCHW-flatten row order, then its
    # rows are permuted ONCE here so the forward pass consumes the natural
    # NHWC flatten of the pooled map (removes a runtime transpose).
    w3_chw = uniform_fan_in(ks[4], (4 * 4 * 50, 500), 4 * 4 * 50)
    w3 = _chw_rows_to_hwc_rows(w3_chw, C=50, H=4, W=4)

    params = {
        # conv1: 1 -> 20, 5x5 (xavier_uniform weight, default bias)
        "w1": xavier_uniform(ks[0], 5, 5, 1, 20),
        "b1": uniform_fan_in(ks[1], (1, 20), 1 * 5 * 5),
        # conv2: 20 -> 50, 5x5
        "w2": xavier_uniform(ks[2], 5, 5, 20, 50),
        "b2": uniform_fan_in(ks[3], (1, 50), 20 * 5 * 5),
        # fc1: 800 -> 500 (rows in NHWC-flatten order)
        "w3": w3,
        "b3": uniform_fan_in(ks[5], (1, 500), 4 * 4 * 50),
        # fc2: 500 -> classes
        "w4": uniform_fan_in(ks[6], (500, classes), 500),
        "b4": uniform_fan_in(ks[7], (1, classes), 500),
    }
    return params


# ---------------------------------------------------------------------------
# Forward pass
# ---------------------------------------------------------------------------

def mlmodel_cnn_forward(params, x_nchw):
    """x_nchw: [B, 1, 28, 28] float32 -> log-probs [B, classes]."""
    B = x_nchw.shape[0]
    bf16 = jnp.bfloat16
    x = jnp.transpose(x_nchw, (0, 2, 3, 1))                  # NHWC [B,28,28,1]

    # conv1 + relu + maxpool(2,2)  -> [B, 12, 12, 20]
    p1 = _im2col_pooled(x, 5)                                # [4, B*144, 25]
    y1 = _conv_relu_pool(p1, params["w1"].astype(bf16), params["b1"])
    y1 = y1.reshape(B, 12, 12, 20)

    # conv2 + relu + maxpool(2,2)  -> rows (b, h2, w2), 50 channels
    p2 = _im2col_pooled(y1, 5)                               # [4, B*16, 500]
    y2 = _conv_relu_pool(p2, params["w2"].astype(bf16), params["b2"])

    # NHWC flatten (h, w, c): fc1 weight rows were permuted at init to consume
    # this order, so no transpose is needed here.
    flat = y2.reshape(B, 4 * 4 * 50)

    # fused fc1 + ReLU + fc2 + log_softmax (hidden [B,500] stays in VMEM)
    return _fc_head(flat, params["w3"].astype(bf16), params["b3"],
                    params["w4"].astype(bf16), params["b4"])


# ---------------------------------------------------------------------------
if __name__ == "__main__":
    params = init_params(classes=10, seed=1)

    # 28x28 spatial is required by the fc1 input size (4*4*50). Batch 8 gives
    # conv1 a multi-step row grid (M = 1152, TM = 576).
    x = jax.random.normal(jax.random.PRNGKey(0), (8, 1, 28, 28), jnp.float32)

    fwd = jax.jit(mlmodel_cnn_forward)
    logp = jax.block_until_ready(fwd(params, x))

    assert logp.shape == (8, 10)
    assert bool(jnp.all(jnp.isfinite(logp)))
    # log_softmax rows must sum to ~1 in prob space
    assert bool(jnp.allclose(jnp.sum(jnp.exp(logp), axis=1), 1.0, atol=1e-3))

    print("KERNEL_OK")
</pallas_src>

<mosaic_0001>
module attributes {stable_mosaic.version = 11 : i64} {
  func.func @conv_relu_pool_kernel(%arg0: i32, %arg1: memref<4x576x25xbf16, #tpu.memory_space<vmem>>, %arg2: memref<25x20xbf16, #tpu.memory_space<vmem>>, %arg3: memref<1x20xf32, #tpu.memory_space<vmem>>, %arg4: memref<576x20xf32, #tpu.memory_space<vmem>>) attributes {dimension_semantics = [#tpu.dimension_semantics<parallel>], iteration_bounds = array<i64: 2>, scalar_prefetch = 0 : i64, scratch_operands = 0 : i64, tpu.core_type = #tpu.core_type<tc>, window_params = [{transform_indices = @transform_0, window_bounds = array<i64: 4, 576, 25>}, {pipeline_mode = #tpu.pipeline_mode<synchronous>, transform_indices = @transform_1, window_bounds = array<i64: 25, 20>}, {pipeline_mode = #tpu.pipeline_mode<synchronous>, transform_indices = @transform_2, window_bounds = array<i64: 1, 20>}, {transform_indices = @transform_3, window_bounds = array<i64: 576, 20>}]} {
    %c0 = arith.constant 0 : index
    %c0_0 = arith.constant 0 : index
    %c0_1 = arith.constant 0 : index
    %0 = vector.load %arg1[%c0, %c0_0, %c0_1] : memref<4x576x25xbf16, #tpu.memory_space<vmem>>, vector<4x576x25xbf16>
    %1 = vector.shape_cast %0 : vector<4x576x25xbf16> to vector<2304x25xbf16>
    %c0_2 = arith.constant 0 : index
    %c0_3 = arith.constant 0 : index
    %2 = vector.load %arg2[%c0_2, %c0_3] : memref<25x20xbf16, #tpu.memory_space<vmem>>, vector<25x20xbf16>
    %cst = arith.constant dense<0.000000e+00> : vector<2304x20xf32>
    %3 = tpu.matmul %1, %2, %cst {dimension_numbers = #tpu.dot_dimension_numbers<[1], [0], [0], [1], [0, 0, 1, 1], [], []>} : vector<2304x25xbf16>, vector<25x20xbf16>, vector<2304x20xf32> -> vector<2304x20xf32>
    %4 = vector.shape_cast %3 : vector<2304x20xf32> to vector<4x576x20xf32>
    %cst_4 = arith.constant dense<0xFF800000> : vector<576x20xf32>
    %5 = vector.multi_reduction <maximumf>, %4, %cst_4 [0] : vector<4x576x20xf32> to vector<576x20xf32>
    %c0_5 = arith.constant 0 : index
    %c0_6 = arith.constant 0 : index
    %6 = vector.load %arg3[%c0_5, %c0_6] : memref<1x20xf32, #tpu.memory_space<vmem>>, vector<1x20xf32>
    %7 = vector.broadcast %6 : vector<1x20xf32> to vector<576x20xf32>
    %8 = arith.addf %5, %7 : vector<576x20xf32>
    %cst_7 = arith.constant 0.000000e+00 : f32
    %9 = vector.broadcast %cst_7 : f32 to vector<576x20xf32>
    %10 = arith.maximumf %8, %9 : vector<576x20xf32>
    %c0_8 = arith.constant 0 : index
    %c0_9 = arith.constant 0 : index
    %11 = vector.load %arg4[%c0_8, %c0_9] : memref<576x20xf32, #tpu.memory_space<vmem>>, vector<576x20xf32>
    tpu.vector_store %arg4[%c0_8, %c0_9], %10 {strides = array<i32>} : memref<576x20xf32, #tpu.memory_space<vmem>>, vector<576x20xf32>,
    return
  }
  func.func @transform_0(%arg0: i32) -> (i32, i32, i32) {
    %c0_i32 = arith.constant 0 : i32
    %c0_i32_0 = arith.constant 0 : i32
    %c0_i32_1 = arith.constant 0 : i32
    return %c0_i32, %arg0, %c0_i32_0 : i32, i32, i32
  }
  func.func @transform_1(%arg0: i32) -> (i32, i32) {
    %c0_i32 = arith.constant 0 : i32
    %c0_i32_0 = arith.constant 0 : i32
    %c0_i32_1 = arith.constant 0 : i32
    return %c0_i32, %c0_i32_0 : i32, i32
  }
  func.func @transform_2(%arg0: i32) -> (i32, i32) {
    %c0_i32 = arith.constant 0 : i32
    %c0_i32_0 = arith.constant 0 : i32
    %c0_i32_1 = arith.constant 0 : i32
    return %c0_i32, %c0_i32_0 : i32, i32
  }
  func.func @transform_3(%arg0: i32) -> (i32, i32) {
    %c0_i32 = arith.constant 0 : i32
    %c0_i32_0 = arith.constant 0 : i32
    return %arg0, %c0_i32 : i32, i32
  }
}

module attributes {stable_mosaic.version = 11 : i64} {
  func.func @conv_relu_pool_kernel(%arg0: i32, %arg1: memref<4x128x500xbf16, #tpu.memory_space<vmem>>, %arg2: memref<500x50xbf16, #tpu.memory_space<vmem>>, %arg3: memref<1x50xf32, #tpu.memory_space<vmem>>, %arg4: memref<128x50xf32, #tpu.memory_space<vmem>>) attributes {dimension_semantics = [#tpu.dimension_semantics<parallel>], iteration_bounds = array<i64: 1>, scalar_prefetch = 0 : i64, scratch_operands = 0 : i64, tpu.core_type = #tpu.core_type<tc>, window_params = [{transform_indices = @transform_0, window_bounds = array<i64: 4, 128, 500>}, {pipeline_mode = #tpu.pipeline_mode<synchronous>, transform_indices = @transform_1, window_bounds = array<i64: 500, 50>}, {pipeline_mode = #tpu.pipeline_mode<synchronous>, transform_indices = @transform_2, window_bounds = array<i64: 1, 50>}, {transform_indices = @transform_3, window_bounds = array<i64: 128, 50>}]} {
    %c0 = arith.constant 0 : index
    %c0_0 = arith.constant 0 : index
    %c0_1 = arith.constant 0 : index
    %0 = vector.load %arg1[%c0, %c0_0, %c0_1] : memref<4x128x500xbf16, #tpu.memory_space<vmem>>, vector<4x128x500xbf16>
    %1 = vector.shape_cast %0 : vector<4x128x500xbf16> to vector<512x500xbf16>
    %c0_2 = arith.constant 0 : index
    %c0_3 = arith.constant 0 : index
    %2 = vector.load %arg2[%c0_2, %c0_3] : memref<500x50xbf16, #tpu.memory_space<vmem>>, vector<500x50xbf16>
    %cst = arith.constant dense<0.000000e+00> : vector<512x50xf32>
    %3 = tpu.matmul %1, %2, %cst {dimension_numbers = #tpu.dot_dimension_numbers<[1], [0], [0], [1], [0, 0, 1, 1], [], []>} : vector<512x500xbf16>, vector<500x50xbf16>, vector<512x50xf32> -> vector<512x50xf32>
    %4 = vector.shape_cast %3 : vector<512x50xf32> to vector<4x128x50xf32>
    %cst_4 = arith.constant dense<0xFF800000> : vector<128x50xf32>
    %5 = vector.multi_reduction <maximumf>, %4, %cst_4 [0] : vector<4x128x50xf32> to vector<128x50xf32>
    %c0_5 = arith.constant 0 : index
    %c0_6 = arith.constant 0 : index
    %6 = vector.load %arg3[%c0_5, %c0_6] : memref<1x50xf32, #tpu.memory_space<vmem>>, vector<1x50xf32>
    %7 = vector.broadcast %6 : vector<1x50xf32> to vector<128x50xf32>
    %8 = arith.addf %5, %7 : vector<128x50xf32>
    %cst_7 = arith.constant 0.000000e+00 : f32
    %9 = vector.broadcast %cst_7 : f32 to vector<128x50xf32>
    %10 = arith.maximumf %8, %9 : vector<128x50xf32>
    %c0_8 = arith.constant 0 : index
    %c0_9 = arith.constant 0 : index
    %11 = vector.load %arg4[%c0_8, %c0_9] : memref<128x50xf32, #tpu.memory_space<vmem>>, vector<128x50xf32>
    tpu.vector_store %arg4[%c0_8, %c0_9], %10 {strides = array<i32>} : memref<128x50xf32, #tpu.memory_space<vmem>>, vector<128x50xf32>,
    return
  }
  func.func @transform_0(%arg0: i32) -> (i32, i32, i32) {
    %c0_i32 = arith.constant 0 : i32
    %c0_i32_0 = arith.constant 0 : i32
    %c0_i32_1 = arith.constant 0 : i32
    return %c0_i32, %arg0, %c0_i32_0 : i32, i32, i32
  }
  func.func @transform_1(%arg0: i32) -> (i32, i32) {
    %c0_i32 = arith.constant 0 : i32
    %c0_i32_0 = arith.constant 0 : i32
    %c0_i32_1 = arith.constant 0 : i32
    return %c0_i32, %c0_i32_0 : i32, i32
  }
  func.func @transform_2(%arg0: i32) -> (i32, i32) {
    %c0_i32 = arith.constant 0 : i32
    %c0_i32_0 = arith.constant 0 : i32
    %c0_i32_1 = arith.constant 0 : i32
    return %c0_i32, %c0_i32_0 : i32, i32
  }
  func.func @transform_3(%arg0: i32) -> (i32, i32) {
    %c0_i32 = arith.constant 0 : i32
    %c0_i32_0 = arith.constant 0 : i32
    return %arg0, %c0_i32 : i32, i32
  }
}

module attributes {stable_mosaic.version = 11 : i64} {
  func.func @fc_head_kernel(%arg0: i32, %arg1: memref<8x800xf32, #tpu.memory_space<vmem>>, %arg2: memref<800x500xbf16, #tpu.memory_space<vmem>>, %arg3: memref<1x500xf32, #tpu.memory_space<vmem>>, %arg4: memref<500x10xbf16, #tpu.memory_space<vmem>>, %arg5: memref<1x10xf32, #tpu.memory_space<vmem>>, %arg6: memref<8x10xf32, #tpu.memory_space<vmem>>) attributes {dimension_semantics = [#tpu.dimension_semantics<parallel>], iteration_bounds = array<i64: 1>, scalar_prefetch = 0 : i64, scratch_operands = 0 : i64, tpu.core_type = #tpu.core_type<tc>, window_params = [{transform_indices = @transform_0, window_bounds = array<i64: 8, 800>}, {pipeline_mode = #tpu.pipeline_mode<synchronous>, transform_indices = @transform_1, window_bounds = array<i64: 800, 500>}, {pipeline_mode = #tpu.pipeline_mode<synchronous>, transform_indices = @transform_2, window_bounds = array<i64: 1, 500>}, {pipeline_mode = #tpu.pipeline_mode<synchronous>, transform_indices = @transform_3, window_bounds = array<i64: 500, 10>}, {pipeline_mode = #tpu.pipeline_mode<synchronous>, transform_indices = @transform_4, window_bounds = array<i64: 1, 10>}, {transform_indices = @transform_5, window_bounds = array<i64: 8, 10>}]} {
    %c0 = arith.constant 0 : index
    %c0_0 = arith.constant 0 : index
    %0 = vector.load %arg1[%c0, %c0_0] : memref<8x800xf32, #tpu.memory_space<vmem>>, vector<8x800xf32>
    %1 = arith.truncf %0 : vector<8x800xf32> to vector<8x800xbf16>
    %c0_1 = arith.constant 0 : index
    %c0_2 = arith.constant 0 : index
    %2 = vector.load %arg2[%c0_1, %c0_2] : memref<800x500xbf16, #tpu.memory_space<vmem>>, vector<800x500xbf16>
    %cst = arith.constant dense<0.000000e+00> : vector<8x500xf32>
    %3 = tpu.matmul %1, %2, %cst {dimension_numbers = #tpu.dot_dimension_numbers<[1], [0], [0], [1], [0, 0, 1, 1], [], []>} : vector<8x800xbf16>, vector<800x500xbf16>, vector<8x500xf32> -> vector<8x500xf32>
    %c0_3 = arith.constant 0 : index
    %c0_4 = arith.constant 0 : index
    %4 = vector.load %arg3[%c0_3, %c0_4] : memref<1x500xf32, #tpu.memory_space<vmem>>, vector<1x500xf32>
    %5 = vector.broadcast %4 : vector<1x500xf32> to vector<8x500xf32>
    %6 = arith.addf %3, %5 : vector<8x500xf32>
    %cst_5 = arith.constant 0.000000e+00 : f32
    %7 = vector.broadcast %cst_5 : f32 to vector<8x500xf32>
    %8 = arith.maximumf %6, %7 : vector<8x500xf32>
    %9 = arith.truncf %8 : vector<8x500xf32> to vector<8x500xbf16>
    %c0_6 = arith.constant 0 : index
    %c0_7 = arith.constant 0 : index
    %10 = vector.load %arg4[%c0_6, %c0_7] : memref<500x10xbf16, #tpu.memory_space<vmem>>, vector<500x10xbf16>
    %cst_8 = arith.constant dense<0.000000e+00> : vector<8x10xf32>
    %11 = tpu.matmul %9, %10, %cst_8 {dimension_numbers = #tpu.dot_dimension_numbers<[1], [0], [0], [1], [0, 0, 1, 1], [], []>} : vector<8x500xbf16>, vector<500x10xbf16>, vector<8x10xf32> -> vector<8x10xf32>
    %c0_9 = arith.constant 0 : index
    %c0_10 = arith.constant 0 : index
    %12 = vector.load %arg5[%c0_9, %c0_10] : memref<1x10xf32, #tpu.memory_space<vmem>>, vector<1x10xf32>
    %13 = vector.broadcast %12 : vector<1x10xf32> to vector<8x10xf32>
    %14 = arith.addf %11, %13 : vector<8x10xf32>
    %cst_11 = arith.constant dense<0xFF800000> : vector<8xf32>
    %15 = vector.multi_reduction <maximumf>, %14, %cst_11 [1] : vector<8x10xf32> to vector<8xf32>
    %16 = vector.shape_cast %15 : vector<8xf32> to vector<8x1xf32>
    %17 = vector.broadcast %16 : vector<8x1xf32> to vector<8x10xf32>
    %18 = arith.subf %14, %17 : vector<8x10xf32>
    %19 = math.exp %18 : vector<8x10xf32>
    %cst_12 = arith.constant dense<0.000000e+00> : vector<8xf32>
    %20 = vector.multi_reduction <add>, %19, %cst_12 [1] : vector<8x10xf32> to vector<8xf32>
    %21 = vector.shape_cast %20 : vector<8xf32> to vector<8x1xf32>
    %22 = math.log %21 : vector<8x1xf32>
    %23 = vector.broadcast %22 : vector<8x1xf32> to vector<8x10xf32>
    %24 = arith.subf %18, %23 : vector<8x10xf32>
    %c0_13 = arith.constant 0 : index
    %c0_14 = arith.constant 0 : index
    %25 = vector.load %arg6[%c0_13, %c0_14] : memref<8x10xf32, #tpu.memory_space<vmem>>, vector<8x10xf32>
    tpu.vector_store %arg6[%c0_13, %c0_14], %24 {strides = array<i32>} : memref<8x10xf32, #tpu.memory_space<vmem>>, vector<8x10xf32>,
    return
  }
  func.func @transform_0(%arg0: i32) -> (i32, i32) {
    %c0_i32 = arith.constant 0 : i32
    %c0_i32_0 = arith.constant 0 : i32
    return %arg0, %c0_i32 : i32, i32
  }
  func.func @transform_1(%arg0: i32) -> (i32, i32) {
    %c0_i32 = arith.constant 0 : i32
    %c0_i32_0 = arith.constant 0 : i32
    %c0_i32_1 = arith.constant 0 : i32
    return %c0_i32, %c0_i32_0 : i32, i32
  }
  func.func @transform_2(%arg0: i32) -> (i32, i32) {
    %c0_i32 = arith.constant 0 : i32
    %c0_i32_0 = arith.constant 0 : i32
    %c0_i32_1 = arith.constant 0 : i32
    return %c0_i32, %c0_i32_0 : i32, i32
  }
  func.func @transform_3(%arg0: i32) -> (i32, i32) {
    %c0_i32 = arith.constant 0 : i32
    %c0_i32_0 = arith.constant 0 : i32
    %c0_i32_1 = arith.constant 0 : i32
    return %c0_i32, %c0_i32_0 : i32, i32
  }
  func.func @transform_4(%arg0: i32) -> (i32, i32) {
    %c0_i32 = arith.constant 0 : i32
    %c0_i32_0 = arith.constant 0 : i32
    %c0_i32_1 = arith.constant 0 : i32
    return %c0_i32, %c0_i32_0 : i32, i32
  }
  func.func @transform_5(%arg0: i32) -> (i32, i32) {
    %c0_i32 = arith.constant 0 : i32
    %c0_i32_0 = arith.constant 0 : i32
    return %arg0, %c0_i32 : i32, i32
  }
}

</mosaic_0001>

<llo_original>
// kernel: mlmodel_cnn_forward.3
$region0: #{mlmodel_cnn_forward.3}
  #allocation0 [shape = 'u32[]', space=smem, size = 0x4, offset = 0x4, fixed_abs, tag = 'smem constant byte address 0x4 - core index']
  #allocation1 [shape = 'u32[144,128]{1,0:T(1,128)}', space=vmem, size = 0x12000, scoped, tag = 'internal scratch']
  %s0 = inlined_call_operand.vmem [shape: bf16[4,1152,25], index: 0, kind: input, shape index: {}]
  %s1 = inlined_call_operand.vmem [shape: bf16[25,20], index: 1, kind: input, shape index: {}]
  %s2 = inlined_call_operand.vmem [shape: f32[1,20], index: 2, kind: input, shape index: {}]
  %s3 = inlined_call_operand.vmem [shape: f32[1152,20], index: 3, kind: output, shape index: {}]
  %s4 = sld [smem:[#allocation0]]
  $region86: #{mlmodel_cnn_forward.3} parent=0
    _
  %s6 = ssub.s32 1, %s4
  %s7 = scalar_select 0, %s6, %s4
  $region1: #{mlmodel_cnn_forward.3} parent=0
    #allocation2 [shape = 'u8[1179648]{0}', space=vmem, size = 0x120000, scoped, tag = 'input window, operand 0']
    loop: start=0, step=1, limit=4
    $region2: #{mlmodel_cnn_forward.3} parent=1 // loop_pre_header
      _
    $region3: #{mlmodel_cnn_forward.3} parent=1 // loop_header
      %s9 = sphi 0, %s13
      %p10 = scmp.ge.s32.totalorder %s9, 4
      %s19 = sphi 0, %s21
      %s22 = sphi 0, %s19
      %s23 = sphi 0, %s22
      %s39 = sphi 0, %s23
      %s43 = sphi 0, %s43
      %s45 = sphi 0, %s43
      %s46 = sphi 0, %s45
      %s60 = sphi 0, %s46
      %s64 = sphi 0, %s64
      %s66 = sphi 0, %s64
      %s67 = sphi 0, %s66
      %s81 = sphi 0, %s67
      %s87 = sphi 0, %s89
      %s90 = sphi 0, %s87
      %s91 = sphi 0, %s90
      %s107 = sphi 0, %s91
    $region4: #{mlmodel_cnn_forward.3} parent=1 // loop_header_branch
      %12 = sbr.rel (%p10) target = $region8
    $region5: #{mlmodel_cnn_forward.3} parent=1 // loop_body
      %s14 = ssub.s32 %s9, 1
      %s15 = ssub.s32 %s9, 2
      %s16 = sadd.s32 %s9, 1
      %s17 = ssub.s32 %s9, %s16
      %p18 = scmp.eq.s32.totalorder %s17, 0
      %s20 = sadd.s32 %s19, 1
      %s21 = scalar_select %p18, %s19, %s20
      %p24 = pneg %p18
      %p25 = scmp.eq.s32.totalorder %s9, 1
      %p26 = por %p24, %p25
      %p27 = scmp.ne.s32.totalorder %s19, %s22
      %p28 = scmp.eq.s32.totalorder %s9, 0
      %p29 = por %p27, %p28
      %p30 = scmp.ne.s32.totalorder %s19, %s22
      %p31 = scmp.eq.s32.totalorder %s14, 1
      %p32 = por %p30, %p31
      %p33 = scmp.ne.s32.totalorder %s22, %s23
      %p34 = scmp.eq.s32.totalorder %s14, 0
      %p35 = por %p33, %p34
      %p36 = scmp.ne.s32.totalorder %s22, %s23
      %p37 = scmp.eq.s32.totalorder %s15, 1
      %p38 = por %p36, %p37
      %p40 = scmp.ne.s32.totalorder %s23, %s39
      %p41 = scmp.eq.s32.totalorder %s15, 0
      %p42 = por %p40, %p41
      %s44 = sadd.s32 %s43, 1
      %p47 = scmp.eq.s32.totalorder %s9, 1
      %p48 = scmp.ne.s32.totalorder %s43, %s45
      %p49 = scmp.eq.s32.totalorder %s9, 0
      %p50 = por %p48, %p49
      %p51 = scmp.ne.s32.totalorder %s43, %s45
      %p52 = scmp.eq.s32.totalorder %s14, 1
      %p53 = por %p51, %p52
      %p54 = scmp.ne.s32.totalorder %s45, %s46
      %p55 = scmp.eq.s32.totalorder %s14, 0
      %p56 = por %p54, %p55
      %p57 = scmp.ne.s32.totalorder %s45, %s46
      %p58 = scmp.eq.s32.totalorder %s15, 1
      %p59 = por %p57, %p58
      %p61 = scmp.ne.s32.totalorder %s46, %s60
      %p62 = scmp.eq.s32.totalorder %s15, 0
      %p63 = por %p61, %p62
      %s65 = sadd.s32 %s64, 1
      %p68 = scmp.eq.s32.totalorder %s9, 1
      %p69 = scmp.ne.s32.totalorder %s64, %s66
      %p70 = scmp.eq.s32.totalorder %s9, 0
      %p71 = por %p69, %p70
      %p72 = scmp.ne.s32.totalorder %s64, %s66
      %p73 = scmp.eq.s32.totalorder %s14, 1
      %p74 = por %p72, %p73
      %p75 = scmp.ne.s32.totalorder %s66, %s67
      %p76 = scmp.eq.s32.totalorder %s14, 0
      %p77 = por %p75, %p76
      %p78 = scmp.ne.s32.totalorder %s66, %s67
      %p79 = scmp.eq.s32.totalorder %s15, 1
      %p80 = por %p78, %p79
      %p82 = scmp.ne.s32.totalorder %s67, %s81
      %p83 = scmp.eq.s32.totalorder %s15, 0
      %p84 = por %p82, %p83
      %s85 = ssub.s32 %s9, %s16
      %p86 = scmp.eq.s32.totalorder %s85, 0
      %s88 = sadd.s32 %s87, 1
      %s89 = scalar_select %p86, %s87, %s88
      %p92 = pneg %p86
      %p93 = scmp.eq.s32.totalorder %s9, 1
      %p94 = por %p92, %p93
      %p95 = scmp.ne.s32.totalorder %s87, %s90
      %p96 = scmp.eq.s32.totalorder %s9, 0
      %p97 = por %p95, %p96
      %p98 = scmp.ne.s32.totalorder %s87, %s90
      %p99 = scmp.eq.s32.totalorder %s14, 1
      %p100 = por %p98, %p99
      %p101 = scmp.ne.s32.totalorder %s90, %s91
      %p102 = scmp.eq.s32.totalorder %s14, 0
      %p103 = por %p101, %p102
      %p104 = scmp.ne.s32.totalorder %s90, %s91
      %p105 = scmp.eq.s32.totalorder %s15, 1
      %p106 = por %p104, %p105
      %p108 = scmp.ne.s32.totalorder %s91, %s107
      %p109 = scmp.eq.s32.totalorder %s15, 0
      %p110 = por %p108, %p109
      %p111 = scmp.le.s32.totalorder 1, %s9
      %p112 = scmp.lt.s32.totalorder %s9, 3
      %p113 = pnand %p111, %p112
      %p114 = pneg %p113
      // Predicated region
      $region9: #{mlmodel_cnn_forward.3} parent=5 // pred_check
        _
      $region10: #{mlmodel_cnn_forward.3} parent=5 // pred_check_branch
        %116 = sbr.rel (%p113) target = $region12
      $region11: #{mlmodel_cnn_forward.3} parent=5 // pred_region
        %s117 = ssub.s32 %s9, 1
        // Predicated region
        $region13: #{mlmodel_cnn_forward.3} parent=11 // pred_check
          %p118 = pneg %p56
        $region14: #{mlmodel_cnn_forward.3} parent=11 // pred_check_branch
          %120 = sbr.rel (%p118) target = $region16
        $region15: #{mlmodel_cnn_forward.3} parent=11 // pred_region
          _
        $region16: #{mlmodel_cnn_forward.3} parent=11 // pred_fallthru
          _
        // Predicated region
        $region17: #{mlmodel_cnn_forward.3} parent=11 // pred_check
          %p121 = pneg %p77
        $region18: #{mlmodel_cnn_forward.3} parent=11 // pred_check_branch
          %123 = sbr.rel (%p121) target = $region20
        $region19: #{mlmodel_cnn_forward.3} parent=11 // pred_region
          _
        $region20: #{mlmodel_cnn_forward.3} parent=11 // pred_fallthru
          _
      $region12: #{mlmodel_cnn_forward.3} parent=5 // pred_fallthru
        _
      %p124 = scmp.lt.s32.totalorder %s9, 2
      // Predicated region
      $region21: #{mlmodel_cnn_forward.3} parent=5 // pred_check
        %p125 = pneg %p124
      $region22: #{mlmodel_cnn_forward.3} parent=5 // pred_check_branch
        %127 = sbr.rel (%p125) target = $region24
      $region23: #{mlmodel_cnn_forward.3} parent=5 // pred_region
        // Predicated region
        $region25: #{mlmodel_cnn_forward.3} parent=23 // pred_check
          %p128 = pneg %p29
        $region26: #{mlmodel_cnn_forward.3} parent=23 // pred_check_branch
          %130 = sbr.rel (%p128) target = $region28
        $region27: #{mlmodel_cnn_forward.3} parent=23 // pred_region
          %s131 = sand.u32 %s19, 1
          %s132 = sand.u32 %s19, 1
          %s133 = smul.addr %s132, 1152
          %s134 = scalar_lea.vmem [#allocation2], %s133
          %s135 = smul.u32 72, %s9
          %s136 = smul.addr %s135, 4
          %s137 = scalar_lea.vmem %s0, %s136
          // Predicated region
          $region29: #{mlmodel_cnn_forward.3} parent=27 // pred_check
            _
          $region30: #{mlmodel_cnn_forward.3} parent=27 // pred_check_branch
            %139 = sbr.rel (0) target = $region32
          $region31: #{mlmodel_cnn_forward.3} parent=27 // pred_region
            // Predicated region
            $region33: #{mlmodel_cnn_forward.3} parent=31 // pred_check
              _
            $region34: #{mlmodel_cnn_forward.3} parent=31 // pred_check_branch
              %141 = sbr.rel target = $region36
            $region35: #{mlmodel_cnn_forward.3} parent=31 // pred_region
              // Predicated region
              $region48: #{mlmodel_cnn_forward.3} parent=35 // pred_check
                _
              $region49: #{mlmodel_cnn_forward.3} parent=35 // pred_check_branch
                %731 = sbr.rel (0) target = $region51
              $region50: #{mlmodel_cnn_forward.3} parent=35 // pred_region
                loop: start=0, step=1, limit=1
                $region52: #{mlmodel_cnn_forward.3} parent=50 // loop_pre_header
                  _
                $region53: #{mlmodel_cnn_forward.3} parent=50 // loop_header
                  %s733 = sphi 0, %s737
                  %p734 = scmp.ge.s32.totalorder %s733, 1
                  %s738 = sphi %s137, %s137
                  %s739 = sphi %s134, %s134
                $region54: #{mlmodel_cnn_forward.3} parent=50 // loop_header_branch
                  %736 = sbr.rel (%p734) target = $region58
                $region55: #{mlmodel_cnn_forward.3} parent=50 // loop_body
                  _
                $region56: #{mlmodel_cnn_forward.3} parent=50 // loop_footer
                  %s737 = sadd.s32 1, %s733
                $region57: #{mlmodel_cnn_forward.3} parent=50 // loop_footer_branch
                  %732 = sbr.rel target = $region53
                $region58: #{mlmodel_cnn_forward.3} parent=50 // loop_exit
                  _
                %s741 = ssub.s32 16, 1
                loop: start=0, step=1, limit=1
                $region59: #{mlmodel_cnn_forward.3} parent=50 // loop_pre_header
                  _
                $region60: #{mlmodel_cnn_forward.3} parent=50 // loop_header
                  %s743 = sphi 0, %s747
                  %p744 = scmp.ge.s32.totalorder %s743, 1
                  %s748 = sphi %s137, %s137
                  %s749 = sphi %s134, %s134
                $region61: #{mlmodel_cnn_forward.3} parent=50 // loop_header_branch
                  %746 = sbr.rel (%p744) target = $region65
                $region62: #{mlmodel_cnn_forward.3} parent=50 // loop_body
                  %v750 = vld [vmem:[%s748] sm:%s741]
                  %751 = vst [vmem:[%s749] sm:%s741] %v750
                  %v752 = vld [vmem:[%s748 + $0x4] sm:%s741]
                  %753 = vst [vmem:[%s749 + $0x4] sm:%s741] %v752
                  %v754 = vld [vmem:[%s748 + $0x8] sm:%s741]
                  %755 = vst [vmem:[%s749 + $0x8] sm:%s741] %v754
                  %v756 = vld [vmem:[%s748 + $0xc] sm:%s741]
                  %757 = vst [vmem:[%s749 + $0xc] sm:%s741] %v756
                  %v758 = vld [vmem:[%s748 + $0x10] sm:%s741]
                  %759 = vst [vmem:[%s749 + $0x10] sm:%s741] %v758
                  %v760 = vld [vmem:[%s748 + $0x14] sm:%s741]
                  %761 = vst [vmem:[%s749 + $0x14] sm:%s741] %v760
                  %v762 = vld [vmem:[%s748 + $0x18] sm:%s741]
                  %763 = vst [vmem:[%s749 + $0x18] sm:%s741] %v762
                  %v764 = vld [vmem:[%s748 + $0x1c] sm:%s741]
                  %765 = vst [vmem:[%s749 + $0x1c] sm:%s741] %v764
                  %v766 = vld [vmem:[%s748 + $0x20] sm:%s741]
                  %767 = vst [vmem:[%s749 + $0x20] sm:%s741] %v766
                  %v768 = vld [vmem:[%s748 + $0x24] sm:%s741]
                  %769 = vst [vmem:[%s749 + $0x24] sm:%s741] %v768
                  %v770 = vld [vmem:[%s748 + $0x28] sm:%s741]
                  %771 = vst [vmem:[%s749 + $0x28] sm:%s741] %v770
                  %v772 = vld [vmem:[%s748 + $0x2c] sm:%s741]
                  %773 = vst [vmem:[%s749 + $0x2c] sm:%s741] %v772
                  %v774 = vld [vmem:[%s748 + $0x30] sm:%s741]
                  %775 = vst [vmem:[%s749 + $0x30] sm:%s741] %v774
                  %v776 = vld [vmem:[%s748 + $0x34] sm:%s741]
                  %777 = vst [vmem:[%s749 + $0x34] sm:%s741] %v776
                  %v778 = vld [vmem:[%s748 + $0x38] sm:%s741]
                  %779 = vst [vmem:[%s749 + $0x38] sm:%s741] %v778
                  %v780 = vld [vmem:[%s748 + $0x3c] sm:%s741]
                  %781 = vst [vmem:[%s749 + $0x3c] sm:%s741] %v780
                  %v782 = vld [vmem:[%s748 + $0x40] sm:%s741]
                  %783 = vst [vmem:[%s749 + $0x40] sm:%s741] %v782
                  %v784 = vld [vmem:[%s748 + $0x44] sm:%s741]
                  %785 = vst [vmem:[%s749 + $0x44] sm:%s741] %v784
                  %v786 = vld [vmem:[%s748 + $0x48] sm:%s741]
                  %787 = vst [vmem:[%s749 + $0x48] sm:%s741] %v786
                  %v788 = vld [vmem:[%s748 + $0x4c] sm:%s741]
                  %789 = vst [vmem:[%s749 + $0x4c] sm:%s741] %v788
                  %v790 = vld [vmem:[%s748 + $0x50] sm:%s741]
                  %791 = vst [vmem:[%s749 + $0x50] sm:%s741] %v790
                  %v792 = vld [vmem:[%s748 + $0x54] sm:%s741]
                  %793 = vst [vmem:[%s749 + $0x54] sm:%s741] %v792
                  %v794 = vld [vmem:[%s748 + $0x58] sm:%s741]
                  %795 = vst [vmem:[%s749 + $0x58] sm:%s741] %v794
                  %v796 = vld [vmem:[%s748 + $0x5c] sm:%s741]
                  %797 = vst [vmem:[%s749 + $0x5c] sm:%s741] %v796
                  %v798 = vld [vmem:[%s748 + $0x60] sm:%s741]
                  %799 = vst [vmem:[%s749 + $0x60] sm:%s741] %v798
                  %v800 = vld [vmem:[%s748 + $0x64] sm:%s741]
                  %801 = vst [vmem:[%s749 + $0x64] sm:%s741] %v800
                  %v802 = vld [vmem:[%s748 + $0x68] sm:%s741]
                  %803 = vst [vmem:[%s749 + $0x68] sm:%s741] %v802
                  %v804 = vld [vmem:[%s748 + $0x6c] sm:%s741]
                  %805 = vst [vmem:[%s749 + $0x6c] sm:%s741] %v804
                  %v806 = vld [vmem:[%s748 + $0x70] sm:%s741]
                  %807 = vst [vmem:[%s749 + $0x70] sm:%s741] %v806
                  %v808 = vld [vmem:[%s748 + $0x74] sm:%s741]
                  %809 = vst [vmem:[%s749 + $0x74] sm:%s741] %v808
                  %v810 = vld [vmem:[%s748 + $0x78] sm:%s741]
                  %811 = vst [vmem:[%s749 + $0x78] sm:%s741] %v810
                  %v812 = vld [vmem:[%s748 + $0x7c] sm:%s741]
                  %813 = vst [vmem:[%s749 + $0x7c] sm:%s741] %v812
                  %v814 = vld [vmem:[%s748 + $0x80] sm:%s741]
                  %815 = vst [vmem:[%s749 + $0x80] sm:%s741] %v814
                  %v816 = vld [vmem:[%s748 + $0x84] sm:%s741]
                  %817 = vst [vmem:[%s749 + $0x84] sm:%s741] %v816
                  %v818 = vld [vmem:[%s748 + $0x88] sm:%s741]
                  %819 = vst [vmem:[%s749 + $0x88] sm:%s741] %v818
                  %v820 = vld [vmem:[%s748 + $0x8c] sm:%s741]
                  %821 = vst [vmem:[%s749 + $0x8c] sm:%s741] %v820
                  %v822 = vld [vmem:[%s748 + $0x90] sm:%s741]
                  %823 = vst [vmem:[%s749 + $0x90] sm:%s741] %v822
                  %v824 = vld [vmem:[%s748 + $0x94] sm:%s741]
                  %825 = vst [vmem:[%s749 + $0x94] sm:%s741] %v824
                  %v826 = vld [vmem:[%s748 + $0x98] sm:%s741]
                  %827 = vst [vmem:[%s749 + $0x98] sm:%s741] %v826
                  %v828 = vld [vmem:[%s748 + $0x9c] sm:%s741]
                  %829 = vst [vmem:[%s749 + $0x9c] sm:%s741] %v828
                  %v830 = vld [vmem:[%s748 + $0xa0] sm:%s741]
                  %831 = vst [vmem:[%s749 + $0xa0] sm:%s741] %v830
                  %v832 = vld [vmem:[%s748 + $0xa4] sm:%s741]
                  %833 = vst [vmem:[%s749 + $0xa4] sm:%s741] %v832
                  %v834 = vld [vmem:[%s748 + $0xa8] sm:%s741]
                  %835 = vst [vmem:[%s749 + $0xa8] sm:%s741] %v834
                  %v836 = vld [vmem:[%s748 + $0xac] sm:%s741]
                  %837 = vst [vmem:[%s749 + $0xac] sm:%s741] %v836
                  %v838 = vld [vmem:[%s748 + $0xb0] sm:%s741]
                  %839 = vst [vmem:[%s749 + $0xb0] sm:%s741] %v838
                  %v840 = vld [vmem:[%s748 + $0xb4] sm:%s741]
                  %841 = vst [vmem:[%s749 + $0xb4] sm:%s741] %v840
                  %v842 = vld [vmem:[%s748 + $0xb8] sm:%s741]
                  %843 = vst [vmem:[%s749 + $0xb8] sm:%s741] %v842
                  %v844 = vld [vmem:[%s748 + $0xbc] sm:%s741]
                  %845 = vst [vmem:[%s749 + $0xbc] sm:%s741] %v844
                  %v846 = vld [vmem:[%s748 + $0xc0] sm:%s741]
                  %847 = vst [vmem:[%s749 + $0xc0] sm:%s741] %v846
                  %v848 = vld [vmem:[%s748 + $0xc4] sm:%s741]
                  %849 = vst [vmem:[%s749 + $0xc4] sm:%s741] %v848
                  %v850 = vld [vmem:[%s748 + $0xc8] sm:%s741]
                  %851 = vst [vmem:[%s749 + $0xc8] sm:%s741] %v850
                  %v852 = vld [vmem:[%s748 + $0xcc] sm:%s741]
                  %853 = vst [vmem:[%s749 + $0xcc] sm:%s741] %v852
                  %v854 = vld [vmem:[%s748 + $0xd0] sm:%s741]
                  %855 = vst [vmem:[%s749 + $0xd0] sm:%s741] %v854
                  %v856 = vld [vmem:[%s748 + $0xd4] sm:%s741]
                  %857 = vst [vmem:[%s749 + $0xd4] sm:%s741] %v856
                  %v858 = vld [vmem:[%s748 + $0xd8] sm:%s741]
                  %859 = vst [vmem:[%s749 + $0xd8] sm:%s741] %v858
                  %v860 = vld [vmem:[%s748 + $0xdc] sm:%s741]
                  %861 = vst [vmem:[%s749 + $0xdc] sm:%s741] %v860
                  %v862 = vld [vmem:[%s748 + $0xe0] sm:%s741]
                  %863 = vst [vmem:[%s749 + $0xe0] sm:%s741] %v862
                  %v864 = vld [vmem:[%s748 + $0xe4] sm:%s741]
                  %865 = vst [vmem:[%s749 + $0xe4] sm:%s741] %v864
                  %v866 = vld [vmem:[%s748 + $0xe8] sm:%s741]
                  %867 = vst [vmem:[%s749 + $0xe8] sm:%s741] %v866
                  %v868 = vld [vmem:[%s748 + $0xec] sm:%s741]
                  %869 = vst [vmem:[%s749 + $0xec] sm:%s741] %v868
                  %v870 = vld [vmem:[%s748 + $0xf0] sm:%s741]
                  %871 = vst [vmem:[%s749 + $0xf0] sm:%s741] %v870
                  %v872 = vld [vmem:[%s748 + $0xf4] sm:%s741]
                  %873 = vst [vmem:[%s749 + $0xf4] sm:%s741] %v872
                  %v874 = vld [vmem:[%s748 + $0xf8] sm:%s741]
                  %875 = vst [vmem:[%s749 + $0xf8] sm:%s741] %v874
                  %v876 = vld [vmem:[%s748 + $0xfc] sm:%s741]
                  %877 = vst [vmem:[%s749 + $0xfc] sm:%s741] %v876
                  %v878 = vld [vmem:[%s748 + $0x100] sm:%s741]
                  %879 = vst [vmem:[%s749 + $0x100] sm:%s741] %v878
                  %v880 = vld [vmem:[%s748 + $0x104] sm:%s741]
                  %881 = vst [vmem:[%s749 + $0x104] sm:%s741] %v880
                  %v882 = vld [vmem:[%s748 + $0x108] sm:%s741]
                  %883 = vst [vmem:[%s749 + $0x108] sm:%s741] %v882
                  %v884 = vld [vmem:[%s748 + $0x10c] sm:%s741]
                  %885 = vst [vmem:[%s749 + $0x10c] sm:%s741] %v884
                  %v886 = vld [vmem:[%s748 + $0x110] sm:%s741]
                  %887 = vst [vmem:[%s749 + $0x110] sm:%s741] %v886
                  %v888 = vld [vmem:[%s748 + $0x114] sm:%s741]
                  %889 = vst [vmem:[%s749 + $0x114] sm:%s741] %v888
                  %v890 = vld [vmem:[%s748 + $0x118] sm:%s741]
                  %891 = vst [vmem:[%s749 + $0x118] sm:%s741] %v890
                  %v892 = vld [vmem:[%s748 + $0x11c] sm:%s741]
                  %893 = vst [vmem:[%s749 + $0x11c] sm:%s741] %v892
                  %v894 = vld [vmem:[%s748 + $0x240] sm:%s741]
                  %895 = vst [vmem:[%s749 + $0x120] sm:%s741] %v894
                  %v896 = vld [vmem:[%s748 + $0x244] sm:%s741]
                  %897 = vst [vmem:[%s749 + $0x124] sm:%s741] %v896
                  %v898 = vld [vmem:[%s748 + $0x248] sm:%s741]
                  %899 = vst [vmem:[%s749 + $0x128] sm:%s741] %v898
                  %v900 = vld [vmem:[%s748 + $0x24c] sm:%s741]
                  %901 = vst [vmem:[%s749 + $0x12c] sm:%s741] %v900
                  %v902 = vld [vmem:[%s748 + $0x250] sm:%s741]
                  %903 = vst [vmem:[%s749 + $0x130] sm:%s741] %v902
                  %v904 = vld [vmem:[%s748 + $0x254] sm:%s741]
                  %905 = vst [vmem:[%s749 + $0x134] sm:%s741] %v904
                  %v906 = vld [vmem:[%s748 + $0x258] sm:%s741]
                  %907 = vst [vmem:[%s749 + $0x138] sm:%s741] %v906
                  %v908 = vld [vmem:[%s748 + $0x25c] sm:%s741]
                  %909 = vst [vmem:[%s749 + $0x13c] sm:%s741] %v908
                  %v910 = vld [vmem:[%s748 + $0x260] sm:%s741]
                  %911 = vst [vmem:[%s749 + $0x140] sm:%s741] %v910
                  %v912 = vld [vmem:[%s748 + $0x264] sm:%s741]
                  %913 = vst [vmem:[%s749 + $0x144] sm:%s741] %v912
                  %v914 = vld [vmem:[%s748 + $0x268] sm:%s741]
                  %915 = vst [vmem:[%s749 + $0x148] sm:%s741] %v914
                  %v916 = vld [vmem:[%s748 + $0x26c] sm:%s741]
                  %917 = vst [vmem:[%s749 + $0x14c] sm:%s741] %v916
                  %v918 = vld [vmem:[%s748 + $0x270] sm:%s741]
                  %919 = vst [vmem:[%s749 + $0x150] sm:%s741] %v918
                  %v920 = vld [vmem:[%s748 + $0x274] sm:%s741]
                  %921 = vst [vmem:[%s749 + $0x154] sm:%s741] %v920
                  %v922 = vld [vmem:[%s748 + $0x278] sm:%s741]
                  %923 = vst [vmem:[%s749 + $0x158] sm:%s741] %v922
                  %v924 = vld [vmem:[%s748 + $0x27c] sm:%s741]
                  %925 = vst [vmem:[%s749 + $0x15c] sm:%s741] %v924
                  %v926 = vld [vmem:[%s748 + $0x280] sm:%s741]
                  %927 = vst [vmem:[%s749 + $0x160] sm:%s741] %v926
                  %v928 = vld [vmem:[%s748 + $0x284] sm:%s741]
                  %929 = vst [vmem:[%s749 + $0x164] sm:%s741] %v928
                  %v930 = vld [vmem:[%s748 + $0x288] sm:%s741]
                  %931 = vst [vmem:[%s749 + $0x168] sm:%s741] %v930
                  %v932 = vld [vmem:[%s748 + $0x28c] sm:%s741]
                  %933 = vst [vmem:[%s749 + $0x16c] sm:%s741] %v932
                  %v934 = vld [vmem:[%s748 + $0x290] sm:%s741]
                  %935 = vst [vmem:[%s749 + $0x170] sm:%s741] %v934
                  %v936 = vld [vmem:[%s748 + $0x294] sm:%s741]
                  %937 = vst [vmem:[%s749 + $0x174] sm:%s741] %v936
                  %v938 = vld [vmem:[%s748 + $0x298] sm:%s741]
                  %939 = vst [vmem:[%s749 + $0x178] sm:%s741] %v938
                  %v940 = vld [vmem:[%s748 + $0x29c] sm:%s741]
                  %941 = vst [vmem:[%s749 + $0x17c] sm:%s741] %v940
                  %v942 = vld [vmem:[%s748 + $0x2a0] sm:%s741]
                  %943 = vst [vmem:[%s749 + $0x180] sm:%s741] %v942
                  %v944 = vld [vmem:[%s748 + $0x2a4] sm:%s741]
                  %945 = vst [vmem:[%s749 + $0x184] sm:%s741] %v944
                  %v946 = vld [vmem:[%s748 + $0x2a8] sm:%s741]
                  %947 = vst [vmem:[%s749 + $0x188] sm:%s741] %v946
                  %v948 = vld [vmem:[%s748 + $0x2ac] sm:%s741]
                  %949 = vst [vmem:[%s749 + $0x18c] sm:%s741] %v948
                  %v950 = vld [vmem:[%s748 + $0x2b0] sm:%s741]
                  %951 = vst [vmem:[%s749 + $0x190] sm:%s741] %v950
                  %v952 = vld [vmem:[%s748 + $0x2b4] sm:%s741]
                  %953 = vst [vmem:[%s749 + $0x194] sm:%s741] %v952
                  %v954 = vld [vmem:[%s748 + $0x2b8] sm:%s741]
                  %955 = vst [vmem:[%s749 + $0x198] sm:%s741] %v954
                  %v956 = vld [vmem:[%s748 + $0x2bc] sm:%s741]
                  %957 = vst [vmem:[%s749 + $0x19c] sm:%s741] %v956
                  %v958 = vld [vmem:[%s748 + $0x2c0] sm:%s741]
                  %959 = vst [vmem:[%s749 + $0x1a0] sm:%s741] %v958
                  %v960 = vld [vmem:[%s748 + $0x2c4] sm:%s741]
                  %961 = vst [vmem:[%s749 + $0x1a4] sm:%s741] %v960
                  %v962 = vld [vmem:[%s748 + $0x2c8] sm:%s741]
                  %963 = vst [vmem:[%s749 + $0x1a8] sm:%s741] %v962
                  %v964 = vld [vmem:[%s748 + $0x2cc] sm:%s741]
                  %965 = vst [vmem:[%s749 + $0x1ac] sm:%s741] %v964
                  %v966 = vld [vmem:[%s748 + $0x2d0] sm:%s741]
                  %967 = vst [vmem:[%s749 + $0x1b0] sm:%s741] %v966
                  %v968 = vld [vmem:[%s748 + $0x2d4] sm:%s741]
                  %969 = vst [vmem:[%s749 + $0x1b4] sm:%s741] %v968
                  %v970 = vld [vmem:[%s748 + $0x2d8] sm:%s741]
                  %971 = vst [vmem:[%s749 + $0x1b8] sm:%s741] %v970
                  %v972 = vld [vmem:[%s748 + $0x2dc] sm:%s741]
                  %973 = vst [vmem:[%s749 + $0x1bc] sm:%s741] %v972
                  %v974 = vld [vmem:[%s748 + $0x2e0] sm:%s741]
                  %975 = vst [vmem:[%s749 + $0x1c0] sm:%s741] %v974
                  %v976 = vld [vmem:[%s748 + $0x2e4] sm:%s741]
                  %977 = vst [vmem:[%s749 + $0x1c4] sm:%s741] %v976
                  %v978 = vld [vmem:[%s748 + $0x2e8] sm:%s741]
                  %979 = vst [vmem:[%s749 + $0x1c8] sm:%s741] %v978
                  %v980 = vld [vmem:[%s748 + $0x2ec] sm:%s741]
                  %981 = vst [vmem:[%s749 + $0x1cc] sm:%s741] %v980
                  %v982 = vld [vmem:[%s748 + $0x2f0] sm:%s741]
                  %983 = vst [vmem:[%s749 + $0x1d0] sm:%s741] %v982
                  %v984 = vld [vmem:[%s748 + $0x2f4] sm:%s741]
                  %985 = vst [vmem:[%s749 + $0x1d4] sm:%s741] %v984
                  %v986 = vld [vmem:[%s748 + $0x2f8] sm:%s741]
                  %987 = vst [vmem:[%s749 + $0x1d8] sm:%s741] %v986
                  %v988 = vld [vmem:[%s748 + $0x2fc] sm:%s741]
                  %989 = vst [vmem:[%s749 + $0x1dc] sm:%s741] %v988
                  %v990 = vld [vmem:[%s748 + $0x300] sm:%s741]
                  %991 = vst [vmem:[%s749 + $0x1e0] sm:%s741] %v990
                  %v992 = vld [vmem:[%s748 + $0x304] sm:%s741]
                  %993 = vst [vmem:[%s749 + $0x1e4] sm:%s741] %v992
                  %v994 = vld [vmem:[%s748 + $0x308] sm:%s741]
                  %995 = vst [vmem:[%s749 + $0x1e8] sm:%s741] %v994
                  %v996 = vld [vmem:[%s748 + $0x30c] sm:%s741]
                  %997 = vst [vmem:[%s749 + $0x1ec] sm:%s741] %v996
                  %v998 = vld [vmem:[%s748 + $0x310] sm:%s741]
                  %999 = vst [vmem:[%s749 + $0x1f0] sm:%s741] %v998
                  %v1000 = vld [vmem:[%s748 + $0x314] sm:%s741]
                  %1001 = vst [vmem:[%s749 + $0x1f4] sm:%s741] %v1000
                  %v1002 = vld [vmem:[%s748 + $0x318] sm:%s741]
                  %1003 = vst [vmem:[%s749 + $0x1f8] sm:%s741] %v1002
                  %v1004 = vld [vmem:[%s748 + $0x31c] sm:%s741]
                  %1005 = vst [vmem:[%s749 + $0x1fc] sm:%s741] %v1004
                  %v1006 = vld [vmem:[%s748 + $0x320] sm:%s741]
                  %1007 = vst [vmem:[%s749 + $0x200] sm:%s741] %v1006
                  %v1008 = vld [vmem:[%s748 + $0x324] sm:%s741]
                  %1009 = vst [vmem:[%s749 + $0x204] sm:%s741] %v1008
                  %v1010 = vld [vmem:[%s748 + $0x328] sm:%s741]
                  %1011 = vst [vmem:[%s749 + $0x208] sm:%s741] %v1010
                  %v1012 = vld [vmem:[%s748 + $0x32c] sm:%s741]
                  %1013 = vst [vmem:[%s749 + $0x20c] sm:%s741] %v1012
                  %v1014 = vld [vmem:[%s748 + $0x330] sm:%s741]
                  %1015 = vst [vmem:[%s749 + $0x210] sm:%s741] %v1014
                  %v1016 = vld [vmem:[%s748 + $0x334] sm:%s741]
                  %1017 = vst [vmem:[%s749 + $0x214] sm:%s741] %v1016
                  %v1018 = vld [vmem:[%s748 + $0x338] sm:%s741]
                  %1019 = vst [vmem:[%s749 + $0x218] sm:%s741] %v1018
                  %v1020 = vld [vmem:[%s748 + $0x33c] sm:%s741]
                  %1021 = vst [vmem:[%s749 + $0x21c] sm:%s741] %v1020
                  %v1022 = vld [vmem:[%s748 + $0x340] sm:%s741]
                  %1023 = vst [vmem:[%s749 + $0x220] sm:%s741] %v1022
                  %v1024 = vld [vmem:[%s748 + $0x344] sm:%s741]
                  %1025 = vst [vmem:[%s749 + $0x224] sm:%s741] %v1024
                  %v1026 = vld [vmem:[%s748 + $0x348] sm:%s741]
                  %1027 = vst [vmem:[%s749 + $0x228] sm:%s741] %v1026
                  %v1028 = vld [vmem:[%s748 + $0x34c] sm:%s741]
                  %1029 = vst [vmem:[%s749 + $0x22c] sm:%s741] %v1028
                  %v1030 = vld [vmem:[%s748 + $0x350] sm:%s741]
                  %1031 = vst [vmem:[%s749 + $0x230] sm:%s741] %v1030
                  %v1032 = vld [vmem:[%s748 + $0x354] sm:%s741]
                  %1033 = vst [vmem:[%s749 + $0x234] sm:%s741] %v1032
                  %v1034 = vld [vmem:[%s748 + $0x358] sm:%s741]
                  %1035 = vst [vmem:[%s749 + $0x238] sm:%s741] %v1034
                  %v1036 = vld [vmem:[%s748 + $0x35c] sm:%s741]
                  %1037 = vst [vmem:[%s749 + $0x23c] sm:%s741] %v1036
                  %v1038 = vld [vmem:[%s748 + $0x480] sm:%s741]
                  %1039 = vst [vmem:[%s749 + $0x240] sm:%s741] %v1038
                  %v1040 = vld [vmem:[%s748 + $0x484] sm:%s741]
                  %1041 = vst [vmem:[%s749 + $0x244] sm:%s741] %v1040
                  %v1042 = vld [vmem:[%s748 + $0x488] sm:%s741]
                  %1043 = vst [vmem:[%s749 + $0x248] sm:%s741] %v1042
                  %v1044 = vld [vmem:[%s748 + $0x48c] sm:%s741]
                  %1045 = vst [vmem:[%s749 + $0x24c] sm:%s741] %v1044
                  %v1046 = vld [vmem:[%s748 + $0x490] sm:%s741]
                  %1047 = vst [vmem:[%s749 + $0x250] sm:%s741] %v1046
                  %v1048 = vld [vmem:[%s748 + $0x494] sm:%s741]
                  %1049 = vst [vmem:[%s749 + $0x254] sm:%s741] %v1048
                  %v1050 = vld [vmem:[%s748 + $0x498] sm:%s741]
                  %1051 = vst [vmem:[%s749 + $0x258] sm:%s741] %v1050
                  %v1052 = vld [vmem:[%s748 + $0x49c] sm:%s741]
                  %1053 = vst [vmem:[%s749 + $0x25c] sm:%s741] %v1052
                  %v1054 = vld [vmem:[%s748 + $0x4a0] sm:%s741]
                  %1055 = vst [vmem:[%s749 + $0x260] sm:%s741] %v1054
                  %v1056 = vld [vmem:[%s748 + $0x4a4] sm:%s741]
                  %1057 = vst [vmem:[%s749 + $0x264] sm:%s741] %v1056
                  %v1058 = vld [vmem:[%s748 + $0x4a8] sm:%s741]
                  %1059 = vst [vmem:[%s749 + $0x268] sm:%s741] %v1058
                  %v1060 = vld [vmem:[%s748 + $0x4ac] sm:%s741]
                  %1061 = vst [vmem:[%s749 + $0x26c] sm:%s741] %v1060
                  %v1062 = vld [vmem:[%s748 + $0x4b0] sm:%s741]
                  %1063 = vst [vmem:[%s749 + $0x270] sm:%s741] %v1062
                  %v1064 = vld [vmem:[%s748 + $0x4b4] sm:%s741]
                  %1065 = vst [vmem:[%s749 + $0x274] sm:%s741] %v1064
                  %v1066 = vld [vmem:[%s748 + $0x4b8] sm:%s741]
                  %1067 = vst [vmem:[%s749 + $0x278] sm:%s741] %v1066
                  %v1068 = vld [vmem:[%s748 + $0x4bc] sm:%s741]
                  %1069 = vst [vmem:[%s749 + $0x27c] sm:%s741] %v1068
                  %v1070 = vld [vmem:[%s748 + $0x4c0] sm:%s741]
                  %1071 = vst [vmem:[%s749 + $0x280] sm:%s741] %v1070
                  %v1072 = vld [vmem:[%s748 + $0x4c4] sm:%s741]
                  %1073 = vst [vmem:[%s749 + $0x284] sm:%s741] %v1072
                  %v1074 = vld [vmem:[%s748 + $0x4c8] sm:%s741]
                  %1075 = vst [vmem:[%s749 + $0x288] sm:%s741] %v1074
                  %v1076 = vld [vmem:[%s748 + $0x4cc] sm:%s741]
                  %1077 = vst [vmem:[%s749 + $0x28c] sm:%s741] %v1076
                  %v1078 = vld [vmem:[%s748 + $0x4d0] sm:%s741]
                  %1079 = vst [vmem:[%s749 + $0x290] sm:%s741] %v1078
                  %v1080 = vld [vmem:[%s748 + $0x4d4] sm:%s741]
                  %1081 = vst [vmem:[%s749 + $0x294] sm:%s741] %v1080
                  %v1082 = vld [vmem:[%s748 + $0x4d8] sm:%s741]
                  %1083 = vst [vmem:[%s749 + $0x298] sm:%s741] %v1082
                  %v1084 = vld [vmem:[%s748 + $0x4dc] sm:%s741]
                  %1085 = vst [vmem:[%s749 + $0x29c] sm:%s741] %v1084
                  %v1086 = vld [vmem:[%s748 + $0x4e0] sm:%s741]
                  %1087 = vst [vmem:[%s749 + $0x2a0] sm:%s741] %v1086
                  %v1088 = vld [vmem:[%s748 + $0x4e4] sm:%s741]
                  %1089 = vst [vmem:[%s749 + $0x2a4] sm:%s741] %v1088
                  %v1090 = vld [vmem:[%s748 + $0x4e8] sm:%s741]
                  %1091 = vst [vmem:[%s749 + $0x2a8] sm:%s741] %v1090
                  %v1092 = vld [vmem:[%s748 + $0x4ec] sm:%s741]
                  %1093 = vst [vmem:[%s749 + $0x2ac] sm:%s741] %v1092
                  %v1094 = vld [vmem:[%s748 + $0x4f0] sm:%s741]
                  %1095 = vst [vmem:[%s749 + $0x2b0] sm:%s741] %v1094
                  %v1096 = vld [vmem:[%s748 + $0x4f4] sm:%s741]
                  %1097 = vst [vmem:[%s749 + $0x2b4] sm:%s741] %v1096
                  %v1098 = vld [vmem:[%s748 + $0x4f8] sm:%s741]
                  %1099 = vst [vmem:[%s749 + $0x2b8] sm:%s741] %v1098
                  %v1100 = vld [vmem:[%s748 + $0x4fc] sm:%s741]
                  %1101 = vst [vmem:[%s749 + $0x2bc] sm:%s741] %v1100
                  %v1102 = vld [vmem:[%s748 + $0x500] sm:%s741]
                  %1103 = vst [vmem:[%s749 + $0x2c0] sm:%s741] %v1102
                  %v1104 = vld [vmem:[%s748 + $0x504] sm:%s741]
                  %1105 = vst [vmem:[%s749 + $0x2c4] sm:%s741] %v1104
                  %v1106 = vld [vmem:[%s748 + $0x508] sm:%s741]
                  %1107 = vst [vmem:[%s749 + $0x2c8] sm:%s741] %v1106
                  %v1108 = vld [vmem:[%s748 + $0x50c] sm:%s741]
                  %1109 = vst [vmem:[%s749 + $0x2cc] sm:%s741] %v1108
                  %v1110 = vld [vmem:[%s748 + $0x510] sm:%s741]
                  %1111 = vst [vmem:[%s749 + $0x2d0] sm:%s741] %v1110
                  %v1112 = vld [vmem:[%s748 + $0x514] sm:%s741]
                  %1113 = vst [vmem:[%s749 + $0x2d4] sm:%s741] %v1112
                  %v1114 = vld [vmem:[%s748 + $0x518] sm:%s741]
                  %1115 = vst [vmem:[%s749 + $0x2d8] sm:%s741] %v1114
                  %v1116 = vld [vmem:[%s748 + $0x51c] sm:%s741]
                  %1117 = vst [vmem:[%s749 + $0x2dc] sm:%s741] %v1116
                  %v1118 = vld [vmem:[%s748 + $0x520] sm:%s741]
                  %1119 = vst [vmem:[%s749 + $0x2e0] sm:%s741] %v1118
                  %v1120 = vld [vmem:[%s748 + $0x524] sm:%s741]
                  %1121 = vst [vmem:[%s749 + $0x2e4] sm:%s741] %v1120
                  %v1122 = vld [vmem:[%s748 + $0x528] sm:%s741]
                  %1123 = vst [vmem:[%s749 + $0x2e8] sm:%s741] %v1122
                  %v1124 = vld [vmem:[%s748 + $0x52c] sm:%s741]
                  %1125 = vst [vmem:[%s749 + $0x2ec] sm:%s741] %v1124
                  %v1126 = vld [vmem:[%s748 + $0x530] sm:%s741]
                  %1127 = vst [vmem:[%s749 + $0x2f0] sm:%s741] %v1126
                  %v1128 = vld [vmem:[%s748 + $0x534] sm:%s741]
                  %1129 = vst [vmem:[%s749 + $0x2f4] sm:%s741] %v1128
                  %v1130 = vld [vmem:[%s748 + $0x538] sm:%s741]
                  %1131 = vst [vmem:[%s749 + $0x2f8] sm:%s741] %v1130
                  %v1132 = vld [vmem:[%s748 + $0x53c] sm:%s741]
                  %1133 = vst [vmem:[%s749 + $0x2fc] sm:%s741] %v1132
                  %v1134 = vld [vmem:[%s748 + $0x540] sm:%s741]
                  %1135 = vst [vmem:[%s749 + $0x300] sm:%s741] %v1134
                  %v1136 = vld [vmem:[%s748 + $0x544] sm:%s741]
                  %1137 = vst [vmem:[%s749 + $0x304] sm:%s741] %v1136
                  %v1138 = vld [vmem:[%s748 + $0x548] sm:%s741]
                  %1139 = vst [vmem:[%s749 + $0x308] sm:%s741] %v1138
                  %v1140 = vld [vmem:[%s748 + $0x54c] sm:%s741]
                  %1141 = vst [vmem:[%s749 + $0x30c] sm:%s741] %v1140
                  %v1142 = vld [vmem:[%s748 + $0x550] sm:%s741]
                  %1143 = vst [vmem:[%s749 + $0x310] sm:%s741] %v1142
                  %v1144 = vld [vmem:[%s748 + $0x554] sm:%s741]
                  %1145 = vst [vmem:[%s749 + $0x314] sm:%s741] %v1144
                  %v1146 = vld [vmem:[%s748 + $0x558] sm:%s741]
                  %1147 = vst [vmem:[%s749 + $0x318] sm:%s741] %v1146
                  %v1148 = vld [vmem:[%s748 + $0x55c] sm:%s741]
                  %1149 = vst [vmem:[%s749 + $0x31c] sm:%s741] %v1148
                  %v1150 = vld [vmem:[%s748 + $0x560] sm:%s741]
                  %1151 = vst [vmem:[%s749 + $0x320] sm:%s741] %v1150
                  %v1152 = vld [vmem:[%s748 + $0x564] sm:%s741]
                  %1153 = vst [vmem:[%s749 + $0x324] sm:%s741] %v1152
                  %v1154 = vld [vmem:[%s748 + $0x568] sm:%s741]
                  %1155 = vst [vmem:[%s749 + $0x328] sm:%s741] %v1154
                  %v1156 = vld [vmem:[%s748 + $0x56c] sm:%s741]
                  %1157 = vst [vmem:[%s749 + $0x32c] sm:%s741] %v1156
                  %v1158 = vld [vmem:[%s748 + $0x570] sm:%s741]
                  %1159 = vst [vmem:[%s749 + $0x330] sm:%s741] %v1158
                  %v1160 = vld [vmem:[%s748 + $0x574] sm:%s741]
                  %1161 = vst [vmem:[%s749 + $0x334] sm:%s741] %v1160
                  %v1162 = vld [vmem:[%s748 + $0x578] sm:%s741]
                  %1163 = vst [vmem:[%s749 + $0x338] sm:%s741] %v1162
                  %v1164 = vld [vmem:[%s748 + $0x57c] sm:%s741]
                  %1165 = vst [vmem:[%s749 + $0x33c] sm:%s741] %v1164
                  %v1166 = vld [vmem:[%s748 + $0x580] sm:%s741]
                  %1167 = vst [vmem:[%s749 + $0x340] sm:%s741] %v1166
                  %v1168 = vld [vmem:[%s748 + $0x584] sm:%s741]
                  %1169 = vst [vmem:[%s749 + $0x344] sm:%s741] %v1168
                  %v1170 = vld [vmem:[%s748 + $0x588] sm:%s741]
                  %1171 = vst [vmem:[%s749 + $0x348] sm:%s741] %v1170
                  %v1172 = vld [vmem:[%s748 + $0x58c] sm:%s741]
                  %1173 = vst [vmem:[%s749 + $0x34c] sm:%s741] %v1172
                  %v1174 = vld [vmem:[%s748 + $0x590] sm:%s741]
                  %1175 = vst [vmem:[%s749 + $0x350] sm:%s741] %v1174
                  %v1176 = vld [vmem:[%s748 + $0x594] sm:%s741]
                  %1177 = vst [vmem:[%s749 + $0x354] sm:%s741] %v1176
                  %v1178 = vld [vmem:[%s748 + $0x598] sm:%s741]
                  %1179 = vst [vmem:[%s749 + $0x358] sm:%s741] %v1178
                  %v1180 = vld [vmem:[%s748 + $0x59c] sm:%s741]
                  %1181 = vst [vmem:[%s749 + $0x35c] sm:%s741] %v1180
                  %v1182 = vld [vmem:[%s748 + $0x6c0] sm:%s741]
                  %1183 = vst [vmem:[%s749 + $0x360] sm:%s741] %v1182
                  %v1184 = vld [vmem:[%s748 + $0x6c4] sm:%s741]
                  %1185 = vst [vmem:[%s749 + $0x364] sm:%s741] %v1184
                  %v1186 = vld [vmem:[%s748 + $0x6c8] sm:%s741]
                  %1187 = vst [vmem:[%s749 + $0x368] sm:%s741] %v1186
                  %v1188 = vld [vmem:[%s748 + $0x6cc] sm:%s741]
                  %1189 = vst [vmem:[%s749 + $0x36c] sm:%s741] %v1188
                  %v1190 = vld [vmem:[%s748 + $0x6d0] sm:%s741]
                  %1191 = vst [vmem:[%s749 + $0x370] sm:%s741] %v1190
                  %v1192 = vld [vmem:[%s748 + $0x6d4] sm:%s741]
                  %1193 = vst [vmem:[%s749 + $0x374] sm:%s741] %v1192
                  %v1194 = vld [vmem:[%s748 + $0x6d8] sm:%s741]
                  %1195 = vst [vmem:[%s749 + $0x378] sm:%s741] %v1194
                  %v1196 = vld [vmem:[%s748 + $0x6dc] sm:%s741]
                  %1197 = vst [vmem:[%s749 + $0x37c] sm:%s741] %v1196
                  %v1198 = vld [vmem:[%s748 + $0x6e0] sm:%s741]
                  %1199 = vst [vmem:[%s749 + $0x380] sm:%s741] %v1198
                  %v1200 = vld [vmem:[%s748 + $0x6e4] sm:%s741]
                  %1201 = vst [vmem:[%s749 + $0x384] sm:%s741] %v1200
                  %v1202 = vld [vmem:[%s748 + $0x6e8] sm:%s741]
                  %1203 = vst [vmem:[%s749 + $0x388] sm:%s741] %v1202
                  %v1204 = vld [vmem:[%s748 + $0x6ec] sm:%s741]
                  %1205 = vst [vmem:[%s749 + $0x38c] sm:%s741] %v1204
                  %v1206 = vld [vmem:[%s748 + $0x6f0] sm:%s741]
                  %1207 = vst [vmem:[%s749 + $0x390] sm:%s741] %v1206
                  %v1208 = vld [vmem:[%s748 + $0x6f4] sm:%s741]
                  %1209 = vst [vmem:[%s749 + $0x394] sm:%s741] %v1208
                  %v1210 = vld [vmem:[%s748 + $0x6f8] sm:%s741]
                  %1211 = vst [vmem:[%s749 + $0x398] sm:%s741] %v1210
                  %v1212 = vld [vmem:[%s748 + $0x6fc] sm:%s741]
                  %1213 = vst [vmem:[%s749 + $0x39c] sm:%s741] %v1212
                  %v1214 = vld [vmem:[%s748 + $0x700] sm:%s741]
                  %1215 = vst [vmem:[%s749 + $0x3a0] sm:%s741] %v1214
                  %v1216 = vld [vmem:[%s748 + $0x704] sm:%s741]
                  %1217 = vst [vmem:[%s749 + $0x3a4] sm:%s741] %v1216
                  %v1218 = vld [vmem:[%s748 + $0x708] sm:%s741]
                  %1219 = vst [vmem:[%s749 + $0x3a8] sm:%s741] %v1218
                  %v1220 = vld [vmem:[%s748 + $0x70c] sm:%s741]
                  %1221 = vst [vmem:[%s749 + $0x3ac] sm:%s741] %v1220
                  %v1222 = vld [vmem:[%s748 + $0x710] sm:%s741]
                  %1223 = vst [vmem:[%s749 + $0x3b0] sm:%s741] %v1222
                  %v1224 = vld [vmem:[%s748 + $0x714] sm:%s741]
                  %1225 = vst [vmem:[%s749 + $0x3b4] sm:%s741] %v1224
                  %v1226 = vld [vmem:[%s748 + $0x718] sm:%s741]
                  %1227 = vst [vmem:[%s749 + $0x3b8] sm:%s741] %v1226
                  %v1228 = vld [vmem:[%s748 + $0x71c] sm:%s741]
                  %1229 = vst [vmem:[%s749 + $0x3bc] sm:%s741] %v1228
                  %v1230 = vld [vmem:[%s748 + $0x720] sm:%s741]
                  %1231 = vst [vmem:[%s749 + $0x3c0] sm:%s741] %v1230
                  %v1232 = vld [vmem:[%s748 + $0x724] sm:%s741]
                  %1233 = vst [vmem:[%s749 + $0x3c4] sm:%s741] %v1232
                  %v1234 = vld [vmem:[%s748 + $0x728] sm:%s741]
                  %1235 = vst [vmem:[%s749 + $0x3c8] sm:%s741] %v1234
                  %v1236 = vld [vmem:[%s748 + $0x72c] sm:%s741]
                  %1237 = vst [vmem:[%s749 + $0x3cc] sm:%s741] %v1236
                  %v1238 = vld [vmem:[%s748 + $0x730] sm:%s741]
                  %1239 = vst [vmem:[%s749 + $0x3d0] sm:%s741] %v1238
                  %v1240 = vld [vmem:[%s748 + $0x734] sm:%s741]
                  %1241 = vst [vmem:[%s749 + $0x3d4] sm:%s741] %v1240
                  %v1242 = vld [vmem:[%s748 + $0x738] sm:%s741]
                  %1243 = vst [vmem:[%s749 + $0x3d8] sm:%s741] %v1242
                  %v1244 = vld [vmem:[%s748 + $0x73c] sm:%s741]
                  %1245 = vst [vmem:[%s749 + $0x3dc] sm:%s741] %v1244
                  %v1246 = vld [vmem:[%s748 + $0x740] sm:%s741]
                  %1247 = vst [vmem:[%s749 + $0x3e0] sm:%s741] %v1246
                  %v1248 = vld [vmem:[%s748 + $0x744] sm:%s741]
                  %1249 = vst [vmem:[%s749 + $0x3e4] sm:%s741] %v1248
                  %v1250 = vld [vmem:[%s748 + $0x748] sm:%s741]
                  %1251 = vst [vmem:[%s749 + $0x3e8] sm:%s741] %v1250
                  %v1252 = vld [vmem:[%s748 + $0x74c] sm:%s741]
                  %1253 = vst [vmem:[%s749 + $0x3ec] sm:%s741] %v1252
                  %v1254 = vld [vmem:[%s748 + $0x750] sm:%s741]
                  %1255 = vst [vmem:[%s749 + $0x3f0] sm:%s741] %v1254
                  %v1256 = vld [vmem:[%s748 + $0x754] sm:%s741]
                  %1257 = vst [vmem:[%s749 + $0x3f4] sm:%s741] %v1256
                  %v1258 = vld [vmem:[%s748 + $0x758] sm:%s741]
                  %1259 = vst [vmem:[%s749 + $0x3f8] sm:%s741] %v1258
                  %v1260 = vld [vmem:[%s748 + $0x75c] sm:%s741]
                  %1261 = vst [vmem:[%s749 + $0x3fc] sm:%s741] %v1260
                  %v1262 = vld [vmem:[%s748 + $0x760] sm:%s741]
                  %1263 = vst [vmem:[%s749 + $0x400] sm:%s741] %v1262
                  %v1264 = vld [vmem:[%s748 + $0x764] sm:%s741]
                  %1265 = vst [vmem:[%s749 + $0x404] sm:%s741] %v1264
                  %v1266 = vld [vmem:[%s748 + $0x768] sm:%s741]
                  %1267 = vst [vmem:[%s749 + $0x408] sm:%s741] %v1266
                  %v1268 = vld [vmem:[%s748 + $0x76c] sm:%s741]
                  %1269 = vst [vmem:[%s749 + $0x40c] sm:%s741] %v1268
                  %v1270 = vld [vmem:[%s748 + $0x770] sm:%s741]
                  %1271 = vst [vmem:[%s749 + $0x410] sm:%s741] %v1270
                  %v1272 = vld [vmem:[%s748 + $0x774] sm:%s741]
                  %1273 = vst [vmem:[%s749 + $0x414] sm:%s741] %v1272
                  %v1274 = vld [vmem:[%s748 + $0x778] sm:%s741]
                  %1275 = vst [vmem:[%s749 + $0x418] sm:%s741] %v1274
                  %v1276 = vld [vmem:[%s748 + $0x77c] sm:%s741]
                  %1277 = vst [vmem:[%s749 + $0x41c] sm:%s741] %v1276
                  %v1278 = vld [vmem:[%s748 + $0x780] sm:%s741]
                  %1279 = vst [vmem:[%s749 + $0x420] sm:%s741] %v1278
                  %v1280 = vld [vmem:[%s748 + $0x784] sm:%s741]
                  %1281 = vst [vmem:[%s749 + $0x424] sm:%s741] %v1280
                  %v1282 = vld [vmem:[%s748 + $0x788] sm:%s741]
                  %1283 = vst [vmem:[%s749 + $0x428] sm:%s741] %v1282
                  %v1284 = vld [vmem:[%s748 + $0x78c] sm:%s741]
                  %1285 = vst [vmem:[%s749 + $0x42c] sm:%s741] %v1284
                  %v1286 = vld [vmem:[%s748 + $0x790] sm:%s741]
                  %1287 = vst [vmem:[%s749 + $0x430] sm:%s741] %v1286
                  %v1288 = vld [vmem:[%s748 + $0x794] sm:%s741]
                  %1289 = vst [vmem:[%s749 + $0x434] sm:%s741] %v1288
                  %v1290 = vld [vmem:[%s748 + $0x798] sm:%s741]
                  %1291 = vst [vmem:[%s749 + $0x438] sm:%s741] %v1290
                  %v1292 = vld [vmem:[%s748 + $0x79c] sm:%s741]
                  %1293 = vst [vmem:[%s749 + $0x43c] sm:%s741] %v1292
                  %v1294 = vld [vmem:[%s748 + $0x7a0] sm:%s741]
                  %1295 = vst [vmem:[%s749 + $0x440] sm:%s741] %v1294
                  %v1296 = vld [vmem:[%s748 + $0x7a4] sm:%s741]
                  %1297 = vst [vmem:[%s749 + $0x444] sm:%s741] %v1296
                  %v1298 = vld [vmem:[%s748 + $0x7a8] sm:%s741]
                  %1299 = vst [vmem:[%s749 + $0x448] sm:%s741] %v1298
                  %v1300 = vld [vmem:[%s748 + $0x7ac] sm:%s741]
                  %1301 = vst [vmem:[%s749 + $0x44c] sm:%s741] %v1300
                  %v1302 = vld [vmem:[%s748 + $0x7b0] sm:%s741]
                  %1303 = vst [vmem:[%s749 + $0x450] sm:%s741] %v1302
                  %v1304 = vld [vmem:[%s748 + $0x7b4] sm:%s741]
                  %1305 = vst [vmem:[%s749 + $0x454] sm:%s741] %v1304
                  %v1306 = vld [vmem:[%s748 + $0x7b8] sm:%s741]
                  %1307 = vst [vmem:[%s749 + $0x458] sm:%s741] %v1306
                  %v1308 = vld [vmem:[%s748 + $0x7bc] sm:%s741]
                  %1309 = vst [vmem:[%s749 + $0x45c] sm:%s741] %v1308
                  %v1310 = vld [vmem:[%s748 + $0x7c0] sm:%s741]
                  %1311 = vst [vmem:[%s749 + $0x460] sm:%s741] %v1310
                  %v1312 = vld [vmem:[%s748 + $0x7c4] sm:%s741]
                  %1313 = vst [vmem:[%s749 + $0x464] sm:%s741] %v1312
                  %v1314 = vld [vmem:[%s748 + $0x7c8] sm:%s741]
                  %1315 = vst [vmem:[%s749 + $0x468] sm:%s741] %v1314
                  %v1316 = vld [vmem:[%s748 + $0x7cc] sm:%s741]
                  %1317 = vst [vmem:[%s749 + $0x46c] sm:%s741] %v1316
                  %v1318 = vld [vmem:[%s748 + $0x7d0] sm:%s741]
                  %1319 = vst [vmem:[%s749 + $0x470] sm:%s741] %v1318
                  %v1320 = vld [vmem:[%s748 + $0x7d4] sm:%s741]
                  %1321 = vst [vmem:[%s749 + $0x474] sm:%s741] %v1320
                  %v1322 = vld [vmem:[%s748 + $0x7d8] sm:%s741]
                  %1323 = vst [vmem:[%s749 + $0x478] sm:%s741] %v1322
                  %v1324 = vld [vmem:[%s748 + $0x7dc] sm:%s741]
                  %1325 = vst [vmem:[%s749 + $0x47c] sm:%s741] %v1324
                $region63: #{mlmodel_cnn_forward.3} parent=50 // loop_footer
                  %s747 = sadd.s32 1, %s743
                $region64: #{mlmodel_cnn_forward.3} parent=50 // loop_footer_branch
                  %742 = sbr.rel target = $region60
                $region65: #{mlmodel_cnn_forward.3} parent=50 // loop_exit
                  _
              $region51: #{mlmodel_cnn_forward.3} parent=35 // pred_fallthru
                _
            $region36: #{mlmodel_cnn_forward.3} parent=31 // pred_fallthru
              _
            // Predicated region
            $region37: #{mlmodel_cnn_forward.3} parent=31 // pred_check
              _
            $region38: #{mlmodel_cnn_forward.3} parent=31 // pred_check_branch
              %143 = sbr.rel (0) target = $region40
            $region39: #{mlmodel_cnn_forward.3} parent=31 // pred_region
              %s145 = ssub.s32 16, 1
              loop: start=0, step=1, limit=1
              $region41: #{mlmodel_cnn_forward.3} parent=39 // loop_pre_header
                _
              $region42: #{mlmodel_cnn_forward.3} parent=39 // loop_header
                %s147 = sphi 0, %s151
                %p148 = scmp.ge.s32.totalorder %s147, 1
                %s152 = sphi %s137, %s137
                %s153 = sphi %s134, %s134
              $region43: #{mlmodel_cnn_forward.3} parent=39 // loop_header_branch
                %150 = sbr.rel (%p148) target = $region47
              $region44: #{mlmodel_cnn_forward.3} parent=39 // loop_body
                %v154 = vld [vmem:[%s152] sm:%s145]
                %155 = vst [vmem:[%s153] sm:%s145] %v154
                %v156 = vld [vmem:[%s152 + $0x4] sm:%s145]
                %157 = vst [vmem:[%s153 + $0x4] sm:%s145] %v156
                %v158 = vld [vmem:[%s152 + $0x8] sm:%s145]
                %159 = vst [vmem:[%s153 + $0x8] sm:%s145] %v158
                %v160 = vld [vmem:[%s152 + $0xc] sm:%s145]
                %161 = vst [vmem:[%s153 + $0xc] sm:%s145] %v160
                %v162 = vld [vmem:[%s152 + $0x10] sm:%s145]
                %163 = vst [vmem:[%s153 + $0x10] sm:%s145] %v162
                %v164 = vld [vmem:[%s152 + $0x14] sm:%s145]
                %165 = vst [vmem:[%s153 + $0x14] sm:%s145] %v164
                %v166 = vld [vmem:[%s152 + $0x18] sm:%s145]
                %167 = vst [vmem:[%s153 + $0x18] sm:%s145] %v166
                %v168 = vld [vmem:[%s152 + $0x1c] sm:%s145]
                %169 = vst [vmem:[%s153 + $0x1c] sm:%s145] %v168
                %v170 = vld [vmem:[%s152 + $0x20] sm:%s145]
                %171 = vst [vmem:[%s153 + $0x20] sm:%s145] %v170
                %v172 = vld [vmem:[%s152 + $0x24] sm:%s145]
                %173 = vst [vmem:[%s153 + $0x24] sm:%s145] %v172
                %v174 = vld [vmem:[%s152 + $0x28] sm:%s145]
                %175 = vst [vmem:[%s153 + $0x28] sm:%s145] %v174
                %v176 = vld [vmem:[%s152 + $0x2c] sm:%s145]
                %177 = vst [vmem:[%s153 + $0x2c] sm:%s145] %v176
                %v178 = vld [vmem:[%s152 + $0x30] sm:%s145]
                %179 = vst [vmem:[%s153 + $0x30] sm:%s145] %v178
                %v180 = vld [vmem:[%s152 + $0x34] sm:%s145]
                %181 = vst [vmem:[%s153 + $0x34] sm:%s145] %v180
                %v182 = vld [vmem:[%s152 + $0x38] sm:%s145]
                %183 = vst [vmem:[%s153 + $0x38] sm:%s145] %v182
                %v184 = vld [vmem:[%s152 + $0x3c] sm:%s145]
                %185 = vst [vmem:[%s153 + $0x3c] sm:%s145] %v184
                %v186 = vld [vmem:[%s152 + $0x40] sm:%s145]
                %187 = vst [vmem:[%s153 + $0x40] sm:%s145] %v186
                %v188 = vld [vmem:[%s152 + $0x44] sm:%s145]
                %189 = vst [vmem:[%s153 + $0x44] sm:%s145] %v188
                %v190 = vld [vmem:[%s152 + $0x48] sm:%s145]
                %191 = vst [vmem:[%s153 + $0x48] sm:%s145] %v190
                %v192 = vld [vmem:[%s152 + $0x4c] sm:%s145]
                %193 = vst [vmem:[%s153 + $0x4c] sm:%s145] %v192
                %v194 = vld [vmem:[%s152 + $0x50] sm:%s145]
                %195 = vst [vmem:[%s153 + $0x50] sm:%s145] %v194
                %v196 = vld [vmem:[%s152 + $0x54] sm:%s145]
                %197 = vst [vmem:[%s153 + $0x54] sm:%s145] %v196
                %v198 = vld [vmem:[%s152 + $0x58] sm:%s145]
                %199 = vst [vmem:[%s153 + $0x58] sm:%s145] %v198
                %v200 = vld [vmem:[%s152 + $0x5c] sm:%s145]
                %201 = vst [vmem:[%s153 + $0x5c] sm:%s145] %v200
                %v202 = vld [vmem:[%s152 + $0x60] sm:%s145]
                %203 = vst [vmem:[%s153 + $0x60] sm:%s145] %v202
                %v204 = vld [vmem:[%s152 + $0x64] sm:%s145]
                %205 = vst [vmem:[%s153 + $0x64] sm:%s145] %v204
                %v206 = vld [vmem:[%s152 + $0x68] sm:%s145]
                %207 = vst [vmem:[%s153 + $0x68] sm:%s145] %v206
                %v208 = vld [vmem:[%s152 + $0x6c] sm:%s145]
                %209 = vst [vmem:[%s153 + $0x6c] sm:%s145] %v208
                %v210 = vld [vmem:[%s152 + $0x70] sm:%s145]
                %211 = vst [vmem:[%s153 + $0x70] sm:%s145] %v210
                %v212 = vld [vmem:[%s152 + $0x74] sm:%s145]
                %213 = vst [vmem:[%s153 + $0x74] sm:%s145] %v212
                %v214 = vld [vmem:[%s152 + $0x78] sm:%s145]
                %215 = vst [vmem:[%s153 + $0x78] sm:%s145] %v214
                %v216 = vld [vmem:[%s152 + $0x7c] sm:%s145]
                %217 = vst [vmem:[%s153 + $0x7c] sm:%s145] %v216
                %v218 = vld [vmem:[%s152 + $0x80] sm:%s145]
                %219 = vst [vmem:[%s153 + $0x80] sm:%s145] %v218
                %v220 = vld [vmem:[%s152 + $0x84] sm:%s145]
                %221 = vst [vmem:[%s153 + $0x84] sm:%s145] %v220
                %v222 = vld [vmem:[%s152 + $0x88] sm:%s145]
                %223 = vst [vmem:[%s153 + $0x88] sm:%s145] %v222
                %v224 = vld [vmem:[%s152 + $0x8c] sm:%s145]
                %225 = vst [vmem:[%s153 + $0x8c] sm:%s145] %v224
                %v226 = vld [vmem:[%s152 + $0x90] sm:%s145]
                %227 = vst [vmem:[%s153 + $0x90] sm:%s145] %v226
                %v228 = vld [vmem:[%s152 + $0x94] sm:%s145]
                %229 = vst [vmem:[%s153 + $0x94] sm:%s145] %v228
                %v230 = vld [vmem:[%s152 + $0x98] sm:%s145]
                %231 = vst [vmem:[%s153 + $0x98] sm:%s145] %v230
                %v232 = vld [vmem:[%s152 + $0x9c] sm:%s145]
                %233 = vst [vmem:[%s153 + $0x9c] sm:%s145] %v232
                %v234 = vld [vmem:[%s152 + $0xa0] sm:%s145]
                %235 = vst [vmem:[%s153 + $0xa0] sm:%s145] %v234
                %v236 = vld [vmem:[%s152 + $0xa4] sm:%s145]
                %237 = vst [vmem:[%s153 + $0xa4] sm:%s145] %v236
                %v238 = vld [vmem:[%s152 + $0xa8] sm:%s145]
                %239 = vst [vmem:[%s153 + $0xa8] sm:%s145] %v238
                %v240 = vld [vmem:[%s152 + $0xac] sm:%s145]
                %241 = vst [vmem:[%s153 + $0xac] sm:%s145] %v240
                %v242 = vld [vmem:[%s152 + $0xb0] sm:%s145]
                %243 = vst [vmem:[%s153 + $0xb0] sm:%s145] %v242
                %v244 = vld [vmem:[%s152 + $0xb4] sm:%s145]
                %245 = vst [vmem:[%s153 + $0xb4] sm:%s145] %v244
                %v246 = vld [vmem:[%s152 + $0xb8] sm:%s145]
                %247 = vst [vmem:[%s153 + $0xb8] sm:%s145] %v246
                %v248 = vld [vmem:[%s152 + $0xbc] sm:%s145]
                %249 = vst [vmem:[%s153 + $0xbc] sm:%s145] %v248
                %v250 = vld [vmem:[%s152 + $0xc0] sm:%s145]
                %251 = vst [vmem:[%s153 + $0xc0] sm:%s145] %v250
                %v252 = vld [vmem:[%s152 + $0xc4] sm:%s145]
                %253 = vst [vmem:[%s153 + $0xc4] sm:%s145] %v252
                %v254 = vld [vmem:[%s152 + $0xc8] sm:%s145]
                %255 = vst [vmem:[%s153 + $0xc8] sm:%s145] %v254
                %v256 = vld [vmem:[%s152 + $0xcc] sm:%s145]
                %257 = vst [vmem:[%s153 + $0xcc] sm:%s145] %v256
                %v258 = vld [vmem:[%s152 + $0xd0] sm:%s145]
                %259 = vst [vmem:[%s153 + $0xd0] sm:%s145] %v258
                %v260 = vld [vmem:[%s152 + $0xd4] sm:%s145]
                %261 = vst [vmem:[%s153 + $0xd4] sm:%s145] %v260
                %v262 = vld [vmem:[%s152 + $0xd8] sm:%s145]
                %263 = vst [vmem:[%s153 + $0xd8] sm:%s145] %v262
                %v264 = vld [vmem:[%s152 + $0xdc] sm:%s145]
                %265 = vst [vmem:[%s153 + $0xdc] sm:%s145] %v264
                %v266 = vld [vmem:[%s152 + $0xe0] sm:%s145]
                %267 = vst [vmem:[%s153 + $0xe0] sm:%s145] %v266
                %v268 = vld [vmem:[%s152 + $0xe4] sm:%s145]
                %269 = vst [vmem:[%s153 + $0xe4] sm:%s145] %v268
                %v270 = vld [vmem:[%s152 + $0xe8] sm:%s145]
                %271 = vst [vmem:[%s153 + $0xe8] sm:%s145] %v270
                %v272 = vld [vmem:[%s152 + $0xec] sm:%s145]
                %273 = vst [vmem:[%s153 + $0xec] sm:%s145] %v272
                %v274 = vld [vmem:[%s152 + $0xf0] sm:%s145]
                %275 = vst [vmem:[%s153 + $0xf0] sm:%s145] %v274
                %v276 = vld [vmem:[%s152 + $0xf4] sm:%s145]
                %277 = vst [vmem:[%s153 + $0xf4] sm:%s145] %v276
                %v278 = vld [vmem:[%s152 + $0xf8] sm:%s145]
                %279 = vst [vmem:[%s153 + $0xf8] sm:%s145] %v278
                %v280 = vld [vmem:[%s152 + $0xfc] sm:%s145]
                %281 = vst [vmem:[%s153 + $0xfc] sm:%s145] %v280
                %v282 = vld [vmem:[%s152 + $0x100] sm:%s145]
                %283 = vst [vmem:[%s153 + $0x100] sm:%s145] %v282
                %v284 = vld [vmem:[%s152 + $0x104] sm:%s145]
                %285 = vst [vmem:[%s153 + $0x104] sm:%s145] %v284
                %v286 = vld [vmem:[%s152 + $0x108] sm:%s145]
                %287 = vst [vmem:[%s153 + $0x108] sm:%s145] %v286
                %v288 = vld [vmem:[%s152 + $0x10c] sm:%s145]
                %289 = vst [vmem:[%s153 + $0x10c] sm:%s145] %v288
                %v290 = vld [vmem:[%s152 + $0x110] sm:%s145]
                %291 = vst [vmem:[%s153 + $0x110] sm:%s145] %v290
                %v292 = vld [vmem:[%s152 + $0x114] sm:%s145]
                %293 = vst [vmem:[%s153 + $0x114] sm:%s145] %v292
                %v294 = vld [vmem:[%s152 + $0x118] sm:%s145]
                %295 = vst [vmem:[%s153 + $0x118] sm:%s145] %v294
                %v296 = vld [vmem:[%s152 + $0x11c] sm:%s145]
                %297 = vst [vmem:[%s153 + $0x11c] sm:%s145] %v296
                %v298 = vld [vmem:[%s152 + $0x240] sm:%s145]
                %299 = vst [vmem:[%s153 + $0x120] sm:%s145] %v298
                %v300 = vld [vmem:[%s152 + $0x244] sm:%s145]
                %301 = vst [vmem:[%s153 + $0x124] sm:%s145] %v300
                %v302 = vld [vmem:[%s152 + $0x248] sm:%s145]
                %303 = vst [vmem:[%s153 + $0x128] sm:%s145] %v302
                %v304 = vld [vmem:[%s152 + $0x24c] sm:%s145]
                %305 = vst [vmem:[%s153 + $0x12c] sm:%s145] %v304
                %v306 = vld [vmem:[%s152 + $0x250] sm:%s145]
                %307 = vst [vmem:[%s153 + $0x130] sm:%s145] %v306
                %v308 = vld [vmem:[%s152 + $0x254] sm:%s145]
                %309 = vst [vmem:[%s153 + $0x134] sm:%s145] %v308
                %v310 = vld [vmem:[%s152 + $0x258] sm:%s145]
                %311 = vst [vmem:[%s153 + $0x138] sm:%s145] %v310
                %v312 = vld [vmem:[%s152 + $0x25c] sm:%s145]
                %313 = vst [vmem:[%s153 + $0x13c] sm:%s145] %v312
                %v314 = vld [vmem:[%s152 + $0x260] sm:%s145]
                %315 = vst [vmem:[%s153 + $0x140] sm:%s145] %v314
                %v316 = vld [vmem:[%s152 + $0x264] sm:%s145]
                %317 = vst [vmem:[%s153 + $0x144] sm:%s145] %v316
                %v318 = vld [vmem:[%s152 + $0x268] sm:%s145]
                %319 = vst [vmem:[%s153 + $0x148] sm:%s145] %v318
                %v320 = vld [vmem:[%s152 + $0x26c] sm:%s145]
                %321 = vst [vmem:[%s153 + $0x14c] sm:%s145] %v320
                %v322 = vld [vmem:[%s152 + $0x270] sm:%s145]
                %323 = vst [vmem:[%s153 + $0x150] sm:%s145] %v322
                %v324 = vld [vmem:[%s152 + $0x274] sm:%s145]
                %325 = vst [vmem:[%s153 + $0x154] sm:%s145] %v324
                %v326 = vld [vmem:[%s152 + $0x278] sm:%s145]
                %327 = vst [vmem:[%s153 + $0x158] sm:%s145] %v326
                %v328 = vld [vmem:[%s152 + $0x27c] sm:%s145]
                %329 = vst [vmem:[%s153 + $0x15c] sm:%s145] %v328
                %v330 = vld [vmem:[%s152 + $0x280] sm:%s145]
                %331 = vst [vmem:[%s153 + $0x160] sm:%s145] %v330
                %v332 = vld [vmem:[%s152 + $0x284] sm:%s145]
                %333 = vst [vmem:[%s153 + $0x164] sm:%s145] %v332
                %v334 = vld [vmem:[%s152 + $0x288] sm:%s145]
                %335 = vst [vmem:[%s153 + $0x168] sm:%s145] %v334
                %v336 = vld [vmem:[%s152 + $0x28c] sm:%s145]
                %337 = vst [vmem:[%s153 + $0x16c] sm:%s145] %v336
                %v338 = vld [vmem:[%s152 + $0x290] sm:%s145]
                %339 = vst [vmem:[%s153 + $0x170] sm:%s145] %v338
                %v340 = vld [vmem:[%s152 + $0x294] sm:%s145]
                %341 = vst [vmem:[%s153 + $0x174] sm:%s145] %v340
                %v342 = vld [vmem:[%s152 + $0x298] sm:%s145]
                %343 = vst [vmem:[%s153 + $0x178] sm:%s145] %v342
                %v344 = vld [vmem:[%s152 + $0x29c] sm:%s145]
                %345 = vst [vmem:[%s153 + $0x17c] sm:%s145] %v344
                %v346 = vld [vmem:[%s152 + $0x2a0] sm:%s145]
                %347 = vst [vmem:[%s153 + $0x180] sm:%s145] %v346
                %v348 = vld [vmem:[%s152 + $0x2a4] sm:%s145]
                %349 = vst [vmem:[%s153 + $0x184] sm:%s145] %v348
                %v350 = vld [vmem:[%s152 + $0x2a8] sm:%s145]
                %351 = vst [vmem:[%s153 + $0x188] sm:%s145] %v350
                %v352 = vld [vmem:[%s152 + $0x2ac] sm:%s145]
                %353 = vst [vmem:[%s153 + $0x18c] sm:%s145] %v352
                %v354 = vld [vmem:[%s152 + $0x2b0] sm:%s145]
                %355 = vst [vmem:[%s153 + $0x190] sm:%s145] %v354
                %v356 = vld [vmem:[%s152 + $0x2b4] sm:%s145]
                %357 = vst [vmem:[%s153 + $0x194] sm:%s145] %v356
                %v358 = vld [vmem:[%s152 + $0x2b8] sm:%s145]
                %359 = vst [vmem:[%s153 + $0x198] sm:%s145] %v358
                %v360 = vld [vmem:[%s152 + $0x2bc] sm:%s145]
                %361 = vst [vmem:[%s153 + $0x19c] sm:%s145] %v360
                %v362 = vld [vmem:[%s152 + $0x2c0] sm:%s145]
                %363 = vst [vmem:[%s153 + $0x1a0] sm:%s145] %v362
                %v364 = vld [vmem:[%s152 + $0x2c4] sm:%s145]
                %365 = vst [vmem:[%s153 + $0x1a4] sm:%s145] %v364
                %v366 = vld [vmem:[%s152 + $0x2c8] sm:%s145]
                %367 = vst [vmem:[%s153 + $0x1a8] sm:%s145] %v366
                %v368 = vld [vmem:[%s152 + $0x2cc] sm:%s145]
                %369 = vst [vmem:[%s153 + $0x1ac] sm:%s145] %v368
                %v370 = vld [vmem:[%s152 + $0x2d0] sm:%s145]
                %371 = vst [vmem:[%s153 + $0x1b0] sm:%s145] %v370
                %v372 = vld [vmem:[%s152 + $0x2d4] sm:%s145]
                %373 = vst [vmem:[%s153 + $0x1b4] sm:%s145] %v372
                %v374 = vld [vmem:[%s152 + $0x2d8] sm:%s145]
                %375 = vst [vmem:[%s153 + $0x1b8] sm:%s145] %v374
                %v376 = vld [vmem:[%s152 + $0x2dc] sm:%s145]
                %377 = vst [vmem:[%s153 + $0x1bc] sm:%s145] %v376
                %v378 = vld [vmem:[%s152 + $0x2e0] sm:%s145]
                %379 = vst [vmem:[%s153 + $0x1c0] sm:%s145] %v378
                %v380 = vld [vmem:[%s152 + $0x2e4] sm:%s145]
                %381 = vst [vmem:[%s153 + $0x1c4] sm:%s145] %v380
                %v382 = vld [vmem:[%s152 + $0x2e8] sm:%s145]
                %383 = vst [vmem:[%s153 + $0x1c8] sm:%s145] %v382
                %v384 = vld [vmem:[%s152 + $0x2ec] sm:%s145]
                %385 = vst [vmem:[%s153 + $0x1cc] sm:%s145] %v384
                %v386 = vld [vmem:[%s152 + $0x2f0] sm:%s145]
                %387 = vst [vmem:[%s153 + $0x1d0] sm:%s145] %v386
                %v388 = vld [vmem:[%s152 + $0x2f4] sm:%s145]
                %389 = vst [vmem:[%s153 + $0x1d4] sm:%s145] %v388
                %v390 = vld [vmem:[%s152 + $0x2f8] sm:%s145]
                %391 = vst [vmem:[%s153 + $0x1d8] sm:%s145] %v390
                %v392 = vld [vmem:[%s152 + $0x2fc] sm:%s145]
                %393 = vst [vmem:[%s153 + $0x1dc] sm:%s145] %v392
                %v394 = vld [vmem:[%s152 + $0x300] sm:%s145]
                %395 = vst [vmem:[%s153 + $0x1e0] sm:%s145] %v394
                %v396 = vld [vmem:[%s152 + $0x304] sm:%s145]
                %397 = vst [vmem:[%s153 + $0x1e4] sm:%s145] %v396
                %v398 = vld [vmem:[%s152 + $0x308] sm:%s145]
                %399 = vst [vmem:[%s153 + $0x1e8] sm:%s145] %v398
                %v400 = vld [vmem:[%s152 + $0x30c] sm:%s145]
                %401 = vst [vmem:[%s153 + $0x1ec] sm:%s145] %v400
                %v402 = vld [vmem:[%s152 + $0x310] sm:%s145]
                %403 = vst [vmem:[%s153 + $0x1f0] sm:%s145] %v402
                %v404 = vld [vmem:[%s152 + $0x314] sm:%s145]
                %405 = vst [vmem:[%s153 + $0x1f4] sm:%s145] %v404
                %v406 = vld [vmem:[%s152 + $0x318] sm:%s145]
                %407 = vst [vmem:[%s153 + $0x1f8] sm:%s145] %v406
                %v408 = vld [vmem:[%s152 + $0x31c] sm:%s145]
                %409 = vst [vmem:[%s153 + $0x1fc] sm:%s145] %v408
                %v410 = vld [vmem:[%s152 + $0x320] sm:%s145]
                %411 = vst [vmem:[%s153 + $0x200] sm:%s145] %v410
                %v412 = vld [vmem:[%s152 + $0x324] sm:%s145]
                %413 = vst [vmem:[%s153 + $0x204] sm:%s145] %v412
                %v414 = vld [vmem:[%s152 + $0x328] sm:%s145]
                %415 = vst [vmem:[%s153 + $0x208] sm:%s145] %v414
                %v416 = vld [vmem:[%s152 + $0x32c] sm:%s145]
                %417 = vst [vmem:[%s153 + $0x20c] sm:%s145] %v416
                %v418 = vld [vmem:[%s152 + $0x330] sm:%s145]
                %419 = vst [vmem:[%s153 + $0x210] sm:%s145] %v418
                %v420 = vld [vmem:[%s152 + $0x334] sm:%s145]
                %421 = vst [vmem:[%s153 + $0x214] sm:%s145] %v420
                %v422 = vld [vmem:[%s152 + $0x338] sm:%s145]
                %423 = vst [vmem:[%s153 + $0x218] sm:%s145] %v422
                %v424 = vld [vmem:[%s152 + $0x33c] sm:%s145]
                %425 = vst [vmem:[%s153 + $0x21c] sm:%s145] %v424
                %v426 = vld [vmem:[%s152 + $0x340] sm:%s145]
                %427 = vst [vmem:[%s153 + $0x220] sm:%s145] %v426
                %v428 = vld [vmem:[%s152 + $0x344] sm:%s145]
                %429 = vst [vmem:[%s153 + $0x224] sm:%s145] %v428
                %v430 = vld [vmem:[%s152 + $0x348] sm:%s145]
                %431 = vst [vmem:[%s153 + $0x228] sm:%s145] %v430
                %v432 = vld [vmem:[%s152 + $0x34c] sm:%s145]
                %433 = vst [vmem:[%s153 + $0x22c] sm:%s145] %v432
                %v434 = vld [vmem:[%s152 + $0x350] sm:%s145]
                %435 = vst [vmem:[%s153 + $0x230] sm:%s145] %v434
                %v436 = vld [vmem:[%s152 + $0x354] sm:%s145]
                %437 = vst [vmem:[%s153 + $0x234] sm:%s145] %v436
                %v438 = vld [vmem:[%s152 + $0x358] sm:%s145]
                %439 = vst [vmem:[%s153 + $0x238] sm:%s145] %v438
                %v440 = vld [vmem:[%s152 + $0x35c] sm:%s145]
                %441 = vst [vmem:[%s153 + $0x23c] sm:%s145] %v440
                %v442 = vld [vmem:[%s152 + $0x480] sm:%s145]
                %443 = vst [vmem:[%s153 + $0x240] sm:%s145] %v442
                %v444 = vld [vmem:[%s152 + $0x484] sm:%s145]
                %445 = vst [vmem:[%s153 + $0x244] sm:%s145] %v444
                %v446 = vld [vmem:[%s152 + $0x488] sm:%s145]
                %447 = vst [vmem:[%s153 + $0x248] sm:%s145] %v446
                %v448 = vld [vmem:[%s152 + $0x48c] sm:%s145]
                %449 = vst [vmem:[%s153 + $0x24c] sm:%s145] %v448
                %v450 = vld [vmem:[%s152 + $0x490] sm:%s145]
                %451 = vst [vmem:[%s153 + $0x250] sm:%s145] %v450
                %v452 = vld [vmem:[%s152 + $0x494] sm:%s145]
                %453 = vst [vmem:[%s153 + $0x254] sm:%s145] %v452
                %v454 = vld [vmem:[%s152 + $0x498] sm:%s145]
                %455 = vst [vmem:[%s153 + $0x258] sm:%s145] %v454
                %v456 = vld [vmem:[%s152 + $0x49c] sm:%s145]
                %457 = vst [vmem:[%s153 + $0x25c] sm:%s145] %v456
                %v458 = vld [vmem:[%s152 + $0x4a0] sm:%s145]
                %459 = vst [vmem:[%s153 + $0x260] sm:%s145] %v458
                %v460 = vld [vmem:[%s152 + $0x4a4] sm:%s145]
                %461 = vst [vmem:[%s153 + $0x264] sm:%s145] %v460
                %v462 = vld [vmem:[%s152 + $0x4a8] sm:%s145]
                %463 = vst [vmem:[%s153 + $0x268] sm:%s145] %v462
                %v464 = vld [vmem:[%s152 + $0x4ac] sm:%s145]
                %465 = vst [vmem:[%s153 + $0x26c] sm:%s145] %v464
                %v466 = vld [vmem:[%s152 + $0x4b0] sm:%s145]
                %467 = vst [vmem:[%s153 + $0x270] sm:%s145] %v466
                %v468 = vld [vmem:[%s152 + $0x4b4] sm:%s145]
                %469 = vst [vmem:[%s153 + $0x274] sm:%s145] %v468
                %v470 = vld [vmem:[%s152 + $0x4b8] sm:%s145]
                %471 = vst [vmem:[%s153 + $0x278] sm:%s145] %v470
                %v472 = vld [vmem:[%s152 + $0x4bc] sm:%s145]
                %473 = vst [vmem:[%s153 + $0x27c] sm:%s145] %v472
                %v474 = vld [vmem:[%s152 + $0x4c0] sm:%s145]
                %475 = vst [vmem:[%s153 + $0x280] sm:%s145] %v474
                %v476 = vld [vmem:[%s152 + $0x4c4] sm:%s145]
                %477 = vst [vmem:[%s153 + $0x284] sm:%s145] %v476
                %v478 = vld [vmem:[%s152 + $0x4c8] sm:%s145]
                %479 = vst [vmem:[%s153 + $0x288] sm:%s145] %v478
                %v480 = vld [vmem:[%s152 + $0x4cc] sm:%s145]
                %481 = vst [vmem:[%s153 + $0x28c] sm:%s145] %v480
                %v482 = vld [vmem:[%s152 + $0x4d0] sm:%s145]
                %483 = vst [vmem:[%s153 + $0x290] sm:%s145] %v482
                %v484 = vld [vmem:[%s152 + $0x4d4] sm:%s145]
                %485 = vst [vmem:[%s153 + $0x294] sm:%s145] %v484
                %v486 = vld [vmem:[%s152 + $0x4d8] sm:%s145]
                %487 = vst [vmem:[%s153 + $0x298] sm:%s145] %v486
                %v488 = vld [vmem:[%s152 + $0x4dc] sm:%s145]
                %489 = vst [vmem:[%s153 + $0x29c] sm:%s145] %v488
                %v490 = vld [vmem:[%s152 + $0x4e0] sm:%s145]
                %491 = vst [vmem:[%s153 + $0x2a0] sm:%s145] %v490
                %v492 = vld [vmem:[%s152 + $0x4e4] sm:%s145]
                %493 = vst [vmem:[%s153 + $0x2a4] sm:%s145] %v492
                %v494 = vld [vmem:[%s152 + $0x4e8] sm:%s145]
                %495 = vst [vmem:[%s153 + $0x2a8] sm:%s145] %v494
                %v496 = vld [vmem:[%s152 + $0x4ec] sm:%s145]
                %497 = vst [vmem:[%s153 + $0x2ac] sm:%s145] %v496
                %v498 = vld [vmem:[%s152 + $0x4f0] sm:%s145]
                %499 = vst [vmem:[%s153 + $0x2b0] sm:%s145] %v498
                %v500 = vld [vmem:[%s152 + $0x4f4] sm:%s145]
                %501 = vst [vmem:[%s153 + $0x2b4] sm:%s145] %v500
                %v502 = vld [vmem:[%s152 + $0x4f8] sm:%s145]
                %503 = vst [vmem:[%s153 + $0x2b8] sm:%s145] %v502
                %v504 = vld [vmem:[%s152 + $0x4fc] sm:%s145]
                %505 = vst [vmem:[%s153 + $0x2bc] sm:%s145] %v504
                %v506 = vld [vmem:[%s152 + $0x500] sm:%s145]
                %507 = vst [vmem:[%s153 + $0x2c0] sm:%s145] %v506
                %v508 = vld [vmem:[%s152 + $0x504] sm:%s145]
                %509 = vst [vmem:[%s153 + $0x2c4] sm:%s145] %v508
                %v510 = vld [vmem:[%s152 + $0x508] sm:%s145]
                %511 = vst [vmem:[%s153 + $0x2c8] sm:%s145] %v510
                %v512 = vld [vmem:[%s152 + $0x50c] sm:%s145]
                %513 = vst [vmem:[%s153 + $0x2cc] sm:%s145] %v512
                %v514 = vld [vmem:[%s152 + $0x510] sm:%s145]
                %515 = vst [vmem:[%s153 + $0x2d0] sm:%s145] %v514
                %v516 = vld [vmem:[%s152 + $0x514] sm:%s145]
                %517 = vst [vmem:[%s153 + $0x2d4] sm:%s145] %v516
                %v518 = vld [vmem:[%s152 + $0x518] sm:%s145]
                %519 = vst [vmem:[%s153 + $0x2d8] sm:%s145] %v518
                %v520 = vld [vmem:[%s152 + $0x51c] sm:%s145]
                %521 = vst [vmem:[%s153 + $0x2dc] sm:%s145] %v520
                %v522 = vld [vmem:[%s152 + $0x520] sm:%s145]
                %523 = vst [vmem:[%s153 + $0x2e0] sm:%s145] %v522
                %v524 = vld [vmem:[%s152 + $0x524] sm:%s145]
                %525 = vst [vmem:[%s153 + $0x2e4] sm:%s145] %v524
                %v526 = vld [vmem:[%s152 + $0x528] sm:%s145]
                %527 = vst [vmem:[%s153 + $0x2e8] sm:%s145] %v526
                %v528 = vld [vmem:[%s152 + $0x52c] sm:%s145]
                %529 = vst [vmem:[%s153 + $0x2ec] sm:%s145] %v528
                %v530 = vld [vmem:[%s152 + $0x530] sm:%s145]
                %531 = vst [vmem:[%s153 + $0x2f0] sm:%s145] %v530
                %v532 = vld [vmem:[%s152 + $0x534] sm:%s145]
                %533 = vst [vmem:[%s153 + $0x2f4] sm:%s145] %v532
                %v534 = vld [vmem:[%s152 + $0x538] sm:%s145]
                %535 = vst [vmem:[%s153 + $0x2f8] sm:%s145] %v534
                %v536 = vld [vmem:[%s152 + $0x53c] sm:%s145]
                %537 = vst [vmem:[%s153 + $0x2fc] sm:%s145] %v536
                %v538 = vld [vmem:[%s152 + $0x540] sm:%s145]
                %539 = vst [vmem:[%s153 + $0x300] sm:%s145] %v538
                %v540 = vld [vmem:[%s152 + $0x544] sm:%s145]
                %541 = vst [vmem:[%s153 + $0x304] sm:%s145] %v540
                %v542 = vld [vmem:[%s152 + $0x548] sm:%s145]
                %543 = vst [vmem:[%s153 + $0x308] sm:%s145] %v542
                %v544 = vld [vmem:[%s152 + $0x54c] sm:%s145]
                %545 = vst [vmem:[%s153 + $0x30c] sm:%s145] %v544
                %v546 = vld [vmem:[%s152 + $0x550] sm:%s145]
                %547 = vst [vmem:[%s153 + $0x310] sm:%s145] %v546
                %v548 = vld [vmem:[%s152 + $0x554] sm:%s145]
                %549 = vst [vmem:[%s153 + $0x314] sm:%s145] %v548
                %v550 = vld [vmem:[%s152 + $0x558] sm:%s145]
                %551 = vst [vmem:[%s153 + $0x318] sm:%s145] %v550
                %v552 = vld [vmem:[%s152 + $0x55c] sm:%s145]
                %553 = vst [vmem:[%s153 + $0x31c] sm:%s145] %v552
                %v554 = vld [vmem:[%s152 + $0x560] sm:%s145]
                %555 = vst [vmem:[%s153 + $0x320] sm:%s145] %v554
                %v556 = vld [vmem:[%s152 + $0x564] sm:%s145]
                %557 = vst [vmem:[%s153 + $0x324] sm:%s145] %v556
                %v558 = vld [vmem:[%s152 + $0x568] sm:%s145]
                %559 = vst [vmem:[%s153 + $0x328] sm:%s145] %v558
                %v560 = vld [vmem:[%s152 + $0x56c] sm:%s145]
                %561 = vst [vmem:[%s153 + $0x32c] sm:%s145] %v560
                %v562 = vld [vmem:[%s152 + $0x570] sm:%s145]
                %563 = vst [vmem:[%s153 + $0x330] sm:%s145] %v562
                %v564 = vld [vmem:[%s152 + $0x574] sm:%s145]
                %565 = vst [vmem:[%s153 + $0x334] sm:%s145] %v564
                %v566 = vld [vmem:[%s152 + $0x578] sm:%s145]
                %567 = vst [vmem:[%s153 + $0x338] sm:%s145] %v566
                %v568 = vld [vmem:[%s152 + $0x57c] sm:%s145]
                %569 = vst [vmem:[%s153 + $0x33c] sm:%s145] %v568
                %v570 = vld [vmem:[%s152 + $0x580] sm:%s145]
                %571 = vst [vmem:[%s153 + $0x340] sm:%s145] %v570
                %v572 = vld [vmem:[%s152 + $0x584] sm:%s145]
                %573 = vst [vmem:[%s153 + $0x344] sm:%s145] %v572
                %v574 = vld [vmem:[%s152 + $0x588] sm:%s145]
                %575 = vst [vmem:[%s153 + $0x348] sm:%s145] %v574
                %v576 = vld [vmem:[%s152 + $0x58c] sm:%s145]
                %577 = vst [vmem:[%s153 + $0x34c] sm:%s145] %v576
                %v578 = vld [vmem:[%s152 + $0x590] sm:%s145]
                %579 = vst [vmem:[%s153 + $0x350] sm:%s145] %v578
                %v580 = vld [vmem:[%s152 + $0x594] sm:%s145]
                %581 = vst [vmem:[%s153 + $0x354] sm:%s145] %v580
                %v582 = vld [vmem:[%s152 + $0x598] sm:%s145]
                %583 = vst [vmem:[%s153 + $0x358] sm:%s145] %v582
                %v584 = vld [vmem:[%s152 + $0x59c] sm:%s145]
                %585 = vst [vmem:[%s153 + $0x35c] sm:%s145] %v584
                %v586 = vld [vmem:[%s152 + $0x6c0] sm:%s145]
                %587 = vst [vmem:[%s153 + $0x360] sm:%s145] %v586
                %v588 = vld [vmem:[%s152 + $0x6c4] sm:%s145]
                %589 = vst [vmem:[%s153 + $0x364] sm:%s145] %v588
                %v590 = vld [vmem:[%s152 + $0x6c8] sm:%s145]
                %591 = vst [vmem:[%s153 + $0x368] sm:%s145] %v590
                %v592 = vld [vmem:[%s152 + $0x6cc] sm:%s145]
                %593 = vst [vmem:[%s153 + $0x36c] sm:%s145] %v592
                %v594 = vld [vmem:[%s152 + $0x6d0] sm:%s145]
                %595 = vst [vmem:[%s153 + $0x370] sm:%s145] %v594
                %v596 = vld [vmem:[%s152 + $0x6d4] sm:%s145]
                %597 = vst [vmem:[%s153 + $0x374] sm:%s145] %v596
                %v598 = vld [vmem:[%s152 + $0x6d8] sm:%s145]
                %599 = vst [vmem:[%s153 + $0x378] sm:%s145] %v598
                %v600 = vld [vmem:[%s152 + $0x6dc] sm:%s145]
                %601 = vst [vmem:[%s153 + $0x37c] sm:%s145] %v600
                %v602 = vld [vmem:[%s152 + $0x6e0] sm:%s145]
                %603 = vst [vmem:[%s153 + $0x380] sm:%s145] %v602
                %v604 = vld [vmem:[%s152 + $0x6e4] sm:%s145]
                %605 = vst [vmem:[%s153 + $0x384] sm:%s145] %v604
                %v606 = vld [vmem:[%s152 + $0x6e8] sm:%s145]
                %607 = vst [vmem:[%s153 + $0x388] sm:%s145] %v606
                %v608 = vld [vmem:[%s152 + $0x6ec] sm:%s145]
                %609 = vst [vmem:[%s153 + $0x38c] sm:%s145] %v608
                %v610 = vld [vmem:[%s152 + $0x6f0] sm:%s145]
                %611 = vst [vmem:[%s153 + $0x390] sm:%s145] %v610
                %v612 = vld [vmem:[%s152 + $0x6f4] sm:%s145]
                %613 = vst [vmem:[%s153 + $0x394] sm:%s145] %v612
                %v614 = vld [vmem:[%s152 + $0x6f8] sm:%s145]
                %615 = vst [vmem:[%s153 + $0x398] sm:%s145] %v614
                %v616 = vld [vmem:[%s152 + $0x6fc] sm:%s145]
                %617 = vst [vmem:[%s153 + $0x39c] sm:%s145] %v616
                %v618 = vld [vmem:[%s152 + $0x700] sm:%s145]
                %619 = vst [vmem:[%s153 + $0x3a0] sm:%s145] %v618
                %v620 = vld [vmem:[%s152 + $0x704] sm:%s145]
                %621 = vst [vmem:[%s153 + $0x3a4] sm:%s145] %v620
                %v622 = vld [vmem:[%s152 + $0x708] sm:%s145]
                %623 = vst [vmem:[%s153 + $0x3a8] sm:%s145] %v622
                %v624 = vld [vmem:[%s152 + $0x70c] sm:%s145]
                %625 = vst [vmem:[%s153 + $0x3ac] sm:%s145] %v624
                %v626 = vld [vmem:[%s152 + $0x710] sm:%s145]
                %627 = vst [vmem:[%s153 + $0x3b0] sm:%s145] %v626
                %v628 = vld [vmem:[%s152 + $0x714] sm:%s145]
                %629 = vst [vmem:[%s153 + $0x3b4] sm:%s145] %v628
                %v630 = vld [vmem:[%s152 + $0x718] sm:%s145]
                %631 = vst [vmem:[%s153 + $0x3b8] sm:%s145] %v630
                %v632 = vld [vmem:[%s152 + $0x71c] sm:%s145]
                %633 = vst [vmem:[%s153 + $0x3bc] sm:%s145] %v632
                %v634 = vld [vmem:[%s152 + $0x720] sm:%s145]
                %635 = vst [vmem:[%s153 + $0x3c0] sm:%s145] %v634
                %v636 = vld [vmem:[%s152 + $0x724] sm:%s145]
                %637 = vst [vmem:[%s153 + $0x3c4] sm:%s145] %v636
                %v638 = vld [vmem:[%s152 + $0x728] sm:%s145]
                %639 = vst [vmem:[%s153 + $0x3c8] sm:%s145] %v638
                %v640 = vld [vmem:[%s152 + $0x72c] sm:%s145]
                %641 = vst [vmem:[%s153 + $0x3cc] sm:%s145] %v640
                %v642 = vld [vmem:[%s152 + $0x730] sm:%s145]
                %643 = vst [vmem:[%s153 + $0x3d0] sm:%s145] %v642
                %v644 = vld [vmem:[%s152 + $0x734] sm:%s145]
                %645 = vst [vmem:[%s153 + $0x3d4] sm:%s145] %v644
                %v646 = vld [vmem:[%s152 + $0x738] sm:%s145]
                %647 = vst [vmem:[%s153 + $0x3d8] sm:%s145] %v646
                %v648 = vld [vmem:[%s152 + $0x73c] sm:%s145]
                %649 = vst [vmem:[%s153 + $0x3dc] sm:%s145] %v648
                %v650 = vld [vmem:[%s152 + $0x740] sm:%s145]
                %651 = vst [vmem:[%s153 + $0x3e0] sm:%s145] %v650
                %v652 = vld [vmem:[%s152 + $0x744] sm:%s145]
                %653 = vst [vmem:[%s153 + $0x3e4] sm:%s145] %v652
                %v654 = vld [vmem:[%s152 + $0x748] sm:%s145]
                %655 = vst [vmem:[%s153 + $0x3e8] sm:%s145] %v654
                %v656 = vld [vmem:[%s152 + $0x74c] sm:%s145]
                %657 = vst [vmem:[%s153 + $0x3ec] sm:%s145] %v656
                %v658 = vld [vmem:[%s152 + $0x750] sm:%s145]
                %659 = vst [vmem:[%s153 + $0x3f0] sm:%s145] %v658
                %v660 = vld [vmem:[%s152 + $0x754] sm:%s145]
                %661 = vst [vmem:[%s153 + $0x3f4] sm:%s145] %v660
                %v662 = vld [vmem:[%s152 + $0x758] sm:%s145]
                %663 = vst [vmem:[%s153 + $0x3f8] sm:%s145] %v662
                %v664 = vld [vmem:[%s152 + $0x75c] sm:%s145]
                %665 = vst [vmem:[%s153 + $0x3fc] sm:%s145] %v664
                %v666 = vld [vmem:[%s152 + $0x760] sm:%s145]
                %667 = vst [vmem:[%s153 + $0x400] sm:%s145] %v666
                %v668 = vld [vmem:[%s152 + $0x764] sm:%s145]
                %669 = vst [vmem:[%s153 + $0x404] sm:%s145] %v668
                %v670 = vld [vmem:[%s152 + $0x768] sm:%s145]
                %671 = vst [vmem:[%s153 + $0x408] sm:%s145] %v670
                %v672 = vld [vmem:[%s152 + $0x76c] sm:%s145]
                %673 = vst [vmem:[%s153 + $0x40c] sm:%s145] %v672
                %v674 = vld [vmem:[%s152 + $0x770] sm:%s145]
                %675 = vst [vmem:[%s153 + $0x410] sm:%s145] %v674
                %v676 = vld [vmem:[%s152 + $0x774] sm:%s145]
                %677 = vst [vmem:[%s153 + $0x414] sm:%s145] %v676
                %v678 = vld [vmem:[%s152 + $0x778] sm:%s145]
                %679 = vst [vmem:[%s153 + $0x418] sm:%s145] %v678
                %v680 = vld [vmem:[%s152 + $0x77c] sm:%s145]
                %681 = vst [vmem:[%s153 + $0x41c] sm:%s145] %v680
                %v682 = vld [vmem:[%s152 + $0x780] sm:%s145]
                %683 = vst [vmem:[%s153 + $0x420] sm:%s145] %v682
                %v684 = vld [vmem:[%s152 + $0x784] sm:%s145]
                %685 = vst [vmem:[%s153 + $0x424] sm:%s145] %v684
                %v686 = vld [vmem:[%s152 + $0x788] sm:%s145]
                %687 = vst [vmem:[%s153 + $0x428] sm:%s145] %v686
                %v688 = vld [vmem:[%s152 + $0x78c] sm:%s145]
                %689 = vst [vmem:[%s153 + $0x42c] sm:%s145] %v688
                %v690 = vld [vmem:[%s152 + $0x790] sm:%s145]
                %691 = vst [vmem:[%s153 + $0x430] sm:%s145] %v690
                %v692 = vld [vmem:[%s152 + $0x794] sm:%s145]
                %693 = vst [vmem:[%s153 + $0x434] sm:%s145] %v692
                %v694 = vld [vmem:[%s152 + $0x798] sm:%s145]
                %695 = vst [vmem:[%s153 + $0x438] sm:%s145] %v694
                %v696 = vld [vmem:[%s152 + $0x79c] sm:%s145]
                %697 = vst [vmem:[%s153 + $0x43c] sm:%s145] %v696
                %v698 = vld [vmem:[%s152 + $0x7a0] sm:%s145]
                %699 = vst [vmem:[%s153 + $0x440] sm:%s145] %v698
                %v700 = vld [vmem:[%s152 + $0x7a4] sm:%s145]
                %701 = vst [vmem:[%s153 + $0x444] sm:%s145] %v700
                %v702 = vld [vmem:[%s152 + $0x7a8] sm:%s145]
                %703 = vst [vmem:[%s153 + $0x448] sm:%s145] %v702
                %v704 = vld [vmem:[%s152 + $0x7ac] sm:%s145]
                %705 = vst [vmem:[%s153 + $0x44c] sm:%s145] %v704
                %v706 = vld [vmem:[%s152 + $0x7b0] sm:%s145]
                %707 = vst [vmem:[%s153 + $0x450] sm:%s145] %v706
                %v708 = vld [vmem:[%s152 + $0x7b4] sm:%s145]
                %709 = vst [vmem:[%s153 + $0x454] sm:%s145] %v708
                %v710 = vld [vmem:[%s152 + $0x7b8] sm:%s145]
                %711 = vst [vmem:[%s153 + $0x458] sm:%s145] %v710
                %v712 = vld [vmem:[%s152 + $0x7bc] sm:%s145]
                %713 = vst [vmem:[%s153 + $0x45c] sm:%s145] %v712
                %v714 = vld [vmem:[%s152 + $0x7c0] sm:%s145]
                %715 = vst [vmem:[%s153 + $0x460] sm:%s145] %v714
                %v716 = vld [vmem:[%s152 + $0x7c4] sm:%s145]
                %717 = vst [vmem:[%s153 + $0x464] sm:%s145] %v716
                %v718 = vld [vmem:[%s152 + $0x7c8] sm:%s145]
                %719 = vst [vmem:[%s153 + $0x468] sm:%s145] %v718
                %v720 = vld [vmem:[%s152 + $0x7cc] sm:%s145]
                %721 = vst [vmem:[%s153 + $0x46c] sm:%s145] %v720
                %v722 = vld [vmem:[%s152 + $0x7d0] sm:%s145]
                %723 = vst [vmem:[%s153 + $0x470] sm:%s145] %v722
                %v724 = vld [vmem:[%s152 + $0x7d4] sm:%s145]
                %725 = vst [vmem:[%s153 + $0x474] sm:%s145] %v724
                %v726 = vld [vmem:[%s152 + $0x7d8] sm:%s145]
                %727 = vst [vmem:[%s153 + $0x478] sm:%s145] %v726
                %v728 = vld [vmem:[%s152 + $0x7dc] sm:%s145]
                %729 = vst [vmem:[%s153 + $0x47c] sm:%s145] %v728
              $region45: #{mlmodel_cnn_forward.3} parent=39 // loop_footer
                %s151 = sadd.s32 1, %s147
              $region46: #{mlmodel_cnn_forward.3} parent=39 // loop_footer_branch
                %146 = sbr.rel target = $region42
              $region47: #{mlmodel_cnn_forward.3} parent=39 // loop_exit
                _
            $region40: #{mlmodel_cnn_forward.3} parent=31 // pred_fallthru
              _
          $region32: #{mlmodel_cnn_forward.3} parent=27 // pred_fallthru
            _
          %1326 = vnop
        $region28: #{mlmodel_cnn_forward.3} parent=23 // pred_fallthru
          _
      $region24: #{mlmodel_cnn_forward.3} parent=5 // pred_fallthru
        _
      %p1327 = scmp.le.s32.totalorder 1, %s9
      %p1328 = scmp.lt.s32.totalorder %s9, 3
      %p1329 = pnand %p1327, %p1328
      %p1330 = pneg %p1329
      // Predicated region
      $region66: #{mlmodel_cnn_forward.3} parent=5 // pred_check
        _
      $region67: #{mlmodel_cnn_forward.3} parent=5 // pred_check_branch
        %1332 = sbr.rel (%p1329) target = $region69
      $region68: #{mlmodel_cnn_forward.3} parent=5 // pred_region
        %s1333 = ssub.s32 %s9, 1
        %s1334 = sand.u32 %s22, 1
        %s1335 = sand.u32 %s22, 1
        %s1336 = smul.addr %s1335, 1152
        %s1337 = scalar_lea.vmem [#allocation2], %s1336
        // Predicated region
        $region70: #{mlmodel_cnn_forward.3} parent=68 // pred_check
          %p1338 = pneg %p35
        $region71: #{mlmodel_cnn_forward.3} parent=68 // pred_check_branch
          %1340 = sbr.rel (%p1338) target = $region73
        $region72: #{mlmodel_cnn_forward.3} parent=68 // pred_region
          _
        $region73: #{mlmodel_cnn_forward.3} parent=68 // pred_fallthru
          _
        %s1341 = sand.u32 %s22, 1
        %s1342 = sand.u32 %s22, 1
        %s1343 = smul.addr %s1342, 1152
        %s1344 = scalar_lea.vmem [#allocation2], %s1343
        %p1345 = pneg %p35
        %p1346 = pneg %p32
        %p1347 = pneg %p56
        %p1348 = pneg %p53
        %p1349 = pneg %p77
        %p1350 = pneg %p74
        %p1351 = pneg %p103
        %p1352 = pneg %p100
        %s1353 = smul.u32 72, %s14
        %p1354 = scmp.lt.s32.totalorder %s1353, 143
        %s1355 = scalar_select %p1354, %s1353, 143
        %s1356 = smul.addr %s1355, 8
        %s1357 = scalar_lea.vmem %s3, %s1356
        %s1358 = smul.u32 72, %s14
        %s1359 = smul.u32 72, %s14
        %p1360 = scmp.lt.s32.totalorder %s1359, 143
        %s1361 = scalar_select %p1360, %s1359, 143
        %s1362 = smul.addr %s1361, 8
        %s1363 = scalar_lea.vmem %s3, %s1362
        %s1364 = smul.u32 72, %s14
        %v1366 = vld [vmem:[%s1337] sm:$0xf]
        %v1367 = vld [vmem:[%s1337 + $0x4] sm:$0xf]
        %v1368 = vld [vmem:[%s1337 + $0x8] sm:$0xf]
        %v1369 = vld [vmem:[%s1337 + $0xc] sm:$0xf]
        %v1370 = vld [vmem:[%s1337 + $0x10] sm:$0xf]
        %v1371 = vld [vmem:[%s1337 + $0x14] sm:$0xf]
        %v1372 = vld [vmem:[%s1337 + $0x18] sm:$0xf]
        %v1373 = vld [vmem:[%s1337 + $0x1c] sm:$0xf]
        %v1374 = vld [vmem:[%s1337 + $0x20] sm:$0xf]
        %v1375 = vld [vmem:[%s1337 + $0x24] sm:$0xf]
        %v1376 = vld [vmem:[%s1337 + $0x28] sm:$0xf]
        %v1377 = vld [vmem:[%s1337 + $0x2c] sm:$0xf]
        %v1378 = vld [vmem:[%s1337 + $0x30] sm:$0xf]
        %v1379 = vld [vmem:[%s1337 + $0x34] sm:$0xf]
        %v1380 = vld [vmem:[%s1337 + $0x38] sm:$0xf]
        %v1381 = vld [vmem:[%s1337 + $0x3c] sm:$0xf]
        %v1382 = vld [vmem:[%s1337 + $0x40] sm:$0xf]
        %v1383 = vld [vmem:[%s1337 + $0x44] sm:$0xf]
        %v1384 = vld [vmem:[%s1337 + $0x48] sm:$0xf]
        %v1385 = vld [vmem:[%s1337 + $0x4c] sm:$0xf]
        %v1386 = vld [vmem:[%s1337 + $0x50] sm:$0xf]
        %v1387 = vld [vmem:[%s1337 + $0x54] sm:$0xf]
        %v1388 = vld [vmem:[%s1337 + $0x58] sm:$0xf]
        %v1389 = vld [vmem:[%s1337 + $0x5c] sm:$0xf]
        %v1390 = vld [vmem:[%s1337 + $0x60] sm:$0xf]
        %v1391 = vld [vmem:[%s1337 + $0x64] sm:$0xf]
        %v1392 = vld [vmem:[%s1337 + $0x68] sm:$0xf]
        %v1393 = vld [vmem:[%s1337 + $0x6c] sm:$0xf]
        %v1394 = vld [vmem:[%s1337 + $0x70] sm:$0xf]
        %v1395 = vld [vmem:[%s1337 + $0x74] sm:$0xf]
        %v1396 = vld [vmem:[%s1337 + $0x78] sm:$0xf]
        %v1397 = vld [vmem:[%s1337 + $0x7c] sm:$0xf]
        %v1398 = vld [vmem:[%s1337 + $0x80] sm:$0xf]
        %v1399 = vld [vmem:[%s1337 + $0x84] sm:$0xf]
        %v1400 = vld [vmem:[%s1337 + $0x88] sm:$0xf]
        %v1401 = vld [vmem:[%s1337 + $0x8c] sm:$0xf]
        %v1402 = vld [vmem:[%s1337 + $0x90] sm:$0xf]
        %v1403 = vld [vmem:[%s1337 + $0x94] sm:$0xf]
        %v1404 = vld [vmem:[%s1337 + $0x98] sm:$0xf]
        %v1405 = vld [vmem:[%s1337 + $0x9c] sm:$0xf]
        %v1406 = vld [vmem:[%s1337 + $0xa0] sm:$0xf]
        %v1407 = vld [vmem:[%s1337 + $0xa4] sm:$0xf]
        %v1408 = vld [vmem:[%s1337 + $0xa8] sm:$0xf]
        %v1409 = vld [vmem:[%s1337 + $0xac] sm:$0xf]
        %v1410 = vld [vmem:[%s1337 + $0xb0] sm:$0xf]
        %v1411 = vld [vmem:[%s1337 + $0xb4] sm:$0xf]
        %v1412 = vld [vmem:[%s1337 + $0xb8] sm:$0xf]
        %v1413 = vld [vmem:[%s1337 + $0xbc] sm:$0xf]
        %v1414 = vld [vmem:[%s1337 + $0xc0] sm:$0xf]
        %v1415 = vld [vmem:[%s1337 + $0xc4] sm:$0xf]
        %v1416 = vld [vmem:[%s1337 + $0xc8] sm:$0xf]
        %v1417 = vld [vmem:[%s1337 + $0xcc] sm:$0xf]
        %v1418 = vld [vmem:[%s1337 + $0xd0] sm:$0xf]
        %v1419 = vld [vmem:[%s1337 + $0xd4] sm:$0xf]
        %v1420 = vld [vmem:[%s1337 + $0xd8] sm:$0xf]
        %v1421 = vld [vmem:[%s1337 + $0xdc] sm:$0xf]
        %v1422 = vld [vmem:[%s1337 + $0xe0] sm:$0xf]
        %v1423 = vld [vmem:[%s1337 + $0xe4] sm:$0xf]
        %v1424 = vld [vmem:[%s1337 + $0xe8] sm:$0xf]
        %v1425 = vld [vmem:[%s1337 + $0xec] sm:$0xf]
        %v1426 = vld [vmem:[%s1337 + $0xf0] sm:$0xf]
        %v1427 = vld [vmem:[%s1337 + $0xf4] sm:$0xf]
        %v1428 = vld [vmem:[%s1337 + $0xf8] sm:$0xf]
        %v1429 = vld [vmem:[%s1337 + $0xfc] sm:$0xf]
        %v1430 = vld [vmem:[%s1337 + $0x100] sm:$0xf]
        %v1431 = vld [vmem:[%s1337 + $0x104] sm:$0xf]
        %v1432 = vld [vmem:[%s1337 + $0x108] sm:$0xf]
        %v1433 = vld [vmem:[%s1337 + $0x10c] sm:$0xf]
        %v1434 = vld [vmem:[%s1337 + $0x110] sm:$0xf]
        %v1435 = vld [vmem:[%s1337 + $0x114] sm:$0xf]
        %v1436 = vld [vmem:[%s1337 + $0x118] sm:$0xf]
        %v1437 = vld [vmem:[%s1337 + $0x11c] sm:$0xf]
        %v1438 = vld [vmem:[%s1337 + $0x120] sm:$0xf]
        %v1439 = vld [vmem:[%s1337 + $0x124] sm:$0xf]
        %v1440 = vld [vmem:[%s1337 + $0x128] sm:$0xf]
        %v1441 = vld [vmem:[%s1337 + $0x12c] sm:$0xf]
        %v1442 = vld [vmem:[%s1337 + $0x130] sm:$0xf]
        %v1443 = vld [vmem:[%s1337 + $0x134] sm:$0xf]
        %v1444 = vld [vmem:[%s1337 + $0x138] sm:$0xf]
        %v1445 = vld [vmem:[%s1337 + $0x13c] sm:$0xf]
        %v1446 = vld [vmem:[%s1337 + $0x140] sm:$0xf]
        %v1447 = vld [vmem:[%s1337 + $0x144] sm:$0xf]
        %v1448 = vld [vmem:[%s1337 + $0x148] sm:$0xf]
        %v1449 = vld [vmem:[%s1337 + $0x14c] sm:$0xf]
        %v1450 = vld [vmem:[%s1337 + $0x150] sm:$0xf]
        %v1451 = vld [vmem:[%s1337 + $0x154] sm:$0xf]
        %v1452 = vld [vmem:[%s1337 + $0x158] sm:$0xf]
        %v1453 = vld [vmem:[%s1337 + $0x15c] sm:$0xf]
        %v1454 = vld [vmem:[%s1337 + $0x160] sm:$0xf]
        %v1455 = vld [vmem:[%s1337 + $0x164] sm:$0xf]
        %v1456 = vld [vmem:[%s1337 + $0x168] sm:$0xf]
        %v1457 = vld [vmem:[%s1337 + $0x16c] sm:$0xf]
        %v1458 = vld [vmem:[%s1337 + $0x170] sm:$0xf]
        %v1459 = vld [vmem:[%s1337 + $0x174] sm:$0xf]
        %v1460 = vld [vmem:[%s1337 + $0x178] sm:$0xf]
        %v1461 = vld [vmem:[%s1337 + $0x17c] sm:$0xf]
        %v1462 = vld [vmem:[%s1337 + $0x180] sm:$0xf]
        %v1463 = vld [vmem:[%s1337 + $0x184] sm:$0xf]
        %v1464 = vld [vmem:[%s1337 + $0x188] sm:$0xf]
        %v1465 = vld [vmem:[%s1337 + $0x18c] sm:$0xf]
        %v1466 = vld [vmem:[%s1337 + $0x190] sm:$0xf]
        %v1467 = vld [vmem:[%s1337 + $0x194] sm:$0xf]
        %v1468 = vld [vmem:[%s1337 + $0x198] sm:$0xf]
        %v1469 = vld [vmem:[%s1337 + $0x19c] sm:$0xf]
        %v1470 = vld [vmem:[%s1337 + $0x1a0] sm:$0xf]
        %v1471 = vld [vmem:[%s1337 + $0x1a4] sm:$0xf]
        %v1472 = vld [vmem:[%s1337 + $0x1a8] sm:$0xf]
        %v1473 = vld [vmem:[%s1337 + $0x1ac] sm:$0xf]
        %v1474 = vld [vmem:[%s1337 + $0x1b0] sm:$0xf]
        %v1475 = vld [vmem:[%s1337 + $0x1b4] sm:$0xf]
        %v1476 = vld [vmem:[%s1337 + $0x1b8] sm:$0xf]
        %v1477 = vld [vmem:[%s1337 + $0x1bc] sm:$0xf]
        %v1478 = vld [vmem:[%s1337 + $0x1c0] sm:$0xf]
        %v1479 = vld [vmem:[%s1337 + $0x1c4] sm:$0xf]
        %v1480 = vld [vmem:[%s1337 + $0x1c8] sm:$0xf]
        %v1481 = vld [vmem:[%s1337 + $0x1cc] sm:$0xf]
        %v1482 = vld [vmem:[%s1337 + $0x1d0] sm:$0xf]
        %v1483 = vld [vmem:[%s1337 + $0x1d4] sm:$0xf]
        %v1484 = vld [vmem:[%s1337 + $0x1d8] sm:$0xf]
        %v1485 = vld [vmem:[%s1337 + $0x1dc] sm:$0xf]
        %v1486 = vld [vmem:[%s1337 + $0x1e0] sm:$0xf]
        %v1487 = vld [vmem:[%s1337 + $0x1e4] sm:$0xf]
        %v1488 = vld [vmem:[%s1337 + $0x1e8] sm:$0xf]
        %v1489 = vld [vmem:[%s1337 + $0x1ec] sm:$0xf]
        %v1490 = vld [vmem:[%s1337 + $0x1f0] sm:$0xf]
        %v1491 = vld [vmem:[%s1337 + $0x1f4] sm:$0xf]
        %v1492 = vld [vmem:[%s1337 + $0x1f8] sm:$0xf]
        %v1493 = vld [vmem:[%s1337 + $0x1fc] sm:$0xf]
        %v1494 = vld [vmem:[%s1337 + $0x200] sm:$0xf]
        %v1495 = vld [vmem:[%s1337 + $0x204] sm:$0xf]
        %v1496 = vld [vmem:[%s1337 + $0x208] sm:$0xf]
        %v1497 = vld [vmem:[%s1337 + $0x20c] sm:$0xf]
        %v1498 = vld [vmem:[%s1337 + $0x210] sm:$0xf]
        %v1499 = vld [vmem:[%s1337 + $0x214] sm:$0xf]
        %v1500 = vld [vmem:[%s1337 + $0x218] sm:$0xf]
        %v1501 = vld [vmem:[%s1337 + $0x21c] sm:$0xf]
        %v1502 = vld [vmem:[%s1337 + $0x220] sm:$0xf]
        %v1503 = vld [vmem:[%s1337 + $0x224] sm:$0xf]
        %v1504 = vld [vmem:[%s1337 + $0x228] sm:$0xf]
        %v1505 = vld [vmem:[%s1337 + $0x22c] sm:$0xf]
        %v1506 = vld [vmem:[%s1337 + $0x230] sm:$0xf]
        %v1507 = vld [vmem:[%s1337 + $0x234] sm:$0xf]
        %v1508 = vld [vmem:[%s1337 + $0x238] sm:$0xf]
        %v1509 = vld [vmem:[%s1337 + $0x23c] sm:$0xf]
        %v1510 = vld [vmem:[%s1337 + $0x240] sm:$0xf]
        %v1511 = vld [vmem:[%s1337 + $0x244] sm:$0xf]
        %v1512 = vld [vmem:[%s1337 + $0x248] sm:$0xf]
        %v1513 = vld [vmem:[%s1337 + $0x24c] sm:$0xf]
        %v1514 = vld [vmem:[%s1337 + $0x250] sm:$0xf]
        %v1515 = vld [vmem:[%s1337 + $0x254] sm:$0xf]
        %v1516 = vld [vmem:[%s1337 + $0x258] sm:$0xf]
        %v1517 = vld [vmem:[%s1337 + $0x25c] sm:$0xf]
        %v1518 = vld [vmem:[%s1337 + $0x260] sm:$0xf]
        %v1519 = vld [vmem:[%s1337 + $0x264] sm:$0xf]
        %v1520 = vld [vmem:[%s1337 + $0x268] sm:$0xf]
        %v1521 = vld [vmem:[%s1337 + $0x26c] sm:$0xf]
        %v1522 = vld [vmem:[%s1337 + $0x270] sm:$0xf]
        %v1523 = vld [vmem:[%s1337 + $0x274] sm:$0xf]
        %v1524 = vld [vmem:[%s1337 + $0x278] sm:$0xf]
        %v1525 = vld [vmem:[%s1337 + $0x27c] sm:$0xf]
        %v1526 = vld [vmem:[%s1337 + $0x280] sm:$0xf]
        %v1527 = vld [vmem:[%s1337 + $0x284] sm:$0xf]
        %v1528 = vld [vmem:[%s1337 + $0x288] sm:$0xf]
        %v1529 = vld [vmem:[%s1337 + $0x28c] sm:$0xf]
        %v1530 = vld [vmem:[%s1337 + $0x290] sm:$0xf]
        %v1531 = vld [vmem:[%s1337 + $0x294] sm:$0xf]
        %v1532 = vld [vmem:[%s1337 + $0x298] sm:$0xf]
        %v1533 = vld [vmem:[%s1337 + $0x29c] sm:$0xf]
        %v1534 = vld [vmem:[%s1337 + $0x2a0] sm:$0xf]
        %v1535 = vld [vmem:[%s1337 + $0x2a4] sm:$0xf]
        %v1536 = vld [vmem:[%s1337 + $0x2a8] sm:$0xf]
        %v1537 = vld [vmem:[%s1337 + $0x2ac] sm:$0xf]
        %v1538 = vld [vmem:[%s1337 + $0x2b0] sm:$0xf]
        %v1539 = vld [vmem:[%s1337 + $0x2b4] sm:$0xf]
        %v1540 = vld [vmem:[%s1337 + $0x2b8] sm:$0xf]
        %v1541 = vld [vmem:[%s1337 + $0x2bc] sm:$0xf]
        %v1542 = vld [vmem:[%s1337 + $0x2c0] sm:$0xf]
        %v1543 = vld [vmem:[%s1337 + $0x2c4] sm:$0xf]
        %v1544 = vld [vmem:[%s1337 + $0x2c8] sm:$0xf]
        %v1545 = vld [vmem:[%s1337 + $0x2cc] sm:$0xf]
        %v1546 = vld [vmem:[%s1337 + $0x2d0] sm:$0xf]
        %v1547 = vld [vmem:[%s1337 + $0x2d4] sm:$0xf]
        %v1548 = vld [vmem:[%s1337 + $0x2d8] sm:$0xf]
        %v1549 = vld [vmem:[%s1337 + $0x2dc] sm:$0xf]
        %v1550 = vld [vmem:[%s1337 + $0x2e0] sm:$0xf]
        %v1551 = vld [vmem:[%s1337 + $0x2e4] sm:$0xf]
        %v1552 = vld [vmem:[%s1337 + $0x2e8] sm:$0xf]
        %v1553 = vld [vmem:[%s1337 + $0x2ec] sm:$0xf]
        %v1554 = vld [vmem:[%s1337 + $0x2f0] sm:$0xf]
        %v1555 = vld [vmem:[%s1337 + $0x2f4] sm:$0xf]
        %v1556 = vld [vmem:[%s1337 + $0x2f8] sm:$0xf]
        %v1557 = vld [vmem:[%s1337 + $0x2fc] sm:$0xf]
        %v1558 = vld [vmem:[%s1337 + $0x300] sm:$0xf]
        %v1559 = vld [vmem:[%s1337 + $0x304] sm:$0xf]
        %v1560 = vld [vmem:[%s1337 + $0x308] sm:$0xf]
        %v1561 = vld [vmem:[%s1337 + $0x30c] sm:$0xf]
        %v1562 = vld [vmem:[%s1337 + $0x310] sm:$0xf]
        %v1563 = vld [vmem:[%s1337 + $0x314] sm:$0xf]
        %v1564 = vld [vmem:[%s1337 + $0x318] sm:$0xf]
        %v1565 = vld [vmem:[%s1337 + $0x31c] sm:$0xf]
        %v1566 = vld [vmem:[%s1337 + $0x320] sm:$0xf]
        %v1567 = vld [vmem:[%s1337 + $0x324] sm:$0xf]
        %v1568 = vld [vmem:[%s1337 + $0x328] sm:$0xf]
        %v1569 = vld [vmem:[%s1337 + $0x32c] sm:$0xf]
        %v1570 = vld [vmem:[%s1337 + $0x330] sm:$0xf]
        %v1571 = vld [vmem:[%s1337 + $0x334] sm:$0xf]
        %v1572 = vld [vmem:[%s1337 + $0x338] sm:$0xf]
        %v1573 = vld [vmem:[%s1337 + $0x33c] sm:$0xf]
        %v1574 = vld [vmem:[%s1337 + $0x340] sm:$0xf]
        %v1575 = vld [vmem:[%s1337 + $0x344] sm:$0xf]
        %v1576 = vld [vmem:[%s1337 + $0x348] sm:$0xf]
        %v1577 = vld [vmem:[%s1337 + $0x34c] sm:$0xf]
        %v1578 = vld [vmem:[%s1337 + $0x350] sm:$0xf]
        %v1579 = vld [vmem:[%s1337 + $0x354] sm:$0xf]
        %v1580 = vld [vmem:[%s1337 + $0x358] sm:$0xf]
        %v1581 = vld [vmem:[%s1337 + $0x35c] sm:$0xf]
        %v1582 = vld [vmem:[%s1337 + $0x360] sm:$0xf]
        %v1583 = vld [vmem:[%s1337 + $0x364] sm:$0xf]
        %v1584 = vld [vmem:[%s1337 + $0x368] sm:$0xf]
        %v1585 = vld [vmem:[%s1337 + $0x36c] sm:$0xf]
        %v1586 = vld [vmem:[%s1337 + $0x370] sm:$0xf]
        %v1587 = vld [vmem:[%s1337 + $0x374] sm:$0xf]
        %v1588 = vld [vmem:[%s1337 + $0x378] sm:$0xf]
        %v1589 = vld [vmem:[%s1337 + $0x37c] sm:$0xf]
        %v1590 = vld [vmem:[%s1337 + $0x380] sm:$0xf]
        %v1591 = vld [vmem:[%s1337 + $0x384] sm:$0xf]
        %v1592 = vld [vmem:[%s1337 + $0x388] sm:$0xf]
        %v1593 = vld [vmem:[%s1337 + $0x38c] sm:$0xf]
        %v1594 = vld [vmem:[%s1337 + $0x390] sm:$0xf]
        %v1595 = vld [vmem:[%s1337 + $0x394] sm:$0xf]
        %v1596 = vld [vmem:[%s1337 + $0x398] sm:$0xf]
        %v1597 = vld [vmem:[%s1337 + $0x39c] sm:$0xf]
        %v1598 = vld [vmem:[%s1337 + $0x3a0] sm:$0xf]
        %v1599 = vld [vmem:[%s1337 + $0x3a4] sm:$0xf]
        %v1600 = vld [vmem:[%s1337 + $0x3a8] sm:$0xf]
        %v1601 = vld [vmem:[%s1337 + $0x3ac] sm:$0xf]
        %v1602 = vld [vmem:[%s1337 + $0x3b0] sm:$0xf]
        %v1603 = vld [vmem:[%s1337 + $0x3b4] sm:$0xf]
        %v1604 = vld [vmem:[%s1337 + $0x3b8] sm:$0xf]
        %v1605 = vld [vmem:[%s1337 + $0x3bc] sm:$0xf]
        %v1606 = vld [vmem:[%s1337 + $0x3c0] sm:$0xf]
        %v1607 = vld [vmem:[%s1337 + $0x3c4] sm:$0xf]
        %v1608 = vld [vmem:[%s1337 + $0x3c8] sm:$0xf]
        %v1609 = vld [vmem:[%s1337 + $0x3cc] sm:$0xf]
        %v1610 = vld [vmem:[%s1337 + $0x3d0] sm:$0xf]
        %v1611 = vld [vmem:[%s1337 + $0x3d4] sm:$0xf]
        %v1612 = vld [vmem:[%s1337 + $0x3d8] sm:$0xf]
        %v1613 = vld [vmem:[%s1337 + $0x3dc] sm:$0xf]
        %v1614 = vld [vmem:[%s1337 + $0x3e0] sm:$0xf]
        %v1615 = vld [vmem:[%s1337 + $0x3e4] sm:$0xf]
        %v1616 = vld [vmem:[%s1337 + $0x3e8] sm:$0xf]
        %v1617 = vld [vmem:[%s1337 + $0x3ec] sm:$0xf]
        %v1618 = vld [vmem:[%s1337 + $0x3f0] sm:$0xf]
        %v1619 = vld [vmem:[%s1337 + $0x3f4] sm:$0xf]
        %v1620 = vld [vmem:[%s1337 + $0x3f8] sm:$0xf]
        %v1621 = vld [vmem:[%s1337 + $0x3fc] sm:$0xf]
        %v1622 = vld [vmem:[%s1337 + $0x400] sm:$0xf]
        %v1623 = vld [vmem:[%s1337 + $0x404] sm:$0xf]
        %v1624 = vld [vmem:[%s1337 + $0x408] sm:$0xf]
        %v1625 = vld [vmem:[%s1337 + $0x40c] sm:$0xf]
        %v1626 = vld [vmem:[%s1337 + $0x410] sm:$0xf]
        %v1627 = vld [vmem:[%s1337 + $0x414] sm:$0xf]
        %v1628 = vld [vmem:[%s1337 + $0x418] sm:$0xf]
        %v1629 = vld [vmem:[%s1337 + $0x41c] sm:$0xf]
        %v1630 = vld [vmem:[%s1337 + $0x420] sm:$0xf]
        %v1631 = vld [vmem:[%s1337 + $0x424] sm:$0xf]
        %v1632 = vld [vmem:[%s1337 + $0x428] sm:$0xf]
        %v1633 = vld [vmem:[%s1337 + $0x42c] sm:$0xf]
        %v1634 = vld [vmem:[%s1337 + $0x430] sm:$0xf]
        %v1635 = vld [vmem:[%s1337 + $0x434] sm:$0xf]
        %v1636 = vld [vmem:[%s1337 + $0x438] sm:$0xf]
        %v1637 = vld [vmem:[%s1337 + $0x43c] sm:$0xf]
        %v1638 = vld [vmem:[%s1337 + $0x440] sm:$0xf]
        %v1639 = vld [vmem:[%s1337 + $0x444] sm:$0xf]
        %v1640 = vld [vmem:[%s1337 + $0x448] sm:$0xf]
        %v1641 = vld [vmem:[%s1337 + $0x44c] sm:$0xf]
        %v1642 = vld [vmem:[%s1337 + $0x450] sm:$0xf]
        %v1643 = vld [vmem:[%s1337 + $0x454] sm:$0xf]
        %v1644 = vld [vmem:[%s1337 + $0x458] sm:$0xf]
        %v1645 = vld [vmem:[%s1337 + $0x45c] sm:$0xf]
        %v1646 = vld [vmem:[%s1337 + $0x460] sm:$0xf]
        %v1647 = vld [vmem:[%s1337 + $0x464] sm:$0xf]
        %v1648 = vld [vmem:[%s1337 + $0x468] sm:$0xf]
        %v1649 = vld [vmem:[%s1337 + $0x46c] sm:$0xf]
        %v1650 = vld [vmem:[%s1337 + $0x470] sm:$0xf]
        %v1651 = vld [vmem:[%s1337 + $0x474] sm:$0xf]
        %v1652 = vld [vmem:[%s1337 + $0x478] sm:$0xf]
        %v1653 = vld [vmem:[%s1337 + $0x47c] sm:$0xf]
        %v1654 = vld [vmem:[%s1] sm:$0xf]
        %v1655 = vld [vmem:[%s1 + $0x4] sm:$0xf]
        %v1656 = vld [vmem:[%s1 + $0x8] sm:$0xf]
        %v1657 = vld [vmem:[%s1 + $0xc] sm:$0x1]
        %v1946 = vunpack.c.l.b16 %v1366
        %v1947 = vunpack.c.l.b16 %v1367
        %v1948 = vunpack.c.l.b16 %v1368
        %v1949 = vunpack.c.l.b16 %v1369
        %v1950 = vunpack.c.l.b16 %v1370
        %v1951 = vunpack.c.l.b16 %v1371
        %v1952 = vunpack.c.l.b16 %v1372
        %v1953 = vunpack.c.l.b16 %v1373
        %v1954 = vunpack.c.l.b16 %v1374
        %v1955 = vunpack.c.l.b16 %v1375
        %v1956 = vunpack.c.l.b16 %v1376
        %v1957 = vunpack.c.l.b16 %v1377
        %v1958 = vunpack.c.l.b16 %v1378
        %v1959 = vunpack.c.l.b16 %v1379
        %v1960 = vunpack.c.l.b16 %v1380
        %v1961 = vunpack.c.l.b16 %v1381
        %v1962 = vunpack.c.l.b16 %v1382
        %v1963 = vunpack.c.l.b16 %v1383
        %v1964 = vunpack.c.l.b16 %v1384
        %v1965 = vunpack.c.l.b16 %v1385
        %v1966 = vunpack.c.l.b16 %v1386
        %v1967 = vunpack.c.l.b16 %v1387
        %v1968 = vunpack.c.l.b16 %v1388
        %v1969 = vunpack.c.l.b16 %v1389
        %v1970 = vunpack.c.l.b16 %v1390
        %v1971 = vunpack.c.l.b16 %v1391
        %v1972 = vunpack.c.l.b16 %v1392
        %v1973 = vunpack.c.l.b16 %v1393
        %v1974 = vunpack.c.l.b16 %v1394
        %v1975 = vunpack.c.l.b16 %v1395
        %v1976 = vunpack.c.l.b16 %v1396
        %v1977 = vunpack.c.l.b16 %v1397
        %v1978 = vunpack.c.l.b16 %v1398
        %v1979 = vunpack.c.l.b16 %v1399
        %v1980 = vunpack.c.l.b16 %v1400
        %v1981 = vunpack.c.l.b16 %v1401
        %v1982 = vunpack.c.l.b16 %v1402
        %v1983 = vunpack.c.l.b16 %v1403
        %v1984 = vunpack.c.l.b16 %v1404
        %v1985 = vunpack.c.l.b16 %v1405
        %v1986 = vunpack.c.l.b16 %v1406
        %v1987 = vunpack.c.l.b16 %v1407
        %v1988 = vunpack.c.l.b16 %v1408
        %v1989 = vunpack.c.l.b16 %v1409
        %v1990 = vunpack.c.l.b16 %v1410
        %v1991 = vunpack.c.l.b16 %v1411
        %v1992 = vunpack.c.l.b16 %v1412
        %v1993 = vunpack.c.l.b16 %v1413
        %v1994 = vunpack.c.l.b16 %v1414
        %v1995 = vunpack.c.l.b16 %v1415
        %v1996 = vunpack.c.l.b16 %v1416
        %v1997 = vunpack.c.l.b16 %v1417
        %v1998 = vunpack.c.l.b16 %v1418
        %v1999 = vunpack.c.l.b16 %v1419
        %v2000 = vunpack.c.l.b16 %v1420
        %v2001 = vunpack.c.l.b16 %v1421
        %v2002 = vunpack.c.l.b16 %v1422
        %v2003 = vunpack.c.l.b16 %v1423
        %v2004 = vunpack.c.l.b16 %v1424
        %v2005 = vunpack.c.l.b16 %v1425
        %v2006 = vunpack.c.l.b16 %v1426
        %v2007 = vunpack.c.l.b16 %v1427
        %v2008 = vunpack.c.l.b16 %v1428
        %v2009 = vunpack.c.l.b16 %v1429
        %v2010 = vunpack.c.l.b16 %v1430
        %v2011 = vunpack.c.l.b16 %v1431
        %v2012 = vunpack.c.l.b16 %v1432
        %v2013 = vunpack.c.l.b16 %v1433
        %v2014 = vunpack.c.l.b16 %v1434
        %v2015 = vunpack.c.l.b16 %v1435
        %v2016 = vunpack.c.l.b16 %v1436
        %v2017 = vunpack.c.l.b16 %v1437
        %v2018 = vunpack.c.l.b16 %v1438
        %v2019 = vunpack.c.l.b16 %v1439
        %v2020 = vunpack.c.l.b16 %v1440
        %v2021 = vunpack.c.l.b16 %v1441
        %v2022 = vunpack.c.l.b16 %v1442
        %v2023 = vunpack.c.l.b16 %v1443
        %v2024 = vunpack.c.l.b16 %v1444
        %v2025 = vunpack.c.l.b16 %v1445
        %v2026 = vunpack.c.l.b16 %v1446
        %v2027 = vunpack.c.l.b16 %v1447
        %v2028 = vunpack.c.l.b16 %v1448
        %v2029 = vunpack.c.l.b16 %v1449
        %v2030 = vunpack.c.l.b16 %v1450
        %v2031 = vunpack.c.l.b16 %v1451
        %v2032 = vunpack.c.l.b16 %v1452
        %v2033 = vunpack.c.l.b16 %v1453
        %v2034 = vunpack.c.l.b16 %v1454
        %v2035 = vunpack.c.l.b16 %v1455
        %v2036 = vunpack.c.l.b16 %v1456
        %v2037 = vunpack.c.l.b16 %v1457
        %v2038 = vunpack.c.l.b16 %v1458
        %v2039 = vunpack.c.l.b16 %v1459
        %v2040 = vunpack.c.l.b16 %v1460
        %v2041 = vunpack.c.l.b16 %v1461
        %v2042 = vunpack.c.l.b16 %v1462
        %v2043 = vunpack.c.l.b16 %v1463
        %v2044 = vunpack.c.l.b16 %v1464
        %v2045 = vunpack.c.l.b16 %v1465
        %v2046 = vunpack.c.l.b16 %v1466
        %v2047 = vunpack.c.l.b16 %v1467
        %v2048 = vunpack.c.l.b16 %v1468
        %v2049 = vunpack.c.l.b16 %v1469
        %v2050 = vunpack.c.l.b16 %v1470
        %v2051 = vunpack.c.l.b16 %v1471
        %v2052 = vunpack.c.l.b16 %v1472
        %v2053 = vunpack.c.l.b16 %v1473
        %v2054 = vunpack.c.l.b16 %v1474
        %v2055 = vunpack.c.l.b16 %v1475
        %v2056 = vunpack.c.l.b16 %v1476
        %v2057 = vunpack.c.l.b16 %v1477
        %v2058 = vunpack.c.l.b16 %v1478
        %v2059 = vunpack.c.l.b16 %v1479
        %v2060 = vunpack.c.l.b16 %v1480
        %v2061 = vunpack.c.l.b16 %v1481
        %v2062 = vunpack.c.l.b16 %v1482
        %v2063 = vunpack.c.l.b16 %v1483
        %v2064 = vunpack.c.l.b16 %v1484
        %v2065 = vunpack.c.l.b16 %v1485
        %v2066 = vunpack.c.l.b16 %v1486
        %v2067 = vunpack.c.l.b16 %v1487
        %v2068 = vunpack.c.l.b16 %v1488
        %v2069 = vunpack.c.l.b16 %v1489
        %v2070 = vunpack.c.l.b16 %v1490
        %v2071 = vunpack.c.l.b16 %v1491
        %v2072 = vunpack.c.l.b16 %v1492
        %v2073 = vunpack.c.l.b16 %v1493
        %v2074 = vunpack.c.l.b16 %v1494
        %v2075 = vunpack.c.l.b16 %v1495
        %v2076 = vunpack.c.l.b16 %v1496
        %v2077 = vunpack.c.l.b16 %v1497
        %v2078 = vunpack.c.l.b16 %v1498
        %v2079 = vunpack.c.l.b16 %v1499
        %v2080 = vunpack.c.l.b16 %v1500
        %v2081 = vunpack.c.l.b16 %v1501
        %v2082 = vunpack.c.l.b16 %v1502
        %v2083 = vunpack.c.l.b16 %v1503
        %v2084 = vunpack.c.l.b16 %v1504
        %v2085 = vunpack.c.l.b16 %v1505
        %v2086 = vunpack.c.l.b16 %v1506
        %v2087 = vunpack.c.l.b16 %v1507
        %v2088 = vunpack.c.l.b16 %v1508
        %v2089 = vunpack.c.l.b16 %v1509
        %v2090 = vunpack.c.l.b16 %v1510
        %v2091 = vunpack.c.l.b16 %v1511
        %v2092 = vunpack.c.l.b16 %v1512
        %v2093 = vunpack.c.l.b16 %v1513
        %v2094 = vunpack.c.l.b16 %v1514
        %v2095 = vunpack.c.l.b16 %v1515
        %v2096 = vunpack.c.l.b16 %v1516
        %v2097 = vunpack.c.l.b16 %v1517
        %v2098 = vunpack.c.l.b16 %v1518
        %v2099 = vunpack.c.l.b16 %v1519
        %v2100 = vunpack.c.l.b16 %v1520
        %v2101 = vunpack.c.l.b16 %v1521
        %v2102 = vunpack.c.l.b16 %v1522
        %v2103 = vunpack.c.l.b16 %v1523
        %v2104 = vunpack.c.l.b16 %v1524
        %v2105 = vunpack.c.l.b16 %v1525
        %v2106 = vunpack.c.l.b16 %v1526
        %v2107 = vunpack.c.l.b16 %v1527
        %v2108 = vunpack.c.l.b16 %v1528
        %v2109 = vunpack.c.l.b16 %v1529
        %v2110 = vunpack.c.l.b16 %v1530
        %v2111 = vunpack.c.l.b16 %v1531
        %v2112 = vunpack.c.l.b16 %v1532
        %v2113 = vunpack.c.l.b16 %v1533
        %v2114 = vunpack.c.l.b16 %v1534
        %v2115 = vunpack.c.l.b16 %v1535
        %v2116 = vunpack.c.l.b16 %v1536
        %v2117 = vunpack.c.l.b16 %v1537
        %v2118 = vunpack.c.l.b16 %v1538
        %v2119 = vunpack.c.l.b16 %v1539
        %v2120 = vunpack.c.l.b16 %v1540
        %v2121 = vunpack.c.l.b16 %v1541
        %v2122 = vunpack.c.l.b16 %v1542
        %v2123 = vunpack.c.l.b16 %v1543
        %v2124 = vunpack.c.l.b16 %v1544
        %v2125 = vunpack.c.l.b16 %v1545
        %v2126 = vunpack.c.l.b16 %v1546
        %v2127 = vunpack.c.l.b16 %v1547
        %v2128 = vunpack.c.l.b16 %v1548
        %v2129 = vunpack.c.l.b16 %v1549
        %v2130 = vunpack.c.l.b16 %v1550
        %v2131 = vunpack.c.l.b16 %v1551
        %v2132 = vunpack.c.l.b16 %v1552
        %v2133 = vunpack.c.l.b16 %v1553
        %v2134 = vunpack.c.l.b16 %v1554
        %v2135 = vunpack.c.l.b16 %v1555
        %v2136 = vunpack.c.l.b16 %v1556
        %v2137 = vunpack.c.l.b16 %v1557
        %v2138 = vunpack.c.l.b16 %v1558
        %v2139 = vunpack.c.l.b16 %v1559
        %v2140 = vunpack.c.l.b16 %v1560
        %v2141 = vunpack.c.l.b16 %v1561
        %v2142 = vunpack.c.l.b16 %v1562
        %v2143 = vunpack.c.l.b16 %v1563
        %v2144 = vunpack.c.l.b16 %v1564
        %v2145 = vunpack.c.l.b16 %v1565
        %v2146 = vunpack.c.l.b16 %v1566
        %v2147 = vunpack.c.l.b16 %v1567
        %v2148 = vunpack.c.l.b16 %v1568
        %v2149 = vunpack.c.l.b16 %v1569
        %v2150 = vunpack.c.l.b16 %v1570
        %v2151 = vunpack.c.l.b16 %v1571
        %v2152 = vunpack.c.l.b16 %v1572
        %v2153 = vunpack.c.l.b16 %v1573
        %v2154 = vunpack.c.l.b16 %v1574
        %v2155 = vunpack.c.l.b16 %v1575
        %v2156 = vunpack.c.l.b16 %v1576
        %v2157 = vunpack.c.l.b16 %v1577
        %v2158 = vunpack.c.l.b16 %v1578
        %v2159 = vunpack.c.l.b16 %v1579
        %v2160 = vunpack.c.l.b16 %v1580
        %v2161 = vunpack.c.l.b16 %v1581
        %v2162 = vunpack.c.l.b16 %v1582
        %v2163 = vunpack.c.l.b16 %v1583
        %v2164 = vunpack.c.l.b16 %v1584
        %v2165 = vunpack.c.l.b16 %v1585
        %v2166 = vunpack.c.l.b16 %v1586
        %v2167 = vunpack.c.l.b16 %v1587
        %v2168 = vunpack.c.l.b16 %v1588
        %v2169 = vunpack.c.l.b16 %v1589
        %v2170 = vunpack.c.l.b16 %v1590
        %v2171 = vunpack.c.l.b16 %v1591
        %v2172 = vunpack.c.l.b16 %v1592
        %v2173 = vunpack.c.l.b16 %v1593
        %v2174 = vunpack.c.l.b16 %v1594
        %v2175 = vunpack.c.l.b16 %v1595
        %v2176 = vunpack.c.l.b16 %v1596
        %v2177 = vunpack.c.l.b16 %v1597
        %v2178 = vunpack.c.l.b16 %v1598
        %v2179 = vunpack.c.l.b16 %v1599
        %v2180 = vunpack.c.l.b16 %v1600
        %v2181 = vunpack.c.l.b16 %v1601
        %v2182 = vunpack.c.l.b16 %v1602
        %v2183 = vunpack.c.l.b16 %v1603
        %v2184 = vunpack.c.l.b16 %v1604
        %v2185 = vunpack.c.l.b16 %v1605
        %v2186 = vunpack.c.l.b16 %v1606
        %v2187 = vunpack.c.l.b16 %v1607
        %v2188 = vunpack.c.l.b16 %v1608
        %v2189 = vunpack.c.l.b16 %v1609
        %v2190 = vunpack.c.l.b16 %v1610
        %v2191 = vunpack.c.l.b16 %v1611
        %v2192 = vunpack.c.l.b16 %v1612
        %v2193 = vunpack.c.l.b16 %v1613
        %v2194 = vunpack.c.l.b16 %v1614
        %v2195 = vunpack.c.l.b16 %v1615
        %v2196 = vunpack.c.l.b16 %v1616
        %v2197 = vunpack.c.l.b16 %v1617
        %v2198 = vunpack.c.l.b16 %v1618
        %v2199 = vunpack.c.l.b16 %v1619
        %v2200 = vunpack.c.l.b16 %v1620
        %v2201 = vunpack.c.l.b16 %v1621
        %v2202 = vunpack.c.l.b16 %v1622
        %v2203 = vunpack.c.l.b16 %v1623
        %v2204 = vunpack.c.l.b16 %v1624
        %v2205 = vunpack.c.l.b16 %v1625
        %v2206 = vunpack.c.l.b16 %v1626
        %v2207 = vunpack.c.l.b16 %v1627
        %v2208 = vunpack.c.l.b16 %v1628
        %v2209 = vunpack.c.l.b16 %v1629
        %v2210 = vunpack.c.l.b16 %v1630
        %v2211 = vunpack.c.l.b16 %v1631
        %v2212 = vunpack.c.l.b16 %v1632
        %v2213 = vunpack.c.l.b16 %v1633
        %v2214 = vunpack.c.l.b16 %v1634
        %v2215 = vunpack.c.l.b16 %v1635
        %v2216 = vunpack.c.l.b16 %v1636
        %v2217 = vunpack.c.l.b16 %v1637
        %v2218 = vunpack.c.l.b16 %v1638
        %v2219 = vunpack.c.l.b16 %v1639
        %v2220 = vunpack.c.l.b16 %v1640
        %v2221 = vunpack.c.l.b16 %v1641
        %v2222 = vunpack.c.l.b16 %v1642
        %v2223 = vunpack.c.l.b16 %v1643
        %v2224 = vunpack.c.l.b16 %v1644
        %v2225 = vunpack.c.l.b16 %v1645
        %v2226 = vunpack.c.l.b16 %v1646
        %v2227 = vunpack.c.l.b16 %v1647
        %v2228 = vunpack.c.l.b16 %v1648
        %v2229 = vunpack.c.l.b16 %v1649
        %v2230 = vunpack.c.l.b16 %v1650
        %v2231 = vunpack.c.l.b16 %v1651
        %v2232 = vunpack.c.l.b16 %v1652
        %v2233 = vunpack.c.l.b16 %v1653
        %v2234 = vpack.c.b16 %v1947, %v1946
        %v2235 = vpack.c.b16 %v1949, %v1948
        %v2236 = vpack.c.b16 %v1951, %v1950
        %v2237 = vpack.c.b16 %v1953, %v1952
        %v2238 = vpack.c.b16 %v1955, %v1954
        %v2239 = vpack.c.b16 %v1957, %v1956
        %v2240 = vpack.c.b16 %v1959, %v1958
        %v2241 = vpack.c.b16 %v1961, %v1960
        %v2242 = vpack.c.b16 %v1963, %v1962
        %v2243 = vpack.c.b16 %v1965, %v1964
        %v2244 = vpack.c.b16 %v1967, %v1966
        %v2245 = vpack.c.b16 %v1969, %v1968
        %v2246 = vpack.c.b16 %v1971, %v1970
        %v2247 = vpack.c.b16 %v1973, %v1972
        %v2248 = vpack.c.b16 %v1975, %v1974
        %v2249 = vpack.c.b16 %v1977, %v1976
        %v2250 = vpack.c.b16 %v1979, %v1978
        %v2251 = vpack.c.b16 %v1981, %v1980
        %v2252 = vpack.c.b16 %v1983, %v1982
        %v2253 = vpack.c.b16 %v1985, %v1984
        %v2254 = vpack.c.b16 %v1987, %v1986
        %v2255 = vpack.c.b16 %v1989, %v1988
        %v2256 = vpack.c.b16 %v1991, %v1990
        %v2257 = vpack.c.b16 %v1993, %v1992
        %v2258 = vpack.c.b16 %v1995, %v1994
        %v2259 = vpack.c.b16 %v1997, %v1996
        %v2260 = vpack.c.b16 %v1999, %v1998
        %v2261 = vpack.c.b16 %v2001, %v2000
        %v2262 = vpack.c.b16 %v2003, %v2002
        %v2263 = vpack.c.b16 %v2005, %v2004
        %v2264 = vpack.c.b16 %v2007, %v2006
        %v2265 = vpack.c.b16 %v2009, %v2008
        %v2266 = vpack.c.b16 %v2011, %v2010
        %v2267 = vpack.c.b16 %v2013, %v2012
        %v2268 = vpack.c.b16 %v2015, %v2014
        %v2269 = vpack.c.b16 %v2017, %v2016
        %v2270 = vpack.c.b16 %v2019, %v2018
        %v2271 = vpack.c.b16 %v2021, %v2020
        %v2272 = vpack.c.b16 %v2023, %v2022
        %v2273 = vpack.c.b16 %v2025, %v2024
        %v2274 = vpack.c.b16 %v2027, %v2026
        %v2275 = vpack.c.b16 %v2029, %v2028
        %v2276 = vpack.c.b16 %v2031, %v2030
        %v2277 = vpack.c.b16 %v2033, %v2032
        %v2278 = vpack.c.b16 %v2035, %v2034
        %v2279 = vpack.c.b16 %v2037, %v2036
        %v2280 = vpack.c.b16 %v2039, %v2038
        %v2281 = vpack.c.b16 %v2041, %v2040
        %v2282 = vpack.c.b16 %v2043, %v2042
        %v2283 = vpack.c.b16 %v2045, %v2044
        %v2284 = vpack.c.b16 %v2047, %v2046
        %v2285 = vpack.c.b16 %v2049, %v2048
        %v2286 = vpack.c.b16 %v2051, %v2050
        %v2287 = vpack.c.b16 %v2053, %v2052
        %v2288 = vpack.c.b16 %v2055, %v2054
        %v2289 = vpack.c.b16 %v2057, %v2056
        %v2290 = vpack.c.b16 %v2059, %v2058
        %v2291 = vpack.c.b16 %v2061, %v2060
        %v2292 = vpack.c.b16 %v2063, %v2062
        %v2293 = vpack.c.b16 %v2065, %v2064
        %v2294 = vpack.c.b16 %v2067, %v2066
        %v2295 = vpack.c.b16 %v2069, %v2068
        %v2296 = vpack.c.b16 %v2071, %v2070
        %v2297 = vpack.c.b16 %v2073, %v2072
        %v2298 = vpack.c.b16 %v2075, %v2074
        %v2299 = vpack.c.b16 %v2077, %v2076
        %v2300 = vpack.c.b16 %v2079, %v2078
        %v2301 = vpack.c.b16 %v2081, %v2080
        %v2302 = vpack.c.b16 %v2083, %v2082
        %v2303 = vpack.c.b16 %v2085, %v2084
        %v2304 = vpack.c.b16 %v2087, %v2086
        %v2305 = vpack.c.b16 %v2089, %v2088
        %v2306 = vpack.c.b16 %v2091, %v2090
        %v2307 = vpack.c.b16 %v2093, %v2092
        %v2308 = vpack.c.b16 %v2095, %v2094
        %v2309 = vpack.c.b16 %v2097, %v2096
        %v2310 = vpack.c.b16 %v2099, %v2098
        %v2311 = vpack.c.b16 %v2101, %v2100
        %v2312 = vpack.c.b16 %v2103, %v2102
        %v2313 = vpack.c.b16 %v2105, %v2104
        %v2314 = vpack.c.b16 %v2107, %v2106
        %v2315 = vpack.c.b16 %v2109, %v2108
        %v2316 = vpack.c.b16 %v2111, %v2110
        %v2317 = vpack.c.b16 %v2113, %v2112
        %v2318 = vpack.c.b16 %v2115, %v2114
        %v2319 = vpack.c.b16 %v2117, %v2116
        %v2320 = vpack.c.b16 %v2119, %v2118
        %v2321 = vpack.c.b16 %v2121, %v2120
        %v2322 = vpack.c.b16 %v2123, %v2122
        %v2323 = vpack.c.b16 %v2125, %v2124
        %v2324 = vpack.c.b16 %v2127, %v2126
        %v2325 = vpack.c.b16 %v2129, %v2128
        %v2326 = vpack.c.b16 %v2131, %v2130
        %v2327 = vpack.c.b16 %v2133, %v2132
        %v2328 = vpack.c.b16 %v2135, %v2134
        %v2329 = vpack.c.b16 %v2137, %v2136
        %v2330 = vpack.c.b16 %v2139, %v2138
        %v2331 = vpack.c.b16 %v2141, %v2140
        %v2332 = vpack.c.b16 %v2143, %v2142
        %v2333 = vpack.c.b16 %v2145, %v2144
        %v2334 = vpack.c.b16 %v2147, %v2146
        %v2335 = vpack.c.b16 %v2149, %v2148
        %v2336 = vpack.c.b16 %v2151, %v2150
        %v2337 = vpack.c.b16 %v2153, %v2152
        %v2338 = vpack.c.b16 %v2155, %v2154
        %v2339 = vpack.c.b16 %v2157, %v2156
        %v2340 = vpack.c.b16 %v2159, %v2158
        %v2341 = vpack.c.b16 %v2161, %v2160
        %v2342 = vpack.c.b16 %v2163, %v2162
        %v2343 = vpack.c.b16 %v2165, %v2164
        %v2344 = vpack.c.b16 %v2167, %v2166
        %v2345 = vpack.c.b16 %v2169, %v2168
        %v2346 = vpack.c.b16 %v2171, %v2170
        %v2347 = vpack.c.b16 %v2173, %v2172
        %v2348 = vpack.c.b16 %v2175, %v2174
        %v2349 = vpack.c.b16 %v2177, %v2176
        %v2350 = vpack.c.b16 %v2179, %v2178
        %v2351 = vpack.c.b16 %v2181, %v2180
        %v2352 = vpack.c.b16 %v2183, %v2182
        %v2353 = vpack.c.b16 %v2185, %v2184
        %v2354 = vpack.c.b16 %v2187, %v2186
        %v2355 = vpack.c.b16 %v2189, %v2188
        %v2356 = vpack.c.b16 %v2191, %v2190
        %v2357 = vpack.c.b16 %v2193, %v2192
        %v2358 = vpack.c.b16 %v2195, %v2194
        %v2359 = vpack.c.b16 %v2197, %v2196
        %v2360 = vpack.c.b16 %v2199, %v2198
        %v2361 = vpack.c.b16 %v2201, %v2200
        %v2362 = vpack.c.b16 %v2203, %v2202
        %v2363 = vpack.c.b16 %v2205, %v2204
        %v2364 = vpack.c.b16 %v2207, %v2206
        %v2365 = vpack.c.b16 %v2209, %v2208
        %v2366 = vpack.c.b16 %v2211, %v2210
        %v2367 = vpack.c.b16 %v2213, %v2212
        %v2368 = vpack.c.b16 %v2215, %v2214
        %v2369 = vpack.c.b16 %v2217, %v2216
        %v2370 = vpack.c.b16 %v2219, %v2218
        %v2371 = vpack.c.b16 %v2221, %v2220
        %v2372 = vpack.c.b16 %v2223, %v2222
        %v2373 = vpack.c.b16 %v2225, %v2224
        %v2374 = vpack.c.b16 %v2227, %v2226
        %v2375 = vpack.c.b16 %v2229, %v2228
        %v2376 = vpack.c.b16 %v2231, %v2230
        %v2377 = vpack.c.b16 %v2233, %v2232
        %v2382 = vunpack.c.l.b16 %v1654
        %v2383 = vunpack.c.l.b16 %v1655
        %v2384 = vunpack.c.l.b16 %v1656
        %v2385 = vunpack.c.l.b16 %v1657
        %v2386 = vpack.c.b16 %v2383, %v2382
        %v2387 = vpack.c.b16 %v2385, %v2384
        %vm2389 = vcmask 203776
        %v2391 = vsel %vm2389, %v2234, 0
        %v2394 = vsel %vm2389, %v2235, 0
        %v2397 = vsel %vm2389, %v2236, 0
        %v2400 = vsel %vm2389, %v2237, 0
        %v2403 = vsel %vm2389, %v2238, 0
        %v2406 = vsel %vm2389, %v2239, 0
        %v2409 = vsel %vm2389, %v2240, 0
        %v2412 = vsel %vm2389, %v2241, 0
        %v2415 = vsel %vm2389, %v2242, 0
        %v2418 = vsel %vm2389, %v2243, 0
        %v2421 = vsel %vm2389, %v2244, 0
        %v2424 = vsel %vm2389, %v2245, 0
        %v2427 = vsel %vm2389, %v2246, 0
        %v2430 = vsel %vm2389, %v2247, 0
        %v2433 = vsel %vm2389, %v2248, 0
        %v2436 = vsel %vm2389, %v2249, 0
        %v2439 = vsel %vm2389, %v2250, 0
        %v2442 = vsel %vm2389, %v2251, 0
        %v2445 = vsel %vm2389, %v2252, 0
        %v2448 = vsel %vm2389, %v2253, 0
        %v2451 = vsel %vm2389, %v2254, 0
        %v2454 = vsel %vm2389, %v2255, 0
        %v2457 = vsel %vm2389, %v2256, 0
        %v2460 = vsel %vm2389, %v2257, 0
        %v2463 = vsel %vm2389, %v2258, 0
        %v2466 = vsel %vm2389, %v2259, 0
        %v2469 = vsel %vm2389, %v2260, 0
        %v2472 = vsel %vm2389, %v2261, 0
        %v2475 = vsel %vm2389, %v2262, 0
        %v2478 = vsel %vm2389, %v2263, 0
        %v2481 = vsel %vm2389, %v2264, 0
        %v2484 = vsel %vm2389, %v2265, 0
        %v2487 = vsel %vm2389, %v2266, 0
        %v2490 = vsel %vm2389, %v2267, 0
        %v2493 = vsel %vm2389, %v2268, 0
        %v2496 = vsel %vm2389, %v2269, 0
        %v2499 = vsel %vm2389, %v2270, 0
        %v2502 = vsel %vm2389, %v2271, 0
        %v2505 = vsel %vm2389, %v2272, 0
        %v2508 = vsel %vm2389, %v2273, 0
        %v2511 = vsel %vm2389, %v2274, 0
        %v2514 = vsel %vm2389, %v2275, 0
        %v2517 = vsel %vm2389, %v2276, 0
        %v2520 = vsel %vm2389, %v2277, 0
        %v2523 = vsel %vm2389, %v2278, 0
        %v2526 = vsel %vm2389, %v2279, 0
        %v2529 = vsel %vm2389, %v2280, 0
        %v2532 = vsel %vm2389, %v2281, 0
        %v2535 = vsel %vm2389, %v2282, 0
        %v2538 = vsel %vm2389, %v2283, 0
        %v2541 = vsel %vm2389, %v2284, 0
        %v2544 = vsel %vm2389, %v2285, 0
        %v2547 = vsel %vm2389, %v2286, 0
        %v2550 = vsel %vm2389, %v2287, 0
        %v2553 = vsel %vm2389, %v2288, 0
        %v2556 = vsel %vm2389, %v2289, 0
        %v2559 = vsel %vm2389, %v2290, 0
        %v2562 = vsel %vm2389, %v2291, 0
        %v2565 = vsel %vm2389, %v2292, 0
        %v2568 = vsel %vm2389, %v2293, 0
        %v2571 = vsel %vm2389, %v2294, 0
        %v2574 = vsel %vm2389, %v2295, 0
        %v2577 = vsel %vm2389, %v2296, 0
        %v2580 = vsel %vm2389, %v2297, 0
        %v2583 = vsel %vm2389, %v2298, 0
        %v2586 = vsel %vm2389, %v2299, 0
        %v2589 = vsel %vm2389, %v2300, 0
        %v2592 = vsel %vm2389, %v2301, 0
        %v2595 = vsel %vm2389, %v2302, 0
        %v2598 = vsel %vm2389, %v2303, 0
        %v2601 = vsel %vm2389, %v2304, 0
        %v2604 = vsel %vm2389, %v2305, 0
        %v2607 = vsel %vm2389, %v2306, 0
        %v2610 = vsel %vm2389, %v2307, 0
        %v2613 = vsel %vm2389, %v2308, 0
        %v2616 = vsel %vm2389, %v2309, 0
        %v2619 = vsel %vm2389, %v2310, 0
        %v2622 = vsel %vm2389, %v2311, 0
        %v2625 = vsel %vm2389, %v2312, 0
        %v2628 = vsel %vm2389, %v2313, 0
        %v2631 = vsel %vm2389, %v2314, 0
        %v2634 = vsel %vm2389, %v2315, 0
        %v2637 = vsel %vm2389, %v2316, 0
        %v2640 = vsel %vm2389, %v2317, 0
        %v2643 = vsel %vm2389, %v2318, 0
        %v2646 = vsel %vm2389, %v2319, 0
        %v2649 = vsel %vm2389, %v2320, 0
        %v2652 = vsel %vm2389, %v2321, 0
        %v2655 = vsel %vm2389, %v2322, 0
        %v2658 = vsel %vm2389, %v2323, 0
        %v2661 = vsel %vm2389, %v2324, 0
        %v2664 = vsel %vm2389, %v2325, 0
        %v2667 = vsel %vm2389, %v2326, 0
        %v2670 = vsel %vm2389, %v2327, 0
        %v2673 = vsel %vm2389, %v2328, 0
        %v2676 = vsel %vm2389, %v2329, 0
        %v2679 = vsel %vm2389, %v2330, 0
        %v2682 = vsel %vm2389, %v2331, 0
        %v2685 = vsel %vm2389, %v2332, 0
        %v2688 = vsel %vm2389, %v2333, 0
        %v2691 = vsel %vm2389, %v2334, 0
        %v2694 = vsel %vm2389, %v2335, 0
        %v2697 = vsel %vm2389, %v2336, 0
        %v2700 = vsel %vm2389, %v2337, 0
        %v2703 = vsel %vm2389, %v2338, 0
        %v2706 = vsel %vm2389, %v2339, 0
        %v2709 = vsel %vm2389, %v2340, 0
        %v2712 = vsel %vm2389, %v2341, 0
        %v2715 = vsel %vm2389, %v2342, 0
        %v2718 = vsel %vm2389, %v2343, 0
        %v2721 = vsel %vm2389, %v2344, 0
        %v2724 = vsel %vm2389, %v2345, 0
        %v2727 = vsel %vm2389, %v2346, 0
        %v2730 = vsel %vm2389, %v2347, 0
        %v2733 = vsel %vm2389, %v2348, 0
        %v2736 = vsel %vm2389, %v2349, 0
        %v2739 = vsel %vm2389, %v2350, 0
        %v2742 = vsel %vm2389, %v2351, 0
        %v2745 = vsel %vm2389, %v2352, 0
        %v2748 = vsel %vm2389, %v2353, 0
        %v2751 = vsel %vm2389, %v2354, 0
        %v2754 = vsel %vm2389, %v2355, 0
        %v2757 = vsel %vm2389, %v2356, 0
        %v2760 = vsel %vm2389, %v2357, 0
        %v2763 = vsel %vm2389, %v2358, 0
        %v2766 = vsel %vm2389, %v2359, 0
        %v2769 = vsel %vm2389, %v2360, 0
        %v2772 = vsel %vm2389, %v2361, 0
        %v2775 = vsel %vm2389, %v2362, 0
        %v2778 = vsel %vm2389, %v2363, 0
        %v2781 = vsel %vm2389, %v2364, 0
        %v2784 = vsel %vm2389, %v2365, 0
        %v2787 = vsel %vm2389, %v2366, 0
        %v2790 = vsel %vm2389, %v2367, 0
        %v2793 = vsel %vm2389, %v2368, 0
        %v2796 = vsel %vm2389, %v2369, 0
        %v2799 = vsel %vm2389, %v2370, 0
        %v2802 = vsel %vm2389, %v2371, 0
        %v2805 = vsel %vm2389, %v2372, 0
        %v2808 = vsel %vm2389, %v2373, 0
        %v2811 = vsel %vm2389, %v2374, 0
        %v2814 = vsel %vm2389, %v2375, 0
        %v2817 = vsel %vm2389, %v2376, 0
        %v2820 = vsel %vm2389, %v2377, 0
        %vm2822 = vcmask 1043456
        %vm2823 = vcmask 1044480
        %v2824 = vsel %vm2822, 4294967295, 65535
        %v2825 = vsel %vm2823, %v2824, 0
        %v2827 = vand.u32 %v2387, %v2825
        %2829 = vmatprep.subr.bf16.mxu0 0
        %2830 = vmatpush1.bf16.msra.mxu0 0
        %2831 = vmatprep.subr.bf16.mxu0 0
        %2832 = vmatpush1.bf16.msra.mxu0 0
        %2833 = vmatprep.subr.bf16.mxu0 0
        %2834 = vmatpush1.bf16.msra.mxu0 0
        %2835 = vmatprep.subr.bf16.mxu0 0
        %2836 = vmatpush1.bf16.msra.mxu0 0
        %2837 = vmatprep.subr.bf16.mxu0 0
        %2838 = vmatpush1.bf16.msra.mxu0 0
        %2839 = vmatprep.subr.bf16.mxu0 0
        %2840 = vmatpush1.bf16.msra.mxu0 0
        %2841 = vmatprep.subr.bf16.mxu0 0
        %2842 = vmatpush1.bf16.msra.mxu0 %v2827
        %2843 = vmatprep.subr.bf16.mxu0 0
        %2844 = vmatpush1.bf16.msra.mxu0 %v2386
        %2845 = vmatprep.subr.bf16.mxu0 0
        %2846 = vmatpush2.bf16.msra.mxu0 0
        %2847 = vmatprep.subr.bf16.mxu0 0
        %2848 = vmatpush2.bf16.msra.mxu0 0
        %2849 = vmatprep.subr.bf16.mxu0 0
        %2850 = vmatpush2.bf16.msra.mxu0 0
        %2851 = vmatprep.subr.bf16.mxu0 0
        %2852 = vmatpush2.bf16.msra.mxu0 0
        %2853 = vmatprep.subr.bf16.mxu0 0
        %2854 = vmatpush2.bf16.msra.mxu0 0
        %2855 = vmatprep.subr.bf16.mxu0 0
        %2856 = vmatpush2.bf16.msra.mxu0 0
        %2857 = vmatprep.subr.bf16.mxu0 0
        %2858 = vmatpush2.bf16.msra.mxu0 0
        %2859 = vmatprep.subr.bf16.mxu0 0
        %2860 = vmatpush2.bf16.msra.mxu0 0
        %2861 = vmatprep.mubr.bf16.mxu0 0
        %2862 = vmatmul.mubr.bf16.gmra.mxu0 %v2391
        %v2863 = vpop.f32.mrf.mxu0
        %v2864 = vadd.f32 0.0, %v2863
        %v2865 = vpop.f32.mrf.mxu0
        %v2866 = vpop.f32.mrf.mxu0
        %v2867 = vadd.f32 0.0, %v2866
        %v2868 = vpop.f32.mrf.mxu0
        %2869 = vmatprep.mubr.bf16.mxu0 0
        %2870 = vmatmul.mubr.bf16.gmra.mxu0 %v2394
        %v2871 = vpop.f32.mrf.mxu0
        %v2872 = vadd.f32 0.0, %v2871
        %v2873 = vpop.f32.mrf.mxu0
        %v2874 = vpop.f32.mrf.mxu0
        %v2875 = vadd.f32 0.0, %v2874
        %v2876 = vpop.f32.mrf.mxu0
        %2877 = vmatprep.mubr.bf16.mxu0 0
        %2878 = vmatmul.mubr.bf16.gmra.mxu0 %v2397
        %v2879 = vpop.f32.mrf.mxu0
        %v2880 = vadd.f32 0.0, %v2879
        %v2881 = vpop.f32.mrf.mxu0
        %v2882 = vpop.f32.mrf.mxu0
        %v2883 = vadd.f32 0.0, %v2882
        %v2884 = vpop.f32.mrf.mxu0
        %2885 = vmatprep.mubr.bf16.mxu0 0
        %2886 = vmatmul.mubr.bf16.gmra.mxu0 %v2400
        %v2887 = vpop.f32.mrf.mxu0
        %v2888 = vadd.f32 0.0, %v2887
        %v2889 = vpop.f32.mrf.mxu0
        %v2890 = vpop.f32.mrf.mxu0
        %v2891 = vadd.f32 0.0, %v2890
        %v2892 = vpop.f32.mrf.mxu0
        %2893 = vmatprep.mubr.bf16.mxu0 0
        %2894 = vmatmul.mubr.bf16.gmra.mxu0 %v2403
        %v2895 = vpop.f32.mrf.mxu0
        %v2896 = vadd.f32 0.0, %v2895
        %v2897 = vpop.f32.mrf.mxu0
        %v2898 = vpop.f32.mrf.mxu0
        %v2899 = vadd.f32 0.0, %v2898
        %v2900 = vpop.f32.mrf.mxu0
        %2901 = vmatprep.mubr.bf16.mxu0 0
        %2902 = vmatmul.mubr.bf16.gmra.mxu0 %v2406
        %v2903 = vpop.f32.mrf.mxu0
        %v2904 = vadd.f32 0.0, %v2903
        %v2905 = vpop.f32.mrf.mxu0
        %v2906 = vpop.f32.mrf.mxu0
        %v2907 = vadd.f32 0.0, %v2906
        %v2908 = vpop.f32.mrf.mxu0
        %2909 = vmatprep.mubr.bf16.mxu0 0
        %2910 = vmatmul.mubr.bf16.gmra.mxu0 %v2409
        %v2911 = vpop.f32.mrf.mxu0
        %v2912 = vadd.f32 0.0, %v2911
        %v2913 = vpop.f32.mrf.mxu0
        %v2914 = vpop.f32.mrf.mxu0
        %v2915 = vadd.f32 0.0, %v2914
        %v2916 = vpop.f32.mrf.mxu0
        %2917 = vmatprep.mubr.bf16.mxu0 0
        %2918 = vmatmul.mubr.bf16.gmra.mxu0 %v2412
        %v2919 = vpop.f32.mrf.mxu0
        %v2920 = vadd.f32 0.0, %v2919
        %v2921 = vpop.f32.mrf.mxu0
        %v2922 = vpop.f32.mrf.mxu0
        %v2923 = vadd.f32 0.0, %v2922
        %v2924 = vpop.f32.mrf.mxu0
        %2925 = vmatprep.mubr.bf16.mxu0 0
        %2926 = vmatmul.mubr.bf16.gmra.mxu0 %v2415
        %v2927 = vpop.f32.mrf.mxu0
        %v2928 = vadd.f32 0.0, %v2927
        %v2929 = vpop.f32.mrf.mxu0
        %v2930 = vpop.f32.mrf.mxu0
        %v2931 = vadd.f32 0.0, %v2930
        %v2932 = vpop.f32.mrf.mxu0
        %2933 = vmatprep.mubr.bf16.mxu0 0
        %2934 = vmatmul.mubr.bf16.gmra.mxu0 %v2418
        %v2935 = vpop.f32.mrf.mxu0
        %v2936 = vadd.f32 0.0, %v2935
        %v2937 = vpop.f32.mrf.mxu0
        %v2938 = vpop.f32.mrf.mxu0
        %v2939 = vadd.f32 0.0, %v2938
        %v2940 = vpop.f32.mrf.mxu0
        %2941 = vmatprep.mubr.bf16.mxu0 0
        %2942 = vmatmul.mubr.bf16.gmra.mxu0 %v2421
        %v2943 = vpop.f32.mrf.mxu0
        %v2944 = vadd.f32 0.0, %v2943
        %v2945 = vpop.f32.mrf.mxu0
        %v2946 = vpop.f32.mrf.mxu0
        %v2947 = vadd.f32 0.0, %v2946
        %v2948 = vpop.f32.mrf.mxu0
        %2949 = vmatprep.mubr.bf16.mxu0 0
        %2950 = vmatmul.mubr.bf16.gmra.mxu0 %v2424
        %v2951 = vpop.f32.mrf.mxu0
        %v2952 = vadd.f32 0.0, %v2951
        %v2953 = vpop.f32.mrf.mxu0
        %v2954 = vpop.f32.mrf.mxu0
        %v2955 = vadd.f32 0.0, %v2954
        %v2956 = vpop.f32.mrf.mxu0
        %2957 = vmatprep.mubr.bf16.mxu0 0
        %2958 = vmatmul.mubr.bf16.gmra.mxu0 %v2427
        %v2959 = vpop.f32.mrf.mxu0
        %v2960 = vadd.f32 0.0, %v2959
        %v2961 = vpop.f32.mrf.mxu0
        %v2962 = vpop.f32.mrf.mxu0
        %v2963 = vadd.f32 0.0, %v2962
        %v2964 = vpop.f32.mrf.mxu0
        %2965 = vmatprep.mubr.bf16.mxu0 0
        %2966 = vmatmul.mubr.bf16.gmra.mxu0 %v2430
        %v2967 = vpop.f32.mrf.mxu0
        %v2968 = vadd.f32 0.0, %v2967
        %v2969 = vpop.f32.mrf.mxu0
        %v2970 = vpop.f32.mrf.mxu0
        %v2971 = vadd.f32 0.0, %v2970
        %v2972 = vpop.f32.mrf.mxu0
        %2973 = vmatprep.mubr.bf16.mxu0 0
        %2974 = vmatmul.mubr.bf16.gmra.mxu0 %v2433
        %v2975 = vpop.f32.mrf.mxu0
        %v2976 = vadd.f32 0.0, %v2975
        %v2977 = vpop.f32.mrf.mxu0
        %v2978 = vpop.f32.mrf.mxu0
        %v2979 = vadd.f32 0.0, %v2978
        %v2980 = vpop.f32.mrf.mxu0
        %2981 = vmatprep.mubr.bf16.mxu0 0
        %2982 = vmatmul.mubr.bf16.gmra.mxu0 %v2436
        %v2983 = vpop.f32.mrf.mxu0
        %v2984 = vadd.f32 0.0, %v2983
        %v2985 = vpop.f32.mrf.mxu0
        %v2986 = vpop.f32.mrf.mxu0
        %v2987 = vadd.f32 0.0, %v2986
        %v2988 = vpop.f32.mrf.mxu0
        %2989 = vmatprep.mubr.bf16.mxu0 0
        %2990 = vmatmul.mubr.bf16.gmra.mxu0 %v2439
        %v2991 = vpop.f32.mrf.mxu0
        %v2992 = vadd.f32 0.0, %v2991
        %v2993 = vpop.f32.mrf.mxu0
        %v2994 = vpop.f32.mrf.mxu0
        %v2995 = vadd.f32 0.0, %v2994
        %v2996 = vpop.f32.mrf.mxu0
        %2997 = vmatprep.mubr.bf16.mxu0 0
        %2998 = vmatmul.mubr.bf16.gmra.mxu0 %v2442
        %v2999 = vpop.f32.mrf.mxu0
        %v3000 = vadd.f32 0.0, %v2999
        %v3001 = vpop.f32.mrf.mxu0
        %v3002 = vpop.f32.mrf.mxu0
        %v3003 = vadd.f32 0.0, %v3002
        %v3004 = vpop.f32.mrf.mxu0
        %3005 = vmatprep.mubr.bf16.mxu0 0
        %3006 = vmatmul.mubr.bf16.gmra.mxu0 %v2445
        %v3007 = vpop.f32.mrf.mxu0
        %v3008 = vadd.f32 0.0, %v3007
        %v3009 = vpop.f32.mrf.mxu0
        %v3010 = vpop.f32.mrf.mxu0
        %v3011 = vadd.f32 0.0, %v3010
        %v3012 = vpop.f32.mrf.mxu0
        %3013 = vmatprep.mubr.bf16.mxu0 0
        %3014 = vmatmul.mubr.bf16.gmra.mxu0 %v2448
        %v3015 = vpop.f32.mrf.mxu0
        %v3016 = vadd.f32 0.0, %v3015
        %v3017 = vpop.f32.mrf.mxu0
        %v3018 = vpop.f32.mrf.mxu0
        %v3019 = vadd.f32 0.0, %v3018
        %v3020 = vpop.f32.mrf.mxu0
        %3021 = vmatprep.mubr.bf16.mxu0 0
        %3022 = vmatmul.mubr.bf16.gmra.mxu0 %v2451
        %v3023 = vpop.f32.mrf.mxu0
        %v3024 = vadd.f32 0.0, %v3023
        %v3025 = vpop.f32.mrf.mxu0
        %v3026 = vpop.f32.mrf.mxu0
        %v3027 = vadd.f32 0.0, %v3026
        %v3028 = vpop.f32.mrf.mxu0
        %3029 = vmatprep.mubr.bf16.mxu0 0
        %3030 = vmatmul.mubr.bf16.gmra.mxu0 %v2454
        %v3031 = vpop.f32.mrf.mxu0
        %v3032 = vadd.f32 0.0, %v3031
        %v3033 = vpop.f32.mrf.mxu0
        %v3034 = vpop.f32.mrf.mxu0
        %v3035 = vadd.f32 0.0, %v3034
        %v3036 = vpop.f32.mrf.mxu0
        %3037 = vmatprep.mubr.bf16.mxu0 0
        %3038 = vmatmul.mubr.bf16.gmra.mxu0 %v2457
        %v3039 = vpop.f32.mrf.mxu0
        %v3040 = vadd.f32 0.0, %v3039
        %v3041 = vpop.f32.mrf.mxu0
        %v3042 = vpop.f32.mrf.mxu0
        %v3043 = vadd.f32 0.0, %v3042
        %v3044 = vpop.f32.mrf.mxu0
        %3045 = vmatprep.mubr.bf16.mxu0 0
        %3046 = vmatmul.mubr.bf16.gmra.mxu0 %v2460
        %v3047 = vpop.f32.mrf.mxu0
        %v3048 = vadd.f32 0.0, %v3047
        %v3049 = vpop.f32.mrf.mxu0
        %v3050 = vpop.f32.mrf.mxu0
        %v3051 = vadd.f32 0.0, %v3050
        %v3052 = vpop.f32.mrf.mxu0
        %3053 = vmatprep.mubr.bf16.mxu0 0
        %3054 = vmatmul.mubr.bf16.gmra.mxu0 %v2463
        %v3055 = vpop.f32.mrf.mxu0
        %v3056 = vadd.f32 0.0, %v3055
        %v3057 = vpop.f32.mrf.mxu0
        %v3058 = vpop.f32.mrf.mxu0
        %v3059 = vadd.f32 0.0, %v3058
        %v3060 = vpop.f32.mrf.mxu0
        %3061 = vmatprep.mubr.bf16.mxu0 0
        %3062 = vmatmul.mubr.bf16.gmra.mxu0 %v2466
        %v3063 = vpop.f32.mrf.mxu0
        %v3064 = vadd.f32 0.0, %v3063
        %v3065 = vpop.f32.mrf.mxu0
        %v3066 = vpop.f32.mrf.mxu0
        %v3067 = vadd.f32 0.0, %v3066
        %v3068 = vpop.f32.mrf.mxu0
        %3069 = vmatprep.mubr.bf16.mxu0 0
        %3070 = vmatmul.mubr.bf16.gmra.mxu0 %v2469
        %v3071 = vpop.f32.mrf.mxu0
        %v3072 = vadd.f32 0.0, %v3071
        %v3073 = vpop.f32.mrf.mxu0
        %v3074 = vpop.f32.mrf.mxu0
        %v3075 = vadd.f32 0.0, %v3074
        %v3076 = vpop.f32.mrf.mxu0
        %3077 = vmatprep.mubr.bf16.mxu0 0
        %3078 = vmatmul.mubr.bf16.gmra.mxu0 %v2472
        %v3079 = vpop.f32.mrf.mxu0
        %v3080 = vadd.f32 0.0, %v3079
        %v3081 = vpop.f32.mrf.mxu0
        %v3082 = vpop.f32.mrf.mxu0
        %v3083 = vadd.f32 0.0, %v3082
        %v3084 = vpop.f32.mrf.mxu0
        %3085 = vmatprep.mubr.bf16.mxu0 0
        %3086 = vmatmul.mubr.bf16.gmra.mxu0 %v2475
        %v3087 = vpop.f32.mrf.mxu0
        %v3088 = vadd.f32 0.0, %v3087
        %v3089 = vpop.f32.mrf.mxu0
        %v3090 = vpop.f32.mrf.mxu0
        %v3091 = vadd.f32 0.0, %v3090
        %v3092 = vpop.f32.mrf.mxu0
        %3093 = vmatprep.mubr.bf16.mxu0 0
        %3094 = vmatmul.mubr.bf16.gmra.mxu0 %v2478
        %v3095 = vpop.f32.mrf.mxu0
        %v3096 = vadd.f32 0.0, %v3095
        %v3097 = vpop.f32.mrf.mxu0
        %v3098 = vpop.f32.mrf.mxu0
        %v3099 = vadd.f32 0.0, %v3098
        %v3100 = vpop.f32.mrf.mxu0
        %3101 = vmatprep.mubr.bf16.mxu0 0
        %3102 = vmatmul.mubr.bf16.gmra.mxu0 %v2481
        %v3103 = vpop.f32.mrf.mxu0
        %v3104 = vadd.f32 0.0, %v3103
        %v3105 = vpop.f32.mrf.mxu0
        %v3106 = vpop.f32.mrf.mxu0
        %v3107 = vadd.f32 0.0, %v3106
        %v3108 = vpop.f32.mrf.mxu0
        %3109 = vmatprep.mubr.bf16.mxu0 0
        %3110 = vmatmul.mubr.bf16.gmra.mxu0 %v2484
        %v3111 = vpop.f32.mrf.mxu0
        %v3112 = vadd.f32 0.0, %v3111
        %v3113 = vpop.f32.mrf.mxu0
        %v3114 = vpop.f32.mrf.mxu0
        %v3115 = vadd.f32 0.0, %v3114
        %v3116 = vpop.f32.mrf.mxu0
        %3117 = vmatprep.mubr.bf16.mxu0 0
        %3118 = vmatmul.mubr.bf16.gmra.mxu0 %v2487
        %v3119 = vpop.f32.mrf.mxu0
        %v3120 = vadd.f32 0.0, %v3119
        %v3121 = vpop.f32.mrf.mxu0
        %v3122 = vpop.f32.mrf.mxu0
        %v3123 = vadd.f32 0.0, %v3122
        %v3124 = vpop.f32.mrf.mxu0
        %3125 = vmatprep.mubr.bf16.mxu0 0
        %3126 = vmatmul.mubr.bf16.gmra.mxu0 %v2490
        %v3127 = vpop.f32.mrf.mxu0
        %v3128 = vadd.f32 0.0, %v3127
        %v3129 = vpop.f32.mrf.mxu0
        %v3130 = vpop.f32.mrf.mxu0
        %v3131 = vadd.f32 0.0, %v3130
        %v3132 = vpop.f32.mrf.mxu0
        %3133 = vmatprep.mubr.bf16.mxu0 0
        %3134 = vmatmul.mubr.bf16.gmra.mxu0 %v2493
        %v3135 = vpop.f32.mrf.mxu0
        %v3136 = vadd.f32 0.0, %v3135
        %v3137 = vpop.f32.mrf.mxu0
        %v3138 = vpop.f32.mrf.mxu0
        %v3139 = vadd.f32 0.0, %v3138
        %v3140 = vpop.f32.mrf.mxu0
        %3141 = vmatprep.mubr.bf16.mxu0 0
        %3142 = vmatmul.mubr.bf16.gmra.mxu0 %v2496
        %v3143 = vpop.f32.mrf.mxu0
        %v3144 = vadd.f32 0.0, %v3143
        %v3145 = vpop.f32.mrf.mxu0
        %v3146 = vpop.f32.mrf.mxu0
        %v3147 = vadd.f32 0.0, %v3146
        %v3148 = vpop.f32.mrf.mxu0
        %3149 = vmatprep.mubr.bf16.mxu0 0
        %3150 = vmatmul.mubr.bf16.gmra.mxu0 %v2499
        %v3151 = vpop.f32.mrf.mxu0
        %v3152 = vadd.f32 0.0, %v3151
        %v3153 = vpop.f32.mrf.mxu0
        %v3154 = vpop.f32.mrf.mxu0
        %v3155 = vadd.f32 0.0, %v3154
        %v3156 = vpop.f32.mrf.mxu0
        %3157 = vmatprep.mubr.bf16.mxu0 0
        %3158 = vmatmul.mubr.bf16.gmra.mxu0 %v2502
        %v3159 = vpop.f32.mrf.mxu0
        %v3160 = vadd.f32 0.0, %v3159
        %v3161 = vpop.f32.mrf.mxu0
        %v3162 = vpop.f32.mrf.mxu0
        %v3163 = vadd.f32 0.0, %v3162
        %v3164 = vpop.f32.mrf.mxu0
        %3165 = vmatprep.mubr.bf16.mxu0 0
        %3166 = vmatmul.mubr.bf16.gmra.mxu0 %v2505
        %v3167 = vpop.f32.mrf.mxu0
        %v3168 = vadd.f32 0.0, %v3167
        %v3169 = vpop.f32.mrf.mxu0
        %v3170 = vpop.f32.mrf.mxu0
        %v3171 = vadd.f32 0.0, %v3170
        %v3172 = vpop.f32.mrf.mxu0
        %3173 = vmatprep.mubr.bf16.mxu0 0
        %3174 = vmatmul.mubr.bf16.gmra.mxu0 %v2508
        %v3175 = vpop.f32.mrf.mxu0
        %v3176 = vadd.f32 0.0, %v3175
        %v3177 = vpop.f32.mrf.mxu0
        %v3178 = vpop.f32.mrf.mxu0
        %v3179 = vadd.f32 0.0, %v3178
        %v3180 = vpop.f32.mrf.mxu0
        %3181 = vmatprep.mubr.bf16.mxu0 0
        %3182 = vmatmul.mubr.bf16.gmra.mxu0 %v2511
        %v3183 = vpop.f32.mrf.mxu0
        %v3184 = vadd.f32 0.0, %v3183
        %v3185 = vpop.f32.mrf.mxu0
        %v3186 = vpop.f32.mrf.mxu0
        %v3187 = vadd.f32 0.0, %v3186
        %v3188 = vpop.f32.mrf.mxu0
        %3189 = vmatprep.mubr.bf16.mxu0 0
        %3190 = vmatmul.mubr.bf16.gmra.mxu0 %v2514
        %v3191 = vpop.f32.mrf.mxu0
        %v3192 = vadd.f32 0.0, %v3191
        %v3193 = vpop.f32.mrf.mxu0
        %v3194 = vpop.f32.mrf.mxu0
        %v3195 = vadd.f32 0.0, %v3194
        %v3196 = vpop.f32.mrf.mxu0
        %3197 = vmatprep.mubr.bf16.mxu0 0
        %3198 = vmatmul.mubr.bf16.gmra.mxu0 %v2517
        %v3199 = vpop.f32.mrf.mxu0
        %v3200 = vadd.f32 0.0, %v3199
        %v3201 = vpop.f32.mrf.mxu0
        %v3202 = vpop.f32.mrf.mxu0
        %v3203 = vadd.f32 0.0, %v3202
        %v3204 = vpop.f32.mrf.mxu0
        %3205 = vmatprep.mubr.bf16.mxu0 0
        %3206 = vmatmul.mubr.bf16.gmra.mxu0 %v2520
        %v3207 = vpop.f32.mrf.mxu0
        %v3208 = vadd.f32 0.0, %v3207
        %v3209 = vpop.f32.mrf.mxu0
        %v3210 = vpop.f32.mrf.mxu0
        %v3211 = vadd.f32 0.0, %v3210
        %v3212 = vpop.f32.mrf.mxu0
        %3213 = vmatprep.mubr.bf16.mxu0 0
        %3214 = vmatmul.mubr.bf16.gmra.mxu0 %v2523
        %v3215 = vpop.f32.mrf.mxu0
        %v3216 = vadd.f32 0.0, %v3215
        %v3217 = vpop.f32.mrf.mxu0
        %v3218 = vpop.f32.mrf.mxu0
        %v3219 = vadd.f32 0.0, %v3218
        %v3220 = vpop.f32.mrf.mxu0
        %3221 = vmatprep.mubr.bf16.mxu0 0
        %3222 = vmatmul.mubr.bf16.gmra.mxu0 %v2526
        %v3223 = vpop.f32.mrf.mxu0
        %v3224 = vadd.f32 0.0, %v3223
        %v3225 = vpop.f32.mrf.mxu0
        %v3226 = vpop.f32.mrf.mxu0
        %v3227 = vadd.f32 0.0, %v3226
        %v3228 = vpop.f32.mrf.mxu0
        %3229 = vmatprep.mubr.bf16.mxu0 0
        %3230 = vmatmul.mubr.bf16.gmra.mxu0 %v2529
        %v3231 = vpop.f32.mrf.mxu0
        %v3232 = vadd.f32 0.0, %v3231
        %v3233 = vpop.f32.mrf.mxu0
        %v3234 = vpop.f32.mrf.mxu0
        %v3235 = vadd.f32 0.0, %v3234
        %v3236 = vpop.f32.mrf.mxu0
        %3237 = vmatprep.mubr.bf16.mxu0 0
        %3238 = vmatmul.mubr.bf16.gmra.mxu0 %v2532
        %v3239 = vpop.f32.mrf.mxu0
        %v3240 = vadd.f32 0.0, %v3239
        %v3241 = vpop.f32.mrf.mxu0
        %v3242 = vpop.f32.mrf.mxu0
        %v3243 = vadd.f32 0.0, %v3242
        %v3244 = vpop.f32.mrf.mxu0
        %3245 = vmatprep.mubr.bf16.mxu0 0
        %3246 = vmatmul.mubr.bf16.gmra.mxu0 %v2535
        %v3247 = vpop.f32.mrf.mxu0
        %v3248 = vadd.f32 0.0, %v3247
        %v3249 = vpop.f32.mrf.mxu0
        %v3250 = vpop.f32.mrf.mxu0
        %v3251 = vadd.f32 0.0, %v3250
        %v3252 = vpop.f32.mrf.mxu0
        %3253 = vmatprep.mubr.bf16.mxu0 0
        %3254 = vmatmul.mubr.bf16.gmra.mxu0 %v2538
        %v3255 = vpop.f32.mrf.mxu0
        %v3256 = vadd.f32 0.0, %v3255
        %v3257 = vpop.f32.mrf.mxu0
        %v3258 = vpop.f32.mrf.mxu0
        %v3259 = vadd.f32 0.0, %v3258
        %v3260 = vpop.f32.mrf.mxu0
        %3261 = vmatprep.mubr.bf16.mxu0 0
        %3262 = vmatmul.mubr.bf16.gmra.mxu0 %v2541
        %v3263 = vpop.f32.mrf.mxu0
        %v3264 = vadd.f32 0.0, %v3263
        %v3265 = vpop.f32.mrf.mxu0
        %v3266 = vpop.f32.mrf.mxu0
        %v3267 = vadd.f32 0.0, %v3266
        %v3268 = vpop.f32.mrf.mxu0
        %3269 = vmatprep.mubr.bf16.mxu0 0
        %3270 = vmatmul.mubr.bf16.gmra.mxu0 %v2544
        %v3271 = vpop.f32.mrf.mxu0
        %v3272 = vadd.f32 0.0, %v3271
        %v3273 = vpop.f32.mrf.mxu0
        %v3274 = vpop.f32.mrf.mxu0
        %v3275 = vadd.f32 0.0, %v3274
        %v3276 = vpop.f32.mrf.mxu0
        %3277 = vmatprep.mubr.bf16.mxu0 0
        %3278 = vmatmul.mubr.bf16.gmra.mxu0 %v2547
        %v3279 = vpop.f32.mrf.mxu0
        %v3280 = vadd.f32 0.0, %v3279
        %v3281 = vpop.f32.mrf.mxu0
        %v3282 = vpop.f32.mrf.mxu0
        %v3283 = vadd.f32 0.0, %v3282
        %v3284 = vpop.f32.mrf.mxu0
        %3285 = vmatprep.mubr.bf16.mxu0 0
        %3286 = vmatmul.mubr.bf16.gmra.mxu0 %v2550
        %v3287 = vpop.f32.mrf.mxu0
        %v3288 = vadd.f32 0.0, %v3287
        %v3289 = vpop.f32.mrf.mxu0
        %v3290 = vpop.f32.mrf.mxu0
        %v3291 = vadd.f32 0.0, %v3290
        %v3292 = vpop.f32.mrf.mxu0
        %3293 = vmatprep.mubr.bf16.mxu0 0
        %3294 = vmatmul.mubr.bf16.gmra.mxu0 %v2553
        %v3295 = vpop.f32.mrf.mxu0
        %v3296 = vadd.f32 0.0, %v3295
        %v3297 = vpop.f32.mrf.mxu0
        %v3298 = vpop.f32.mrf.mxu0
        %v3299 = vadd.f32 0.0, %v3298
        %v3300 = vpop.f32.mrf.mxu0
        %3301 = vmatprep.mubr.bf16.mxu0 0
        %3302 = vmatmul.mubr.bf16.gmra.mxu0 %v2556
        %v3303 = vpop.f32.mrf.mxu0
        %v3304 = vadd.f32 0.0, %v3303
        %v3305 = vpop.f32.mrf.mxu0
        %v3306 = vpop.f32.mrf.mxu0
        %v3307 = vadd.f32 0.0, %v3306
        %v3308 = vpop.f32.mrf.mxu0
        %3309 = vmatprep.mubr.bf16.mxu0 0
        %3310 = vmatmul.mubr.bf16.gmra.mxu0 %v2559
        %v3311 = vpop.f32.mrf.mxu0
        %v3312 = vadd.f32 0.0, %v3311
        %v3313 = vpop.f32.mrf.mxu0
        %v3314 = vpop.f32.mrf.mxu0
        %v3315 = vadd.f32 0.0, %v3314
        %v3316 = vpop.f32.mrf.mxu0
        %3317 = vmatprep.mubr.bf16.mxu0 0
        %3318 = vmatmul.mubr.bf16.gmra.mxu0 %v2562
        %v3319 = vpop.f32.mrf.mxu0
        %v3320 = vadd.f32 0.0, %v3319
        %v3321 = vpop.f32.mrf.mxu0
        %v3322 = vpop.f32.mrf.mxu0
        %v3323 = vadd.f32 0.0, %v3322
        %v3324 = vpop.f32.mrf.mxu0
        %3325 = vmatprep.mubr.bf16.mxu0 0
        %3326 = vmatmul.mubr.bf16.gmra.mxu0 %v2565
        %v3327 = vpop.f32.mrf.mxu0
        %v3328 = vadd.f32 0.0, %v3327
        %v3329 = vpop.f32.mrf.mxu0
        %v3330 = vpop.f32.mrf.mxu0
        %v3331 = vadd.f32 0.0, %v3330
        %v3332 = vpop.f32.mrf.mxu0
        %3333 = vmatprep.mubr.bf16.mxu0 0
        %3334 = vmatmul.mubr.bf16.gmra.mxu0 %v2568
        %v3335 = vpop.f32.mrf.mxu0
        %v3336 = vadd.f32 0.0, %v3335
        %v3337 = vpop.f32.mrf.mxu0
        %v3338 = vpop.f32.mrf.mxu0
        %v3339 = vadd.f32 0.0, %v3338
        %v3340 = vpop.f32.mrf.mxu0
        %3341 = vmatprep.mubr.bf16.mxu0 0
        %3342 = vmatmul.mubr.bf16.gmra.mxu0 %v2571
        %v3343 = vpop.f32.mrf.mxu0
        %v3344 = vadd.f32 0.0, %v3343
        %v3345 = vpop.f32.mrf.mxu0
        %v3346 = vpop.f32.mrf.mxu0
        %v3347 = vadd.f32 0.0, %v3346
        %v3348 = vpop.f32.mrf.mxu0
        %3349 = vmatprep.mubr.bf16.mxu0 0
        %3350 = vmatmul.mubr.bf16.gmra.mxu0 %v2574
        %v3351 = vpop.f32.mrf.mxu0
        %v3352 = vadd.f32 0.0, %v3351
        %v3353 = vpop.f32.mrf.mxu0
        %v3354 = vpop.f32.mrf.mxu0
        %v3355 = vadd.f32 0.0, %v3354
        %v3356 = vpop.f32.mrf.mxu0
        %3357 = vmatprep.mubr.bf16.mxu0 0
        %3358 = vmatmul.mubr.bf16.gmra.mxu0 %v2577
        %v3359 = vpop.f32.mrf.mxu0
        %v3360 = vadd.f32 0.0, %v3359
        %v3361 = vpop.f32.mrf.mxu0
        %v3362 = vpop.f32.mrf.mxu0
        %v3363 = vadd.f32 0.0, %v3362
        %v3364 = vpop.f32.mrf.mxu0
        %3365 = vmatprep.mubr.bf16.mxu0 0
        %3366 = vmatmul.mubr.bf16.gmra.mxu0 %v2580
        %v3367 = vpop.f32.mrf.mxu0
        %v3368 = vadd.f32 0.0, %v3367
        %v3369 = vpop.f32.mrf.mxu0
        %v3370 = vpop.f32.mrf.mxu0
        %v3371 = vadd.f32 0.0, %v3370
        %v3372 = vpop.f32.mrf.mxu0
        %3373 = vmatprep.mubr.bf16.mxu0 0
        %3374 = vmatmul.mubr.bf16.gmra.mxu0 %v2583
        %v3375 = vpop.f32.mrf.mxu0
        %v3376 = vadd.f32 0.0, %v3375
        %v3377 = vpop.f32.mrf.mxu0
        %v3378 = vpop.f32.mrf.mxu0
        %v3379 = vadd.f32 0.0, %v3378
        %v3380 = vpop.f32.mrf.mxu0
        %3381 = vmatprep.mubr.bf16.mxu0 0
        %3382 = vmatmul.mubr.bf16.gmra.mxu0 %v2586
        %v3383 = vpop.f32.mrf.mxu0
        %v3384 = vadd.f32 0.0, %v3383
        %v3385 = vpop.f32.mrf.mxu0
        %v3386 = vpop.f32.mrf.mxu0
        %v3387 = vadd.f32 0.0, %v3386
        %v3388 = vpop.f32.mrf.mxu0
        %3389 = vmatprep.mubr.bf16.mxu0 0
        %3390 = vmatmul.mubr.bf16.gmra.mxu0 %v2589
        %v3391 = vpop.f32.mrf.mxu0
        %v3392 = vadd.f32 0.0, %v3391
        %v3393 = vpop.f32.mrf.mxu0
        %v3394 = vpop.f32.mrf.mxu0
        %v3395 = vadd.f32 0.0, %v3394
        %v3396 = vpop.f32.mrf.mxu0
        %3397 = vmatprep.mubr.bf16.mxu0 0
        %3398 = vmatmul.mubr.bf16.gmra.mxu0 %v2592
        %v3399 = vpop.f32.mrf.mxu0
        %v3400 = vadd.f32 0.0, %v3399
        %v3401 = vpop.f32.mrf.mxu0
        %v3402 = vpop.f32.mrf.mxu0
        %v3403 = vadd.f32 0.0, %v3402
        %v3404 = vpop.f32.mrf.mxu0
        %3405 = vmatprep.mubr.bf16.mxu0 0
        %3406 = vmatmul.mubr.bf16.gmra.mxu0 %v2595
        %v3407 = vpop.f32.mrf.mxu0
        %v3408 = vadd.f32 0.0, %v3407
        %v3409 = vpop.f32.mrf.mxu0
        %v3410 = vpop.f32.mrf.mxu0
        %v3411 = vadd.f32 0.0, %v3410
        %v3412 = vpop.f32.mrf.mxu0
        %3413 = vmatprep.mubr.bf16.mxu0 0
        %3414 = vmatmul.mubr.bf16.gmra.mxu0 %v2598
        %v3415 = vpop.f32.mrf.mxu0
        %v3416 = vadd.f32 0.0, %v3415
        %v3417 = vpop.f32.mrf.mxu0
        %v3418 = vpop.f32.mrf.mxu0
        %v3419 = vadd.f32 0.0, %v3418
        %v3420 = vpop.f32.mrf.mxu0
        %3421 = vmatprep.mubr.bf16.mxu0 0
        %3422 = vmatmul.mubr.bf16.gmra.mxu0 %v2601
        %v3423 = vpop.f32.mrf.mxu0
        %v3424 = vadd.f32 0.0, %v3423
        %v3425 = vpop.f32.mrf.mxu0
        %v3426 = vpop.f32.mrf.mxu0
        %v3427 = vadd.f32 0.0, %v3426
        %v3428 = vpop.f32.mrf.mxu0
        %3429 = vmatprep.mubr.bf16.mxu0 0
        %3430 = vmatmul.mubr.bf16.gmra.mxu0 %v2604
        %v3431 = vpop.f32.mrf.mxu0
        %v3432 = vadd.f32 0.0, %v3431
        %v3433 = vpop.f32.mrf.mxu0
        %v3434 = vpop.f32.mrf.mxu0
        %v3435 = vadd.f32 0.0, %v3434
        %v3436 = vpop.f32.mrf.mxu0
        %3437 = vmatprep.mubr.bf16.mxu0 0
        %3438 = vmatmul.mubr.bf16.gmra.mxu0 %v2607
        %v3439 = vpop.f32.mrf.mxu0
        %v3440 = vadd.f32 0.0, %v3439
        %v3441 = vpop.f32.mrf.mxu0
        %v3442 = vpop.f32.mrf.mxu0
        %v3443 = vadd.f32 0.0, %v3442
        %v3444 = vpop.f32.mrf.mxu0
        %3445 = vmatprep.mubr.bf16.mxu0 0
        %3446 = vmatmul.mubr.bf16.gmra.mxu0 %v2610
        %v3447 = vpop.f32.mrf.mxu0
        %v3448 = vadd.f32 0.0, %v3447
        %v3449 = vpop.f32.mrf.mxu0
        %v3450 = vpop.f32.mrf.mxu0
        %v3451 = vadd.f32 0.0, %v3450
        %v3452 = vpop.f32.mrf.mxu0
        %3453 = vmatprep.mubr.bf16.mxu0 0
        %3454 = vmatmul.mubr.bf16.gmra.mxu0 %v2613
        %v3455 = vpop.f32.mrf.mxu0
        %v3456 = vadd.f32 0.0, %v3455
        %v3457 = vpop.f32.mrf.mxu0
        %v3458 = vpop.f32.mrf.mxu0
        %v3459 = vadd.f32 0.0, %v3458
        %v3460 = vpop.f32.mrf.mxu0
        %3461 = vmatprep.mubr.bf16.mxu0 0
        %3462 = vmatmul.mubr.bf16.gmra.mxu0 %v2616
        %v3463 = vpop.f32.mrf.mxu0
        %v3464 = vadd.f32 0.0, %v3463
        %v3465 = vpop.f32.mrf.mxu0
        %v3466 = vpop.f32.mrf.mxu0
        %v3467 = vadd.f32 0.0, %v3466
        %v3468 = vpop.f32.mrf.mxu0
        %3469 = vmatprep.mubr.bf16.mxu0 0
        %3470 = vmatmul.mubr.bf16.gmra.mxu0 %v2619
        %v3471 = vpop.f32.mrf.mxu0
        %v3472 = vadd.f32 0.0, %v3471
        %v3473 = vpop.f32.mrf.mxu0
        %v3474 = vpop.f32.mrf.mxu0
        %v3475 = vadd.f32 0.0, %v3474
        %v3476 = vpop.f32.mrf.mxu0
        %3477 = vmatprep.mubr.bf16.mxu0 0
        %3478 = vmatmul.mubr.bf16.gmra.mxu0 %v2622
        %v3479 = vpop.f32.mrf.mxu0
        %v3480 = vadd.f32 0.0, %v3479
        %v3481 = vpop.f32.mrf.mxu0
        %v3482 = vpop.f32.mrf.mxu0
        %v3483 = vadd.f32 0.0, %v3482
        %v3484 = vpop.f32.mrf.mxu0
        %3485 = vmatprep.mubr.bf16.mxu0 0
        %3486 = vmatmul.mubr.bf16.gmra.mxu0 %v2625
        %v3487 = vpop.f32.mrf.mxu0
        %v3488 = vadd.f32 0.0, %v3487
        %v3489 = vpop.f32.mrf.mxu0
        %v3490 = vpop.f32.mrf.mxu0
        %v3491 = vadd.f32 0.0, %v3490
        %v3492 = vpop.f32.mrf.mxu0
        %3493 = vmatprep.mubr.bf16.mxu0 0
        %3494 = vmatmul.mubr.bf16.gmra.mxu0 %v2628
        %v3495 = vpop.f32.mrf.mxu0
        %v3496 = vadd.f32 0.0, %v3495
        %v3497 = vpop.f32.mrf.mxu0
        %v3498 = vpop.f32.mrf.mxu0
        %v3499 = vadd.f32 0.0, %v3498
        %v3500 = vpop.f32.mrf.mxu0
        %3501 = vmatprep.mubr.bf16.mxu0 0
        %3502 = vmatmul.mubr.bf16.gmra.mxu0 %v2631
        %v3503 = vpop.f32.mrf.mxu0
        %v3504 = vadd.f32 0.0, %v3503
        %v3505 = vpop.f32.mrf.mxu0
        %v3506 = vpop.f32.mrf.mxu0
        %v3507 = vadd.f32 0.0, %v3506
        %v3508 = vpop.f32.mrf.mxu0
        %3509 = vmatprep.mubr.bf16.mxu0 0
        %3510 = vmatmul.mubr.bf16.gmra.mxu0 %v2634
        %v3511 = vpop.f32.mrf.mxu0
        %v3512 = vadd.f32 0.0, %v3511
        %v3513 = vpop.f32.mrf.mxu0
        %v3514 = vpop.f32.mrf.mxu0
        %v3515 = vadd.f32 0.0, %v3514
        %v3516 = vpop.f32.mrf.mxu0
        %3517 = vmatprep.mubr.bf16.mxu0 0
        %3518 = vmatmul.mubr.bf16.gmra.mxu0 %v2637
        %v3519 = vpop.f32.mrf.mxu0
        %v3520 = vadd.f32 0.0, %v3519
        %v3521 = vpop.f32.mrf.mxu0
        %v3522 = vpop.f32.mrf.mxu0
        %v3523 = vadd.f32 0.0, %v3522
        %v3524 = vpop.f32.mrf.mxu0
        %3525 = vmatprep.mubr.bf16.mxu0 0
        %3526 = vmatmul.mubr.bf16.gmra.mxu0 %v2640
        %v3527 = vpop.f32.mrf.mxu0
        %v3528 = vadd.f32 0.0, %v3527
        %v3529 = vpop.f32.mrf.mxu0
        %v3530 = vpop.f32.mrf.mxu0
        %v3531 = vadd.f32 0.0, %v3530
        %v3532 = vpop.f32.mrf.mxu0
        %3533 = vmatprep.mubr.bf16.mxu0 0
        %3534 = vmatmul.mubr.bf16.gmra.mxu0 %v2643
        %v3535 = vpop.f32.mrf.mxu0
        %v3536 = vadd.f32 0.0, %v3535
        %v3537 = vpop.f32.mrf.mxu0
        %v3538 = vpop.f32.mrf.mxu0
        %v3539 = vadd.f32 0.0, %v3538
        %v3540 = vpop.f32.mrf.mxu0
        %3541 = vmatprep.mubr.bf16.mxu0 0
        %3542 = vmatmul.mubr.bf16.gmra.mxu0 %v2646
        %v3543 = vpop.f32.mrf.mxu0
        %v3544 = vadd.f32 0.0, %v3543
        %v3545 = vpop.f32.mrf.mxu0
        %v3546 = vpop.f32.mrf.mxu0
        %v3547 = vadd.f32 0.0, %v3546
        %v3548 = vpop.f32.mrf.mxu0
        %3549 = vmatprep.mubr.bf16.mxu0 0
        %3550 = vmatmul.mubr.bf16.gmra.mxu0 %v2649
        %v3551 = vpop.f32.mrf.mxu0
        %v3552 = vadd.f32 0.0, %v3551
        %v3553 = vpop.f32.mrf.mxu0
        %v3554 = vpop.f32.mrf.mxu0
        %v3555 = vadd.f32 0.0, %v3554
        %v3556 = vpop.f32.mrf.mxu0
        %3557 = vmatprep.mubr.bf16.mxu0 0
        %3558 = vmatmul.mubr.bf16.gmra.mxu0 %v2652
        %v3559 = vpop.f32.mrf.mxu0
        %v3560 = vadd.f32 0.0, %v3559
        %v3561 = vpop.f32.mrf.mxu0
        %v3562 = vpop.f32.mrf.mxu0
        %v3563 = vadd.f32 0.0, %v3562
        %v3564 = vpop.f32.mrf.mxu0
        %3565 = vmatprep.mubr.bf16.mxu0 0
        %3566 = vmatmul.mubr.bf16.gmra.mxu0 %v2655
        %v3567 = vpop.f32.mrf.mxu0
        %v3568 = vadd.f32 0.0, %v3567
        %v3569 = vpop.f32.mrf.mxu0
        %v3570 = vpop.f32.mrf.mxu0
        %v3571 = vadd.f32 0.0, %v3570
        %v3572 = vpop.f32.mrf.mxu0
        %3573 = vmatprep.mubr.bf16.mxu0 0
        %3574 = vmatmul.mubr.bf16.gmra.mxu0 %v2658
        %v3575 = vpop.f32.mrf.mxu0
        %v3576 = vadd.f32 0.0, %v3575
        %v3577 = vpop.f32.mrf.mxu0
        %v3578 = vpop.f32.mrf.mxu0
        %v3579 = vadd.f32 0.0, %v3578
        %v3580 = vpop.f32.mrf.mxu0
        %3581 = vmatprep.mubr.bf16.mxu0 0
        %3582 = vmatmul.mubr.bf16.gmra.mxu0 %v2661
        %v3583 = vpop.f32.mrf.mxu0
        %v3584 = vadd.f32 0.0, %v3583
        %v3585 = vpop.f32.mrf.mxu0
        %v3586 = vpop.f32.mrf.mxu0
        %v3587 = vadd.f32 0.0, %v3586
        %v3588 = vpop.f32.mrf.mxu0
        %3589 = vmatprep.mubr.bf16.mxu0 0
        %3590 = vmatmul.mubr.bf16.gmra.mxu0 %v2664
        %v3591 = vpop.f32.mrf.mxu0
        %v3592 = vadd.f32 0.0, %v3591
        %v3593 = vpop.f32.mrf.mxu0
        %v3594 = vpop.f32.mrf.mxu0
        %v3595 = vadd.f32 0.0, %v3594
        %v3596 = vpop.f32.mrf.mxu0
        %3597 = vmatprep.mubr.bf16.mxu0 0
        %3598 = vmatmul.mubr.bf16.gmra.mxu0 %v2667
        %v3599 = vpop.f32.mrf.mxu0
        %v3600 = vadd.f32 0.0, %v3599
        %v3601 = vpop.f32.mrf.mxu0
        %v3602 = vpop.f32.mrf.mxu0
        %v3603 = vadd.f32 0.0, %v3602
        %v3604 = vpop.f32.mrf.mxu0
        %3605 = vmatprep.mubr.bf16.mxu0 0
        %3606 = vmatmul.mubr.bf16.gmra.mxu0 %v2670
        %v3607 = vpop.f32.mrf.mxu0
        %v3608 = vadd.f32 0.0, %v3607
        %v3609 = vpop.f32.mrf.mxu0
        %v3610 = vpop.f32.mrf.mxu0
        %v3611 = vadd.f32 0.0, %v3610
        %v3612 = vpop.f32.mrf.mxu0
        %3613 = vmatprep.mubr.bf16.mxu0 0
        %3614 = vmatmul.mubr.bf16.gmra.mxu0 %v2673
        %v3615 = vpop.f32.mrf.mxu0
        %v3616 = vadd.f32 0.0, %v3615
        %v3617 = vpop.f32.mrf.mxu0
        %v3618 = vpop.f32.mrf.mxu0
        %v3619 = vadd.f32 0.0, %v3618
        %v3620 = vpop.f32.mrf.mxu0
        %3621 = vmatprep.mubr.bf16.mxu0 0
        %3622 = vmatmul.mubr.bf16.gmra.mxu0 %v2676
        %v3623 = vpop.f32.mrf.mxu0
        %v3624 = vadd.f32 0.0, %v3623
        %v3625 = vpop.f32.mrf.mxu0
        %v3626 = vpop.f32.mrf.mxu0
        %v3627 = vadd.f32 0.0, %v3626
        %v3628 = vpop.f32.mrf.mxu0
        %3629 = vmatprep.mubr.bf16.mxu0 0
        %3630 = vmatmul.mubr.bf16.gmra.mxu0 %v2679
        %v3631 = vpop.f32.mrf.mxu0
        %v3632 = vadd.f32 0.0, %v3631
        %v3633 = vpop.f32.mrf.mxu0
        %v3634 = vpop.f32.mrf.mxu0
        %v3635 = vadd.f32 0.0, %v3634
        %v3636 = vpop.f32.mrf.mxu0
        %3637 = vmatprep.mubr.bf16.mxu0 0
        %3638 = vmatmul.mubr.bf16.gmra.mxu0 %v2682
        %v3639 = vpop.f32.mrf.mxu0
        %v3640 = vadd.f32 0.0, %v3639
        %v3641 = vpop.f32.mrf.mxu0
        %v3642 = vpop.f32.mrf.mxu0
        %v3643 = vadd.f32 0.0, %v3642
        %v3644 = vpop.f32.mrf.mxu0
        %3645 = vmatprep.mubr.bf16.mxu0 0
        %3646 = vmatmul.mubr.bf16.gmra.mxu0 %v2685
        %v3647 = vpop.f32.mrf.mxu0
        %v3648 = vadd.f32 0.0, %v3647
        %v3649 = vpop.f32.mrf.mxu0
        %v3650 = vpop.f32.mrf.mxu0
        %v3651 = vadd.f32 0.0, %v3650
        %v3652 = vpop.f32.mrf.mxu0
        %3653 = vmatprep.mubr.bf16.mxu0 0
        %3654 = vmatmul.mubr.bf16.gmra.mxu0 %v2688
        %v3655 = vpop.f32.mrf.mxu0
        %v3656 = vadd.f32 0.0, %v3655
        %v3657 = vpop.f32.mrf.mxu0
        %v3658 = vpop.f32.mrf.mxu0
        %v3659 = vadd.f32 0.0, %v3658
        %v3660 = vpop.f32.mrf.mxu0
        %3661 = vmatprep.mubr.bf16.mxu0 0
        %3662 = vmatmul.mubr.bf16.gmra.mxu0 %v2691
        %v3663 = vpop.f32.mrf.mxu0
        %v3664 = vadd.f32 0.0, %v3663
        %v3665 = vpop.f32.mrf.mxu0
        %v3666 = vpop.f32.mrf.mxu0
        %v3667 = vadd.f32 0.0, %v3666
        %v3668 = vpop.f32.mrf.mxu0
        %3669 = vmatprep.mubr.bf16.mxu0 0
        %3670 = vmatmul.mubr.bf16.gmra.mxu0 %v2694
        %v3671 = vpop.f32.mrf.mxu0
        %v3672 = vadd.f32 0.0, %v3671
        %v3673 = vpop.f32.mrf.mxu0
        %v3674 = vpop.f32.mrf.mxu0
        %v3675 = vadd.f32 0.0, %v3674
        %v3676 = vpop.f32.mrf.mxu0
        %3677 = vmatprep.mubr.bf16.mxu0 0
        %3678 = vmatmul.mubr.bf16.gmra.mxu0 %v2697
        %v3679 = vpop.f32.mrf.mxu0
        %v3680 = vadd.f32 0.0, %v3679
        %v3681 = vpop.f32.mrf.mxu0
        %v3682 = vpop.f32.mrf.mxu0
        %v3683 = vadd.f32 0.0, %v3682
        %v3684 = vpop.f32.mrf.mxu0
        %3685 = vmatprep.mubr.bf16.mxu0 0
        %3686 = vmatmul.mubr.bf16.gmra.mxu0 %v2700
        %v3687 = vpop.f32.mrf.mxu0
        %v3688 = vadd.f32 0.0, %v3687
        %v3689 = vpop.f32.mrf.mxu0
        %v3690 = vpop.f32.mrf.mxu0
        %v3691 = vadd.f32 0.0, %v3690
        %v3692 = vpop.f32.mrf.mxu0
        %3693 = vmatprep.mubr.bf16.mxu0 0
        %3694 = vmatmul.mubr.bf16.gmra.mxu0 %v2703
        %v3695 = vpop.f32.mrf.mxu0
        %v3696 = vadd.f32 0.0, %v3695
        %v3697 = vpop.f32.mrf.mxu0
        %v3698 = vpop.f32.mrf.mxu0
        %v3699 = vadd.f32 0.0, %v3698
        %v3700 = vpop.f32.mrf.mxu0
        %3701 = vmatprep.mubr.bf16.mxu0 0
        %3702 = vmatmul.mubr.bf16.gmra.mxu0 %v2706
        %v3703 = vpop.f32.mrf.mxu0
        %v3704 = vadd.f32 0.0, %v3703
        %v3705 = vpop.f32.mrf.mxu0
        %v3706 = vpop.f32.mrf.mxu0
        %v3707 = vadd.f32 0.0, %v3706
        %v3708 = vpop.f32.mrf.mxu0
        %3709 = vmatprep.mubr.bf16.mxu0 0
        %3710 = vmatmul.mubr.bf16.gmra.mxu0 %v2709
        %v3711 = vpop.f32.mrf.mxu0
        %v3712 = vadd.f32 0.0, %v3711
        %v3713 = vpop.f32.mrf.mxu0
        %v3714 = vpop.f32.mrf.mxu0
        %v3715 = vadd.f32 0.0, %v3714
        %v3716 = vpop.f32.mrf.mxu0
        %3717 = vmatprep.mubr.bf16.mxu0 0
        %3718 = vmatmul.mubr.bf16.gmra.mxu0 %v2712
        %v3719 = vpop.f32.mrf.mxu0
        %v3720 = vadd.f32 0.0, %v3719
        %v3721 = vpop.f32.mrf.mxu0
        %v3722 = vpop.f32.mrf.mxu0
        %v3723 = vadd.f32 0.0, %v3722
        %v3724 = vpop.f32.mrf.mxu0
        %3725 = vmatprep.mubr.bf16.mxu0 0
        %3726 = vmatmul.mubr.bf16.gmra.mxu0 %v2715
        %v3727 = vpop.f32.mrf.mxu0
        %v3728 = vadd.f32 0.0, %v3727
        %v3729 = vpop.f32.mrf.mxu0
        %v3730 = vpop.f32.mrf.mxu0
        %v3731 = vadd.f32 0.0, %v3730
        %v3732 = vpop.f32.mrf.mxu0
        %3733 = vmatprep.mubr.bf16.mxu0 0
        %3734 = vmatmul.mubr.bf16.gmra.mxu0 %v2718
        %v3735 = vpop.f32.mrf.mxu0
        %v3736 = vadd.f32 0.0, %v3735
        %v3737 = vpop.f32.mrf.mxu0
        %v3738 = vpop.f32.mrf.mxu0
        %v3739 = vadd.f32 0.0, %v3738
        %v3740 = vpop.f32.mrf.mxu0
        %3741 = vmatprep.mubr.bf16.mxu0 0
        %3742 = vmatmul.mubr.bf16.gmra.mxu0 %v2721
        %v3743 = vpop.f32.mrf.mxu0
        %v3744 = vadd.f32 0.0, %v3743
        %v3745 = vpop.f32.mrf.mxu0
        %v3746 = vpop.f32.mrf.mxu0
        %v3747 = vadd.f32 0.0, %v3746
        %v3748 = vpop.f32.mrf.mxu0
        %3749 = vmatprep.mubr.bf16.mxu0 0
        %3750 = vmatmul.mubr.bf16.gmra.mxu0 %v2724
        %v3751 = vpop.f32.mrf.mxu0
        %v3752 = vadd.f32 0.0, %v3751
        %v3753 = vpop.f32.mrf.mxu0
        %v3754 = vpop.f32.mrf.mxu0
        %v3755 = vadd.f32 0.0, %v3754
        %v3756 = vpop.f32.mrf.mxu0
        %3757 = vmatprep.mubr.bf16.mxu0 0
        %3758 = vmatmul.mubr.bf16.gmra.mxu0 %v2727
        %v3759 = vpop.f32.mrf.mxu0
        %v3760 = vadd.f32 0.0, %v3759
        %v3761 = vpop.f32.mrf.mxu0
        %v3762 = vpop.f32.mrf.mxu0
        %v3763 = vadd.f32 0.0, %v3762
        %v3764 = vpop.f32.mrf.mxu0
        %3765 = vmatprep.mubr.bf16.mxu0 0
        %3766 = vmatmul.mubr.bf16.gmra.mxu0 %v2730
        %v3767 = vpop.f32.mrf.mxu0
        %v3768 = vadd.f32 0.0, %v3767
        %v3769 = vpop.f32.mrf.mxu0
        %v3770 = vpop.f32.mrf.mxu0
        %v3771 = vadd.f32 0.0, %v3770
        %v3772 = vpop.f32.mrf.mxu0
        %3773 = vmatprep.mubr.bf16.mxu0 0
        %3774 = vmatmul.mubr.bf16.gmra.mxu0 %v2733
        %v3775 = vpop.f32.mrf.mxu0
        %v3776 = vadd.f32 0.0, %v3775
        %v3777 = vpop.f32.mrf.mxu0
        %v3778 = vpop.f32.mrf.mxu0
        %v3779 = vadd.f32 0.0, %v3778
        %v3780 = vpop.f32.mrf.mxu0
        %3781 = vmatprep.mubr.bf16.mxu0 0
        %3782 = vmatmul.mubr.bf16.gmra.mxu0 %v2736
        %v3783 = vpop.f32.mrf.mxu0
        %v3784 = vadd.f32 0.0, %v3783
        %v3785 = vpop.f32.mrf.mxu0
        %v3786 = vpop.f32.mrf.mxu0
        %v3787 = vadd.f32 0.0, %v3786
        %v3788 = vpop.f32.mrf.mxu0
        %3789 = vmatprep.mubr.bf16.mxu0 0
        %3790 = vmatmul.mubr.bf16.gmra.mxu0 %v2739
        %v3791 = vpop.f32.mrf.mxu0
        %v3792 = vadd.f32 0.0, %v3791
        %v3793 = vpop.f32.mrf.mxu0
        %v3794 = vpop.f32.mrf.mxu0
        %v3795 = vadd.f32 0.0, %v3794
        %v3796 = vpop.f32.mrf.mxu0
        %3797 = vmatprep.mubr.bf16.mxu0 0
        %3798 = vmatmul.mubr.bf16.gmra.mxu0 %v2742
        %v3799 = vpop.f32.mrf.mxu0
        %v3800 = vadd.f32 0.0, %v3799
        %v3801 = vpop.f32.mrf.mxu0
        %v3802 = vpop.f32.mrf.mxu0
        %v3803 = vadd.f32 0.0, %v3802
        %v3804 = vpop.f32.mrf.mxu0
        %3805 = vmatprep.mubr.bf16.mxu0 0
        %3806 = vmatmul.mubr.bf16.gmra.mxu0 %v2745
        %v3807 = vpop.f32.mrf.mxu0
        %v3808 = vadd.f32 0.0, %v3807
        %v3809 = vpop.f32.mrf.mxu0
        %v3810 = vpop.f32.mrf.mxu0
        %v3811 = vadd.f32 0.0, %v3810
        %v3812 = vpop.f32.mrf.mxu0
        %3813 = vmatprep.mubr.bf16.mxu0 0
        %3814 = vmatmul.mubr.bf16.gmra.mxu0 %v2748
        %v3815 = vpop.f32.mrf.mxu0
        %v3816 = vadd.f32 0.0, %v3815
        %v3817 = vpop.f32.mrf.mxu0
        %v3818 = vpop.f32.mrf.mxu0
        %v3819 = vadd.f32 0.0, %v3818
        %v3820 = vpop.f32.mrf.mxu0
        %3821 = vmatprep.mubr.bf16.mxu0 0
        %3822 = vmatmul.mubr.bf16.gmra.mxu0 %v2751
        %v3823 = vpop.f32.mrf.mxu0
        %v3824 = vadd.f32 0.0, %v3823
        %v3825 = vpop.f32.mrf.mxu0
        %v3826 = vpop.f32.mrf.mxu0
        %v3827 = vadd.f32 0.0, %v3826
        %v3828 = vpop.f32.mrf.mxu0
        %3829 = vmatprep.mubr.bf16.mxu0 0
        %3830 = vmatmul.mubr.bf16.gmra.mxu0 %v2754
        %v3831 = vpop.f32.mrf.mxu0
        %v3832 = vadd.f32 0.0, %v3831
        %v3833 = vpop.f32.mrf.mxu0
        %v3834 = vpop.f32.mrf.mxu0
        %v3835 = vadd.f32 0.0, %v3834
        %v3836 = vpop.f32.mrf.mxu0
        %3837 = vmatprep.mubr.bf16.mxu0 0
        %3838 = vmatmul.mubr.bf16.gmra.mxu0 %v2757
        %v3839 = vpop.f32.mrf.mxu0
        %v3840 = vadd.f32 0.0, %v3839
        %v3841 = vpop.f32.mrf.mxu0
        %v3842 = vpop.f32.mrf.mxu0
        %v3843 = vadd.f32 0.0, %v3842
        %v3844 = vpop.f32.mrf.mxu0
        %3845 = vmatprep.mubr.bf16.mxu0 0
        %3846 = vmatmul.mubr.bf16.gmra.mxu0 %v2760
        %v3847 = vpop.f32.mrf.mxu0
        %v3848 = vadd.f32 0.0, %v3847
        %v3849 = vpop.f32.mrf.mxu0
        %v3850 = vpop.f32.mrf.mxu0
        %v3851 = vadd.f32 0.0, %v3850
        %v3852 = vpop.f32.mrf.mxu0
        %3853 = vmatprep.mubr.bf16.mxu0 0
        %3854 = vmatmul.mubr.bf16.gmra.mxu0 %v2763
        %v3855 = vpop.f32.mrf.mxu0
        %v3856 = vadd.f32 0.0, %v3855
        %v3857 = vpop.f32.mrf.mxu0
        %v3858 = vpop.f32.mrf.mxu0
        %v3859 = vadd.f32 0.0, %v3858
        %v3860 = vpop.f32.mrf.mxu0
        %3861 = vmatprep.mubr.bf16.mxu0 0
        %3862 = vmatmul.mubr.bf16.gmra.mxu0 %v2766
        %v3863 = vpop.f32.mrf.mxu0
        %v3864 = vadd.f32 0.0, %v3863
        %v3865 = vpop.f32.mrf.mxu0
        %v3866 = vpop.f32.mrf.mxu0
        %v3867 = vadd.f32 0.0, %v3866
        %v3868 = vpop.f32.mrf.mxu0
        %3869 = vmatprep.mubr.bf16.mxu0 0
        %3870 = vmatmul.mubr.bf16.gmra.mxu0 %v2769
        %v3871 = vpop.f32.mrf.mxu0
        %v3872 = vadd.f32 0.0, %v3871
        %v3873 = vpop.f32.mrf.mxu0
        %v3874 = vpop.f32.mrf.mxu0
        %v3875 = vadd.f32 0.0, %v3874
        %v3876 = vpop.f32.mrf.mxu0
        %3877 = vmatprep.mubr.bf16.mxu0 0
        %3878 = vmatmul.mubr.bf16.gmra.mxu0 %v2772
        %v3879 = vpop.f32.mrf.mxu0
        %v3880 = vadd.f32 0.0, %v3879
        %v3881 = vpop.f32.mrf.mxu0
        %v3882 = vpop.f32.mrf.mxu0
        %v3883 = vadd.f32 0.0, %v3882
        %v3884 = vpop.f32.mrf.mxu0
        %3885 = vmatprep.mubr.bf16.mxu0 0
        %3886 = vmatmul.mubr.bf16.gmra.mxu0 %v2775
        %v3887 = vpop.f32.mrf.mxu0
        %v3888 = vadd.f32 0.0, %v3887
        %v3889 = vpop.f32.mrf.mxu0
        %v3890 = vpop.f32.mrf.mxu0
        %v3891 = vadd.f32 0.0, %v3890
        %v3892 = vpop.f32.mrf.mxu0
        %3893 = vmatprep.mubr.bf16.mxu0 0
        %3894 = vmatmul.mubr.bf16.gmra.mxu0 %v2778
        %v3895 = vpop.f32.mrf.mxu0
        %v3896 = vadd.f32 0.0, %v3895
        %v3897 = vpop.f32.mrf.mxu0
        %v3898 = vpop.f32.mrf.mxu0
        %v3899 = vadd.f32 0.0, %v3898
        %v3900 = vpop.f32.mrf.mxu0
        %3901 = vmatprep.mubr.bf16.mxu0 0
        %3902 = vmatmul.mubr.bf16.gmra.mxu0 %v2781
        %v3903 = vpop.f32.mrf.mxu0
        %v3904 = vadd.f32 0.0, %v3903
        %v3905 = vpop.f32.mrf.mxu0
        %v3906 = vpop.f32.mrf.mxu0
        %v3907 = vadd.f32 0.0, %v3906
        %v3908 = vpop.f32.mrf.mxu0
        %3909 = vmatprep.mubr.bf16.mxu0 0
        %3910 = vmatmul.mubr.bf16.gmra.mxu0 %v2784
        %v3911 = vpop.f32.mrf.mxu0
        %v3912 = vadd.f32 0.0, %v3911
        %v3913 = vpop.f32.mrf.mxu0
        %v3914 = vpop.f32.mrf.mxu0
        %v3915 = vadd.f32 0.0, %v3914
        %v3916 = vpop.f32.mrf.mxu0
        %3917 = vmatprep.mubr.bf16.mxu0 0
        %3918 = vmatmul.mubr.bf16.gmra.mxu0 %v2787
        %v3919 = vpop.f32.mrf.mxu0
        %v3920 = vadd.f32 0.0, %v3919
        %v3921 = vpop.f32.mrf.mxu0
        %v3922 = vpop.f32.mrf.mxu0
        %v3923 = vadd.f32 0.0, %v3922
        %v3924 = vpop.f32.mrf.mxu0
        %3925 = vmatprep.mubr.bf16.mxu0 0
        %3926 = vmatmul.mubr.bf16.gmra.mxu0 %v2790
        %v3927 = vpop.f32.mrf.mxu0
        %v3928 = vadd.f32 0.0, %v3927
        %v3929 = vpop.f32.mrf.mxu0
        %v3930 = vpop.f32.mrf.mxu0
        %v3931 = vadd.f32 0.0, %v3930
        %v3932 = vpop.f32.mrf.mxu0
        %3933 = vmatprep.mubr.bf16.mxu0 0
        %3934 = vmatmul.mubr.bf16.gmra.mxu0 %v2793
        %v3935 = vpop.f32.mrf.mxu0
        %v3936 = vadd.f32 0.0, %v3935
        %v3937 = vpop.f32.mrf.mxu0
        %v3938 = vpop.f32.mrf.mxu0
        %v3939 = vadd.f32 0.0, %v3938
        %v3940 = vpop.f32.mrf.mxu0
        %3941 = vmatprep.mubr.bf16.mxu0 0
        %3942 = vmatmul.mubr.bf16.gmra.mxu0 %v2796
        %v3943 = vpop.f32.mrf.mxu0
        %v3944 = vadd.f32 0.0, %v3943
        %v3945 = vpop.f32.mrf.mxu0
        %v3946 = vpop.f32.mrf.mxu0
        %v3947 = vadd.f32 0.0, %v3946
        %v3948 = vpop.f32.mrf.mxu0
        %3949 = vmatprep.mubr.bf16.mxu0 0
        %3950 = vmatmul.mubr.bf16.gmra.mxu0 %v2799
        %v3951 = vpop.f32.mrf.mxu0
        %v3952 = vadd.f32 0.0, %v3951
        %v3953 = vpop.f32.mrf.mxu0
        %v3954 = vpop.f32.mrf.mxu0
        %v3955 = vadd.f32 0.0, %v3954
        %v3956 = vpop.f32.mrf.mxu0
        %3957 = vmatprep.mubr.bf16.mxu0 0
        %3958 = vmatmul.mubr.bf16.gmra.mxu0 %v2802
        %v3959 = vpop.f32.mrf.mxu0
        %v3960 = vadd.f32 0.0, %v3959
        %v3961 = vpop.f32.mrf.mxu0
        %v3962 = vpop.f32.mrf.mxu0
        %v3963 = vadd.f32 0.0, %v3962
        %v3964 = vpop.f32.mrf.mxu0
        %3965 = vmatprep.mubr.bf16.mxu0 0
        %3966 = vmatmul.mubr.bf16.gmra.mxu0 %v2805
        %v3967 = vpop.f32.mrf.mxu0
        %v3968 = vadd.f32 0.0, %v3967
        %v3969 = vpop.f32.mrf.mxu0
        %v3970 = vpop.f32.mrf.mxu0
        %v3971 = vadd.f32 0.0, %v3970
        %v3972 = vpop.f32.mrf.mxu0
        %3973 = vmatprep.mubr.bf16.mxu0 0
        %3974 = vmatmul.mubr.bf16.gmra.mxu0 %v2808
        %v3975 = vpop.f32.mrf.mxu0
        %v3976 = vadd.f32 0.0, %v3975
        %v3977 = vpop.f32.mrf.mxu0
        %v3978 = vpop.f32.mrf.mxu0
        %v3979 = vadd.f32 0.0, %v3978
        %v3980 = vpop.f32.mrf.mxu0
        %3981 = vmatprep.mubr.bf16.mxu0 0
        %3982 = vmatmul.mubr.bf16.gmra.mxu0 %v2811
        %v3983 = vpop.f32.mrf.mxu0
        %v3984 = vadd.f32 0.0, %v3983
        %v3985 = vpop.f32.mrf.mxu0
        %v3986 = vpop.f32.mrf.mxu0
        %v3987 = vadd.f32 0.0, %v3986
        %v3988 = vpop.f32.mrf.mxu0
        %3989 = vmatprep.mubr.bf16.mxu0 0
        %3990 = vmatmul.mubr.bf16.gmra.mxu0 %v2814
        %v3991 = vpop.f32.mrf.mxu0
        %v3992 = vadd.f32 0.0, %v3991
        %v3993 = vpop.f32.mrf.mxu0
        %v3994 = vpop.f32.mrf.mxu0
        %v3995 = vadd.f32 0.0, %v3994
        %v3996 = vpop.f32.mrf.mxu0
        %3997 = vmatprep.mubr.bf16.mxu0 0
        %3998 = vmatmul.mubr.bf16.gmra.mxu0 %v2817
        %v3999 = vpop.f32.mrf.mxu0
        %v4000 = vadd.f32 0.0, %v3999
        %v4001 = vpop.f32.mrf.mxu0
        %v4002 = vpop.f32.mrf.mxu0
        %v4003 = vadd.f32 0.0, %v4002
        %v4004 = vpop.f32.mrf.mxu0
        %4005 = vmatprep.mubr.bf16.mxu0 0
        %4006 = vmatmul.mubr.bf16.gmra.mxu0 %v2820
        %v4007 = vpop.f32.mrf.mxu0
        %v4008 = vadd.f32 0.0, %v4007
        %v4009 = vpop.f32.mrf.mxu0
        %v4010 = vpop.f32.mrf.mxu0
        %v4011 = vadd.f32 0.0, %v4010
        %v4012 = vpop.f32.mrf.mxu0
        %4013 = vdwg.mxu0
        %vm4014 = vcmask 162816
        %v4015 = vsel %vm4014, %v2864, -inf
        %v4016 = vsel %vm4014, %v3152, -inf
        %v4017 = vmax.f32 %v4015, %v4016
        %v4018 = vsel %vm4014, %v3440, -inf
        %v4019 = vmax.f32 %v4017, %v4018
        %v4020 = vsel %vm4014, %v3728, -inf
        %v4021 = vmax.f32 %v4019, %v4020
        %v4022 = vsel %vm4014, %v2867, -inf
        %v4023 = vsel %vm4014, %v3155, -inf
        %v4024 = vmax.f32 %v4022, %v4023
        %v4025 = vsel %vm4014, %v3443, -inf
        %v4026 = vmax.f32 %v4024, %v4025
        %v4027 = vsel %vm4014, %v3731, -inf
        %v4028 = vmax.f32 %v4026, %v4027
        %v4029 = vsel %vm4014, %v2872, -inf
        %v4030 = vsel %vm4014, %v3160, -inf
        %v4031 = vmax.f32 %v4029, %v4030
        %v4032 = vsel %vm4014, %v3448, -inf
        %v4033 = vmax.f32 %v4031, %v4032
        %v4034 = vsel %vm4014, %v3736, -inf
        %v4035 = vmax.f32 %v4033, %v4034
        %v4036 = vsel %vm4014, %v2875, -inf
        %v4037 = vsel %vm4014, %v3163, -inf
        %v4038 = vmax.f32 %v4036, %v4037
        %v4039 = vsel %vm4014, %v3451, -inf
        %v4040 = vmax.f32 %v4038, %v4039
        %v4041 = vsel %vm4014, %v3739, -inf
        %v4042 = vmax.f32 %v4040, %v4041
        %v4043 = vsel %vm4014, %v2880, -inf
        %v4044 = vsel %vm4014, %v3168, -inf
        %v4045 = vmax.f32 %v4043, %v4044
        %v4046 = vsel %vm4014, %v3456, -inf
        %v4047 = vmax.f32 %v4045, %v4046
        %v4048 = vsel %vm4014, %v3744, -inf
        %v4049 = vmax.f32 %v4047, %v4048
        %v4050 = vsel %vm4014, %v2883, -inf
        %v4051 = vsel %vm4014, %v3171, -inf
        %v4052 = vmax.f32 %v4050, %v4051
        %v4053 = vsel %vm4014, %v3459, -inf
        %v4054 = vmax.f32 %v4052, %v4053
        %v4055 = vsel %vm4014, %v3747, -inf
        %v4056 = vmax.f32 %v4054, %v4055
        %v4057 = vsel %vm4014, %v2888, -inf
        %v4058 = vsel %vm4014, %v3176, -inf
        %v4059 = vmax.f32 %v4057, %v4058
        %v4060 = vsel %vm4014, %v3464, -inf
        %v4061 = vmax.f32 %v4059, %v4060
        %v4062 = vsel %vm4014, %v3752, -inf
        %v4063 = vmax.f32 %v4061, %v4062
        %v4064 = vsel %vm4014, %v2891, -inf
        %v4065 = vsel %vm4014, %v3179, -inf
        %v4066 = vmax.f32 %v4064, %v4065
        %v4067 = vsel %vm4014, %v3467, -inf
        %v4068 = vmax.f32 %v4066, %v4067
        %v4069 = vsel %vm4014, %v3755, -inf
        %v4070 = vmax.f32 %v4068, %v4069
        %v4071 = vsel %vm4014, %v2896, -inf
        %v4072 = vsel %vm4014, %v3184, -inf
        %v4073 = vmax.f32 %v4071, %v4072
        %v4074 = vsel %vm4014, %v3472, -inf
        %v4075 = vmax.f32 %v4073, %v4074
        %v4076 = vsel %vm4014, %v3760, -inf
        %v4077 = vmax.f32 %v4075, %v4076
        %v4078 = vsel %vm4014, %v2899, -inf
        %v4079 = vsel %vm4014, %v3187, -inf
        %v4080 = vmax.f32 %v4078, %v4079
        %v4081 = vsel %vm4014, %v3475, -inf
        %v4082 = vmax.f32 %v4080, %v4081
        %v4083 = vsel %vm4014, %v3763, -inf
        %v4084 = vmax.f32 %v4082, %v4083
        %v4085 = vsel %vm4014, %v2904, -inf
        %v4086 = vsel %vm4014, %v3192, -inf
        %v4087 = vmax.f32 %v4085, %v4086
        %v4088 = vsel %vm4014, %v3480, -inf
        %v4089 = vmax.f32 %v4087, %v4088
        %v4090 = vsel %vm4014, %v3768, -inf
        %v4091 = vmax.f32 %v4089, %v4090
        %v4092 = vsel %vm4014, %v2907, -inf
        %v4093 = vsel %vm4014, %v3195, -inf
        %v4094 = vmax.f32 %v4092, %v4093
        %v4095 = vsel %vm4014, %v3483, -inf
        %v4096 = vmax.f32 %v4094, %v4095
        %v4097 = vsel %vm4014, %v3771, -inf
        %v4098 = vmax.f32 %v4096, %v4097
        %v4099 = vsel %vm4014, %v2912, -inf
        %v4100 = vsel %vm4014, %v3200, -inf
        %v4101 = vmax.f32 %v4099, %v4100
        %v4102 = vsel %vm4014, %v3488, -inf
        %v4103 = vmax.f32 %v4101, %v4102
        %v4104 = vsel %vm4014, %v3776, -inf
        %v4105 = vmax.f32 %v4103, %v4104
        %v4106 = vsel %vm4014, %v2915, -inf
        %v4107 = vsel %vm4014, %v3203, -inf
        %v4108 = vmax.f32 %v4106, %v4107
        %v4109 = vsel %vm4014, %v3491, -inf
        %v4110 = vmax.f32 %v4108, %v4109
        %v4111 = vsel %vm4014, %v3779, -inf
        %v4112 = vmax.f32 %v4110, %v4111
        %v4113 = vsel %vm4014, %v2920, -inf
        %v4114 = vsel %vm4014, %v3208, -inf
        %v4115 = vmax.f32 %v4113, %v4114
        %v4116 = vsel %vm4014, %v3496, -inf
        %v4117 = vmax.f32 %v4115, %v4116
        %v4118 = vsel %vm4014, %v3784, -inf
        %v4119 = vmax.f32 %v4117, %v4118
        %v4120 = vsel %vm4014, %v2923, -inf
        %v4121 = vsel %vm4014, %v3211, -inf
        %v4122 = vmax.f32 %v4120, %v4121
        %v4123 = vsel %vm4014, %v3499, -inf
        %v4124 = vmax.f32 %v4122, %v4123
        %v4125 = vsel %vm4014, %v3787, -inf
        %v4126 = vmax.f32 %v4124, %v4125
        %v4127 = vsel %vm4014, %v2928, -inf
        %v4128 = vsel %vm4014, %v3216, -inf
        %v4129 = vmax.f32 %v4127, %v4128
        %v4130 = vsel %vm4014, %v3504, -inf
        %v4131 = vmax.f32 %v4129, %v4130
        %v4132 = vsel %vm4014, %v3792, -inf
        %v4133 = vmax.f32 %v4131, %v4132
        %v4134 = vsel %vm4014, %v2931, -inf
        %v4135 = vsel %vm4014, %v3219, -inf
        %v4136 = vmax.f32 %v4134, %v4135
        %v4137 = vsel %vm4014, %v3507, -inf
        %v4138 = vmax.f32 %v4136, %v4137
        %v4139 = vsel %vm4014, %v3795, -inf
        %v4140 = vmax.f32 %v4138, %v4139
        %v4141 = vsel %vm4014, %v2936, -inf
        %v4142 = vsel %vm4014, %v3224, -inf
        %v4143 = vmax.f32 %v4141, %v4142
        %v4144 = vsel %vm4014, %v3512, -inf
        %v4145 = vmax.f32 %v4143, %v4144
        %v4146 = vsel %vm4014, %v3800, -inf
        %v4147 = vmax.f32 %v4145, %v4146
        %v4148 = vsel %vm4014, %v2939, -inf
        %v4149 = vsel %vm4014, %v3227, -inf
        %v4150 = vmax.f32 %v4148, %v4149
        %v4151 = vsel %vm4014, %v3515, -inf
        %v4152 = vmax.f32 %v4150, %v4151
        %v4153 = vsel %vm4014, %v3803, -inf
        %v4154 = vmax.f32 %v4152, %v4153
        %v4155 = vsel %vm4014, %v2944, -inf
        %v4156 = vsel %vm4014, %v3232, -inf
        %v4157 = vmax.f32 %v4155, %v4156
        %v4158 = vsel %vm4014, %v3520, -inf
        %v4159 = vmax.f32 %v4157, %v4158
        %v4160 = vsel %vm4014, %v3808, -inf
        %v4161 = vmax.f32 %v4159, %v4160
        %v4162 = vsel %vm4014, %v2947, -inf
        %v4163 = vsel %vm4014, %v3235, -inf
        %v4164 = vmax.f32 %v4162, %v4163
        %v4165 = vsel %vm4014, %v3523, -inf
        %v4166 = vmax.f32 %v4164, %v4165
        %v4167 = vsel %vm4014, %v3811, -inf
        %v4168 = vmax.f32 %v4166, %v4167
        %v4169 = vsel %vm4014, %v2952, -inf
        %v4170 = vsel %vm4014, %v3240, -inf
        %v4171 = vmax.f32 %v4169, %v4170
        %v4172 = vsel %vm4014, %v3528, -inf
        %v4173 = vmax.f32 %v4171, %v4172
        %v4174 = vsel %vm4014, %v3816, -inf
        %v4175 = vmax.f32 %v4173, %v4174
        %v4176 = vsel %vm4014, %v2955, -inf
        %v4177 = vsel %vm4014, %v3243, -inf
        %v4178 = vmax.f32 %v4176, %v4177
        %v4179 = vsel %vm4014, %v3531, -inf
        %v4180 = vmax.f32 %v4178, %v4179
        %v4181 = vsel %vm4014, %v3819, -inf
        %v4182 = vmax.f32 %v4180, %v4181
        %v4183 = vsel %vm4014, %v2960, -inf
        %v4184 = vsel %vm4014, %v3248, -inf
        %v4185 = vmax.f32 %v4183, %v4184
        %v4186 = vsel %vm4014, %v3536, -inf
        %v4187 = vmax.f32 %v4185, %v4186
        %v4188 = vsel %vm4014, %v3824, -inf
        %v4189 = vmax.f32 %v4187, %v4188
        %v4190 = vsel %vm4014, %v2963, -inf
        %v4191 = vsel %vm4014, %v3251, -inf
        %v4192 = vmax.f32 %v4190, %v4191
        %v4193 = vsel %vm4014, %v3539, -inf
        %v4194 = vmax.f32 %v4192, %v4193
        %v4195 = vsel %vm4014, %v3827, -inf
        %v4196 = vmax.f32 %v4194, %v4195
        %v4197 = vsel %vm4014, %v2968, -inf
        %v4198 = vsel %vm4014, %v3256, -inf
        %v4199 = vmax.f32 %v4197, %v4198
        %v4200 = vsel %vm4014, %v3544, -inf
        %v4201 = vmax.f32 %v4199, %v4200
        %v4202 = vsel %vm4014, %v3832, -inf
        %v4203 = vmax.f32 %v4201, %v4202
        %v4204 = vsel %vm4014, %v2971, -inf
        %v4205 = vsel %vm4014, %v3259, -inf
        %v4206 = vmax.f32 %v4204, %v4205
        %v4207 = vsel %vm4014, %v3547, -inf
        %v4208 = vmax.f32 %v4206, %v4207
        %v4209 = vsel %vm4014, %v3835, -inf
        %v4210 = vmax.f32 %v4208, %v4209
        %v4211 = vsel %vm4014, %v2976, -inf
        %v4212 = vsel %vm4014, %v3264, -inf
        %v4213 = vmax.f32 %v4211, %v4212
        %v4214 = vsel %vm4014, %v3552, -inf
        %v4215 = vmax.f32 %v4213, %v4214
        %v4216 = vsel %vm4014, %v3840, -inf
        %v4217 = vmax.f32 %v4215, %v4216
        %v4218 = vsel %vm4014, %v2979, -inf
        %v4219 = vsel %vm4014, %v3267, -inf
        %v4220 = vmax.f32 %v4218, %v4219
        %v4221 = vsel %vm4014, %v3555, -inf
        %v4222 = vmax.f32 %v4220, %v4221
        %v4223 = vsel %vm4014, %v3843, -inf
        %v4224 = vmax.f32 %v4222, %v4223
        %v4225 = vsel %vm4014, %v2984, -inf
        %v4226 = vsel %vm4014, %v3272, -inf
        %v4227 = vmax.f32 %v4225, %v4226
        %v4228 = vsel %vm4014, %v3560, -inf
        %v4229 = vmax.f32 %v4227, %v4228
        %v4230 = vsel %vm4014, %v3848, -inf
        %v4231 = vmax.f32 %v4229, %v4230
        %v4232 = vsel %vm4014, %v2987, -inf
        %v4233 = vsel %vm4014, %v3275, -inf
        %v4234 = vmax.f32 %v4232, %v4233
        %v4235 = vsel %vm4014, %v3563, -inf
        %v4236 = vmax.f32 %v4234, %v4235
        %v4237 = vsel %vm4014, %v3851, -inf
        %v4238 = vmax.f32 %v4236, %v4237
        %v4239 = vsel %vm4014, %v2992, -inf
        %v4240 = vsel %vm4014, %v3280, -inf
        %v4241 = vmax.f32 %v4239, %v4240
        %v4242 = vsel %vm4014, %v3568, -inf
        %v4243 = vmax.f32 %v4241, %v4242
        %v4244 = vsel %vm4014, %v3856, -inf
        %v4245 = vmax.f32 %v4243, %v4244
        %v4246 = vsel %vm4014, %v2995, -inf
        %v4247 = vsel %vm4014, %v3283, -inf
        %v4248 = vmax.f32 %v4246, %v4247
        %v4249 = vsel %vm4014, %v3571, -inf
        %v4250 = vmax.f32 %v4248, %v4249
        %v4251 = vsel %vm4014, %v3859, -inf
        %v4252 = vmax.f32 %v4250, %v4251
        %v4253 = vsel %vm4014, %v3000, -inf
        %v4254 = vsel %vm4014, %v3288, -inf
        %v4255 = vmax.f32 %v4253, %v4254
        %v4256 = vsel %vm4014, %v3576, -inf
        %v4257 = vmax.f32 %v4255, %v4256
        %v4258 = vsel %vm4014, %v3864, -inf
        %v4259 = vmax.f32 %v4257, %v4258
        %v4260 = vsel %vm4014, %v3003, -inf
        %v4261 = vsel %vm4014, %v3291, -inf
        %v4262 = vmax.f32 %v4260, %v4261
        %v4263 = vsel %vm4014, %v3579, -inf
        %v4264 = vmax.f32 %v4262, %v4263
        %v4265 = vsel %vm4014, %v3867, -inf
        %v4266 = vmax.f32 %v4264, %v4265
        %v4267 = vsel %vm4014, %v3008, -inf
        %v4268 = vsel %vm4014, %v3296, -inf
        %v4269 = vmax.f32 %v4267, %v4268
        %v4270 = vsel %vm4014, %v3584, -inf
        %v4271 = vmax.f32 %v4269, %v4270
        %v4272 = vsel %vm4014, %v3872, -inf
        %v4273 = vmax.f32 %v4271, %v4272
        %v4274 = vsel %vm4014, %v3011, -inf
        %v4275 = vsel %vm4014, %v3299, -inf
        %v4276 = vmax.f32 %v4274, %v4275
        %v4277 = vsel %vm4014, %v3587, -inf
        %v4278 = vmax.f32 %v4276, %v4277
        %v4279 = vsel %vm4014, %v3875, -inf
        %v4280 = vmax.f32 %v4278, %v4279
        %v4281 = vsel %vm4014, %v3016, -inf
        %v4282 = vsel %vm4014, %v3304, -inf
        %v4283 = vmax.f32 %v4281, %v4282
        %v4284 = vsel %vm4014, %v3592, -inf
        %v4285 = vmax.f32 %v4283, %v4284
        %v4286 = vsel %vm4014, %v3880, -inf
        %v4287 = vmax.f32 %v4285, %v4286
        %v4288 = vsel %vm4014, %v3019, -inf
        %v4289 = vsel %vm4014, %v3307, -inf
        %v4290 = vmax.f32 %v4288, %v4289
        %v4291 = vsel %vm4014, %v3595, -inf
        %v4292 = vmax.f32 %v4290, %v4291
        %v4293 = vsel %vm4014, %v3883, -inf
        %v4294 = vmax.f32 %v4292, %v4293
        %v4295 = vsel %vm4014, %v3024, -inf
        %v4296 = vsel %vm4014, %v3312, -inf
        %v4297 = vmax.f32 %v4295, %v4296
        %v4298 = vsel %vm4014, %v3600, -inf
        %v4299 = vmax.f32 %v4297, %v4298
        %v4300 = vsel %vm4014, %v3888, -inf
        %v4301 = vmax.f32 %v4299, %v4300
        %v4302 = vsel %vm4014, %v3027, -inf
        %v4303 = vsel %vm4014, %v3315, -inf
        %v4304 = vmax.f32 %v4302, %v4303
        %v4305 = vsel %vm4014, %v3603, -inf
        %v4306 = vmax.f32 %v4304, %v4305
        %v4307 = vsel %vm4014, %v3891, -inf
        %v4308 = vmax.f32 %v4306, %v4307
        %v4309 = vsel %vm4014, %v3032, -inf
        %v4310 = vsel %vm4014, %v3320, -inf
        %v4311 = vmax.f32 %v4309, %v4310
        %v4312 = vsel %vm4014, %v3608, -inf
        %v4313 = vmax.f32 %v4311, %v4312
        %v4314 = vsel %vm4014, %v3896, -inf
        %v4315 = vmax.f32 %v4313, %v4314
        %v4316 = vsel %vm4014, %v3035, -inf
        %v4317 = vsel %vm4014, %v3323, -inf
        %v4318 = vmax.f32 %v4316, %v4317
        %v4319 = vsel %vm4014, %v3611, -inf
        %v4320 = vmax.f32 %v4318, %v4319
        %v4321 = vsel %vm4014, %v3899, -inf
        %v4322 = vmax.f32 %v4320, %v4321
        %v4323 = vsel %vm4014, %v3040, -inf
        %v4324 = vsel %vm4014, %v3328, -inf
        %v4325 = vmax.f32 %v4323, %v4324
        %v4326 = vsel %vm4014, %v3616, -inf
        %v4327 = vmax.f32 %v4325, %v4326
        %v4328 = vsel %vm4014, %v3904, -inf
        %v4329 = vmax.f32 %v4327, %v4328
        %v4330 = vsel %vm4014, %v3043, -inf
        %v4331 = vsel %vm4014, %v3331, -inf
        %v4332 = vmax.f32 %v4330, %v4331
        %v4333 = vsel %vm4014, %v3619, -inf
        %v4334 = vmax.f32 %v4332, %v4333
        %v4335 = vsel %vm4014, %v3907, -inf
        %v4336 = vmax.f32 %v4334, %v4335
        %v4337 = vsel %vm4014, %v3048, -inf
        %v4338 = vsel %vm4014, %v3336, -inf
        %v4339 = vmax.f32 %v4337, %v4338
        %v4340 = vsel %vm4014, %v3624, -inf
        %v4341 = vmax.f32 %v4339, %v4340
        %v4342 = vsel %vm4014, %v3912, -inf
        %v4343 = vmax.f32 %v4341, %v4342
        %v4344 = vsel %vm4014, %v3051, -inf
        %v4345 = vsel %vm4014, %v3339, -inf
        %v4346 = vmax.f32 %v4344, %v4345
        %v4347 = vsel %vm4014, %v3627, -inf
        %v4348 = vmax.f32 %v4346, %v4347
        %v4349 = vsel %vm4014, %v3915, -inf
        %v4350 = vmax.f32 %v4348, %v4349
        %v4351 = vsel %vm4014, %v3056, -inf
        %v4352 = vsel %vm4014, %v3344, -inf
        %v4353 = vmax.f32 %v4351, %v4352
        %v4354 = vsel %vm4014, %v3632, -inf
        %v4355 = vmax.f32 %v4353, %v4354
        %v4356 = vsel %vm4014, %v3920, -inf
        %v4357 = vmax.f32 %v4355, %v4356
        %v4358 = vsel %vm4014, %v3059, -inf
        %v4359 = vsel %vm4014, %v3347, -inf
        %v4360 = vmax.f32 %v4358, %v4359
        %v4361 = vsel %vm4014, %v3635, -inf
        %v4362 = vmax.f32 %v4360, %v4361
        %v4363 = vsel %vm4014, %v3923, -inf
        %v4364 = vmax.f32 %v4362, %v4363
        %v4365 = vsel %vm4014, %v3064, -inf
        %v4366 = vsel %vm4014, %v3352, -inf
        %v4367 = vmax.f32 %v4365, %v4366
        %v4368 = vsel %vm4014, %v3640, -inf
        %v4369 = vmax.f32 %v4367, %v4368
        %v4370 = vsel %vm4014, %v3928, -inf
        %v4371 = vmax.f32 %v4369, %v4370
        %v4372 = vsel %vm4014, %v3067, -inf
        %v4373 = vsel %vm4014, %v3355, -inf
        %v4374 = vmax.f32 %v4372, %v4373
        %v4375 = vsel %vm4014, %v3643, -inf
        %v4376 = vmax.f32 %v4374, %v4375
        %v4377 = vsel %vm4014, %v3931, -inf
        %v4378 = vmax.f32 %v4376, %v4377
        %v4379 = vsel %vm4014, %v3072, -inf
        %v4380 = vsel %vm4014, %v3360, -inf
        %v4381 = vmax.f32 %v4379, %v4380
        %v4382 = vsel %vm4014, %v3648, -inf
        %v4383 = vmax.f32 %v4381, %v4382
        %v4384 = vsel %vm4014, %v3936, -inf
        %v4385 = vmax.f32 %v4383, %v4384
        %v4386 = vsel %vm4014, %v3075, -inf
        %v4387 = vsel %vm4014, %v3363, -inf
        %v4388 = vmax.f32 %v4386, %v4387
        %v4389 = vsel %vm4014, %v3651, -inf
        %v4390 = vmax.f32 %v4388, %v4389
        %v4391 = vsel %vm4014, %v3939, -inf
        %v4392 = vmax.f32 %v4390, %v4391
        %v4393 = vsel %vm4014, %v3080, -inf
        %v4394 = vsel %vm4014, %v3368, -inf
        %v4395 = vmax.f32 %v4393, %v4394
        %v4396 = vsel %vm4014, %v3656, -inf
        %v4397 = vmax.f32 %v4395, %v4396
        %v4398 = vsel %vm4014, %v3944, -inf
        %v4399 = vmax.f32 %v4397, %v4398
        %v4400 = vsel %vm4014, %v3083, -inf
        %v4401 = vsel %vm4014, %v3371, -inf
        %v4402 = vmax.f32 %v4400, %v4401
        %v4403 = vsel %vm4014, %v3659, -inf
        %v4404 = vmax.f32 %v4402, %v4403
        %v4405 = vsel %vm4014, %v3947, -inf
        %v4406 = vmax.f32 %v4404, %v4405
        %v4407 = vsel %vm4014, %v3088, -inf
        %v4408 = vsel %vm4014, %v3376, -inf
        %v4409 = vmax.f32 %v4407, %v4408
        %v4410 = vsel %vm4014, %v3664, -inf
        %v4411 = vmax.f32 %v4409, %v4410
        %v4412 = vsel %vm4014, %v3952, -inf
        %v4413 = vmax.f32 %v4411, %v4412
        %v4414 = vsel %vm4014, %v3091, -inf
        %v4415 = vsel %vm4014, %v3379, -inf
        %v4416 = vmax.f32 %v4414, %v4415
        %v4417 = vsel %vm4014, %v3667, -inf
        %v4418 = vmax.f32 %v4416, %v4417
        %v4419 = vsel %vm4014, %v3955, -inf
        %v4420 = vmax.f32 %v4418, %v4419
        %v4421 = vsel %vm4014, %v3096, -inf
        %v4422 = vsel %vm4014, %v3384, -inf
        %v4423 = vmax.f32 %v4421, %v4422
        %v4424 = vsel %vm4014, %v3672, -inf
        %v4425 = vmax.f32 %v4423, %v4424
        %v4426 = vsel %vm4014, %v3960, -inf
        %v4427 = vmax.f32 %v4425, %v4426
        %v4428 = vsel %vm4014, %v3099, -inf
        %v4429 = vsel %vm4014, %v3387, -inf
        %v4430 = vmax.f32 %v4428, %v4429
        %v4431 = vsel %vm4014, %v3675, -inf
        %v4432 = vmax.f32 %v4430, %v4431
        %v4433 = vsel %vm4014, %v3963, -inf
        %v4434 = vmax.f32 %v4432, %v4433
        %v4435 = vsel %vm4014, %v3104, -inf
        %v4436 = vsel %vm4014, %v3392, -inf
        %v4437 = vmax.f32 %v4435, %v4436
        %v4438 = vsel %vm4014, %v3680, -inf
        %v4439 = vmax.f32 %v4437, %v4438
        %v4440 = vsel %vm4014, %v3968, -inf
        %v4441 = vmax.f32 %v4439, %v4440
        %v4442 = vsel %vm4014, %v3107, -inf
        %v4443 = vsel %vm4014, %v3395, -inf
        %v4444 = vmax.f32 %v4442, %v4443
        %v4445 = vsel %vm4014, %v3683, -inf
        %v4446 = vmax.f32 %v4444, %v4445
        %v4447 = vsel %vm4014, %v3971, -inf
        %v4448 = vmax.f32 %v4446, %v4447
        %v4449 = vsel %vm4014, %v3112, -inf
        %v4450 = vsel %vm4014, %v3400, -inf
        %v4451 = vmax.f32 %v4449, %v4450
        %v4452 = vsel %vm4014, %v3688, -inf
        %v4453 = vmax.f32 %v4451, %v4452
        %v4454 = vsel %vm4014, %v3976, -inf
        %v4455 = vmax.f32 %v4453, %v4454
        %v4456 = vsel %vm4014, %v3115, -inf
        %v4457 = vsel %vm4014, %v3403, -inf
        %v4458 = vmax.f32 %v4456, %v4457
        %v4459 = vsel %vm4014, %v3691, -inf
        %v4460 = vmax.f32 %v4458, %v4459
        %v4461 = vsel %vm4014, %v3979, -inf
        %v4462 = vmax.f32 %v4460, %v4461
        %v4463 = vsel %vm4014, %v3120, -inf
        %v4464 = vsel %vm4014, %v3408, -inf
        %v4465 = vmax.f32 %v4463, %v4464
        %v4466 = vsel %vm4014, %v3696, -inf
        %v4467 = vmax.f32 %v4465, %v4466
        %v4468 = vsel %vm4014, %v3984, -inf
        %v4469 = vmax.f32 %v4467, %v4468
        %v4470 = vsel %vm4014, %v3123, -inf
        %v4471 = vsel %vm4014, %v3411, -inf
        %v4472 = vmax.f32 %v4470, %v4471
        %v4473 = vsel %vm4014, %v3699, -inf
        %v4474 = vmax.f32 %v4472, %v4473
        %v4475 = vsel %vm4014, %v3987, -inf
        %v4476 = vmax.f32 %v4474, %v4475
        %v4477 = vsel %vm4014, %v3128, -inf
        %v4478 = vsel %vm4014, %v3416, -inf
        %v4479 = vmax.f32 %v4477, %v4478
        %v4480 = vsel %vm4014, %v3704, -inf
        %v4481 = vmax.f32 %v4479, %v4480
        %v4482 = vsel %vm4014, %v3992, -inf
        %v4483 = vmax.f32 %v4481, %v4482
        %v4484 = vsel %vm4014, %v3131, -inf
        %v4485 = vsel %vm4014, %v3419, -inf
        %v4486 = vmax.f32 %v4484, %v4485
        %v4487 = vsel %vm4014, %v3707, -inf
        %v4488 = vmax.f32 %v4486, %v4487
        %v4489 = vsel %vm4014, %v3995, -inf
        %v4490 = vmax.f32 %v4488, %v4489
        %v4491 = vsel %vm4014, %v3136, -inf
        %v4492 = vsel %vm4014, %v3424, -inf
        %v4493 = vmax.f32 %v4491, %v4492
        %v4494 = vsel %vm4014, %v3712, -inf
        %v4495 = vmax.f32 %v4493, %v4494
        %v4496 = vsel %vm4014, %v4000, -inf
        %v4497 = vmax.f32 %v4495, %v4496
        %v4498 = vsel %vm4014, %v3139, -inf
        %v4499 = vsel %vm4014, %v3427, -inf
        %v4500 = vmax.f32 %v4498, %v4499
        %v4501 = vsel %vm4014, %v3715, -inf
        %v4502 = vmax.f32 %v4500, %v4501
        %v4503 = vsel %vm4014, %v4003, -inf
        %v4504 = vmax.f32 %v4502, %v4503
        %v4505 = vsel %vm4014, %v3144, -inf
        %v4506 = vsel %vm4014, %v3432, -inf
        %v4507 = vmax.f32 %v4505, %v4506
        %v4508 = vsel %vm4014, %v3720, -inf
        %v4509 = vmax.f32 %v4507, %v4508
        %v4510 = vsel %vm4014, %v4008, -inf
        %v4511 = vmax.f32 %v4509, %v4510
        %v4512 = vsel %vm4014, %v3147, -inf
        %v4513 = vsel %vm4014, %v3435, -inf
        %v4514 = vmax.f32 %v4512, %v4513
        %v4515 = vsel %vm4014, %v3723, -inf
        %v4516 = vmax.f32 %v4514, %v4515
        %v4517 = vsel %vm4014, %v4011, -inf
        %v4518 = vmax.f32 %v4516, %v4517
        %v4519 = vld [vmem:[%s2] sm:$0x1]
        %v4521 = vlaneseq
        %v4522 = vshrl.u32 %v4521, 7
        %v4523 = vsub.s32 0, %v4522
        %v4524 = vrot.slane %v4519, %v4523
        %v4526 = vadd.f32 %v4021, %v4524
        %v4527 = vadd.f32 %v4028, %v4524
        %v4528 = vadd.f32 %v4035, %v4524
        %v4529 = vadd.f32 %v4042, %v4524
        %v4530 = vadd.f32 %v4049, %v4524
        %v4531 = vadd.f32 %v4056, %v4524
        %v4532 = vadd.f32 %v4063, %v4524
        %v4533 = vadd.f32 %v4070, %v4524
        %v4534 = vadd.f32 %v4077, %v4524
        %v4535 = vadd.f32 %v4084, %v4524
        %v4536 = vadd.f32 %v4091, %v4524
        %v4537 = vadd.f32 %v4098, %v4524
        %v4538 = vadd.f32 %v4105, %v4524
        %v4539 = vadd.f32 %v4112, %v4524
        %v4540 = vadd.f32 %v4119, %v4524
        %v4541 = vadd.f32 %v4126, %v4524
        %v4542 = vadd.f32 %v4133, %v4524
        %v4543 = vadd.f32 %v4140, %v4524
        %v4544 = vadd.f32 %v4147, %v4524
        %v4545 = vadd.f32 %v4154, %v4524
        %v4546 = vadd.f32 %v4161, %v4524
        %v4547 = vadd.f32 %v4168, %v4524
        %v4548 = vadd.f32 %v4175, %v4524
        %v4549 = vadd.f32 %v4182, %v4524
        %v4550 = vadd.f32 %v4189, %v4524
        %v4551 = vadd.f32 %v4196, %v4524
        %v4552 = vadd.f32 %v4203, %v4524
        %v4553 = vadd.f32 %v4210, %v4524
        %v4554 = vadd.f32 %v4217, %v4524
        %v4555 = vadd.f32 %v4224, %v4524
        %v4556 = vadd.f32 %v4231, %v4524
        %v4557 = vadd.f32 %v4238, %v4524
        %v4558 = vadd.f32 %v4245, %v4524
        %v4559 = vadd.f32 %v4252, %v4524
        %v4560 = vadd.f32 %v4259, %v4524
        %v4561 = vadd.f32 %v4266, %v4524
        %v4562 = vadd.f32 %v4273, %v4524
        %v4563 = vadd.f32 %v4280, %v4524
        %v4564 = vadd.f32 %v4287, %v4524
        %v4565 = vadd.f32 %v4294, %v4524
        %v4566 = vadd.f32 %v4301, %v4524
        %v4567 = vadd.f32 %v4308, %v4524
        %v4568 = vadd.f32 %v4315, %v4524
        %v4569 = vadd.f32 %v4322, %v4524
        %v4570 = vadd.f32 %v4329, %v4524
        %v4571 = vadd.f32 %v4336, %v4524
        %v4572 = vadd.f32 %v4343, %v4524
        %v4573 = vadd.f32 %v4350, %v4524
        %v4574 = vadd.f32 %v4357, %v4524
        %v4575 = vadd.f32 %v4364, %v4524
        %v4576 = vadd.f32 %v4371, %v4524
        %v4577 = vadd.f32 %v4378, %v4524
        %v4578 = vadd.f32 %v4385, %v4524
        %v4579 = vadd.f32 %v4392, %v4524
        %v4580 = vadd.f32 %v4399, %v4524
        %v4581 = vadd.f32 %v4406, %v4524
        %v4582 = vadd.f32 %v4413, %v4524
        %v4583 = vadd.f32 %v4420, %v4524
        %v4584 = vadd.f32 %v4427, %v4524
        %v4585 = vadd.f32 %v4434, %v4524
        %v4586 = vadd.f32 %v4441, %v4524
        %v4587 = vadd.f32 %v4448, %v4524
        %v4588 = vadd.f32 %v4455, %v4524
        %v4589 = vadd.f32 %v4462, %v4524
        %v4590 = vadd.f32 %v4469, %v4524
        %v4591 = vadd.f32 %v4476, %v4524
        %v4592 = vadd.f32 %v4483, %v4524
        %v4593 = vadd.f32 %v4490, %v4524
        %v4594 = vadd.f32 %v4497, %v4524
        %v4595 = vadd.f32 %v4504, %v4524
        %v4596 = vadd.f32 %v4511, %v4524
        %v4597 = vadd.f32 %v4518, %v4524
        %v4598 = vmax.f32 %v4526, 0.0
        %v4599 = vmax.f32 %v4527, 0.0
        %v4600 = vmax.f32 %v4528, 0.0
        %v4601 = vmax.f32 %v4529, 0.0
        %v4602 = vmax.f32 %v4530, 0.0
        %v4603 = vmax.f32 %v4531, 0.0
        %v4604 = vmax.f32 %v4532, 0.0
        %v4605 = vmax.f32 %v4533, 0.0
        %v4606 = vmax.f32 %v4534, 0.0
        %v4607 = vmax.f32 %v4535, 0.0
        %v4608 = vmax.f32 %v4536, 0.0
        %v4609 = vmax.f32 %v4537, 0.0
        %v4610 = vmax.f32 %v4538, 0.0
        %v4611 = vmax.f32 %v4539, 0.0
        %v4612 = vmax.f32 %v4540, 0.0
        %v4613 = vmax.f32 %v4541, 0.0
        %v4614 = vmax.f32 %v4542, 0.0
        %v4615 = vmax.f32 %v4543, 0.0
        %v4616 = vmax.f32 %v4544, 0.0
        %v4617 = vmax.f32 %v4545, 0.0
        %v4618 = vmax.f32 %v4546, 0.0
        %v4619 = vmax.f32 %v4547, 0.0
        %v4620 = vmax.f32 %v4548, 0.0
        %v4621 = vmax.f32 %v4549, 0.0
        %v4622 = vmax.f32 %v4550, 0.0
        %v4623 = vmax.f32 %v4551, 0.0
        %v4624 = vmax.f32 %v4552, 0.0
        %v4625 = vmax.f32 %v4553, 0.0
        %v4626 = vmax.f32 %v4554, 0.0
        %v4627 = vmax.f32 %v4555, 0.0
        %v4628 = vmax.f32 %v4556, 0.0
        %v4629 = vmax.f32 %v4557, 0.0
        %v4630 = vmax.f32 %v4558, 0.0
        %v4631 = vmax.f32 %v4559, 0.0
        %v4632 = vmax.f32 %v4560, 0.0
        %v4633 = vmax.f32 %v4561, 0.0
        %v4634 = vmax.f32 %v4562, 0.0
        %v4635 = vmax.f32 %v4563, 0.0
        %v4636 = vmax.f32 %v4564, 0.0
        %v4637 = vmax.f32 %v4565, 0.0
        %v4638 = vmax.f32 %v4566, 0.0
        %v4639 = vmax.f32 %v4567, 0.0
        %v4640 = vmax.f32 %v4568, 0.0
        %v4641 = vmax.f32 %v4569, 0.0
        %v4642 = vmax.f32 %v4570, 0.0
        %v4643 = vmax.f32 %v4571, 0.0
        %v4644 = vmax.f32 %v4572, 0.0
        %v4645 = vmax.f32 %v4573, 0.0
        %v4646 = vmax.f32 %v4574, 0.0
        %v4647 = vmax.f32 %v4575, 0.0
        %v4648 = vmax.f32 %v4576, 0.0
        %v4649 = vmax.f32 %v4577, 0.0
        %v4650 = vmax.f32 %v4578, 0.0
        %v4651 = vmax.f32 %v4579, 0.0
        %v4652 = vmax.f32 %v4580, 0.0
        %v4653 = vmax.f32 %v4581, 0.0
        %v4654 = vmax.f32 %v4582, 0.0
        %v4655 = vmax.f32 %v4583, 0.0
        %v4656 = vmax.f32 %v4584, 0.0
        %v4657 = vmax.f32 %v4585, 0.0
        %v4658 = vmax.f32 %v4586, 0.0
        %v4659 = vmax.f32 %v4587, 0.0
        %v4660 = vmax.f32 %v4588, 0.0
        %v4661 = vmax.f32 %v4589, 0.0
        %v4662 = vmax.f32 %v4590, 0.0
        %v4663 = vmax.f32 %v4591, 0.0
        %v4664 = vmax.f32 %v4592, 0.0
        %v4665 = vmax.f32 %v4593, 0.0
        %v4666 = vmax.f32 %v4594, 0.0
        %v4667 = vmax.f32 %v4595, 0.0
        %v4668 = vmax.f32 %v4596, 0.0
        %v4669 = vmax.f32 %v4597, 0.0
        %4670 = vst.msk [vmem:[%s1363] sm:$0xff] %vm4014, %v4598
        %4671 = vst.msk [vmem:[%s1363 + $0x8] sm:$0xff] %vm4014, %v4599
        %4672 = vst.msk [vmem:[%s1363 + $0x10] sm:$0xff] %vm4014, %v4600
        %4673 = vst.msk [vmem:[%s1363 + $0x18] sm:$0xff] %vm4014, %v4601
        %4674 = vst.msk [vmem:[%s1363 + $0x20] sm:$0xff] %vm4014, %v4602
        %4675 = vst.msk [vmem:[%s1363 + $0x28] sm:$0xff] %vm4014, %v4603
        %4676 = vst.msk [vmem:[%s1363 + $0x30] sm:$0xff] %vm4014, %v4604
        %4677 = vst.msk [vmem:[%s1363 + $0x38] sm:$0xff] %vm4014, %v4605
        %4678 = vst.msk [vmem:[%s1363 + $0x40] sm:$0xff] %vm4014, %v4606
        %4679 = vst.msk [vmem:[%s1363 + $0x48] sm:$0xff] %vm4014, %v4607
        %4680 = vst.msk [vmem:[%s1363 + $0x50] sm:$0xff] %vm4014, %v4608
        %4681 = vst.msk [vmem:[%s1363 + $0x58] sm:$0xff] %vm4014, %v4609
        %4682 = vst.msk [vmem:[%s1363 + $0x60] sm:$0xff] %vm4014, %v4610
        %4683 = vst.msk [vmem:[%s1363 + $0x68] sm:$0xff] %vm4014, %v4611
        %4684 = vst.msk [vmem:[%s1363 + $0x70] sm:$0xff] %vm4014, %v4612
        %4685 = vst.msk [vmem:[%s1363 + $0x78] sm:$0xff] %vm4014, %v4613
        %4686 = vst.msk [vmem:[%s1363 + $0x80] sm:$0xff] %vm4014, %v4614
        %4687 = vst.msk [vmem:[%s1363 + $0x88] sm:$0xff] %vm4014, %v4615
        %4688 = vst.msk [vmem:[%s1363 + $0x90] sm:$0xff] %vm4014, %v4616
        %4689 = vst.msk [vmem:[%s1363 + $0x98] sm:$0xff] %vm4014, %v4617
        %4690 = vst.msk [vmem:[%s1363 + $0xa0] sm:$0xff] %vm4014, %v4618
        %4691 = vst.msk [vmem:[%s1363 + $0xa8] sm:$0xff] %vm4014, %v4619
        %4692 = vst.msk [vmem:[%s1363 + $0xb0] sm:$0xff] %vm4014, %v4620
        %4693 = vst.msk [vmem:[%s1363 + $0xb8] sm:$0xff] %vm4014, %v4621
        %4694 = vst.msk [vmem:[%s1363 + $0xc0] sm:$0xff] %vm4014, %v4622
        %4695 = vst.msk [vmem:[%s1363 + $0xc8] sm:$0xff] %vm4014, %v4623
        %4696 = vst.msk [vmem:[%s1363 + $0xd0] sm:$0xff] %vm4014, %v4624
        %4697 = vst.msk [vmem:[%s1363 + $0xd8] sm:$0xff] %vm4014, %v4625
        %4698 = vst.msk [vmem:[%s1363 + $0xe0] sm:$0xff] %vm4014, %v4626
        %4699 = vst.msk [vmem:[%s1363 + $0xe8] sm:$0xff] %vm4014, %v4627
        %4700 = vst.msk [vmem:[%s1363 + $0xf0] sm:$0xff] %vm4014, %v4628
        %4701 = vst.msk [vmem:[%s1363 + $0xf8] sm:$0xff] %vm4014, %v4629
        %4702 = vst.msk [vmem:[%s1363 + $0x100] sm:$0xff] %vm4014, %v4630
        %4703 = vst.msk [vmem:[%s1363 + $0x108] sm:$0xff] %vm4014, %v4631
        %4704 = vst.msk [vmem:[%s1363 + $0x110] sm:$0xff] %vm4014, %v4632
        %4705 = vst.msk [vmem:[%s1363 + $0x118] sm:$0xff] %vm4014, %v4633
        %4706 = vst.msk [vmem:[%s1363 + $0x120] sm:$0xff] %vm4014, %v4634
        %4707 = vst.msk [vmem:[%s1363 + $0x128] sm:$0xff] %vm4014, %v4635
        %4708 = vst.msk [vmem:[%s1363 + $0x130] sm:$0xff] %vm4014, %v4636
        %4709 = vst.msk [vmem:[%s1363 + $0x138] sm:$0xff] %vm4014, %v4637
        %4710 = vst.msk [vmem:[%s1363 + $0x140] sm:$0xff] %vm4014, %v4638
        %4711 = vst.msk [vmem:[%s1363 + $0x148] sm:$0xff] %vm4014, %v4639
        %4712 = vst.msk [vmem:[%s1363 + $0x150] sm:$0xff] %vm4014, %v4640
        %4713 = vst.msk [vmem:[%s1363 + $0x158] sm:$0xff] %vm4014, %v4641
        %4714 = vst.msk [vmem:[%s1363 + $0x160] sm:$0xff] %vm4014, %v4642
        %4715 = vst.msk [vmem:[%s1363 + $0x168] sm:$0xff] %vm4014, %v4643
        %4716 = vst.msk [vmem:[%s1363 + $0x170] sm:$0xff] %vm4014, %v4644
        %4717 = vst.msk [vmem:[%s1363 + $0x178] sm:$0xff] %vm4014, %v4645
        %4718 = vst.msk [vmem:[%s1363 + $0x180] sm:$0xff] %vm4014, %v4646
        %4719 = vst.msk [vmem:[%s1363 + $0x188] sm:$0xff] %vm4014, %v4647
        %4720 = vst.msk [vmem:[%s1363 + $0x190] sm:$0xff] %vm4014, %v4648
        %4721 = vst.msk [vmem:[%s1363 + $0x198] sm:$0xff] %vm4014, %v4649
        %4722 = vst.msk [vmem:[%s1363 + $0x1a0] sm:$0xff] %vm4014, %v4650
        %4723 = vst.msk [vmem:[%s1363 + $0x1a8] sm:$0xff] %vm4014, %v4651
        %4724 = vst.msk [vmem:[%s1363 + $0x1b0] sm:$0xff] %vm4014, %v4652
        %4725 = vst.msk [vmem:[%s1363 + $0x1b8] sm:$0xff] %vm4014, %v4653
        %4726 = vst.msk [vmem:[%s1363 + $0x1c0] sm:$0xff] %vm4014, %v4654
        %4727 = vst.msk [vmem:[%s1363 + $0x1c8] sm:$0xff] %vm4014, %v4655
        %4728 = vst.msk [vmem:[%s1363 + $0x1d0] sm:$0xff] %vm4014, %v4656
        %4729 = vst.msk [vmem:[%s1363 + $0x1d8] sm:$0xff] %vm4014, %v4657
        %4730 = vst.msk [vmem:[%s1363 + $0x1e0] sm:$0xff] %vm4014, %v4658
        %4731 = vst.msk [vmem:[%s1363 + $0x1e8] sm:$0xff] %vm4014, %v4659
        %4732 = vst.msk [vmem:[%s1363 + $0x1f0] sm:$0xff] %vm4014, %v4660
        %4733 = vst.msk [vmem:[%s1363 + $0x1f8] sm:$0xff] %vm4014, %v4661
        %4734 = vst.msk [vmem:[%s1363 + $0x200] sm:$0xff] %vm4014, %v4662
        %4735 = vst.msk [vmem:[%s1363 + $0x208] sm:$0xff] %vm4014, %v4663
        %4736 = vst.msk [vmem:[%s1363 + $0x210] sm:$0xff] %vm4014, %v4664
        %4737 = vst.msk [vmem:[%s1363 + $0x218] sm:$0xff] %vm4014, %v4665
        %4738 = vst.msk [vmem:[%s1363 + $0x220] sm:$0xff] %vm4014, %v4666
        %4739 = vst.msk [vmem:[%s1363 + $0x228] sm:$0xff] %vm4014, %v4667
        %4740 = vst.msk [vmem:[%s1363 + $0x230] sm:$0xff] %vm4014, %v4668
        %4741 = vst.msk [vmem:[%s1363 + $0x238] sm:$0xff] %vm4014, %v4669
        %s4742 = smul.u32 72, %s14
        %p4743 = scmp.lt.s32.totalorder %s4742, 143
        %s4744 = scalar_select %p4743, %s4742, 143
        %s4745 = smul.addr %s4744, 8
        %s4746 = scalar_lea.vmem %s3, %s4745
        // Predicated region
        $region74: #{mlmodel_cnn_forward.3} parent=68 // pred_check
          %p4747 = pneg %p100
        $region75: #{mlmodel_cnn_forward.3} parent=68 // pred_check_branch
          %4749 = sbr.rel (%p4747) target = $region77
        $region76: #{mlmodel_cnn_forward.3} parent=68 // pred_region
          %s4750 = smul.u32 72, %s14
        $region77: #{mlmodel_cnn_forward.3} parent=68 // pred_fallthru
          _
      $region69: #{mlmodel_cnn_forward.3} parent=5 // pred_fallthru
        _
      %p4751 = scmp.le.s32.totalorder 2, %s9
      // Predicated region
      $region78: #{mlmodel_cnn_forward.3} parent=5 // pred_check
        %p4752 = pneg %p4751
      $region79: #{mlmodel_cnn_forward.3} parent=5 // pred_check_branch
        %4754 = sbr.rel (%p4752) target = $region81
      $region80: #{mlmodel_cnn_forward.3} parent=5 // pred_region
        %s4755 = ssub.s32 %s9, 2
        // Predicated region
        $region82: #{mlmodel_cnn_forward.3} parent=80 // pred_check
          %p4756 = pneg %p106
        $region83: #{mlmodel_cnn_forward.3} parent=80 // pred_check_branch
          %4758 = sbr.rel (%p4756) target = $region85
        $region84: #{mlmodel_cnn_forward.3} parent=80 // pred_region
          %s4759 = smul.u32 72, %s15
          %p4760 = scmp.lt.s32.totalorder %s4759, 143
          %s4761 = scalar_select %p4760, %s4759, 143
          %s4762 = smul.addr %s4761, 8
          %s4763 = scalar_lea.vmem %s3, %s4762
        $region85: #{mlmodel_cnn_forward.3} parent=80 // pred_fallthru
          _
      $region81: #{mlmodel_cnn_forward.3} parent=5 // pred_fallthru
        _
    $region6: #{mlmodel_cnn_forward.3} parent=1 // loop_footer
      %s13 = sadd.s32 1, %s9
    $region7: #{mlmodel_cnn_forward.3} parent=1 // loop_footer_branch
      %8 = sbr.rel target = $region3
    $region8: #{mlmodel_cnn_forward.3} parent=1 // loop_exit
      _

// kernel: mlmodel_cnn_forward.4
$region0: #{mlmodel_cnn_forward.4}
  #allocation0 [shape = 'u32[]', space=smem, size = 0x4, offset = 0x4, fixed_abs, tag = 'smem constant byte address 0x4 - core index']
  #allocation1 [shape = 'u32[144,128]{1,0:T(1,128)}', space=vmem, size = 0x12000, scoped, tag = 'internal scratch']
  %s0 = inlined_call_operand.vmem [shape: bf16[4,128,500], index: 0, kind: input, shape index: {}]
  %s1 = inlined_call_operand.vmem [shape: bf16[500,50], index: 1, kind: input, shape index: {}]
  %s2 = inlined_call_operand.vmem [shape: f32[1,50], index: 2, kind: input, shape index: {}]
  %s3 = inlined_call_operand.vmem [shape: f32[128,50], index: 3, kind: output, shape index: {}]
  %s4 = sld [smem:[#allocation0]]
  $region22: #{mlmodel_cnn_forward.4} parent=0
    _
  %s6 = ssub.s32 1, %s4
  %s7 = scalar_select 0, %s6, %s4
  // Predicated region
  $region2: #{mlmodel_cnn_forward.4} parent=0 // pred_check
    _
  $region3: #{mlmodel_cnn_forward.4} parent=0 // pred_check_branch
    %9 = sbr.rel (0) target = $region5
  $region4: #{mlmodel_cnn_forward.4} parent=0 // pred_region
    _
  $region5: #{mlmodel_cnn_forward.4} parent=0 // pred_fallthru
    _
  // Predicated region
  $region6: #{mlmodel_cnn_forward.4} parent=0 // pred_check
    _
  $region7: #{mlmodel_cnn_forward.4} parent=0 // pred_check_branch
    %11 = sbr.rel (0) target = $region9
  $region8: #{mlmodel_cnn_forward.4} parent=0 // pred_region
    _
  $region9: #{mlmodel_cnn_forward.4} parent=0 // pred_fallthru
    _
  // Predicated region
  $region10: #{mlmodel_cnn_forward.4} parent=0 // pred_check
    _
  $region11: #{mlmodel_cnn_forward.4} parent=0 // pred_check_branch
    %13 = sbr.rel (0) target = $region13
  $region12: #{mlmodel_cnn_forward.4} parent=0 // pred_region
    _
  $region13: #{mlmodel_cnn_forward.4} parent=0 // pred_fallthru
    _
  %v15 = vld [vmem:[%s0] sm:$0xff]
  %v16 = vld [vmem:[%s0 + $0x8] sm:$0xff]
  %v17 = vld [vmem:[%s0 + $0x10] sm:$0xff]
  %v18 = vld [vmem:[%s0 + $0x18] sm:$0xff]
  %v19 = vld [vmem:[%s0 + $0x20] sm:$0xff]
  %v20 = vld [vmem:[%s0 + $0x28] sm:$0xff]
  %v21 = vld [vmem:[%s0 + $0x30] sm:$0xff]
  %v22 = vld [vmem:[%s0 + $0x38] sm:$0xff]
  %v23 = vld [vmem:[%s0 + $0x40] sm:$0xff]
  %v24 = vld [vmem:[%s0 + $0x48] sm:$0xff]
  %v25 = vld [vmem:[%s0 + $0x50] sm:$0xff]
  %v26 = vld [vmem:[%s0 + $0x58] sm:$0xff]
  %v27 = vld [vmem:[%s0 + $0x60] sm:$0xff]
  %v28 = vld [vmem:[%s0 + $0x68] sm:$0xff]
  %v29 = vld [vmem:[%s0 + $0x70] sm:$0xff]
  %v30 = vld [vmem:[%s0 + $0x78] sm:$0xff]
  %v31 = vld [vmem:[%s0 + $0x80] sm:$0xff]
  %v32 = vld [vmem:[%s0 + $0x88] sm:$0xff]
  %v33 = vld [vmem:[%s0 + $0x90] sm:$0xff]
  %v34 = vld [vmem:[%s0 + $0x98] sm:$0xff]
  %v35 = vld [vmem:[%s0 + $0xa0] sm:$0xff]
  %v36 = vld [vmem:[%s0 + $0xa8] sm:$0xff]
  %v37 = vld [vmem:[%s0 + $0xb0] sm:$0xff]
  %v38 = vld [vmem:[%s0 + $0xb8] sm:$0xff]
  %v39 = vld [vmem:[%s0 + $0xc0] sm:$0xff]
  %v40 = vld [vmem:[%s0 + $0xc8] sm:$0xff]
  %v41 = vld [vmem:[%s0 + $0xd0] sm:$0xff]
  %v42 = vld [vmem:[%s0 + $0xd8] sm:$0xff]
  %v43 = vld [vmem:[%s0 + $0xe0] sm:$0xff]
  %v44 = vld [vmem:[%s0 + $0xe8] sm:$0xff]
  %v45 = vld [vmem:[%s0 + $0xf0] sm:$0xff]
  %v46 = vld [vmem:[%s0 + $0xf8] sm:$0xff]
  %v47 = vld [vmem:[%s0 + $0x100] sm:$0xff]
  %v48 = vld [vmem:[%s0 + $0x108] sm:$0xff]
  %v49 = vld [vmem:[%s0 + $0x110] sm:$0xff]
  %v50 = vld [vmem:[%s0 + $0x118] sm:$0xff]
  %v51 = vld [vmem:[%s0 + $0x120] sm:$0xff]
  %v52 = vld [vmem:[%s0 + $0x128] sm:$0xff]
  %v53 = vld [vmem:[%s0 + $0x130] sm:$0xff]
  %v54 = vld [vmem:[%s0 + $0x138] sm:$0xff]
  %v55 = vld [vmem:[%s0 + $0x140] sm:$0xff]
  %v56 = vld [vmem:[%s0 + $0x148] sm:$0xff]
  %v57 = vld [vmem:[%s0 + $0x150] sm:$0xff]
  %v58 = vld [vmem:[%s0 + $0x158] sm:$0xff]
  %v59 = vld [vmem:[%s0 + $0x160] sm:$0xff]
  %v60 = vld [vmem:[%s0 + $0x168] sm:$0xff]
  %v61 = vld [vmem:[%s0 + $0x170] sm:$0xff]
  %v62 = vld [vmem:[%s0 + $0x178] sm:$0xff]
  %v63 = vld [vmem:[%s0 + $0x180] sm:$0xff]
  %v64 = vld [vmem:[%s0 + $0x188] sm:$0xff]
  %v65 = vld [vmem:[%s0 + $0x190] sm:$0xff]
  %v66 = vld [vmem:[%s0 + $0x198] sm:$0xff]
  %v67 = vld [vmem:[%s0 + $0x1a0] sm:$0xff]
  %v68 = vld [vmem:[%s0 + $0x1a8] sm:$0xff]
  %v69 = vld [vmem:[%s0 + $0x1b0] sm:$0xff]
  %v70 = vld [vmem:[%s0 + $0x1b8] sm:$0xff]
  %v71 = vld [vmem:[%s0 + $0x1c0] sm:$0xff]
  %v72 = vld [vmem:[%s0 + $0x1c8] sm:$0xff]
  %v73 = vld [vmem:[%s0 + $0x1d0] sm:$0xff]
  %v74 = vld [vmem:[%s0 + $0x1d8] sm:$0xff]
  %v75 = vld [vmem:[%s0 + $0x1e0] sm:$0xff]
  %v76 = vld [vmem:[%s0 + $0x1e8] sm:$0xff]
  %v77 = vld [vmem:[%s0 + $0x1f0] sm:$0xff]
  %v78 = vld [vmem:[%s0 + $0x1f8] sm:$0xff]
  %v79 = vld [vmem:[%s0 + $0x200] sm:$0xff]
  %v80 = vld [vmem:[%s0 + $0x208] sm:$0xff]
  %v81 = vld [vmem:[%s0 + $0x210] sm:$0xff]
  %v82 = vld [vmem:[%s0 + $0x218] sm:$0xff]
  %v83 = vld [vmem:[%s0 + $0x220] sm:$0xff]
  %v84 = vld [vmem:[%s0 + $0x228] sm:$0xff]
  %v85 = vld [vmem:[%s0 + $0x230] sm:$0xff]
  %v86 = vld [vmem:[%s0 + $0x238] sm:$0xff]
  %v87 = vld [vmem:[%s0 + $0x240] sm:$0xff]
  %v88 = vld [vmem:[%s0 + $0x248] sm:$0xff]
  %v89 = vld [vmem:[%s0 + $0x250] sm:$0xff]
  %v90 = vld [vmem:[%s0 + $0x258] sm:$0xff]
  %v91 = vld [vmem:[%s0 + $0x260] sm:$0xff]
  %v92 = vld [vmem:[%s0 + $0x268] sm:$0xff]
  %v93 = vld [vmem:[%s0 + $0x270] sm:$0xff]
  %v94 = vld [vmem:[%s0 + $0x278] sm:$0xff]
  %v95 = vld [vmem:[%s0 + $0x280] sm:$0xff]
  %v96 = vld [vmem:[%s0 + $0x288] sm:$0xff]
  %v97 = vld [vmem:[%s0 + $0x290] sm:$0xff]
  %v98 = vld [vmem:[%s0 + $0x298] sm:$0xff]
  %v99 = vld [vmem:[%s0 + $0x2a0] sm:$0xff]
  %v100 = vld [vmem:[%s0 + $0x2a8] sm:$0xff]
  %v101 = vld [vmem:[%s0 + $0x2b0] sm:$0xff]
  %v102 = vld [vmem:[%s0 + $0x2b8] sm:$0xff]
  %v103 = vld [vmem:[%s0 + $0x2c0] sm:$0xff]
  %v104 = vld [vmem:[%s0 + $0x2c8] sm:$0xff]
  %v105 = vld [vmem:[%s0 + $0x2d0] sm:$0xff]
  %v106 = vld [vmem:[%s0 + $0x2d8] sm:$0xff]
  %v107 = vld [vmem:[%s0 + $0x2e0] sm:$0xff]
  %v108 = vld [vmem:[%s0 + $0x2e8] sm:$0xff]
  %v109 = vld [vmem:[%s0 + $0x2f0] sm:$0xff]
  %v110 = vld [vmem:[%s0 + $0x2f8] sm:$0xff]
  %v111 = vld [vmem:[%s0 + $0x300] sm:$0xff]
  %v112 = vld [vmem:[%s0 + $0x308] sm:$0xff]
  %v113 = vld [vmem:[%s0 + $0x310] sm:$0xff]
  %v114 = vld [vmem:[%s0 + $0x318] sm:$0xff]
  %v115 = vld [vmem:[%s0 + $0x320] sm:$0xff]
  %v116 = vld [vmem:[%s0 + $0x328] sm:$0xff]
  %v117 = vld [vmem:[%s0 + $0x330] sm:$0xff]
  %v118 = vld [vmem:[%s0 + $0x338] sm:$0xff]
  %v119 = vld [vmem:[%s0 + $0x340] sm:$0xff]
  %v120 = vld [vmem:[%s0 + $0x348] sm:$0xff]
  %v121 = vld [vmem:[%s0 + $0x350] sm:$0xff]
  %v122 = vld [vmem:[%s0 + $0x358] sm:$0xff]
  %v123 = vld [vmem:[%s0 + $0x360] sm:$0xff]
  %v124 = vld [vmem:[%s0 + $0x368] sm:$0xff]
  %v125 = vld [vmem:[%s0 + $0x370] sm:$0xff]
  %v126 = vld [vmem:[%s0 + $0x378] sm:$0xff]
  %v127 = vld [vmem:[%s0 + $0x380] sm:$0xff]
  %v128 = vld [vmem:[%s0 + $0x388] sm:$0xff]
  %v129 = vld [vmem:[%s0 + $0x390] sm:$0xff]
  %v130 = vld [vmem:[%s0 + $0x398] sm:$0xff]
  %v131 = vld [vmem:[%s0 + $0x3a0] sm:$0xff]
  %v132 = vld [vmem:[%s0 + $0x3a8] sm:$0xff]
  %v133 = vld [vmem:[%s0 + $0x3b0] sm:$0xff]
  %v134 = vld [vmem:[%s0 + $0x3b8] sm:$0xff]
  %v135 = vld [vmem:[%s0 + $0x3c0] sm:$0xff]
  %v136 = vld [vmem:[%s0 + $0x3c8] sm:$0xff]
  %v137 = vld [vmem:[%s0 + $0x3d0] sm:$0xff]
  %v138 = vld [vmem:[%s0 + $0x3d8] sm:$0xff]
  %v139 = vld [vmem:[%s0 + $0x3e0] sm:$0xff]
  %v140 = vld [vmem:[%s0 + $0x3e8] sm:$0xff]
  %v141 = vld [vmem:[%s0 + $0x3f0] sm:$0xff]
  %v142 = vld [vmem:[%s0 + $0x3f8] sm:$0xff]
  %v143 = vld [vmem:[%s1] sm:$0xf]
  %v144 = vld [vmem:[%s1 + $0x4] sm:$0xf]
  %v145 = vld [vmem:[%s1 + $0x8] sm:$0xf]
  %v146 = vld [vmem:[%s1 + $0xc] sm:$0xf]
  %v147 = vld [vmem:[%s1 + $0x10] sm:$0xf]
  %v148 = vld [vmem:[%s1 + $0x14] sm:$0xf]
  %v149 = vld [vmem:[%s1 + $0x18] sm:$0xf]
  %v150 = vld [vmem:[%s1 + $0x1c] sm:$0xf]
  %v151 = vld [vmem:[%s1 + $0x20] sm:$0xf]
  %v152 = vld [vmem:[%s1 + $0x24] sm:$0xf]
  %v153 = vld [vmem:[%s1 + $0x28] sm:$0xf]
  %v154 = vld [vmem:[%s1 + $0x2c] sm:$0xf]
  %v155 = vld [vmem:[%s1 + $0x30] sm:$0xf]
  %v156 = vld [vmem:[%s1 + $0x34] sm:$0xf]
  %v157 = vld [vmem:[%s1 + $0x38] sm:$0xf]
  %v158 = vld [vmem:[%s1 + $0x3c] sm:$0xf]
  %v159 = vld [vmem:[%s1 + $0x40] sm:$0xf]
  %v160 = vld [vmem:[%s1 + $0x44] sm:$0xf]
  %v161 = vld [vmem:[%s1 + $0x48] sm:$0xf]
  %v162 = vld [vmem:[%s1 + $0x4c] sm:$0xf]
  %v163 = vld [vmem:[%s1 + $0x50] sm:$0xf]
  %v164 = vld [vmem:[%s1 + $0x54] sm:$0xf]
  %v165 = vld [vmem:[%s1 + $0x58] sm:$0xf]
  %v166 = vld [vmem:[%s1 + $0x5c] sm:$0xf]
  %v167 = vld [vmem:[%s1 + $0x60] sm:$0xf]
  %v168 = vld [vmem:[%s1 + $0x64] sm:$0xf]
  %v169 = vld [vmem:[%s1 + $0x68] sm:$0xf]
  %v170 = vld [vmem:[%s1 + $0x6c] sm:$0xf]
  %v171 = vld [vmem:[%s1 + $0x70] sm:$0xf]
  %v172 = vld [vmem:[%s1 + $0x74] sm:$0xf]
  %v173 = vld [vmem:[%s1 + $0x78] sm:$0xf]
  %v174 = vld [vmem:[%s1 + $0x7c] sm:$0xf]
  %v175 = vld [vmem:[%s1 + $0x80] sm:$0xf]
  %v176 = vld [vmem:[%s1 + $0x84] sm:$0xf]
  %v177 = vld [vmem:[%s1 + $0x88] sm:$0xf]
  %v178 = vld [vmem:[%s1 + $0x8c] sm:$0xf]
  %v179 = vld [vmem:[%s1 + $0x90] sm:$0xf]
  %v180 = vld [vmem:[%s1 + $0x94] sm:$0xf]
  %v181 = vld [vmem:[%s1 + $0x98] sm:$0xf]
  %v182 = vld [vmem:[%s1 + $0x9c] sm:$0xf]
  %v183 = vld [vmem:[%s1 + $0xa0] sm:$0xf]
  %v184 = vld [vmem:[%s1 + $0xa4] sm:$0xf]
  %v185 = vld [vmem:[%s1 + $0xa8] sm:$0xf]
  %v186 = vld [vmem:[%s1 + $0xac] sm:$0xf]
  %v187 = vld [vmem:[%s1 + $0xb0] sm:$0xf]
  %v188 = vld [vmem:[%s1 + $0xb4] sm:$0xf]
  %v189 = vld [vmem:[%s1 + $0xb8] sm:$0xf]
  %v190 = vld [vmem:[%s1 + $0xbc] sm:$0xf]
  %v191 = vld [vmem:[%s1 + $0xc0] sm:$0xf]
  %v192 = vld [vmem:[%s1 + $0xc4] sm:$0xf]
  %v193 = vld [vmem:[%s1 + $0xc8] sm:$0xf]
  %v194 = vld [vmem:[%s1 + $0xcc] sm:$0xf]
  %v195 = vld [vmem:[%s1 + $0xd0] sm:$0xf]
  %v196 = vld [vmem:[%s1 + $0xd4] sm:$0xf]
  %v197 = vld [vmem:[%s1 + $0xd8] sm:$0xf]
  %v198 = vld [vmem:[%s1 + $0xdc] sm:$0xf]
  %v199 = vld [vmem:[%s1 + $0xe0] sm:$0xf]
  %v200 = vld [vmem:[%s1 + $0xe4] sm:$0xf]
  %v201 = vld [vmem:[%s1 + $0xe8] sm:$0xf]
  %v202 = vld [vmem:[%s1 + $0xec] sm:$0xf]
  %v203 = vld [vmem:[%s1 + $0xf0] sm:$0xf]
  %v204 = vld [vmem:[%s1 + $0xf4] sm:$0xf]
  %v205 = vld [vmem:[%s1 + $0xf8] sm:$0x3]
  %v334 = vunpack.c.l.b16 %v15
  %v335 = vunpack.c.h.b16 %v15
  %v336 = vunpack.c.l.b16 %v16
  %v337 = vunpack.c.h.b16 %v16
  %v338 = vunpack.c.l.b16 %v17
  %v339 = vunpack.c.h.b16 %v17
  %v340 = vunpack.c.l.b16 %v18
  %v341 = vunpack.c.h.b16 %v18
  %v342 = vunpack.c.l.b16 %v19
  %v343 = vunpack.c.h.b16 %v19
  %v344 = vunpack.c.l.b16 %v20
  %v345 = vunpack.c.h.b16 %v20
  %v346 = vunpack.c.l.b16 %v21
  %v347 = vunpack.c.h.b16 %v21
  %v348 = vunpack.c.l.b16 %v22
  %v349 = vunpack.c.h.b16 %v22
  %v350 = vunpack.c.l.b16 %v23
  %v351 = vunpack.c.h.b16 %v23
  %v352 = vunpack.c.l.b16 %v24
  %v353 = vunpack.c.h.b16 %v24
  %v354 = vunpack.c.l.b16 %v25
  %v355 = vunpack.c.h.b16 %v25
  %v356 = vunpack.c.l.b16 %v26
  %v357 = vunpack.c.h.b16 %v26
  %v358 = vunpack.c.l.b16 %v27
  %v359 = vunpack.c.h.b16 %v27
  %v360 = vunpack.c.l.b16 %v28
  %v361 = vunpack.c.h.b16 %v28
  %v362 = vunpack.c.l.b16 %v29
  %v363 = vunpack.c.h.b16 %v29
  %v364 = vunpack.c.l.b16 %v30
  %v365 = vunpack.c.h.b16 %v30
  %v366 = vunpack.c.l.b16 %v31
  %v367 = vunpack.c.h.b16 %v31
  %v368 = vunpack.c.l.b16 %v32
  %v369 = vunpack.c.h.b16 %v32
  %v370 = vunpack.c.l.b16 %v33
  %v371 = vunpack.c.h.b16 %v33
  %v372 = vunpack.c.l.b16 %v34
  %v373 = vunpack.c.h.b16 %v34
  %v374 = vunpack.c.l.b16 %v35
  %v375 = vunpack.c.h.b16 %v35
  %v376 = vunpack.c.l.b16 %v36
  %v377 = vunpack.c.h.b16 %v36
  %v378 = vunpack.c.l.b16 %v37
  %v379 = vunpack.c.h.b16 %v37
  %v380 = vunpack.c.l.b16 %v38
  %v381 = vunpack.c.h.b16 %v38
  %v382 = vunpack.c.l.b16 %v39
  %v383 = vunpack.c.h.b16 %v39
  %v384 = vunpack.c.l.b16 %v40
  %v385 = vunpack.c.h.b16 %v40
  %v386 = vunpack.c.l.b16 %v41
  %v387 = vunpack.c.h.b16 %v41
  %v388 = vunpack.c.l.b16 %v42
  %v389 = vunpack.c.h.b16 %v42
  %v390 = vunpack.c.l.b16 %v43
  %v391 = vunpack.c.h.b16 %v43
  %v392 = vunpack.c.l.b16 %v44
  %v393 = vunpack.c.h.b16 %v44
  %v394 = vunpack.c.l.b16 %v45
  %v395 = vunpack.c.h.b16 %v45
  %v396 = vunpack.c.l.b16 %v46
  %v397 = vunpack.c.h.b16 %v46
  %v398 = vunpack.c.l.b16 %v47
  %v399 = vunpack.c.h.b16 %v47
  %v400 = vunpack.c.l.b16 %v48
  %v401 = vunpack.c.h.b16 %v48
  %v402 = vunpack.c.l.b16 %v49
  %v403 = vunpack.c.h.b16 %v49
  %v404 = vunpack.c.l.b16 %v50
  %v405 = vunpack.c.h.b16 %v50
  %v406 = vunpack.c.l.b16 %v51
  %v407 = vunpack.c.h.b16 %v51
  %v408 = vunpack.c.l.b16 %v52
  %v409 = vunpack.c.h.b16 %v52
  %v410 = vunpack.c.l.b16 %v53
  %v411 = vunpack.c.h.b16 %v53
  %v412 = vunpack.c.l.b16 %v54
  %v413 = vunpack.c.h.b16 %v54
  %v414 = vunpack.c.l.b16 %v55
  %v415 = vunpack.c.h.b16 %v55
  %v416 = vunpack.c.l.b16 %v56
  %v417 = vunpack.c.h.b16 %v56
  %v418 = vunpack.c.l.b16 %v57
  %v419 = vunpack.c.h.b16 %v57
  %v420 = vunpack.c.l.b16 %v58
  %v421 = vunpack.c.h.b16 %v58
  %v422 = vunpack.c.l.b16 %v59
  %v423 = vunpack.c.h.b16 %v59
  %v424 = vunpack.c.l.b16 %v60
  %v425 = vunpack.c.h.b16 %v60
  %v426 = vunpack.c.l.b16 %v61
  %v427 = vunpack.c.h.b16 %v61
  %v428 = vunpack.c.l.b16 %v62
  %v429 = vunpack.c.h.b16 %v62
  %v430 = vunpack.c.l.b16 %v63
  %v431 = vunpack.c.h.b16 %v63
  %v432 = vunpack.c.l.b16 %v64
  %v433 = vunpack.c.h.b16 %v64
  %v434 = vunpack.c.l.b16 %v65
  %v435 = vunpack.c.h.b16 %v65
  %v436 = vunpack.c.l.b16 %v66
  %v437 = vunpack.c.h.b16 %v66
  %v438 = vunpack.c.l.b16 %v67
  %v439 = vunpack.c.h.b16 %v67
  %v440 = vunpack.c.l.b16 %v68
  %v441 = vunpack.c.h.b16 %v68
  %v442 = vunpack.c.l.b16 %v69
  %v443 = vunpack.c.h.b16 %v69
  %v444 = vunpack.c.l.b16 %v70
  %v445 = vunpack.c.h.b16 %v70
  %v446 = vunpack.c.l.b16 %v71
  %v447 = vunpack.c.h.b16 %v71
  %v448 = vunpack.c.l.b16 %v72
  %v449 = vunpack.c.h.b16 %v72
  %v450 = vunpack.c.l.b16 %v73
  %v451 = vunpack.c.h.b16 %v73
  %v452 = vunpack.c.l.b16 %v74
  %v453 = vunpack.c.h.b16 %v74
  %v454 = vunpack.c.l.b16 %v75
  %v455 = vunpack.c.h.b16 %v75
  %v456 = vunpack.c.l.b16 %v76
  %v457 = vunpack.c.h.b16 %v76
  %v458 = vunpack.c.l.b16 %v77
  %v459 = vunpack.c.h.b16 %v77
  %v460 = vunpack.c.l.b16 %v78
  %v461 = vunpack.c.h.b16 %v78
  %v462 = vunpack.c.l.b16 %v79
  %v463 = vunpack.c.h.b16 %v79
  %v464 = vunpack.c.l.b16 %v80
  %v465 = vunpack.c.h.b16 %v80
  %v466 = vunpack.c.l.b16 %v81
  %v467 = vunpack.c.h.b16 %v81
  %v468 = vunpack.c.l.b16 %v82
  %v469 = vunpack.c.h.b16 %v82
  %v470 = vunpack.c.l.b16 %v83
  %v471 = vunpack.c.h.b16 %v83
  %v472 = vunpack.c.l.b16 %v84
  %v473 = vunpack.c.h.b16 %v84
  %v474 = vunpack.c.l.b16 %v85
  %v475 = vunpack.c.h.b16 %v85
  %v476 = vunpack.c.l.b16 %v86
  %v477 = vunpack.c.h.b16 %v86
  %v478 = vunpack.c.l.b16 %v87
  %v479 = vunpack.c.h.b16 %v87
  %v480 = vunpack.c.l.b16 %v88
  %v481 = vunpack.c.h.b16 %v88
  %v482 = vunpack.c.l.b16 %v89
  %v483 = vunpack.c.h.b16 %v89
  %v484 = vunpack.c.l.b16 %v90
  %v485 = vunpack.c.h.b16 %v90
  %v486 = vunpack.c.l.b16 %v91
  %v487 = vunpack.c.h.b16 %v91
  %v488 = vunpack.c.l.b16 %v92
  %v489 = vunpack.c.h.b16 %v92
  %v490 = vunpack.c.l.b16 %v93
  %v491 = vunpack.c.h.b16 %v93
  %v492 = vunpack.c.l.b16 %v94
  %v493 = vunpack.c.h.b16 %v94
  %v494 = vunpack.c.l.b16 %v95
  %v495 = vunpack.c.h.b16 %v95
  %v496 = vunpack.c.l.b16 %v96
  %v497 = vunpack.c.h.b16 %v96
  %v498 = vunpack.c.l.b16 %v97
  %v499 = vunpack.c.h.b16 %v97
  %v500 = vunpack.c.l.b16 %v98
  %v501 = vunpack.c.h.b16 %v98
  %v502 = vunpack.c.l.b16 %v99
  %v503 = vunpack.c.h.b16 %v99
  %v504 = vunpack.c.l.b16 %v100
  %v505 = vunpack.c.h.b16 %v100
  %v506 = vunpack.c.l.b16 %v101
  %v507 = vunpack.c.h.b16 %v101
  %v508 = vunpack.c.l.b16 %v102
  %v509 = vunpack.c.h.b16 %v102
  %v510 = vunpack.c.l.b16 %v103
  %v511 = vunpack.c.h.b16 %v103
  %v512 = vunpack.c.l.b16 %v104
  %v513 = vunpack.c.h.b16 %v104
  %v514 = vunpack.c.l.b16 %v105
  %v515 = vunpack.c.h.b16 %v105
  %v516 = vunpack.c.l.b16 %v106
  %v517 = vunpack.c.h.b16 %v106
  %v518 = vunpack.c.l.b16 %v107
  %v519 = vunpack.c.h.b16 %v107
  %v520 = vunpack.c.l.b16 %v108
  %v521 = vunpack.c.h.b16 %v108
  %v522 = vunpack.c.l.b16 %v109
  %v523 = vunpack.c.h.b16 %v109
  %v524 = vunpack.c.l.b16 %v110
  %v525 = vunpack.c.h.b16 %v110
  %v526 = vunpack.c.l.b16 %v111
  %v527 = vunpack.c.h.b16 %v111
  %v528 = vunpack.c.l.b16 %v112
  %v529 = vunpack.c.h.b16 %v112
  %v530 = vunpack.c.l.b16 %v113
  %v531 = vunpack.c.h.b16 %v113
  %v532 = vunpack.c.l.b16 %v114
  %v533 = vunpack.c.h.b16 %v114
  %v534 = vunpack.c.l.b16 %v115
  %v535 = vunpack.c.h.b16 %v115
  %v536 = vunpack.c.l.b16 %v116
  %v537 = vunpack.c.h.b16 %v116
  %v538 = vunpack.c.l.b16 %v117
  %v539 = vunpack.c.h.b16 %v117
  %v540 = vunpack.c.l.b16 %v118
  %v541 = vunpack.c.h.b16 %v118
  %v542 = vunpack.c.l.b16 %v119
  %v543 = vunpack.c.h.b16 %v119
  %v544 = vunpack.c.l.b16 %v120
  %v545 = vunpack.c.h.b16 %v120
  %v546 = vunpack.c.l.b16 %v121
  %v547 = vunpack.c.h.b16 %v121
  %v548 = vunpack.c.l.b16 %v122
  %v549 = vunpack.c.h.b16 %v122
  %v550 = vunpack.c.l.b16 %v123
  %v551 = vunpack.c.h.b16 %v123
  %v552 = vunpack.c.l.b16 %v124
  %v553 = vunpack.c.h.b16 %v124
  %v554 = vunpack.c.l.b16 %v125
  %v555 = vunpack.c.h.b16 %v125
  %v556 = vunpack.c.l.b16 %v126
  %v557 = vunpack.c.h.b16 %v126
  %v558 = vunpack.c.l.b16 %v127
  %v559 = vunpack.c.h.b16 %v127
  %v560 = vunpack.c.l.b16 %v128
  %v561 = vunpack.c.h.b16 %v128
  %v562 = vunpack.c.l.b16 %v129
  %v563 = vunpack.c.h.b16 %v129
  %v564 = vunpack.c.l.b16 %v130
  %v565 = vunpack.c.h.b16 %v130
  %v566 = vunpack.c.l.b16 %v131
  %v567 = vunpack.c.h.b16 %v131
  %v568 = vunpack.c.l.b16 %v132
  %v569 = vunpack.c.h.b16 %v132
  %v570 = vunpack.c.l.b16 %v133
  %v571 = vunpack.c.h.b16 %v133
  %v572 = vunpack.c.l.b16 %v134
  %v573 = vunpack.c.h.b16 %v134
  %v574 = vunpack.c.l.b16 %v135
  %v575 = vunpack.c.h.b16 %v135
  %v576 = vunpack.c.l.b16 %v136
  %v577 = vunpack.c.h.b16 %v136
  %v578 = vunpack.c.l.b16 %v137
  %v579 = vunpack.c.h.b16 %v137
  %v580 = vunpack.c.l.b16 %v138
  %v581 = vunpack.c.h.b16 %v138
  %v582 = vunpack.c.l.b16 %v139
  %v583 = vunpack.c.h.b16 %v139
  %v584 = vunpack.c.l.b16 %v140
  %v585 = vunpack.c.h.b16 %v140
  %v586 = vunpack.c.l.b16 %v141
  %v587 = vunpack.c.h.b16 %v141
  %v588 = vunpack.c.l.b16 %v142
  %v589 = vunpack.c.h.b16 %v142
  %v590 = vpack.c.b16 %v338, %v334
  %v591 = vpack.c.b16 %v339, %v335
  %v592 = vpack.c.b16 %v340, %v336
  %v593 = vpack.c.b16 %v341, %v337
  %v594 = vpack.c.b16 %v346, %v342
  %v595 = vpack.c.b16 %v347, %v343
  %v596 = vpack.c.b16 %v348, %v344
  %v597 = vpack.c.b16 %v349, %v345
  %v598 = vpack.c.b16 %v354, %v350
  %v599 = vpack.c.b16 %v355, %v351
  %v600 = vpack.c.b16 %v356, %v352
  %v601 = vpack.c.b16 %v357, %v353
  %v602 = vpack.c.b16 %v362, %v358
  %v603 = vpack.c.b16 %v363, %v359
  %v604 = vpack.c.b16 %v364, %v360
  %v605 = vpack.c.b16 %v365, %v361
  %v606 = vpack.c.b16 %v370, %v366
  %v607 = vpack.c.b16 %v371, %v367
  %v608 = vpack.c.b16 %v372, %v368
  %v609 = vpack.c.b16 %v373, %v369
  %v610 = vpack.c.b16 %v378, %v374
  %v611 = vpack.c.b16 %v379, %v375
  %v612 = vpack.c.b16 %v380, %v376
  %v613 = vpack.c.b16 %v381, %v377
  %v614 = vpack.c.b16 %v386, %v382
  %v615 = vpack.c.b16 %v387, %v383
  %v616 = vpack.c.b16 %v388, %v384
  %v617 = vpack.c.b16 %v389, %v385
  %v618 = vpack.c.b16 %v394, %v390
  %v619 = vpack.c.b16 %v395, %v391
  %v620 = vpack.c.b16 %v396, %v392
  %v621 = vpack.c.b16 %v397, %v393
  %v622 = vpack.c.b16 %v402, %v398
  %v623 = vpack.c.b16 %v403, %v399
  %v624 = vpack.c.b16 %v404, %v400
  %v625 = vpack.c.b16 %v405, %v401
  %v626 = vpack.c.b16 %v410, %v406
  %v627 = vpack.c.b16 %v411, %v407
  %v628 = vpack.c.b16 %v412, %v408
  %v629 = vpack.c.b16 %v413, %v409
  %v630 = vpack.c.b16 %v418, %v414
  %v631 = vpack.c.b16 %v419, %v415
  %v632 = vpack.c.b16 %v420, %v416
  %v633 = vpack.c.b16 %v421, %v417
  %v634 = vpack.c.b16 %v426, %v422
  %v635 = vpack.c.b16 %v427, %v423
  %v636 = vpack.c.b16 %v428, %v424
  %v637 = vpack.c.b16 %v429, %v425
  %v638 = vpack.c.b16 %v434, %v430
  %v639 = vpack.c.b16 %v435, %v431
  %v640 = vpack.c.b16 %v436, %v432
  %v641 = vpack.c.b16 %v437, %v433
  %v642 = vpack.c.b16 %v442, %v438
  %v643 = vpack.c.b16 %v443, %v439
  %v644 = vpack.c.b16 %v444, %v440
  %v645 = vpack.c.b16 %v445, %v441
  %v646 = vpack.c.b16 %v450, %v446
  %v647 = vpack.c.b16 %v451, %v447
  %v648 = vpack.c.b16 %v452, %v448
  %v649 = vpack.c.b16 %v453, %v449
  %v650 = vpack.c.b16 %v458, %v454
  %v651 = vpack.c.b16 %v459, %v455
  %v652 = vpack.c.b16 %v460, %v456
  %v653 = vpack.c.b16 %v461, %v457
  %v654 = vpack.c.b16 %v466, %v462
  %v655 = vpack.c.b16 %v467, %v463
  %v656 = vpack.c.b16 %v468, %v464
  %v657 = vpack.c.b16 %v469, %v465
  %v658 = vpack.c.b16 %v474, %v470
  %v659 = vpack.c.b16 %v475, %v471
  %v660 = vpack.c.b16 %v476, %v472
  %v661 = vpack.c.b16 %v477, %v473
  %v662 = vpack.c.b16 %v482, %v478
  %v663 = vpack.c.b16 %v483, %v479
  %v664 = vpack.c.b16 %v484, %v480
  %v665 = vpack.c.b16 %v485, %v481
  %v666 = vpack.c.b16 %v490, %v486
  %v667 = vpack.c.b16 %v491, %v487
  %v668 = vpack.c.b16 %v492, %v488
  %v669 = vpack.c.b16 %v493, %v489
  %v670 = vpack.c.b16 %v498, %v494
  %v671 = vpack.c.b16 %v499, %v495
  %v672 = vpack.c.b16 %v500, %v496
  %v673 = vpack.c.b16 %v501, %v497
  %v674 = vpack.c.b16 %v506, %v502
  %v675 = vpack.c.b16 %v507, %v503
  %v676 = vpack.c.b16 %v508, %v504
  %v677 = vpack.c.b16 %v509, %v505
  %v678 = vpack.c.b16 %v514, %v510
  %v679 = vpack.c.b16 %v515, %v511
  %v680 = vpack.c.b16 %v516, %v512
  %v681 = vpack.c.b16 %v517, %v513
  %v682 = vpack.c.b16 %v522, %v518
  %v683 = vpack.c.b16 %v523, %v519
  %v684 = vpack.c.b16 %v524, %v520
  %v685 = vpack.c.b16 %v525, %v521
  %v686 = vpack.c.b16 %v530, %v526
  %v687 = vpack.c.b16 %v531, %v527
  %v688 = vpack.c.b16 %v532, %v528
  %v689 = vpack.c.b16 %v533, %v529
  %v690 = vpack.c.b16 %v538, %v534
  %v691 = vpack.c.b16 %v539, %v535
  %v692 = vpack.c.b16 %v540, %v536
  %v693 = vpack.c.b16 %v541, %v537
  %v694 = vpack.c.b16 %v546, %v542
  %v695 = vpack.c.b16 %v547, %v543
  %v696 = vpack.c.b16 %v548, %v544
  %v697 = vpack.c.b16 %v549, %v545
  %v698 = vpack.c.b16 %v554, %v550
  %v699 = vpack.c.b16 %v555, %v551
  %v700 = vpack.c.b16 %v556, %v552
  %v701 = vpack.c.b16 %v557, %v553
  %v702 = vpack.c.b16 %v562, %v558
  %v703 = vpack.c.b16 %v563, %v559
  %v704 = vpack.c.b16 %v564, %v560
  %v705 = vpack.c.b16 %v565, %v561
  %v706 = vpack.c.b16 %v570, %v566
  %v707 = vpack.c.b16 %v571, %v567
  %v708 = vpack.c.b16 %v572, %v568
  %v709 = vpack.c.b16 %v573, %v569
  %v710 = vpack.c.b16 %v578, %v574
  %v711 = vpack.c.b16 %v579, %v575
  %v712 = vpack.c.b16 %v580, %v576
  %v713 = vpack.c.b16 %v581, %v577
  %v714 = vpack.c.b16 %v586, %v582
  %v715 = vpack.c.b16 %v587, %v583
  %v716 = vpack.c.b16 %v588, %v584
  %v717 = vpack.c.b16 %v589, %v585
  %v877 = vunpack.c.l.b16 %v143
  %v878 = vunpack.c.l.b16 %v144
  %v879 = vunpack.c.l.b16 %v145
  %v880 = vunpack.c.l.b16 %v146
  %v881 = vunpack.c.l.b16 %v147
  %v882 = vunpack.c.l.b16 %v148
  %v883 = vunpack.c.l.b16 %v149
  %v884 = vunpack.c.l.b16 %v150
  %v885 = vunpack.c.l.b16 %v151
  %v886 = vunpack.c.l.b16 %v152
  %v887 = vunpack.c.l.b16 %v153
  %v888 = vunpack.c.l.b16 %v154
  %v889 = vunpack.c.l.b16 %v155
  %v890 = vunpack.c.l.b16 %v156
  %v891 = vunpack.c.l.b16 %v157
  %v892 = vunpack.c.l.b16 %v158
  %v893 = vunpack.c.l.b16 %v159
  %v894 = vunpack.c.l.b16 %v160
  %v895 = vunpack.c.l.b16 %v161
  %v896 = vunpack.c.l.b16 %v162
  %v897 = vunpack.c.l.b16 %v163
  %v898 = vunpack.c.l.b16 %v164
  %v899 = vunpack.c.l.b16 %v165
  %v900 = vunpack.c.l.b16 %v166
  %v901 = vunpack.c.l.b16 %v167
  %v902 = vunpack.c.l.b16 %v168
  %v903 = vunpack.c.l.b16 %v169
  %v904 = vunpack.c.l.b16 %v170
  %v905 = vunpack.c.l.b16 %v171
  %v906 = vunpack.c.l.b16 %v172
  %v907 = vunpack.c.l.b16 %v173
  %v908 = vunpack.c.l.b16 %v174
  %v909 = vunpack.c.l.b16 %v175
  %v910 = vunpack.c.l.b16 %v176
  %v911 = vunpack.c.l.b16 %v177
  %v912 = vunpack.c.l.b16 %v178
  %v913 = vunpack.c.l.b16 %v179
  %v914 = vunpack.c.l.b16 %v180
  %v915 = vunpack.c.l.b16 %v181
  %v916 = vunpack.c.l.b16 %v182
  %v917 = vunpack.c.l.b16 %v183
  %v918 = vunpack.c.l.b16 %v184
  %v919 = vunpack.c.l.b16 %v185
  %v920 = vunpack.c.l.b16 %v186
  %v921 = vunpack.c.l.b16 %v187
  %v922 = vunpack.c.l.b16 %v188
  %v923 = vunpack.c.l.b16 %v189
  %v924 = vunpack.c.l.b16 %v190
  %v925 = vunpack.c.l.b16 %v191
  %v926 = vunpack.c.l.b16 %v192
  %v927 = vunpack.c.l.b16 %v193
  %v928 = vunpack.c.l.b16 %v194
  %v929 = vunpack.c.l.b16 %v195
  %v930 = vunpack.c.l.b16 %v196
  %v931 = vunpack.c.l.b16 %v197
  %v932 = vunpack.c.l.b16 %v198
  %v933 = vunpack.c.l.b16 %v199
  %v934 = vunpack.c.l.b16 %v200
  %v935 = vunpack.c.l.b16 %v201
  %v936 = vunpack.c.l.b16 %v202
  %v937 = vunpack.c.l.b16 %v203
  %v938 = vunpack.c.l.b16 %v204
  %v939 = vunpack.c.l.b16 %v205
  %v940 = vpack.c.b16 %v878, %v877
  %v941 = vpack.c.b16 %v880, %v879
  %v942 = vpack.c.b16 %v882, %v881
  %v943 = vpack.c.b16 %v884, %v883
  %v944 = vpack.c.b16 %v886, %v885
  %v945 = vpack.c.b16 %v888, %v887
  %v946 = vpack.c.b16 %v890, %v889
  %v947 = vpack.c.b16 %v892, %v891
  %v948 = vpack.c.b16 %v894, %v893
  %v949 = vpack.c.b16 %v896, %v895
  %v950 = vpack.c.b16 %v898, %v897
  %v951 = vpack.c.b16 %v900, %v899
  %v952 = vpack.c.b16 %v902, %v901
  %v953 = vpack.c.b16 %v904, %v903
  %v954 = vpack.c.b16 %v906, %v905
  %v955 = vpack.c.b16 %v908, %v907
  %v956 = vpack.c.b16 %v910, %v909
  %v957 = vpack.c.b16 %v912, %v911
  %v958 = vpack.c.b16 %v914, %v913
  %v959 = vpack.c.b16 %v916, %v915
  %v960 = vpack.c.b16 %v918, %v917
  %v961 = vpack.c.b16 %v920, %v919
  %v962 = vpack.c.b16 %v922, %v921
  %v963 = vpack.c.b16 %v924, %v923
  %v964 = vpack.c.b16 %v926, %v925
  %v965 = vpack.c.b16 %v928, %v927
  %v966 = vpack.c.b16 %v930, %v929
  %v967 = vpack.c.b16 %v932, %v931
  %v968 = vpack.c.b16 %v934, %v933
  %v969 = vpack.c.b16 %v936, %v935
  %v970 = vpack.c.b16 %v938, %v937
  %v971 = vpack.c.b16 %v939, %v939
  %vm1003 = vcmask 949248
  %v1005 = vsel %vm1003, %v593, 0
  %v1008 = vsel %vm1003, %v597, 0
  %v1011 = vsel %vm1003, %v601, 0
  %v1014 = vsel %vm1003, %v605, 0
  %v1017 = vsel %vm1003, %v609, 0
  %v1020 = vsel %vm1003, %v613, 0
  %v1023 = vsel %vm1003, %v617, 0
  %v1026 = vsel %vm1003, %v621, 0
  %v1029 = vsel %vm1003, %v625, 0
  %v1032 = vsel %vm1003, %v629, 0
  %v1035 = vsel %vm1003, %v633, 0
  %v1038 = vsel %vm1003, %v637, 0
  %v1041 = vsel %vm1003, %v641, 0
  %v1044 = vsel %vm1003, %v645, 0
  %v1047 = vsel %vm1003, %v649, 0
  %v1050 = vsel %vm1003, %v653, 0
  %v1053 = vsel %vm1003, %v657, 0
  %v1056 = vsel %vm1003, %v661, 0
  %v1059 = vsel %vm1003, %v665, 0
  %v1062 = vsel %vm1003, %v669, 0
  %v1065 = vsel %vm1003, %v673, 0
  %v1068 = vsel %vm1003, %v677, 0
  %v1071 = vsel %vm1003, %v681, 0
  %v1074 = vsel %vm1003, %v685, 0
  %v1077 = vsel %vm1003, %v689, 0
  %v1080 = vsel %vm1003, %v693, 0
  %v1083 = vsel %vm1003, %v697, 0
  %v1086 = vsel %vm1003, %v701, 0
  %v1089 = vsel %vm1003, %v705, 0
  %v1092 = vsel %vm1003, %v709, 0
  %v1095 = vsel %vm1003, %v713, 0
  %v1098 = vsel %vm1003, %v717, 0
  %vm1100 = vcmask 1041408
  %v1102 = vsel %vm1100, %v971, 0
  %1104 = vmatprep.subr.bf16.mxu0 0
  %1105 = vmatpush1.bf16.msra.mxu0 %v947
  %1106 = vmatprep.subr.bf16.mxu0 0
  %1107 = vmatpush1.bf16.msra.mxu0 %v946
  %1108 = vmatprep.subr.bf16.mxu0 0
  %1109 = vmatpush1.bf16.msra.mxu0 %v945
  %1110 = vmatprep.subr.bf16.mxu0 0
  %1111 = vmatpush1.bf16.msra.mxu0 %v944
  %1112 = vmatprep.subr.bf16.mxu0 0
  %1113 = vmatpush1.bf16.msra.mxu0 %v943
  %1114 = vmatprep.subr.bf16.mxu0 0
  %1115 = vmatpush1.bf16.msra.mxu0 %v942
  %1116 = vmatprep.subr.bf16.mxu0 0
  %1117 = vmatpush1.bf16.msra.mxu0 %v941
  %1118 = vmatprep.subr.bf16.mxu0 0
  %1119 = vmatpush1.bf16.msra.mxu0 %v940
  %1120 = vmatprep.subr.bf16.mxu0 0
  %1121 = vmatpush2.bf16.msra.mxu0 %v955
  %1122 = vmatprep.subr.bf16.mxu0 0
  %1123 = vmatpush2.bf16.msra.mxu0 %v954
  %1124 = vmatprep.subr.bf16.mxu0 0
  %1125 = vmatpush2.bf16.msra.mxu0 %v953
  %1126 = vmatprep.subr.bf16.mxu0 0
  %1127 = vmatpush2.bf16.msra.mxu0 %v952
  %1128 = vmatprep.subr.bf16.mxu0 0
  %1129 = vmatpush2.bf16.msra.mxu0 %v951
  %1130 = vmatprep.subr.bf16.mxu0 0
  %1131 = vmatpush2.bf16.msra.mxu0 %v950
  %1132 = vmatprep.subr.bf16.mxu0 0
  %1133 = vmatpush2.bf16.msra.mxu0 %v949
  %1134 = vmatprep.subr.bf16.mxu0 0
  %1135 = vmatpush2.bf16.msra.mxu0 %v948
  %1136 = vmatprep.mubr.bf16.mxu0 %v591
  %1137 = vmatmul.mubr.bf16.gmra.mxu0 %v590
  %v1138 = vpop.f32.mrf.mxu0
  %v1139 = vadd.f32 0.0, %v1138
  %v1140 = vpop.f32.mrf.mxu0
  %v1141 = vpop.f32.mrf.mxu0
  %v1142 = vadd.f32 0.0, %v1141
  %v1143 = vpop.f32.mrf.mxu0
  %1144 = vmatprep.mubr.bf16.mxu0 %v595
  %1145 = vmatmul.mubr.bf16.gmra.mxu0 %v594
  %v1146 = vpop.f32.mrf.mxu0
  %v1147 = vadd.f32 0.0, %v1146
  %v1148 = vpop.f32.mrf.mxu0
  %v1149 = vpop.f32.mrf.mxu0
  %v1150 = vadd.f32 0.0, %v1149
  %v1151 = vpop.f32.mrf.mxu0
  %1152 = vmatprep.mubr.bf16.mxu0 %v599
  %1153 = vmatmul.mubr.bf16.gmra.mxu0 %v598
  %v1154 = vpop.f32.mrf.mxu0
  %v1155 = vadd.f32 0.0, %v1154
  %v1156 = vpop.f32.mrf.mxu0
  %v1157 = vpop.f32.mrf.mxu0
  %v1158 = vadd.f32 0.0, %v1157
  %v1159 = vpop.f32.mrf.mxu0
  %1160 = vmatprep.mubr.bf16.mxu0 %v603
  %1161 = vmatmul.mubr.bf16.gmra.mxu0 %v602
  %v1162 = vpop.f32.mrf.mxu0
  %v1163 = vadd.f32 0.0, %v1162
  %v1164 = vpop.f32.mrf.mxu0
  %v1165 = vpop.f32.mrf.mxu0
  %v1166 = vadd.f32 0.0, %v1165
  %v1167 = vpop.f32.mrf.mxu0
  %1168 = vmatprep.mubr.bf16.mxu0 %v607
  %1169 = vmatmul.mubr.bf16.gmra.mxu0 %v606
  %v1170 = vpop.f32.mrf.mxu0
  %v1171 = vadd.f32 0.0, %v1170
  %v1172 = vpop.f32.mrf.mxu0
  %v1173 = vpop.f32.mrf.mxu0
  %v1174 = vadd.f32 0.0, %v1173
  %v1175 = vpop.f32.mrf.mxu0
  %1176 = vmatprep.mubr.bf16.mxu0 %v611
  %1177 = vmatmul.mubr.bf16.gmra.mxu0 %v610
  %v1178 = vpop.f32.mrf.mxu0
  %v1179 = vadd.f32 0.0, %v1178
  %v1180 = vpop.f32.mrf.mxu0
  %v1181 = vpop.f32.mrf.mxu0
  %v1182 = vadd.f32 0.0, %v1181
  %v1183 = vpop.f32.mrf.mxu0
  %1184 = vmatprep.mubr.bf16.mxu0 %v615
  %1185 = vmatmul.mubr.bf16.gmra.mxu0 %v614
  %v1186 = vpop.f32.mrf.mxu0
  %v1187 = vadd.f32 0.0, %v1186
  %v1188 = vpop.f32.mrf.mxu0
  %v1189 = vpop.f32.mrf.mxu0
  %v1190 = vadd.f32 0.0, %v1189
  %v1191 = vpop.f32.mrf.mxu0
  %1192 = vmatprep.mubr.bf16.mxu0 %v619
  %1193 = vmatmul.mubr.bf16.gmra.mxu0 %v618
  %v1194 = vpop.f32.mrf.mxu0
  %v1195 = vadd.f32 0.0, %v1194
  %v1196 = vpop.f32.mrf.mxu0
  %v1197 = vpop.f32.mrf.mxu0
  %v1198 = vadd.f32 0.0, %v1197
  %v1199 = vpop.f32.mrf.mxu0
  %1200 = vmatprep.mubr.bf16.mxu0 %v623
  %1201 = vmatmul.mubr.bf16.gmra.mxu0 %v622
  %v1202 = vpop.f32.mrf.mxu0
  %v1203 = vadd.f32 0.0, %v1202
  %v1204 = vpop.f32.mrf.mxu0
  %v1205 = vpop.f32.mrf.mxu0
  %v1206 = vadd.f32 0.0, %v1205
  %v1207 = vpop.f32.mrf.mxu0
  %1208 = vmatprep.mubr.bf16.mxu0 %v627
  %1209 = vmatmul.mubr.bf16.gmra.mxu0 %v626
  %v1210 = vpop.f32.mrf.mxu0
  %v1211 = vadd.f32 0.0, %v1210
  %v1212 = vpop.f32.mrf.mxu0
  %v1213 = vpop.f32.mrf.mxu0
  %v1214 = vadd.f32 0.0, %v1213
  %v1215 = vpop.f32.mrf.mxu0
  %1216 = vmatprep.mubr.bf16.mxu0 %v631
  %1217 = vmatmul.mubr.bf16.gmra.mxu0 %v630
  %v1218 = vpop.f32.mrf.mxu0
  %v1219 = vadd.f32 0.0, %v1218
  %v1220 = vpop.f32.mrf.mxu0
  %v1221 = vpop.f32.mrf.mxu0
  %v1222 = vadd.f32 0.0, %v1221
  %v1223 = vpop.f32.mrf.mxu0
  %1224 = vmatprep.mubr.bf16.mxu0 %v635
  %1225 = vmatmul.mubr.bf16.gmra.mxu0 %v634
  %v1226 = vpop.f32.mrf.mxu0
  %v1227 = vadd.f32 0.0, %v1226
  %v1228 = vpop.f32.mrf.mxu0
  %v1229 = vpop.f32.mrf.mxu0
  %v1230 = vadd.f32 0.0, %v1229
  %v1231 = vpop.f32.mrf.mxu0
  %1232 = vmatprep.mubr.bf16.mxu0 %v639
  %1233 = vmatmul.mubr.bf16.gmra.mxu0 %v638
  %v1234 = vpop.f32.mrf.mxu0
  %v1235 = vadd.f32 0.0, %v1234
  %v1236 = vpop.f32.mrf.mxu0
  %v1237 = vpop.f32.mrf.mxu0
  %v1238 = vadd.f32 0.0, %v1237
  %v1239 = vpop.f32.mrf.mxu0
  %1240 = vmatprep.mubr.bf16.mxu0 %v643
  %1241 = vmatmul.mubr.bf16.gmra.mxu0 %v642
  %v1242 = vpop.f32.mrf.mxu0
  %v1243 = vadd.f32 0.0, %v1242
  %v1244 = vpop.f32.mrf.mxu0
  %v1245 = vpop.f32.mrf.mxu0
  %v1246 = vadd.f32 0.0, %v1245
  %v1247 = vpop.f32.mrf.mxu0
  %1248 = vmatprep.mubr.bf16.mxu0 %v647
  %1249 = vmatmul.mubr.bf16.gmra.mxu0 %v646
  %v1250 = vpop.f32.mrf.mxu0
  %v1251 = vadd.f32 0.0, %v1250
  %v1252 = vpop.f32.mrf.mxu0
  %v1253 = vpop.f32.mrf.mxu0
  %v1254 = vadd.f32 0.0, %v1253
  %v1255 = vpop.f32.mrf.mxu0
  %1256 = vmatprep.mubr.bf16.mxu0 %v651
  %1257 = vmatmul.mubr.bf16.gmra.mxu0 %v650
  %v1258 = vpop.f32.mrf.mxu0
  %v1259 = vadd.f32 0.0, %v1258
  %v1260 = vpop.f32.mrf.mxu0
  %v1261 = vpop.f32.mrf.mxu0
  %v1262 = vadd.f32 0.0, %v1261
  %v1263 = vpop.f32.mrf.mxu0
  %1264 = vmatprep.mubr.bf16.mxu0 %v655
  %1265 = vmatmul.mubr.bf16.gmra.mxu0 %v654
  %v1266 = vpop.f32.mrf.mxu0
  %v1267 = vadd.f32 0.0, %v1266
  %v1268 = vpop.f32.mrf.mxu0
  %v1269 = vpop.f32.mrf.mxu0
  %v1270 = vadd.f32 0.0, %v1269
  %v1271 = vpop.f32.mrf.mxu0
  %1272 = vmatprep.mubr.bf16.mxu0 %v659
  %1273 = vmatmul.mubr.bf16.gmra.mxu0 %v658
  %v1274 = vpop.f32.mrf.mxu0
  %v1275 = vadd.f32 0.0, %v1274
  %v1276 = vpop.f32.mrf.mxu0
  %v1277 = vpop.f32.mrf.mxu0
  %v1278 = vadd.f32 0.0, %v1277
  %v1279 = vpop.f32.mrf.mxu0
  %1280 = vmatprep.mubr.bf16.mxu0 %v663
  %1281 = vmatmul.mubr.bf16.gmra.mxu0 %v662
  %v1282 = vpop.f32.mrf.mxu0
  %v1283 = vadd.f32 0.0, %v1282
  %v1284 = vpop.f32.mrf.mxu0
  %v1285 = vpop.f32.mrf.mxu0
  %v1286 = vadd.f32 0.0, %v1285
  %v1287 = vpop.f32.mrf.mxu0
  %1288 = vmatprep.mubr.bf16.mxu0 %v667
  %1289 = vmatmul.mubr.bf16.gmra.mxu0 %v666
  %v1290 = vpop.f32.mrf.mxu0
  %v1291 = vadd.f32 0.0, %v1290
  %v1292 = vpop.f32.mrf.mxu0
  %v1293 = vpop.f32.mrf.mxu0
  %v1294 = vadd.f32 0.0, %v1293
  %v1295 = vpop.f32.mrf.mxu0
  %1296 = vmatprep.mubr.bf16.mxu0 %v671
  %1297 = vmatmul.mubr.bf16.gmra.mxu0 %v670
  %v1298 = vpop.f32.mrf.mxu0
  %v1299 = vadd.f32 0.0, %v1298
  %v1300 = vpop.f32.mrf.mxu0
  %v1301 = vpop.f32.mrf.mxu0
  %v1302 = vadd.f32 0.0, %v1301
  %v1303 = vpop.f32.mrf.mxu0
  %1304 = vmatprep.mubr.bf16.mxu0 %v675
  %1305 = vmatmul.mubr.bf16.gmra.mxu0 %v674
  %v1306 = vpop.f32.mrf.mxu0
  %v1307 = vadd.f32 0.0, %v1306
  %v1308 = vpop.f32.mrf.mxu0
  %v1309 = vpop.f32.mrf.mxu0
  %v1310 = vadd.f32 0.0, %v1309
  %v1311 = vpop.f32.mrf.mxu0
  %1312 = vmatprep.mubr.bf16.mxu0 %v679
  %1313 = vmatmul.mubr.bf16.gmra.mxu0 %v678
  %v1314 = vpop.f32.mrf.mxu0
  %v1315 = vadd.f32 0.0, %v1314
  %v1316 = vpop.f32.mrf.mxu0
  %v1317 = vpop.f32.mrf.mxu0
  %v1318 = vadd.f32 0.0, %v1317
  %v1319 = vpop.f32.mrf.mxu0
  %1320 = vmatprep.mubr.bf16.mxu0 %v683
  %1321 = vmatmul.mubr.bf16.gmra.mxu0 %v682
  %v1322 = vpop.f32.mrf.mxu0
  %v1323 = vadd.f32 0.0, %v1322
  %v1324 = vpop.f32.mrf.mxu0
  %v1325 = vpop.f32.mrf.mxu0
  %v1326 = vadd.f32 0.0, %v1325
  %v1327 = vpop.f32.mrf.mxu0
  %1328 = vmatprep.mubr.bf16.mxu0 %v687
  %1329 = vmatmul.mubr.bf16.gmra.mxu0 %v686
  %v1330 = vpop.f32.mrf.mxu0
  %v1331 = vadd.f32 0.0, %v1330
  %v1332 = vpop.f32.mrf.mxu0
  %v1333 = vpop.f32.mrf.mxu0
  %v1334 = vadd.f32 0.0, %v1333
  %v1335 = vpop.f32.mrf.mxu0
  %1336 = vmatprep.mubr.bf16.mxu0 %v691
  %1337 = vmatmul.mubr.bf16.gmra.mxu0 %v690
  %v1338 = vpop.f32.mrf.mxu0
  %v1339 = vadd.f32 0.0, %v1338
  %v1340 = vpop.f32.mrf.mxu0
  %v1341 = vpop.f32.mrf.mxu0
  %v1342 = vadd.f32 0.0, %v1341
  %v1343 = vpop.f32.mrf.mxu0
  %1344 = vmatprep.mubr.bf16.mxu0 %v695
  %1345 = vmatmul.mubr.bf16.gmra.mxu0 %v694
  %v1346 = vpop.f32.mrf.mxu0
  %v1347 = vadd.f32 0.0, %v1346
  %v1348 = vpop.f32.mrf.mxu0
  %v1349 = vpop.f32.mrf.mxu0
  %v1350 = vadd.f32 0.0, %v1349
  %v1351 = vpop.f32.mrf.mxu0
  %1352 = vmatprep.mubr.bf16.mxu0 %v699
  %1353 = vmatmul.mubr.bf16.gmra.mxu0 %v698
  %v1354 = vpop.f32.mrf.mxu0
  %v1355 = vadd.f32 0.0, %v1354
  %v1356 = vpop.f32.mrf.mxu0
  %v1357 = vpop.f32.mrf.mxu0
  %v1358 = vadd.f32 0.0, %v1357
  %v1359 = vpop.f32.mrf.mxu0
  %1360 = vmatprep.mubr.bf16.mxu0 %v703
  %1361 = vmatmul.mubr.bf16.gmra.mxu0 %v702
  %v1362 = vpop.f32.mrf.mxu0
  %v1363 = vadd.f32 0.0, %v1362
  %v1364 = vpop.f32.mrf.mxu0
  %v1365 = vpop.f32.mrf.mxu0
  %v1366 = vadd.f32 0.0, %v1365
  %v1367 = vpop.f32.mrf.mxu0
  %1368 = vmatprep.mubr.bf16.mxu0 %v707
  %1369 = vmatmul.mubr.bf16.gmra.mxu0 %v706
  %v1370 = vpop.f32.mrf.mxu0
  %v1371 = vadd.f32 0.0, %v1370
  %v1372 = vpop.f32.mrf.mxu0
  %v1373 = vpop.f32.mrf.mxu0
  %v1374 = vadd.f32 0.0, %v1373
  %v1375 = vpop.f32.mrf.mxu0
  %1376 = vmatprep.mubr.bf16.mxu0 %v711
  %1377 = vmatmul.mubr.bf16.gmra.mxu0 %v710
  %v1378 = vpop.f32.mrf.mxu0
  %v1379 = vadd.f32 0.0, %v1378
  %v1380 = vpop.f32.mrf.mxu0
  %v1381 = vpop.f32.mrf.mxu0
  %v1382 = vadd.f32 0.0, %v1381
  %v1383 = vpop.f32.mrf.mxu0
  %1384 = vmatprep.mubr.bf16.mxu0 %v715
  %1385 = vmatmul.mubr.bf16.gmra.mxu0 %v714
  %v1386 = vpop.f32.mrf.mxu0
  %v1387 = vadd.f32 0.0, %v1386
  %v1388 = vpop.f32.mrf.mxu0
  %v1389 = vpop.f32.mrf.mxu0
  %v1390 = vadd.f32 0.0, %v1389
  %v1391 = vpop.f32.mrf.mxu0
  %1392 = vdwg.mxu0
  %1393 = vmatprep.subr.bf16.mxu0 0
  %1394 = vmatpush1.bf16.msra.mxu0 %v963
  %1395 = vmatprep.subr.bf16.mxu0 0
  %1396 = vmatpush1.bf16.msra.mxu0 %v962
  %1397 = vmatprep.subr.bf16.mxu0 0
  %1398 = vmatpush1.bf16.msra.mxu0 %v961
  %1399 = vmatprep.subr.bf16.mxu0 0
  %1400 = vmatpush1.bf16.msra.mxu0 %v960
  %1401 = vmatprep.subr.bf16.mxu0 0
  %1402 = vmatpush1.bf16.msra.mxu0 %v959
  %1403 = vmatprep.subr.bf16.mxu0 0
  %1404 = vmatpush1.bf16.msra.mxu0 %v958
  %1405 = vmatprep.subr.bf16.mxu0 0
  %1406 = vmatpush1.bf16.msra.mxu0 %v957
  %1407 = vmatprep.subr.bf16.mxu0 0
  %1408 = vmatpush1.bf16.msra.mxu0 %v956
  %1409 = vmatprep.subr.bf16.mxu0 0
  %1410 = vmatpush2.bf16.msra.mxu0 %v1102
  %1411 = vmatprep.subr.bf16.mxu0 0
  %1412 = vmatpush2.bf16.msra.mxu0 %v970
  %1413 = vmatprep.subr.bf16.mxu0 0
  %1414 = vmatpush2.bf16.msra.mxu0 %v969
  %1415 = vmatprep.subr.bf16.mxu0 0
  %1416 = vmatpush2.bf16.msra.mxu0 %v968
  %1417 = vmatprep.subr.bf16.mxu0 0
  %1418 = vmatpush2.bf16.msra.mxu0 %v967
  %1419 = vmatprep.subr.bf16.mxu0 0
  %1420 = vmatpush2.bf16.msra.mxu0 %v966
  %1421 = vmatprep.subr.bf16.mxu0 0
  %1422 = vmatpush2.bf16.msra.mxu0 %v965
  %1423 = vmatprep.subr.bf16.mxu0 0
  %1424 = vmatpush2.bf16.msra.mxu0 %v964
  %1425 = vmatprep.mubr.bf16.mxu0 %v1005
  %1426 = vmatmul.mubr.bf16.gmra.mxu0 %v592
  %v1427 = vpop.f32.mrf.mxu0
  %v1428 = vadd.f32 %v1139, %v1427
  %v1429 = vpop.f32.mrf.mxu0
  %v1430 = vpop.f32.mrf.mxu0
  %v1431 = vadd.f32 %v1142, %v1430
  %v1432 = vpop.f32.mrf.mxu0
  %1433 = vmatprep.mubr.bf16.mxu0 %v1008
  %1434 = vmatmul.mubr.bf16.gmra.mxu0 %v596
  %v1435 = vpop.f32.mrf.mxu0
  %v1436 = vadd.f32 %v1147, %v1435
  %v1437 = vpop.f32.mrf.mxu0
  %v1438 = vpop.f32.mrf.mxu0
  %v1439 = vadd.f32 %v1150, %v1438
  %v1440 = vpop.f32.mrf.mxu0
  %1441 = vmatprep.mubr.bf16.mxu0 %v1011
  %1442 = vmatmul.mubr.bf16.gmra.mxu0 %v600
  %v1443 = vpop.f32.mrf.mxu0
  %v1444 = vadd.f32 %v1155, %v1443
  %v1445 = vpop.f32.mrf.mxu0
  %v1446 = vpop.f32.mrf.mxu0
  %v1447 = vadd.f32 %v1158, %v1446
  %v1448 = vpop.f32.mrf.mxu0
  %1449 = vmatprep.mubr.bf16.mxu0 %v1014
  %1450 = vmatmul.mubr.bf16.gmra.mxu0 %v604
  %v1451 = vpop.f32.mrf.mxu0
  %v1452 = vadd.f32 %v1163, %v1451
  %v1453 = vpop.f32.mrf.mxu0
  %v1454 = vpop.f32.mrf.mxu0
  %v1455 = vadd.f32 %v1166, %v1454
  %v1456 = vpop.f32.mrf.mxu0
  %1457 = vmatprep.mubr.bf16.mxu0 %v1017
  %1458 = vmatmul.mubr.bf16.gmra.mxu0 %v608
  %v1459 = vpop.f32.mrf.mxu0
  %v1460 = vadd.f32 %v1171, %v1459
  %v1461 = vpop.f32.mrf.mxu0
  %v1462 = vpop.f32.mrf.mxu0
  %v1463 = vadd.f32 %v1174, %v1462
  %v1464 = vpop.f32.mrf.mxu0
  %1465 = vmatprep.mubr.bf16.mxu0 %v1020
  %1466 = vmatmul.mubr.bf16.gmra.mxu0 %v612
  %v1467 = vpop.f32.mrf.mxu0
  %v1468 = vadd.f32 %v1179, %v1467
  %v1469 = vpop.f32.mrf.mxu0
  %v1470 = vpop.f32.mrf.mxu0
  %v1471 = vadd.f32 %v1182, %v1470
  %v1472 = vpop.f32.mrf.mxu0
  %1473 = vmatprep.mubr.bf16.mxu0 %v1023
  %1474 = vmatmul.mubr.bf16.gmra.mxu0 %v616
  %v1475 = vpop.f32.mrf.mxu0
  %v1476 = vadd.f32 %v1187, %v1475
  %v1477 = vpop.f32.mrf.mxu0
  %v1478 = vpop.f32.mrf.mxu0
  %v1479 = vadd.f32 %v1190, %v1478
  %v1480 = vpop.f32.mrf.mxu0
  %1481 = vmatprep.mubr.bf16.mxu0 %v1026
  %1482 = vmatmul.mubr.bf16.gmra.mxu0 %v620
  %v1483 = vpop.f32.mrf.mxu0
  %v1484 = vadd.f32 %v1195, %v1483
  %v1485 = vpop.f32.mrf.mxu0
  %v1486 = vpop.f32.mrf.mxu0
  %v1487 = vadd.f32 %v1198, %v1486
  %v1488 = vpop.f32.mrf.mxu0
  %1489 = vmatprep.mubr.bf16.mxu0 %v1029
  %1490 = vmatmul.mubr.bf16.gmra.mxu0 %v624
  %v1491 = vpop.f32.mrf.mxu0
  %v1492 = vadd.f32 %v1203, %v1491
  %v1493 = vpop.f32.mrf.mxu0
  %v1494 = vpop.f32.mrf.mxu0
  %v1495 = vadd.f32 %v1206, %v1494
  %v1496 = vpop.f32.mrf.mxu0
  %1497 = vmatprep.mubr.bf16.mxu0 %v1032
  %1498 = vmatmul.mubr.bf16.gmra.mxu0 %v628
  %v1499 = vpop.f32.mrf.mxu0
  %v1500 = vadd.f32 %v1211, %v1499
  %v1501 = vpop.f32.mrf.mxu0
  %v1502 = vpop.f32.mrf.mxu0
  %v1503 = vadd.f32 %v1214, %v1502
  %v1504 = vpop.f32.mrf.mxu0
  %1505 = vmatprep.mubr.bf16.mxu0 %v1035
  %1506 = vmatmul.mubr.bf16.gmra.mxu0 %v632
  %v1507 = vpop.f32.mrf.mxu0
  %v1508 = vadd.f32 %v1219, %v1507
  %v1509 = vpop.f32.mrf.mxu0
  %v1510 = vpop.f32.mrf.mxu0
  %v1511 = vadd.f32 %v1222, %v1510
  %v1512 = vpop.f32.mrf.mxu0
  %1513 = vmatprep.mubr.bf16.mxu0 %v1038
  %1514 = vmatmul.mubr.bf16.gmra.mxu0 %v636
  %v1515 = vpop.f32.mrf.mxu0
  %v1516 = vadd.f32 %v1227, %v1515
  %v1517 = vpop.f32.mrf.mxu0
  %v1518 = vpop.f32.mrf.mxu0
  %v1519 = vadd.f32 %v1230, %v1518
  %v1520 = vpop.f32.mrf.mxu0
  %1521 = vmatprep.mubr.bf16.mxu0 %v1041
  %1522 = vmatmul.mubr.bf16.gmra.mxu0 %v640
  %v1523 = vpop.f32.mrf.mxu0
  %v1524 = vadd.f32 %v1235, %v1523
  %v1525 = vpop.f32.mrf.mxu0
  %v1526 = vpop.f32.mrf.mxu0
  %v1527 = vadd.f32 %v1238, %v1526
  %v1528 = vpop.f32.mrf.mxu0
  %1529 = vmatprep.mubr.bf16.mxu0 %v1044
  %1530 = vmatmul.mubr.bf16.gmra.mxu0 %v644
  %v1531 = vpop.f32.mrf.mxu0
  %v1532 = vadd.f32 %v1243, %v1531
  %v1533 = vpop.f32.mrf.mxu0
  %v1534 = vpop.f32.mrf.mxu0
  %v1535 = vadd.f32 %v1246, %v1534
  %v1536 = vpop.f32.mrf.mxu0
  %1537 = vmatprep.mubr.bf16.mxu0 %v1047
  %1538 = vmatmul.mubr.bf16.gmra.mxu0 %v648
  %v1539 = vpop.f32.mrf.mxu0
  %v1540 = vadd.f32 %v1251, %v1539
  %v1541 = vpop.f32.mrf.mxu0
  %v1542 = vpop.f32.mrf.mxu0
  %v1543 = vadd.f32 %v1254, %v1542
  %v1544 = vpop.f32.mrf.mxu0
  %1545 = vmatprep.mubr.bf16.mxu0 %v1050
  %1546 = vmatmul.mubr.bf16.gmra.mxu0 %v652
  %v1547 = vpop.f32.mrf.mxu0
  %v1548 = vadd.f32 %v1259, %v1547
  %v1549 = vpop.f32.mrf.mxu0
  %v1550 = vpop.f32.mrf.mxu0
  %v1551 = vadd.f32 %v1262, %v1550
  %v1552 = vpop.f32.mrf.mxu0
  %1553 = vmatprep.mubr.bf16.mxu0 %v1053
  %1554 = vmatmul.mubr.bf16.gmra.mxu0 %v656
  %v1555 = vpop.f32.mrf.mxu0
  %v1556 = vadd.f32 %v1267, %v1555
  %v1557 = vpop.f32.mrf.mxu0
  %v1558 = vpop.f32.mrf.mxu0
  %v1559 = vadd.f32 %v1270, %v1558
  %v1560 = vpop.f32.mrf.mxu0
  %1561 = vmatprep.mubr.bf16.mxu0 %v1056
  %1562 = vmatmul.mubr.bf16.gmra.mxu0 %v660
  %v1563 = vpop.f32.mrf.mxu0
  %v1564 = vadd.f32 %v1275, %v1563
  %v1565 = vpop.f32.mrf.mxu0
  %v1566 = vpop.f32.mrf.mxu0
  %v1567 = vadd.f32 %v1278, %v1566
  %v1568 = vpop.f32.mrf.mxu0
  %1569 = vmatprep.mubr.bf16.mxu0 %v1059
  %1570 = vmatmul.mubr.bf16.gmra.mxu0 %v664
  %v1571 = vpop.f32.mrf.mxu0
  %v1572 = vadd.f32 %v1283, %v1571
  %v1573 = vpop.f32.mrf.mxu0
  %v1574 = vpop.f32.mrf.mxu0
  %v1575 = vadd.f32 %v1286, %v1574
  %v1576 = vpop.f32.mrf.mxu0
  %1577 = vmatprep.mubr.bf16.mxu0 %v1062
  %1578 = vmatmul.mubr.bf16.gmra.mxu0 %v668
  %v1579 = vpop.f32.mrf.mxu0
  %v1580 = vadd.f32 %v1291, %v1579
  %v1581 = vpop.f32.mrf.mxu0
  %v1582 = vpop.f32.mrf.mxu0
  %v1583 = vadd.f32 %v1294, %v1582
  %v1584 = vpop.f32.mrf.mxu0
  %1585 = vmatprep.mubr.bf16.mxu0 %v1065
  %1586 = vmatmul.mubr.bf16.gmra.mxu0 %v672
  %v1587 = vpop.f32.mrf.mxu0
  %v1588 = vadd.f32 %v1299, %v1587
  %v1589 = vpop.f32.mrf.mxu0
  %v1590 = vpop.f32.mrf.mxu0
  %v1591 = vadd.f32 %v1302, %v1590
  %v1592 = vpop.f32.mrf.mxu0
  %1593 = vmatprep.mubr.bf16.mxu0 %v1068
  %1594 = vmatmul.mubr.bf16.gmra.mxu0 %v676
  %v1595 = vpop.f32.mrf.mxu0
  %v1596 = vadd.f32 %v1307, %v1595
  %v1597 = vpop.f32.mrf.mxu0
  %v1598 = vpop.f32.mrf.mxu0
  %v1599 = vadd.f32 %v1310, %v1598
  %v1600 = vpop.f32.mrf.mxu0
  %1601 = vmatprep.mubr.bf16.mxu0 %v1071
  %1602 = vmatmul.mubr.bf16.gmra.mxu0 %v680
  %v1603 = vpop.f32.mrf.mxu0
  %v1604 = vadd.f32 %v1315, %v1603
  %v1605 = vpop.f32.mrf.mxu0
  %v1606 = vpop.f32.mrf.mxu0
  %v1607 = vadd.f32 %v1318, %v1606
  %v1608 = vpop.f32.mrf.mxu0
  %1609 = vmatprep.mubr.bf16.mxu0 %v1074
  %1610 = vmatmul.mubr.bf16.gmra.mxu0 %v684
  %v1611 = vpop.f32.mrf.mxu0
  %v1612 = vadd.f32 %v1323, %v1611
  %v1613 = vpop.f32.mrf.mxu0
  %v1614 = vpop.f32.mrf.mxu0
  %v1615 = vadd.f32 %v1326, %v1614
  %v1616 = vpop.f32.mrf.mxu0
  %1617 = vmatprep.mubr.bf16.mxu0 %v1077
  %1618 = vmatmul.mubr.bf16.gmra.mxu0 %v688
  %v1619 = vpop.f32.mrf.mxu0
  %v1620 = vadd.f32 %v1331, %v1619
  %v1621 = vpop.f32.mrf.mxu0
  %v1622 = vpop.f32.mrf.mxu0
  %v1623 = vadd.f32 %v1334, %v1622
  %v1624 = vpop.f32.mrf.mxu0
  %1625 = vmatprep.mubr.bf16.mxu0 %v1080
  %1626 = vmatmul.mubr.bf16.gmra.mxu0 %v692
  %v1627 = vpop.f32.mrf.mxu0
  %v1628 = vadd.f32 %v1339, %v1627
  %v1629 = vpop.f32.mrf.mxu0
  %v1630 = vpop.f32.mrf.mxu0
  %v1631 = vadd.f32 %v1342, %v1630
  %v1632 = vpop.f32.mrf.mxu0
  %1633 = vmatprep.mubr.bf16.mxu0 %v1083
  %1634 = vmatmul.mubr.bf16.gmra.mxu0 %v696
  %v1635 = vpop.f32.mrf.mxu0
  %v1636 = vadd.f32 %v1347, %v1635
  %v1637 = vpop.f32.mrf.mxu0
  %v1638 = vpop.f32.mrf.mxu0
  %v1639 = vadd.f32 %v1350, %v1638
  %v1640 = vpop.f32.mrf.mxu0
  %1641 = vmatprep.mubr.bf16.mxu0 %v1086
  %1642 = vmatmul.mubr.bf16.gmra.mxu0 %v700
  %v1643 = vpop.f32.mrf.mxu0
  %v1644 = vadd.f32 %v1355, %v1643
  %v1645 = vpop.f32.mrf.mxu0
  %v1646 = vpop.f32.mrf.mxu0
  %v1647 = vadd.f32 %v1358, %v1646
  %v1648 = vpop.f32.mrf.mxu0
  %1649 = vmatprep.mubr.bf16.mxu0 %v1089
  %1650 = vmatmul.mubr.bf16.gmra.mxu0 %v704
  %v1651 = vpop.f32.mrf.mxu0
  %v1652 = vadd.f32 %v1363, %v1651
  %v1653 = vpop.f32.mrf.mxu0
  %v1654 = vpop.f32.mrf.mxu0
  %v1655 = vadd.f32 %v1366, %v1654
  %v1656 = vpop.f32.mrf.mxu0
  %1657 = vmatprep.mubr.bf16.mxu0 %v1092
  %1658 = vmatmul.mubr.bf16.gmra.mxu0 %v708
  %v1659 = vpop.f32.mrf.mxu0
  %v1660 = vadd.f32 %v1371, %v1659
  %v1661 = vpop.f32.mrf.mxu0
  %v1662 = vpop.f32.mrf.mxu0
  %v1663 = vadd.f32 %v1374, %v1662
  %v1664 = vpop.f32.mrf.mxu0
  %1665 = vmatprep.mubr.bf16.mxu0 %v1095
  %1666 = vmatmul.mubr.bf16.gmra.mxu0 %v712
  %v1667 = vpop.f32.mrf.mxu0
  %v1668 = vadd.f32 %v1379, %v1667
  %v1669 = vpop.f32.mrf.mxu0
  %v1670 = vpop.f32.mrf.mxu0
  %v1671 = vadd.f32 %v1382, %v1670
  %v1672 = vpop.f32.mrf.mxu0
  %1673 = vmatprep.mubr.bf16.mxu0 %v1098
  %1674 = vmatmul.mubr.bf16.gmra.mxu0 %v716
  %v1675 = vpop.f32.mrf.mxu0
  %v1676 = vadd.f32 %v1387, %v1675
  %v1677 = vpop.f32.mrf.mxu0
  %v1678 = vpop.f32.mrf.mxu0
  %v1679 = vadd.f32 %v1390, %v1678
  %v1680 = vpop.f32.mrf.mxu0
  %1681 = vdwg.mxu0
  %vm1682 = vcmask 408576
  %v1683 = vsel %vm1682, %v1428, -inf
  %v1684 = vsel %vm1682, %v1492, -inf
  %v1685 = vmax.f32 %v1683, %v1684
  %v1686 = vsel %vm1682, %v1556, -inf
  %v1687 = vmax.f32 %v1685, %v1686
  %v1688 = vsel %vm1682, %v1620, -inf
  %v1689 = vmax.f32 %v1687, %v1688
  %v1690 = vsel %vm1682, %v1431, -inf
  %v1691 = vsel %vm1682, %v1495, -inf
  %v1692 = vmax.f32 %v1690, %v1691
  %v1693 = vsel %vm1682, %v1559, -inf
  %v1694 = vmax.f32 %v1692, %v1693
  %v1695 = vsel %vm1682, %v1623, -inf
  %v1696 = vmax.f32 %v1694, %v1695
  %v1697 = vsel %vm1682, %v1436, -inf
  %v1698 = vsel %vm1682, %v1500, -inf
  %v1699 = vmax.f32 %v1697, %v1698
  %v1700 = vsel %vm1682, %v1564, -inf
  %v1701 = vmax.f32 %v1699, %v1700
  %v1702 = vsel %vm1682, %v1628, -inf
  %v1703 = vmax.f32 %v1701, %v1702
  %v1704 = vsel %vm1682, %v1439, -inf
  %v1705 = vsel %vm1682, %v1503, -inf
  %v1706 = vmax.f32 %v1704, %v1705
  %v1707 = vsel %vm1682, %v1567, -inf
  %v1708 = vmax.f32 %v1706, %v1707
  %v1709 = vsel %vm1682, %v1631, -inf
  %v1710 = vmax.f32 %v1708, %v1709
  %v1711 = vsel %vm1682, %v1444, -inf
  %v1712 = vsel %vm1682, %v1508, -inf
  %v1713 = vmax.f32 %v1711, %v1712
  %v1714 = vsel %vm1682, %v1572, -inf
  %v1715 = vmax.f32 %v1713, %v1714
  %v1716 = vsel %vm1682, %v1636, -inf
  %v1717 = vmax.f32 %v1715, %v1716
  %v1718 = vsel %vm1682, %v1447, -inf
  %v1719 = vsel %vm1682, %v1511, -inf
  %v1720 = vmax.f32 %v1718, %v1719
  %v1721 = vsel %vm1682, %v1575, -inf
  %v1722 = vmax.f32 %v1720, %v1721
  %v1723 = vsel %vm1682, %v1639, -inf
  %v1724 = vmax.f32 %v1722, %v1723
  %v1725 = vsel %vm1682, %v1452, -inf
  %v1726 = vsel %vm1682, %v1516, -inf
  %v1727 = vmax.f32 %v1725, %v1726
  %v1728 = vsel %vm1682, %v1580, -inf
  %v1729 = vmax.f32 %v1727, %v1728
  %v1730 = vsel %vm1682, %v1644, -inf
  %v1731 = vmax.f32 %v1729, %v1730
  %v1732 = vsel %vm1682, %v1455, -inf
  %v1733 = vsel %vm1682, %v1519, -inf
  %v1734 = vmax.f32 %v1732, %v1733
  %v1735 = vsel %vm1682, %v1583, -inf
  %v1736 = vmax.f32 %v1734, %v1735
  %v1737 = vsel %vm1682, %v1647, -inf
  %v1738 = vmax.f32 %v1736, %v1737
  %v1739 = vsel %vm1682, %v1460, -inf
  %v1740 = vsel %vm1682, %v1524, -inf
  %v1741 = vmax.f32 %v1739, %v1740
  %v1742 = vsel %vm1682, %v1588, -inf
  %v1743 = vmax.f32 %v1741, %v1742
  %v1744 = vsel %vm1682, %v1652, -inf
  %v1745 = vmax.f32 %v1743, %v1744
  %v1746 = vsel %vm1682, %v1463, -inf
  %v1747 = vsel %vm1682, %v1527, -inf
  %v1748 = vmax.f32 %v1746, %v1747
  %v1749 = vsel %vm1682, %v1591, -inf
  %v1750 = vmax.f32 %v1748, %v1749
  %v1751 = vsel %vm1682, %v1655, -inf
  %v1752 = vmax.f32 %v1750, %v1751
  %v1753 = vsel %vm1682, %v1468, -inf
  %v1754 = vsel %vm1682, %v1532, -inf
  %v1755 = vmax.f32 %v1753, %v1754
  %v1756 = vsel %vm1682, %v1596, -inf
  %v1757 = vmax.f32 %v1755, %v1756
  %v1758 = vsel %vm1682, %v1660, -inf
  %v1759 = vmax.f32 %v1757, %v1758
  %v1760 = vsel %vm1682, %v1471, -inf
  %v1761 = vsel %vm1682, %v1535, -inf
  %v1762 = vmax.f32 %v1760, %v1761
  %v1763 = vsel %vm1682, %v1599, -inf
  %v1764 = vmax.f32 %v1762, %v1763
  %v1765 = vsel %vm1682, %v1663, -inf
  %v1766 = vmax.f32 %v1764, %v1765
  %v1767 = vsel %vm1682, %v1476, -inf
  %v1768 = vsel %vm1682, %v1540, -inf
  %v1769 = vmax.f32 %v1767, %v1768
  %v1770 = vsel %vm1682, %v1604, -inf
  %v1771 = vmax.f32 %v1769, %v1770
  %v1772 = vsel %vm1682, %v1668, -inf
  %v1773 = vmax.f32 %v1771, %v1772
  %v1774 = vsel %vm1682, %v1479, -inf
  %v1775 = vsel %vm1682, %v1543, -inf
  %v1776 = vmax.f32 %v1774, %v1775
  %v1777 = vsel %vm1682, %v1607, -inf
  %v1778 = vmax.f32 %v1776, %v1777
  %v1779 = vsel %vm1682, %v1671, -inf
  %v1780 = vmax.f32 %v1778, %v1779
  %v1781 = vsel %vm1682, %v1484, -inf
  %v1782 = vsel %vm1682, %v1548, -inf
  %v1783 = vmax.f32 %v1781, %v1782
  %v1784 = vsel %vm1682, %v1612, -inf
  %v1785 = vmax.f32 %v1783, %v1784
  %v1786 = vsel %vm1682, %v1676, -inf
  %v1787 = vmax.f32 %v1785, %v1786
  %v1788 = vsel %vm1682, %v1487, -inf
  %v1789 = vsel %vm1682, %v1551, -inf
  %v1790 = vmax.f32 %v1788, %v1789
  %v1791 = vsel %vm1682, %v1615, -inf
  %v1792 = vmax.f32 %v1790, %v1791
  %v1793 = vsel %vm1682, %v1679, -inf
  %v1794 = vmax.f32 %v1792, %v1793
  %v1795 = vld [vmem:[%s2] sm:$0x1]
  %v1797 = vlaneseq
  %v1798 = vshrl.u32 %v1797, 7
  %v1799 = vsub.s32 0, %v1798
  %v1800 = vrot.slane %v1795, %v1799
  %v1802 = vadd.f32 %v1689, %v1800
  %v1803 = vadd.f32 %v1696, %v1800
  %v1804 = vadd.f32 %v1703, %v1800
  %v1805 = vadd.f32 %v1710, %v1800
  %v1806 = vadd.f32 %v1717, %v1800
  %v1807 = vadd.f32 %v1724, %v1800
  %v1808 = vadd.f32 %v1731, %v1800
  %v1809 = vadd.f32 %v1738, %v1800
  %v1810 = vadd.f32 %v1745, %v1800
  %v1811 = vadd.f32 %v1752, %v1800
  %v1812 = vadd.f32 %v1759, %v1800
  %v1813 = vadd.f32 %v1766, %v1800
  %v1814 = vadd.f32 %v1773, %v1800
  %v1815 = vadd.f32 %v1780, %v1800
  %v1816 = vadd.f32 %v1787, %v1800
  %v1817 = vadd.f32 %v1794, %v1800
  %v1818 = vmax.f32 %v1802, 0.0
  %v1819 = vmax.f32 %v1803, 0.0
  %v1820 = vmax.f32 %v1804, 0.0
  %v1821 = vmax.f32 %v1805, 0.0
  %v1822 = vmax.f32 %v1806, 0.0
  %v1823 = vmax.f32 %v1807, 0.0
  %v1824 = vmax.f32 %v1808, 0.0
  %v1825 = vmax.f32 %v1809, 0.0
  %v1826 = vmax.f32 %v1810, 0.0
  %v1827 = vmax.f32 %v1811, 0.0
  %v1828 = vmax.f32 %v1812, 0.0
  %v1829 = vmax.f32 %v1813, 0.0
  %v1830 = vmax.f32 %v1814, 0.0
  %v1831 = vmax.f32 %v1815, 0.0
  %v1832 = vmax.f32 %v1816, 0.0
  %v1833 = vmax.f32 %v1817, 0.0
  %1834 = vst.msk [vmem:[%s3] sm:$0xff] %vm1682, %v1818
  %1835 = vst.msk [vmem:[%s3 + $0x8] sm:$0xff] %vm1682, %v1819
  %1836 = vst.msk [vmem:[%s3 + $0x10] sm:$0xff] %vm1682, %v1820
  %1837 = vst.msk [vmem:[%s3 + $0x18] sm:$0xff] %vm1682, %v1821
  %1838 = vst.msk [vmem:[%s3 + $0x20] sm:$0xff] %vm1682, %v1822
  %1839 = vst.msk [vmem:[%s3 + $0x28] sm:$0xff] %vm1682, %v1823
  %1840 = vst.msk [vmem:[%s3 + $0x30] sm:$0xff] %vm1682, %v1824
  %1841 = vst.msk [vmem:[%s3 + $0x38] sm:$0xff] %vm1682, %v1825
  %1842 = vst.msk [vmem:[%s3 + $0x40] sm:$0xff] %vm1682, %v1826
  %1843 = vst.msk [vmem:[%s3 + $0x48] sm:$0xff] %vm1682, %v1827
  %1844 = vst.msk [vmem:[%s3 + $0x50] sm:$0xff] %vm1682, %v1828
  %1845 = vst.msk [vmem:[%s3 + $0x58] sm:$0xff] %vm1682, %v1829
  %1846 = vst.msk [vmem:[%s3 + $0x60] sm:$0xff] %vm1682, %v1830
  %1847 = vst.msk [vmem:[%s3 + $0x68] sm:$0xff] %vm1682, %v1831
  %1848 = vst.msk [vmem:[%s3 + $0x70] sm:$0xff] %vm1682, %v1832
  %1849 = vst.msk [vmem:[%s3 + $0x78] sm:$0xff] %vm1682, %v1833
  // Predicated region
  $region14: #{mlmodel_cnn_forward.4} parent=0 // pred_check
    _
  $region15: #{mlmodel_cnn_forward.4} parent=0 // pred_check_branch
    %1851 = sbr.rel (0) target = $region17
  $region16: #{mlmodel_cnn_forward.4} parent=0 // pred_region
    _
  $region17: #{mlmodel_cnn_forward.4} parent=0 // pred_fallthru
    _
  // Predicated region
  $region18: #{mlmodel_cnn_forward.4} parent=0 // pred_check
    _
  $region19: #{mlmodel_cnn_forward.4} parent=0 // pred_check_branch
    %1853 = sbr.rel (0) target = $region21
  $region20: #{mlmodel_cnn_forward.4} parent=0 // pred_region
    _
  $region21: #{mlmodel_cnn_forward.4} parent=0 // pred_fallthru
    _

// kernel: mlmodel_cnn_forward.5
$region0: #{mlmodel_cnn_forward.5}
  #allocation0 [shape = 'u32[]', space=smem, size = 0x4, offset = 0x4, fixed_abs, tag = 'smem constant byte address 0x4 - core index']
  #allocation1 [shape = 'u32[144,128]{1,0:T(1,128)}', space=vmem, size = 0x12000, scoped, tag = 'internal scratch']
  %s0 = inlined_call_operand.vmem [shape: f32[8,800], index: 0, kind: input, shape index: {}]
  %s1 = inlined_call_operand.vmem [shape: bf16[800,500], index: 1, kind: input, shape index: {}]
  %s2 = inlined_call_operand.vmem [shape: f32[1,500], index: 2, kind: input, shape index: {}]
  %s3 = inlined_call_operand.vmem [shape: bf16[500,10], index: 3, kind: input, shape index: {}]
  %s4 = inlined_call_operand.vmem [shape: f32[1,10], index: 4, kind: input, shape index: {}]
  %s5 = inlined_call_operand.hbm [shape: f32[8,10], index: 5, kind: output, shape index: {}]
  %s6 = sld [smem:[#allocation0]]
  $region30: #{mlmodel_cnn_forward.5} parent=0
    _
  %s8 = ssub.s32 1, %s6
  %s9 = scalar_select 0, %s8, %s6
  $region1: #{mlmodel_cnn_forward.5} parent=0
    #allocation2 [shape = 'u8[4096]{0}', space=vmem, size = 0x1000, scoped, tag = 'output window, operand 0, single buffered']
    #allocation3 [shape = 's32[1]{0}', space=sflag, size = 0x4, scoped, tag = 'scoped memory for mlmodel_cnn_forward.5']
    %10 = vsyncpa [#allocation3], 0
    // Predicated region
    $region2: #{mlmodel_cnn_forward.5} parent=1 // pred_check
      _
    $region3: #{mlmodel_cnn_forward.5} parent=1 // pred_check_branch
      %12 = sbr.rel (0) target = $region5
    $region4: #{mlmodel_cnn_forward.5} parent=1 // pred_region
      _
    $region5: #{mlmodel_cnn_forward.5} parent=1 // pred_fallthru
      _
    // Predicated region
    $region6: #{mlmodel_cnn_forward.5} parent=1 // pred_check
      _
    $region7: #{mlmodel_cnn_forward.5} parent=1 // pred_check_branch
      %14 = sbr.rel (0) target = $region9
    $region8: #{mlmodel_cnn_forward.5} parent=1 // pred_region
      _
    $region9: #{mlmodel_cnn_forward.5} parent=1 // pred_fallthru
      _
    // Predicated region
    $region10: #{mlmodel_cnn_forward.5} parent=1 // pred_check
      _
    $region11: #{mlmodel_cnn_forward.5} parent=1 // pred_check_branch
      %16 = sbr.rel (0) target = $region13
    $region12: #{mlmodel_cnn_forward.5} parent=1 // pred_region
      _
    $region13: #{mlmodel_cnn_forward.5} parent=1 // pred_fallthru
      _
    // Predicated region
    $region14: #{mlmodel_cnn_forward.5} parent=1 // pred_check
      _
    $region15: #{mlmodel_cnn_forward.5} parent=1 // pred_check_branch
      %18 = sbr.rel (0) target = $region17
    $region16: #{mlmodel_cnn_forward.5} parent=1 // pred_region
      _
    $region17: #{mlmodel_cnn_forward.5} parent=1 // pred_fallthru
      _
    // Predicated region
    $region18: #{mlmodel_cnn_forward.5} parent=1 // pred_check
      _
    $region19: #{mlmodel_cnn_forward.5} parent=1 // pred_check_branch
      %20 = sbr.rel (0) target = $region21
    $region20: #{mlmodel_cnn_forward.5} parent=1 // pred_region
      _
    $region21: #{mlmodel_cnn_forward.5} parent=1 // pred_fallthru
      _
    %v22 = vld [vmem:[%s0] sm:$0xff]
    %v23 = vld [vmem:[%s0 + $0x8] sm:$0xff]
    %v24 = vld [vmem:[%s0 + $0x10] sm:$0xff]
    %v25 = vld [vmem:[%s0 + $0x18] sm:$0xff]
    %v26 = vld [vmem:[%s0 + $0x20] sm:$0xff]
    %v27 = vld [vmem:[%s0 + $0x28] sm:$0xff]
    %v28 = vld [vmem:[%s0 + $0x30] sm:$0xff]
    %v29 = vpack.c.bf16 %v22, %v22
    %v30 = vpack.c.bf16 %v23, %v23
    %v31 = vpack.c.bf16 %v24, %v24
    %v32 = vpack.c.bf16 %v25, %v25
    %v33 = vpack.c.bf16 %v26, %v26
    %v34 = vpack.c.bf16 %v27, %v27
    %v35 = vpack.c.bf16 %v28, %v28
    %v36 = vld [vmem:[%s1] sm:$0xff]
    %v37 = vld [vmem:[%s1 + $0x8] sm:$0xff]
    %v38 = vld [vmem:[%s1 + $0x10] sm:$0xff]
    %v39 = vld [vmem:[%s1 + $0x18] sm:$0xff]
    %v40 = vld [vmem:[%s1 + $0x20] sm:$0xff]
    %v41 = vld [vmem:[%s1 + $0x28] sm:$0xff]
    %v42 = vld [vmem:[%s1 + $0x30] sm:$0xff]
    %v43 = vld [vmem:[%s1 + $0x38] sm:$0xff]
    %v44 = vld [vmem:[%s1 + $0x40] sm:$0xff]
    %v45 = vld [vmem:[%s1 + $0x48] sm:$0xff]
    %v46 = vld [vmem:[%s1 + $0x50] sm:$0xff]
    %v47 = vld [vmem:[%s1 + $0x58] sm:$0xff]
    %v48 = vld [vmem:[%s1 + $0x60] sm:$0xff]
    %v49 = vld [vmem:[%s1 + $0x68] sm:$0xff]
    %v50 = vld [vmem:[%s1 + $0x70] sm:$0xff]
    %v51 = vld [vmem:[%s1 + $0x78] sm:$0xff]
    %v52 = vld [vmem:[%s1 + $0x80] sm:$0xff]
    %v53 = vld [vmem:[%s1 + $0x88] sm:$0xff]
    %v54 = vld [vmem:[%s1 + $0x90] sm:$0xff]
    %v55 = vld [vmem:[%s1 + $0x98] sm:$0xff]
    %v56 = vld [vmem:[%s1 + $0xa0] sm:$0xff]
    %v57 = vld [vmem:[%s1 + $0xa8] sm:$0xff]
    %v58 = vld [vmem:[%s1 + $0xb0] sm:$0xff]
    %v59 = vld [vmem:[%s1 + $0xb8] sm:$0xff]
    %v60 = vld [vmem:[%s1 + $0xc0] sm:$0xff]
    %v61 = vld [vmem:[%s1 + $0xc8] sm:$0xff]
    %v62 = vld [vmem:[%s1 + $0xd0] sm:$0xff]
    %v63 = vld [vmem:[%s1 + $0xd8] sm:$0xff]
    %v64 = vld [vmem:[%s1 + $0xe0] sm:$0xff]
    %v65 = vld [vmem:[%s1 + $0xe8] sm:$0xff]
    %v66 = vld [vmem:[%s1 + $0xf0] sm:$0xff]
    %v67 = vld [vmem:[%s1 + $0xf8] sm:$0xff]
    %v68 = vld [vmem:[%s1 + $0x100] sm:$0xff]
    %v69 = vld [vmem:[%s1 + $0x108] sm:$0xff]
    %v70 = vld [vmem:[%s1 + $0x110] sm:$0xff]
    %v71 = vld [vmem:[%s1 + $0x118] sm:$0xff]
    %v72 = vld [vmem:[%s1 + $0x120] sm:$0xff]
    %v73 = vld [vmem:[%s1 + $0x128] sm:$0xff]
    %v74 = vld [vmem:[%s1 + $0x130] sm:$0xff]
    %v75 = vld [vmem:[%s1 + $0x138] sm:$0xff]
    %v76 = vld [vmem:[%s1 + $0x140] sm:$0xff]
    %v77 = vld [vmem:[%s1 + $0x148] sm:$0xff]
    %v78 = vld [vmem:[%s1 + $0x150] sm:$0xff]
    %v79 = vld [vmem:[%s1 + $0x158] sm:$0xff]
    %v80 = vld [vmem:[%s1 + $0x160] sm:$0xff]
    %v81 = vld [vmem:[%s1 + $0x168] sm:$0xff]
    %v82 = vld [vmem:[%s1 + $0x170] sm:$0xff]
    %v83 = vld [vmem:[%s1 + $0x178] sm:$0xff]
    %v84 = vld [vmem:[%s1 + $0x180] sm:$0xff]
    %v85 = vld [vmem:[%s1 + $0x188] sm:$0xff]
    %v86 = vld [vmem:[%s1 + $0x190] sm:$0xff]
    %v87 = vld [vmem:[%s1 + $0x198] sm:$0xff]
    %v88 = vld [vmem:[%s1 + $0x1a0] sm:$0xff]
    %v89 = vld [vmem:[%s1 + $0x1a8] sm:$0xff]
    %v90 = vld [vmem:[%s1 + $0x1b0] sm:$0xff]
    %v91 = vld [vmem:[%s1 + $0x1b8] sm:$0xff]
    %v92 = vld [vmem:[%s1 + $0x1c0] sm:$0xff]
    %v93 = vld [vmem:[%s1 + $0x1c8] sm:$0xff]
    %v94 = vld [vmem:[%s1 + $0x1d0] sm:$0xff]
    %v95 = vld [vmem:[%s1 + $0x1d8] sm:$0xff]
    %v96 = vld [vmem:[%s1 + $0x1e0] sm:$0xff]
    %v97 = vld [vmem:[%s1 + $0x1e8] sm:$0xff]
    %v98 = vld [vmem:[%s1 + $0x1f0] sm:$0xff]
    %v99 = vld [vmem:[%s1 + $0x1f8] sm:$0xff]
    %v100 = vld [vmem:[%s1 + $0x200] sm:$0xff]
    %v101 = vld [vmem:[%s1 + $0x208] sm:$0xff]
    %v102 = vld [vmem:[%s1 + $0x210] sm:$0xff]
    %v103 = vld [vmem:[%s1 + $0x218] sm:$0xff]
    %v104 = vld [vmem:[%s1 + $0x220] sm:$0xff]
    %v105 = vld [vmem:[%s1 + $0x228] sm:$0xff]
    %v106 = vld [vmem:[%s1 + $0x230] sm:$0xff]
    %v107 = vld [vmem:[%s1 + $0x238] sm:$0xff]
    %v108 = vld [vmem:[%s1 + $0x240] sm:$0xff]
    %v109 = vld [vmem:[%s1 + $0x248] sm:$0xff]
    %v110 = vld [vmem:[%s1 + $0x250] sm:$0xff]
    %v111 = vld [vmem:[%s1 + $0x258] sm:$0xff]
    %v112 = vld [vmem:[%s1 + $0x260] sm:$0xff]
    %v113 = vld [vmem:[%s1 + $0x268] sm:$0xff]
    %v114 = vld [vmem:[%s1 + $0x270] sm:$0xff]
    %v115 = vld [vmem:[%s1 + $0x278] sm:$0xff]
    %v116 = vld [vmem:[%s1 + $0x280] sm:$0xff]
    %v117 = vld [vmem:[%s1 + $0x288] sm:$0xff]
    %v118 = vld [vmem:[%s1 + $0x290] sm:$0xff]
    %v119 = vld [vmem:[%s1 + $0x298] sm:$0xff]
    %v120 = vld [vmem:[%s1 + $0x2a0] sm:$0xff]
    %v121 = vld [vmem:[%s1 + $0x2a8] sm:$0xff]
    %v122 = vld [vmem:[%s1 + $0x2b0] sm:$0xff]
    %v123 = vld [vmem:[%s1 + $0x2b8] sm:$0xff]
    %v124 = vld [vmem:[%s1 + $0x2c0] sm:$0xff]
    %v125 = vld [vmem:[%s1 + $0x2c8] sm:$0xff]
    %v126 = vld [vmem:[%s1 + $0x2d0] sm:$0xff]
    %v127 = vld [vmem:[%s1 + $0x2d8] sm:$0xff]
    %v128 = vld [vmem:[%s1 + $0x2e0] sm:$0xff]
    %v129 = vld [vmem:[%s1 + $0x2e8] sm:$0xff]
    %v130 = vld [vmem:[%s1 + $0x2f0] sm:$0xff]
    %v131 = vld [vmem:[%s1 + $0x2f8] sm:$0xff]
    %v132 = vld [vmem:[%s1 + $0x300] sm:$0xff]
    %v133 = vld [vmem:[%s1 + $0x308] sm:$0xff]
    %v134 = vld [vmem:[%s1 + $0x310] sm:$0xff]
    %v135 = vld [vmem:[%s1 + $0x318] sm:$0xff]
    %v136 = vld [vmem:[%s1 + $0x320] sm:$0xff]
    %v137 = vld [vmem:[%s1 + $0x328] sm:$0xff]
    %v138 = vld [vmem:[%s1 + $0x330] sm:$0xff]
    %v139 = vld [vmem:[%s1 + $0x338] sm:$0xff]
    %v140 = vld [vmem:[%s1 + $0x340] sm:$0xff]
    %v141 = vld [vmem:[%s1 + $0x348] sm:$0xff]
    %v142 = vld [vmem:[%s1 + $0x350] sm:$0xff]
    %v143 = vld [vmem:[%s1 + $0x358] sm:$0xff]
    %v144 = vld [vmem:[%s1 + $0x360] sm:$0xff]
    %v145 = vld [vmem:[%s1 + $0x368] sm:$0xff]
    %v146 = vld [vmem:[%s1 + $0x370] sm:$0xff]
    %v147 = vld [vmem:[%s1 + $0x378] sm:$0xff]
    %v148 = vld [vmem:[%s1 + $0x380] sm:$0xff]
    %v149 = vld [vmem:[%s1 + $0x388] sm:$0xff]
    %v150 = vld [vmem:[%s1 + $0x390] sm:$0xff]
    %v151 = vld [vmem:[%s1 + $0x398] sm:$0xff]
    %v152 = vld [vmem:[%s1 + $0x3a0] sm:$0xff]
    %v153 = vld [vmem:[%s1 + $0x3a8] sm:$0xff]
    %v154 = vld [vmem:[%s1 + $0x3b0] sm:$0xff]
    %v155 = vld [vmem:[%s1 + $0x3b8] sm:$0xff]
    %v156 = vld [vmem:[%s1 + $0x3c0] sm:$0xff]
    %v157 = vld [vmem:[%s1 + $0x3c8] sm:$0xff]
    %v158 = vld [vmem:[%s1 + $0x3d0] sm:$0xff]
    %v159 = vld [vmem:[%s1 + $0x3d8] sm:$0xff]
    %v160 = vld [vmem:[%s1 + $0x3e0] sm:$0xff]
    %v161 = vld [vmem:[%s1 + $0x3e8] sm:$0xff]
    %v162 = vld [vmem:[%s1 + $0x3f0] sm:$0xff]
    %v163 = vld [vmem:[%s1 + $0x3f8] sm:$0xff]
    %v164 = vld [vmem:[%s1 + $0x400] sm:$0xff]
    %v165 = vld [vmem:[%s1 + $0x408] sm:$0xff]
    %v166 = vld [vmem:[%s1 + $0x410] sm:$0xff]
    %v167 = vld [vmem:[%s1 + $0x418] sm:$0xff]
    %v168 = vld [vmem:[%s1 + $0x420] sm:$0xff]
    %v169 = vld [vmem:[%s1 + $0x428] sm:$0xff]
    %v170 = vld [vmem:[%s1 + $0x430] sm:$0xff]
    %v171 = vld [vmem:[%s1 + $0x438] sm:$0xff]
    %v172 = vld [vmem:[%s1 + $0x440] sm:$0xff]
    %v173 = vld [vmem:[%s1 + $0x448] sm:$0xff]
    %v174 = vld [vmem:[%s1 + $0x450] sm:$0xff]
    %v175 = vld [vmem:[%s1 + $0x458] sm:$0xff]
    %v176 = vld [vmem:[%s1 + $0x460] sm:$0xff]
    %v177 = vld [vmem:[%s1 + $0x468] sm:$0xff]
    %v178 = vld [vmem:[%s1 + $0x470] sm:$0xff]
    %v179 = vld [vmem:[%s1 + $0x478] sm:$0xff]
    %v180 = vld [vmem:[%s1 + $0x480] sm:$0xff]
    %v181 = vld [vmem:[%s1 + $0x488] sm:$0xff]
    %v182 = vld [vmem:[%s1 + $0x490] sm:$0xff]
    %v183 = vld [vmem:[%s1 + $0x498] sm:$0xff]
    %v184 = vld [vmem:[%s1 + $0x4a0] sm:$0xff]
    %v185 = vld [vmem:[%s1 + $0x4a8] sm:$0xff]
    %v186 = vld [vmem:[%s1 + $0x4b0] sm:$0xff]
    %v187 = vld [vmem:[%s1 + $0x4b8] sm:$0xff]
    %v188 = vld [vmem:[%s1 + $0x4c0] sm:$0xff]
    %v189 = vld [vmem:[%s1 + $0x4c8] sm:$0xff]
    %v190 = vld [vmem:[%s1 + $0x4d0] sm:$0xff]
    %v191 = vld [vmem:[%s1 + $0x4d8] sm:$0xff]
    %v192 = vld [vmem:[%s1 + $0x4e0] sm:$0xff]
    %v193 = vld [vmem:[%s1 + $0x4e8] sm:$0xff]
    %v194 = vld [vmem:[%s1 + $0x4f0] sm:$0xff]
    %v195 = vld [vmem:[%s1 + $0x4f8] sm:$0xff]
    %v196 = vld [vmem:[%s1 + $0x500] sm:$0xff]
    %v197 = vld [vmem:[%s1 + $0x508] sm:$0xff]
    %v198 = vld [vmem:[%s1 + $0x510] sm:$0xff]
    %v199 = vld [vmem:[%s1 + $0x518] sm:$0xff]
    %v200 = vld [vmem:[%s1 + $0x520] sm:$0xff]
    %v201 = vld [vmem:[%s1 + $0x528] sm:$0xff]
    %v202 = vld [vmem:[%s1 + $0x530] sm:$0xff]
    %v203 = vld [vmem:[%s1 + $0x538] sm:$0xff]
    %v204 = vld [vmem:[%s1 + $0x540] sm:$0xff]
    %v205 = vld [vmem:[%s1 + $0x548] sm:$0xff]
    %v206 = vld [vmem:[%s1 + $0x550] sm:$0xff]
    %v207 = vld [vmem:[%s1 + $0x558] sm:$0xff]
    %v208 = vld [vmem:[%s1 + $0x560] sm:$0xff]
    %v209 = vld [vmem:[%s1 + $0x568] sm:$0xff]
    %v210 = vld [vmem:[%s1 + $0x570] sm:$0xff]
    %v211 = vld [vmem:[%s1 + $0x578] sm:$0xff]
    %v212 = vld [vmem:[%s1 + $0x580] sm:$0xff]
    %v213 = vld [vmem:[%s1 + $0x588] sm:$0xff]
    %v214 = vld [vmem:[%s1 + $0x590] sm:$0xff]
    %v215 = vld [vmem:[%s1 + $0x598] sm:$0xff]
    %v216 = vld [vmem:[%s1 + $0x5a0] sm:$0xff]
    %v217 = vld [vmem:[%s1 + $0x5a8] sm:$0xff]
    %v218 = vld [vmem:[%s1 + $0x5b0] sm:$0xff]
    %v219 = vld [vmem:[%s1 + $0x5b8] sm:$0xff]
    %v220 = vld [vmem:[%s1 + $0x5c0] sm:$0xff]
    %v221 = vld [vmem:[%s1 + $0x5c8] sm:$0xff]
    %v222 = vld [vmem:[%s1 + $0x5d0] sm:$0xff]
    %v223 = vld [vmem:[%s1 + $0x5d8] sm:$0xff]
    %v224 = vld [vmem:[%s1 + $0x5e0] sm:$0xff]
    %v225 = vld [vmem:[%s1 + $0x5e8] sm:$0xff]
    %v226 = vld [vmem:[%s1 + $0x5f0] sm:$0xff]
    %v227 = vld [vmem:[%s1 + $0x5f8] sm:$0xff]
    %v228 = vld [vmem:[%s1 + $0x600] sm:$0xff]
    %v229 = vld [vmem:[%s1 + $0x608] sm:$0xff]
    %v230 = vld [vmem:[%s1 + $0x610] sm:$0xff]
    %v231 = vld [vmem:[%s1 + $0x618] sm:$0xff]
    %v232 = vld [vmem:[%s1 + $0x620] sm:$0xff]
    %v233 = vld [vmem:[%s1 + $0x628] sm:$0xff]
    %v234 = vld [vmem:[%s1 + $0x630] sm:$0xff]
    %v235 = vld [vmem:[%s1 + $0x638] sm:$0xff]
    %v236 = vld [vmem:[%s2] sm:$0xf]
    %v238 = vlaneseq
    %v239 = vshrl.u32 %v238, 7
    %v240 = vsub.s32 0, %v239
    %v241 = vrot.slane %v236, %v240
    %v242 = vlaneseq
    %v243 = vshrl.u32 %v242, 7
    %v244 = vsub.s32 1, %v243
    %v245 = vrot.slane %v236, %v244
    %v246 = vlaneseq
    %v247 = vshrl.u32 %v246, 7
    %v248 = vsub.s32 2, %v247
    %v249 = vrot.slane %v236, %v248
    %v250 = vlaneseq
    %v251 = vshrl.u32 %v250, 7
    %v252 = vsub.s32 3, %v251
    %v253 = vrot.slane %v236, %v252
    %v458 = vunpack.c.l.b16 %v36
    %v459 = vunpack.c.h.b16 %v36
    %v460 = vunpack.c.l.b16 %v37
    %v461 = vunpack.c.h.b16 %v37
    %v462 = vunpack.c.l.b16 %v38
    %v463 = vunpack.c.h.b16 %v38
    %v464 = vunpack.c.l.b16 %v39
    %v465 = vunpack.c.h.b16 %v39
    %v466 = vunpack.c.l.b16 %v40
    %v467 = vunpack.c.h.b16 %v40
    %v468 = vunpack.c.l.b16 %v41
    %v469 = vunpack.c.h.b16 %v41
    %v470 = vunpack.c.l.b16 %v42
    %v471 = vunpack.c.h.b16 %v42
    %v472 = vunpack.c.l.b16 %v43
    %v473 = vunpack.c.h.b16 %v43
    %v474 = vunpack.c.l.b16 %v44
    %v475 = vunpack.c.h.b16 %v44
    %v476 = vunpack.c.l.b16 %v45
    %v477 = vunpack.c.h.b16 %v45
    %v478 = vunpack.c.l.b16 %v46
    %v479 = vunpack.c.h.b16 %v46
    %v480 = vunpack.c.l.b16 %v47
    %v481 = vunpack.c.h.b16 %v47
    %v482 = vunpack.c.l.b16 %v48
    %v483 = vunpack.c.h.b16 %v48
    %v484 = vunpack.c.l.b16 %v49
    %v485 = vunpack.c.h.b16 %v49
    %v486 = vunpack.c.l.b16 %v50
    %v487 = vunpack.c.h.b16 %v50
    %v488 = vunpack.c.l.b16 %v51
    %v489 = vunpack.c.h.b16 %v51
    %v490 = vunpack.c.l.b16 %v52
    %v491 = vunpack.c.h.b16 %v52
    %v492 = vunpack.c.l.b16 %v53
    %v493 = vunpack.c.h.b16 %v53
    %v494 = vunpack.c.l.b16 %v54
    %v495 = vunpack.c.h.b16 %v54
    %v496 = vunpack.c.l.b16 %v55
    %v497 = vunpack.c.h.b16 %v55
    %v498 = vunpack.c.l.b16 %v56
    %v499 = vunpack.c.h.b16 %v56
    %v500 = vunpack.c.l.b16 %v57
    %v501 = vunpack.c.h.b16 %v57
    %v502 = vunpack.c.l.b16 %v58
    %v503 = vunpack.c.h.b16 %v58
    %v504 = vunpack.c.l.b16 %v59
    %v505 = vunpack.c.h.b16 %v59
    %v506 = vunpack.c.l.b16 %v60
    %v507 = vunpack.c.h.b16 %v60
    %v508 = vunpack.c.l.b16 %v61
    %v509 = vunpack.c.h.b16 %v61
    %v510 = vunpack.c.l.b16 %v62
    %v511 = vunpack.c.h.b16 %v62
    %v512 = vunpack.c.l.b16 %v63
    %v513 = vunpack.c.h.b16 %v63
    %v514 = vunpack.c.l.b16 %v64
    %v515 = vunpack.c.h.b16 %v64
    %v516 = vunpack.c.l.b16 %v65
    %v517 = vunpack.c.h.b16 %v65
    %v518 = vunpack.c.l.b16 %v66
    %v519 = vunpack.c.h.b16 %v66
    %v520 = vunpack.c.l.b16 %v67
    %v521 = vunpack.c.h.b16 %v67
    %v522 = vunpack.c.l.b16 %v68
    %v523 = vunpack.c.h.b16 %v68
    %v524 = vunpack.c.l.b16 %v69
    %v525 = vunpack.c.h.b16 %v69
    %v526 = vunpack.c.l.b16 %v70
    %v527 = vunpack.c.h.b16 %v70
    %v528 = vunpack.c.l.b16 %v71
    %v529 = vunpack.c.h.b16 %v71
    %v530 = vunpack.c.l.b16 %v72
    %v531 = vunpack.c.h.b16 %v72
    %v532 = vunpack.c.l.b16 %v73
    %v533 = vunpack.c.h.b16 %v73
    %v534 = vunpack.c.l.b16 %v74
    %v535 = vunpack.c.h.b16 %v74
    %v536 = vunpack.c.l.b16 %v75
    %v537 = vunpack.c.h.b16 %v75
    %v538 = vunpack.c.l.b16 %v76
    %v539 = vunpack.c.h.b16 %v76
    %v540 = vunpack.c.l.b16 %v77
    %v541 = vunpack.c.h.b16 %v77
    %v542 = vunpack.c.l.b16 %v78
    %v543 = vunpack.c.h.b16 %v78
    %v544 = vunpack.c.l.b16 %v79
    %v545 = vunpack.c.h.b16 %v79
    %v546 = vunpack.c.l.b16 %v80
    %v547 = vunpack.c.h.b16 %v80
    %v548 = vunpack.c.l.b16 %v81
    %v549 = vunpack.c.h.b16 %v81
    %v550 = vunpack.c.l.b16 %v82
    %v551 = vunpack.c.h.b16 %v82
    %v552 = vunpack.c.l.b16 %v83
    %v553 = vunpack.c.h.b16 %v83
    %v554 = vunpack.c.l.b16 %v84
    %v555 = vunpack.c.h.b16 %v84
    %v556 = vunpack.c.l.b16 %v85
    %v557 = vunpack.c.h.b16 %v85
    %v558 = vunpack.c.l.b16 %v86
    %v559 = vunpack.c.h.b16 %v86
    %v560 = vunpack.c.l.b16 %v87
    %v561 = vunpack.c.h.b16 %v87
    %v562 = vunpack.c.l.b16 %v88
    %v563 = vunpack.c.h.b16 %v88
    %v564 = vunpack.c.l.b16 %v89
    %v565 = vunpack.c.h.b16 %v89
    %v566 = vunpack.c.l.b16 %v90
    %v567 = vunpack.c.h.b16 %v90
    %v568 = vunpack.c.l.b16 %v91
    %v569 = vunpack.c.h.b16 %v91
    %v570 = vunpack.c.l.b16 %v92
    %v571 = vunpack.c.h.b16 %v92
    %v572 = vunpack.c.l.b16 %v93
    %v573 = vunpack.c.h.b16 %v93
    %v574 = vunpack.c.l.b16 %v94
    %v575 = vunpack.c.h.b16 %v94
    %v576 = vunpack.c.l.b16 %v95
    %v577 = vunpack.c.h.b16 %v95
    %v578 = vunpack.c.l.b16 %v96
    %v579 = vunpack.c.h.b16 %v96
    %v580 = vunpack.c.l.b16 %v97
    %v581 = vunpack.c.h.b16 %v97
    %v582 = vunpack.c.l.b16 %v98
    %v583 = vunpack.c.h.b16 %v98
    %v584 = vunpack.c.l.b16 %v99
    %v585 = vunpack.c.h.b16 %v99
    %v586 = vunpack.c.l.b16 %v100
    %v587 = vunpack.c.h.b16 %v100
    %v588 = vunpack.c.l.b16 %v101
    %v589 = vunpack.c.h.b16 %v101
    %v590 = vunpack.c.l.b16 %v102
    %v591 = vunpack.c.h.b16 %v102
    %v592 = vunpack.c.l.b16 %v103
    %v593 = vunpack.c.h.b16 %v103
    %v594 = vunpack.c.l.b16 %v104
    %v595 = vunpack.c.h.b16 %v104
    %v596 = vunpack.c.l.b16 %v105
    %v597 = vunpack.c.h.b16 %v105
    %v598 = vunpack.c.l.b16 %v106
    %v599 = vunpack.c.h.b16 %v106
    %v600 = vunpack.c.l.b16 %v107
    %v601 = vunpack.c.h.b16 %v107
    %v602 = vunpack.c.l.b16 %v108
    %v603 = vunpack.c.h.b16 %v108
    %v604 = vunpack.c.l.b16 %v109
    %v605 = vunpack.c.h.b16 %v109
    %v606 = vunpack.c.l.b16 %v110
    %v607 = vunpack.c.h.b16 %v110
    %v608 = vunpack.c.l.b16 %v111
    %v609 = vunpack.c.h.b16 %v111
    %v610 = vunpack.c.l.b16 %v112
    %v611 = vunpack.c.h.b16 %v112
    %v612 = vunpack.c.l.b16 %v113
    %v613 = vunpack.c.h.b16 %v113
    %v614 = vunpack.c.l.b16 %v114
    %v615 = vunpack.c.h.b16 %v114
    %v616 = vunpack.c.l.b16 %v115
    %v617 = vunpack.c.h.b16 %v115
    %v618 = vunpack.c.l.b16 %v116
    %v619 = vunpack.c.h.b16 %v116
    %v620 = vunpack.c.l.b16 %v117
    %v621 = vunpack.c.h.b16 %v117
    %v622 = vunpack.c.l.b16 %v118
    %v623 = vunpack.c.h.b16 %v118
    %v624 = vunpack.c.l.b16 %v119
    %v625 = vunpack.c.h.b16 %v119
    %v626 = vunpack.c.l.b16 %v120
    %v627 = vunpack.c.h.b16 %v120
    %v628 = vunpack.c.l.b16 %v121
    %v629 = vunpack.c.h.b16 %v121
    %v630 = vunpack.c.l.b16 %v122
    %v631 = vunpack.c.h.b16 %v122
    %v632 = vunpack.c.l.b16 %v123
    %v633 = vunpack.c.h.b16 %v123
    %v634 = vunpack.c.l.b16 %v124
    %v635 = vunpack.c.h.b16 %v124
    %v636 = vunpack.c.l.b16 %v125
    %v637 = vunpack.c.h.b16 %v125
    %v638 = vunpack.c.l.b16 %v126
    %v639 = vunpack.c.h.b16 %v126
    %v640 = vunpack.c.l.b16 %v127
    %v641 = vunpack.c.h.b16 %v127
    %v642 = vunpack.c.l.b16 %v128
    %v643 = vunpack.c.h.b16 %v128
    %v644 = vunpack.c.l.b16 %v129
    %v645 = vunpack.c.h.b16 %v129
    %v646 = vunpack.c.l.b16 %v130
    %v647 = vunpack.c.h.b16 %v130
    %v648 = vunpack.c.l.b16 %v131
    %v649 = vunpack.c.h.b16 %v131
    %v650 = vunpack.c.l.b16 %v132
    %v651 = vunpack.c.h.b16 %v132
    %v652 = vunpack.c.l.b16 %v133
    %v653 = vunpack.c.h.b16 %v133
    %v654 = vunpack.c.l.b16 %v134
    %v655 = vunpack.c.h.b16 %v134
    %v656 = vunpack.c.l.b16 %v135
    %v657 = vunpack.c.h.b16 %v135
    %v658 = vunpack.c.l.b16 %v136
    %v659 = vunpack.c.h.b16 %v136
    %v660 = vunpack.c.l.b16 %v137
    %v661 = vunpack.c.h.b16 %v137
    %v662 = vunpack.c.l.b16 %v138
    %v663 = vunpack.c.h.b16 %v138
    %v664 = vunpack.c.l.b16 %v139
    %v665 = vunpack.c.h.b16 %v139
    %v666 = vunpack.c.l.b16 %v140
    %v667 = vunpack.c.h.b16 %v140
    %v668 = vunpack.c.l.b16 %v141
    %v669 = vunpack.c.h.b16 %v141
    %v670 = vunpack.c.l.b16 %v142
    %v671 = vunpack.c.h.b16 %v142
    %v672 = vunpack.c.l.b16 %v143
    %v673 = vunpack.c.h.b16 %v143
    %v674 = vunpack.c.l.b16 %v144
    %v675 = vunpack.c.h.b16 %v144
    %v676 = vunpack.c.l.b16 %v145
    %v677 = vunpack.c.h.b16 %v145
    %v678 = vunpack.c.l.b16 %v146
    %v679 = vunpack.c.h.b16 %v146
    %v680 = vunpack.c.l.b16 %v147
    %v681 = vunpack.c.h.b16 %v147
    %v682 = vunpack.c.l.b16 %v148
    %v683 = vunpack.c.h.b16 %v148
    %v684 = vunpack.c.l.b16 %v149
    %v685 = vunpack.c.h.b16 %v149
    %v686 = vunpack.c.l.b16 %v150
    %v687 = vunpack.c.h.b16 %v150
    %v688 = vunpack.c.l.b16 %v151
    %v689 = vunpack.c.h.b16 %v151
    %v690 = vunpack.c.l.b16 %v152
    %v691 = vunpack.c.h.b16 %v152
    %v692 = vunpack.c.l.b16 %v153
    %v693 = vunpack.c.h.b16 %v153
    %v694 = vunpack.c.l.b16 %v154
    %v695 = vunpack.c.h.b16 %v154
    %v696 = vunpack.c.l.b16 %v155
    %v697 = vunpack.c.h.b16 %v155
    %v698 = vunpack.c.l.b16 %v156
    %v699 = vunpack.c.h.b16 %v156
    %v700 = vunpack.c.l.b16 %v157
    %v701 = vunpack.c.h.b16 %v157
    %v702 = vunpack.c.l.b16 %v158
    %v703 = vunpack.c.h.b16 %v158
    %v704 = vunpack.c.l.b16 %v159
    %v705 = vunpack.c.h.b16 %v159
    %v706 = vunpack.c.l.b16 %v160
    %v707 = vunpack.c.h.b16 %v160
    %v708 = vunpack.c.l.b16 %v161
    %v709 = vunpack.c.h.b16 %v161
    %v710 = vunpack.c.l.b16 %v162
    %v711 = vunpack.c.h.b16 %v162
    %v712 = vunpack.c.l.b16 %v163
    %v713 = vunpack.c.h.b16 %v163
    %v714 = vunpack.c.l.b16 %v164
    %v715 = vunpack.c.h.b16 %v164
    %v716 = vunpack.c.l.b16 %v165
    %v717 = vunpack.c.h.b16 %v165
    %v718 = vunpack.c.l.b16 %v166
    %v719 = vunpack.c.h.b16 %v166
    %v720 = vunpack.c.l.b16 %v167
    %v721 = vunpack.c.h.b16 %v167
    %v722 = vunpack.c.l.b16 %v168
    %v723 = vunpack.c.h.b16 %v168
    %v724 = vunpack.c.l.b16 %v169
    %v725 = vunpack.c.h.b16 %v169
    %v726 = vunpack.c.l.b16 %v170
    %v727 = vunpack.c.h.b16 %v170
    %v728 = vunpack.c.l.b16 %v171
    %v729 = vunpack.c.h.b16 %v171
    %v730 = vunpack.c.l.b16 %v172
    %v731 = vunpack.c.h.b16 %v172
    %v732 = vunpack.c.l.b16 %v173
    %v733 = vunpack.c.h.b16 %v173
    %v734 = vunpack.c.l.b16 %v174
    %v735 = vunpack.c.h.b16 %v174
    %v736 = vunpack.c.l.b16 %v175
    %v737 = vunpack.c.h.b16 %v175
    %v738 = vunpack.c.l.b16 %v176
    %v739 = vunpack.c.h.b16 %v176
    %v740 = vunpack.c.l.b16 %v177
    %v741 = vunpack.c.h.b16 %v177
    %v742 = vunpack.c.l.b16 %v178
    %v743 = vunpack.c.h.b16 %v178
    %v744 = vunpack.c.l.b16 %v179
    %v745 = vunpack.c.h.b16 %v179
    %v746 = vunpack.c.l.b16 %v180
    %v747 = vunpack.c.h.b16 %v180
    %v748 = vunpack.c.l.b16 %v181
    %v749 = vunpack.c.h.b16 %v181
    %v750 = vunpack.c.l.b16 %v182
    %v751 = vunpack.c.h.b16 %v182
    %v752 = vunpack.c.l.b16 %v183
    %v753 = vunpack.c.h.b16 %v183
    %v754 = vunpack.c.l.b16 %v184
    %v755 = vunpack.c.h.b16 %v184
    %v756 = vunpack.c.l.b16 %v185
    %v757 = vunpack.c.h.b16 %v185
    %v758 = vunpack.c.l.b16 %v186
    %v759 = vunpack.c.h.b16 %v186
    %v760 = vunpack.c.l.b16 %v187
    %v761 = vunpack.c.h.b16 %v187
    %v762 = vunpack.c.l.b16 %v188
    %v763 = vunpack.c.h.b16 %v188
    %v764 = vunpack.c.l.b16 %v189
    %v765 = vunpack.c.h.b16 %v189
    %v766 = vunpack.c.l.b16 %v190
    %v767 = vunpack.c.h.b16 %v190
    %v768 = vunpack.c.l.b16 %v191
    %v769 = vunpack.c.h.b16 %v191
    %v770 = vunpack.c.l.b16 %v192
    %v771 = vunpack.c.h.b16 %v192
    %v772 = vunpack.c.l.b16 %v193
    %v773 = vunpack.c.h.b16 %v193
    %v774 = vunpack.c.l.b16 %v194
    %v775 = vunpack.c.h.b16 %v194
    %v776 = vunpack.c.l.b16 %v195
    %v777 = vunpack.c.h.b16 %v195
    %v778 = vunpack.c.l.b16 %v196
    %v779 = vunpack.c.h.b16 %v196
    %v780 = vunpack.c.l.b16 %v197
    %v781 = vunpack.c.h.b16 %v197
    %v782 = vunpack.c.l.b16 %v198
    %v783 = vunpack.c.h.b16 %v198
    %v784 = vunpack.c.l.b16 %v199
    %v785 = vunpack.c.h.b16 %v199
    %v786 = vunpack.c.l.b16 %v200
    %v787 = vunpack.c.h.b16 %v200
    %v788 = vunpack.c.l.b16 %v201
    %v789 = vunpack.c.h.b16 %v201
    %v790 = vunpack.c.l.b16 %v202
    %v791 = vunpack.c.h.b16 %v202
    %v792 = vunpack.c.l.b16 %v203
    %v793 = vunpack.c.h.b16 %v203
    %v794 = vunpack.c.l.b16 %v204
    %v795 = vunpack.c.h.b16 %v204
    %v796 = vunpack.c.l.b16 %v205
    %v797 = vunpack.c.h.b16 %v205
    %v798 = vunpack.c.l.b16 %v206
    %v799 = vunpack.c.h.b16 %v206
    %v800 = vunpack.c.l.b16 %v207
    %v801 = vunpack.c.h.b16 %v207
    %v802 = vunpack.c.l.b16 %v208
    %v803 = vunpack.c.h.b16 %v208
    %v804 = vunpack.c.l.b16 %v209
    %v805 = vunpack.c.h.b16 %v209
    %v806 = vunpack.c.l.b16 %v210
    %v807 = vunpack.c.h.b16 %v210
    %v808 = vunpack.c.l.b16 %v211
    %v809 = vunpack.c.h.b16 %v211
    %v810 = vunpack.c.l.b16 %v212
    %v811 = vunpack.c.h.b16 %v212
    %v812 = vunpack.c.l.b16 %v213
    %v813 = vunpack.c.h.b16 %v213
    %v814 = vunpack.c.l.b16 %v214
    %v815 = vunpack.c.h.b16 %v214
    %v816 = vunpack.c.l.b16 %v215
    %v817 = vunpack.c.h.b16 %v215
    %v818 = vunpack.c.l.b16 %v216
    %v819 = vunpack.c.h.b16 %v216
    %v820 = vunpack.c.l.b16 %v217
    %v821 = vunpack.c.h.b16 %v217
    %v822 = vunpack.c.l.b16 %v218
    %v823 = vunpack.c.h.b16 %v218
    %v824 = vunpack.c.l.b16 %v219
    %v825 = vunpack.c.h.b16 %v219
    %v826 = vunpack.c.l.b16 %v220
    %v827 = vunpack.c.h.b16 %v220
    %v828 = vunpack.c.l.b16 %v221
    %v829 = vunpack.c.h.b16 %v221
    %v830 = vunpack.c.l.b16 %v222
    %v831 = vunpack.c.h.b16 %v222
    %v832 = vunpack.c.l.b16 %v223
    %v833 = vunpack.c.h.b16 %v223
    %v834 = vunpack.c.l.b16 %v224
    %v835 = vunpack.c.h.b16 %v224
    %v836 = vunpack.c.l.b16 %v225
    %v837 = vunpack.c.h.b16 %v225
    %v838 = vunpack.c.l.b16 %v226
    %v839 = vunpack.c.h.b16 %v226
    %v840 = vunpack.c.l.b16 %v227
    %v841 = vunpack.c.h.b16 %v227
    %v842 = vunpack.c.l.b16 %v228
    %v843 = vunpack.c.h.b16 %v228
    %v844 = vunpack.c.l.b16 %v229
    %v845 = vunpack.c.h.b16 %v229
    %v846 = vunpack.c.l.b16 %v230
    %v847 = vunpack.c.h.b16 %v230
    %v848 = vunpack.c.l.b16 %v231
    %v849 = vunpack.c.h.b16 %v231
    %v850 = vunpack.c.l.b16 %v232
    %v851 = vunpack.c.h.b16 %v232
    %v852 = vunpack.c.l.b16 %v233
    %v853 = vunpack.c.h.b16 %v233
    %v854 = vunpack.c.l.b16 %v234
    %v855 = vunpack.c.h.b16 %v234
    %v856 = vunpack.c.l.b16 %v235
    %v857 = vunpack.c.h.b16 %v235
    %v858 = vpack.c.b16 %v462, %v458
    %v859 = vpack.c.b16 %v463, %v459
    %v860 = vpack.c.b16 %v464, %v460
    %v861 = vpack.c.b16 %v465, %v461
    %v862 = vpack.c.b16 %v470, %v466
    %v863 = vpack.c.b16 %v471, %v467
    %v864 = vpack.c.b16 %v472, %v468
    %v865 = vpack.c.b16 %v473, %v469
    %v866 = vpack.c.b16 %v478, %v474
    %v867 = vpack.c.b16 %v479, %v475
    %v868 = vpack.c.b16 %v480, %v476
    %v869 = vpack.c.b16 %v481, %v477
    %v870 = vpack.c.b16 %v486, %v482
    %v871 = vpack.c.b16 %v487, %v483
    %v872 = vpack.c.b16 %v488, %v484
    %v873 = vpack.c.b16 %v489, %v485
    %v874 = vpack.c.b16 %v494, %v490
    %v875 = vpack.c.b16 %v495, %v491
    %v876 = vpack.c.b16 %v496, %v492
    %v877 = vpack.c.b16 %v497, %v493
    %v878 = vpack.c.b16 %v502, %v498
    %v879 = vpack.c.b16 %v503, %v499
    %v880 = vpack.c.b16 %v504, %v500
    %v881 = vpack.c.b16 %v505, %v501
    %v882 = vpack.c.b16 %v510, %v506
    %v883 = vpack.c.b16 %v511, %v507
    %v884 = vpack.c.b16 %v512, %v508
    %v885 = vpack.c.b16 %v513, %v509
    %v886 = vpack.c.b16 %v518, %v514
    %v887 = vpack.c.b16 %v519, %v515
    %v888 = vpack.c.b16 %v520, %v516
    %v889 = vpack.c.b16 %v521, %v517
    %v890 = vpack.c.b16 %v526, %v522
    %v891 = vpack.c.b16 %v527, %v523
    %v892 = vpack.c.b16 %v528, %v524
    %v893 = vpack.c.b16 %v529, %v525
    %v894 = vpack.c.b16 %v534, %v530
    %v895 = vpack.c.b16 %v535, %v531
    %v896 = vpack.c.b16 %v536, %v532
    %v897 = vpack.c.b16 %v537, %v533
    %v898 = vpack.c.b16 %v542, %v538
    %v899 = vpack.c.b16 %v543, %v539
    %v900 = vpack.c.b16 %v544, %v540
    %v901 = vpack.c.b16 %v545, %v541
    %v902 = vpack.c.b16 %v550, %v546
    %v903 = vpack.c.b16 %v551, %v547
    %v904 = vpack.c.b16 %v552, %v548
    %v905 = vpack.c.b16 %v553, %v549
    %v906 = vpack.c.b16 %v558, %v554
    %v907 = vpack.c.b16 %v559, %v555
    %v908 = vpack.c.b16 %v560, %v556
    %v909 = vpack.c.b16 %v561, %v557
    %v910 = vpack.c.b16 %v566, %v562
    %v911 = vpack.c.b16 %v567, %v563
    %v912 = vpack.c.b16 %v568, %v564
    %v913 = vpack.c.b16 %v569, %v565
    %v914 = vpack.c.b16 %v574, %v570
    %v915 = vpack.c.b16 %v575, %v571
    %v916 = vpack.c.b16 %v576, %v572
    %v917 = vpack.c.b16 %v577, %v573
    %v918 = vpack.c.b16 %v582, %v578
    %v919 = vpack.c.b16 %v583, %v579
    %v920 = vpack.c.b16 %v584, %v580
    %v921 = vpack.c.b16 %v585, %v581
    %v922 = vpack.c.b16 %v590, %v586
    %v923 = vpack.c.b16 %v591, %v587
    %v924 = vpack.c.b16 %v592, %v588
    %v925 = vpack.c.b16 %v593, %v589
    %v926 = vpack.c.b16 %v598, %v594
    %v927 = vpack.c.b16 %v599, %v595
    %v928 = vpack.c.b16 %v600, %v596
    %v929 = vpack.c.b16 %v601, %v597
    %v930 = vpack.c.b16 %v606, %v602
    %v931 = vpack.c.b16 %v607, %v603
    %v932 = vpack.c.b16 %v608, %v604
    %v933 = vpack.c.b16 %v609, %v605
    %v934 = vpack.c.b16 %v614, %v610
    %v935 = vpack.c.b16 %v615, %v611
    %v936 = vpack.c.b16 %v616, %v612
    %v937 = vpack.c.b16 %v617, %v613
    %v938 = vpack.c.b16 %v622, %v618
    %v939 = vpack.c.b16 %v623, %v619
    %v940 = vpack.c.b16 %v624, %v620
    %v941 = vpack.c.b16 %v625, %v621
    %v942 = vpack.c.b16 %v630, %v626
    %v943 = vpack.c.b16 %v631, %v627
    %v944 = vpack.c.b16 %v632, %v628
    %v945 = vpack.c.b16 %v633, %v629
    %v946 = vpack.c.b16 %v638, %v634
    %v947 = vpack.c.b16 %v639, %v635
    %v948 = vpack.c.b16 %v640, %v636
    %v949 = vpack.c.b16 %v641, %v637
    %v950 = vpack.c.b16 %v646, %v642
    %v951 = vpack.c.b16 %v647, %v643
    %v952 = vpack.c.b16 %v648, %v644
    %v953 = vpack.c.b16 %v649, %v645
    %v954 = vpack.c.b16 %v654, %v650
    %v955 = vpack.c.b16 %v655, %v651
    %v956 = vpack.c.b16 %v656, %v652
    %v957 = vpack.c.b16 %v657, %v653
    %v958 = vpack.c.b16 %v662, %v658
    %v959 = vpack.c.b16 %v663, %v659
    %v960 = vpack.c.b16 %v664, %v660
    %v961 = vpack.c.b16 %v665, %v661
    %v962 = vpack.c.b16 %v670, %v666
    %v963 = vpack.c.b16 %v671, %v667
    %v964 = vpack.c.b16 %v672, %v668
    %v965 = vpack.c.b16 %v673, %v669
    %v966 = vpack.c.b16 %v678, %v674
    %v967 = vpack.c.b16 %v679, %v675
    %v968 = vpack.c.b16 %v680, %v676
    %v969 = vpack.c.b16 %v681, %v677
    %v970 = vpack.c.b16 %v686, %v682
    %v971 = vpack.c.b16 %v687, %v683
    %v972 = vpack.c.b16 %v688, %v684
    %v973 = vpack.c.b16 %v689, %v685
    %v974 = vpack.c.b16 %v694, %v690
    %v975 = vpack.c.b16 %v695, %v691
    %v976 = vpack.c.b16 %v696, %v692
    %v977 = vpack.c.b16 %v697, %v693
    %v978 = vpack.c.b16 %v702, %v698
    %v979 = vpack.c.b16 %v703, %v699
    %v980 = vpack.c.b16 %v704, %v700
    %v981 = vpack.c.b16 %v705, %v701
    %v982 = vpack.c.b16 %v710, %v706
    %v983 = vpack.c.b16 %v711, %v707
    %v984 = vpack.c.b16 %v712, %v708
    %v985 = vpack.c.b16 %v713, %v709
    %v986 = vpack.c.b16 %v718, %v714
    %v987 = vpack.c.b16 %v719, %v715
    %v988 = vpack.c.b16 %v720, %v716
    %v989 = vpack.c.b16 %v721, %v717
    %v990 = vpack.c.b16 %v726, %v722
    %v991 = vpack.c.b16 %v727, %v723
    %v992 = vpack.c.b16 %v728, %v724
    %v993 = vpack.c.b16 %v729, %v725
    %v994 = vpack.c.b16 %v734, %v730
    %v995 = vpack.c.b16 %v735, %v731
    %v996 = vpack.c.b16 %v736, %v732
    %v997 = vpack.c.b16 %v737, %v733
    %v998 = vpack.c.b16 %v742, %v738
    %v999 = vpack.c.b16 %v743, %v739
    %v1000 = vpack.c.b16 %v744, %v740
    %v1001 = vpack.c.b16 %v745, %v741
    %v1002 = vpack.c.b16 %v750, %v746
    %v1003 = vpack.c.b16 %v751, %v747
    %v1004 = vpack.c.b16 %v752, %v748
    %v1005 = vpack.c.b16 %v753, %v749
    %v1006 = vpack.c.b16 %v758, %v754
    %v1007 = vpack.c.b16 %v759, %v755
    %v1008 = vpack.c.b16 %v760, %v756
    %v1009 = vpack.c.b16 %v761, %v757
    %v1010 = vpack.c.b16 %v766, %v762
    %v1011 = vpack.c.b16 %v767, %v763
    %v1012 = vpack.c.b16 %v768, %v764
    %v1013 = vpack.c.b16 %v769, %v765
    %v1014 = vpack.c.b16 %v774, %v770
    %v1015 = vpack.c.b16 %v775, %v771
    %v1016 = vpack.c.b16 %v776, %v772
    %v1017 = vpack.c.b16 %v777, %v773
    %v1018 = vpack.c.b16 %v782, %v778
    %v1019 = vpack.c.b16 %v783, %v779
    %v1020 = vpack.c.b16 %v784, %v780
    %v1021 = vpack.c.b16 %v785, %v781
    %v1022 = vpack.c.b16 %v790, %v786
    %v1023 = vpack.c.b16 %v791, %v787
    %v1024 = vpack.c.b16 %v792, %v788
    %v1025 = vpack.c.b16 %v793, %v789
    %v1026 = vpack.c.b16 %v798, %v794
    %v1027 = vpack.c.b16 %v799, %v795
    %v1028 = vpack.c.b16 %v800, %v796
    %v1029 = vpack.c.b16 %v801, %v797
    %v1030 = vpack.c.b16 %v806, %v802
    %v1031 = vpack.c.b16 %v807, %v803
    %v1032 = vpack.c.b16 %v808, %v804
    %v1033 = vpack.c.b16 %v809, %v805
    %v1034 = vpack.c.b16 %v814, %v810
    %v1035 = vpack.c.b16 %v815, %v811
    %v1036 = vpack.c.b16 %v816, %v812
    %v1037 = vpack.c.b16 %v817, %v813
    %v1038 = vpack.c.b16 %v822, %v818
    %v1039 = vpack.c.b16 %v823, %v819
    %v1040 = vpack.c.b16 %v824, %v820
    %v1041 = vpack.c.b16 %v825, %v821
    %v1042 = vpack.c.b16 %v830, %v826
    %v1043 = vpack.c.b16 %v831, %v827
    %v1044 = vpack.c.b16 %v832, %v828
    %v1045 = vpack.c.b16 %v833, %v829
    %v1046 = vpack.c.b16 %v838, %v834
    %v1047 = vpack.c.b16 %v839, %v835
    %v1048 = vpack.c.b16 %v840, %v836
    %v1049 = vpack.c.b16 %v841, %v837
    %v1050 = vpack.c.b16 %v846, %v842
    %v1051 = vpack.c.b16 %v847, %v843
    %v1052 = vpack.c.b16 %v848, %v844
    %v1053 = vpack.c.b16 %v849, %v845
    %v1054 = vpack.c.b16 %v854, %v850
    %v1055 = vpack.c.b16 %v855, %v851
    %v1056 = vpack.c.b16 %v856, %v852
    %v1057 = vpack.c.b16 %v857, %v853
    %vm1258 = vcmask 261120
    %v1260 = vsel %vm1258, %v35, 0
    %1262 = vmatprep.subr.bf16.mxu0 %v887
    %1263 = vmatpush1.bf16.msra.mxu0 %v886
    %1264 = vmatprep.subr.bf16.mxu0 %v883
    %1265 = vmatpush1.bf16.msra.mxu0 %v882
    %1266 = vmatprep.subr.bf16.mxu0 %v879
    %1267 = vmatpush1.bf16.msra.mxu0 %v878
    %1268 = vmatprep.subr.bf16.mxu0 %v875
    %1269 = vmatpush1.bf16.msra.mxu0 %v874
    %1270 = vmatprep.subr.bf16.mxu0 %v871
    %1271 = vmatpush1.bf16.msra.mxu0 %v870
    %1272 = vmatprep.subr.bf16.mxu0 %v867
    %1273 = vmatpush1.bf16.msra.mxu0 %v866
    %1274 = vmatprep.subr.bf16.mxu0 %v863
    %1275 = vmatpush1.bf16.msra.mxu0 %v862
    %1276 = vmatprep.subr.bf16.mxu0 %v859
    %1277 = vmatpush1.bf16.msra.mxu0 %v858
    %1278 = vmatprep.subr.bf16.mxu0 %v919
    %1279 = vmatpush2.bf16.msra.mxu0 %v918
    %1280 = vmatprep.subr.bf16.mxu0 %v915
    %1281 = vmatpush2.bf16.msra.mxu0 %v914
    %1282 = vmatprep.subr.bf16.mxu0 %v911
    %1283 = vmatpush2.bf16.msra.mxu0 %v910
    %1284 = vmatprep.subr.bf16.mxu0 %v907
    %1285 = vmatpush2.bf16.msra.mxu0 %v906
    %1286 = vmatprep.subr.bf16.mxu0 %v903
    %1287 = vmatpush2.bf16.msra.mxu0 %v902
    %1288 = vmatprep.subr.bf16.mxu0 %v899
    %1289 = vmatpush2.bf16.msra.mxu0 %v898
    %1290 = vmatprep.subr.bf16.mxu0 %v895
    %1291 = vmatpush2.bf16.msra.mxu0 %v894
    %1292 = vmatprep.subr.bf16.mxu0 %v891
    %1293 = vmatpush2.bf16.msra.mxu0 %v890
    %1294 = vmatprep.mubr.bf16.mxu0 %v30
    %1295 = vmatmul.mubr.bf16.gmra.mxu0 %v29
    %v1296 = vpop.f32.mrf.mxu0
    %v1297 = vadd.f32 %v241, %v1296
    %v1298 = vpop.f32.mrf.mxu0
    %v1299 = vadd.f32 %v245, %v1298
    %v1300 = vpop.f32.mrf.mxu0
    %v1301 = vpop.f32.mrf.mxu0
    %1302 = vdwg.mxu0
    %1303 = vmatprep.subr.bf16.mxu0 %v951
    %1304 = vmatpush1.bf16.msra.mxu0 %v950
    %1305 = vmatprep.subr.bf16.mxu0 %v947
    %1306 = vmatpush1.bf16.msra.mxu0 %v946
    %1307 = vmatprep.subr.bf16.mxu0 %v943
    %1308 = vmatpush1.bf16.msra.mxu0 %v942
    %1309 = vmatprep.subr.bf16.mxu0 %v939
    %1310 = vmatpush1.bf16.msra.mxu0 %v938
    %1311 = vmatprep.subr.bf16.mxu0 %v935
    %1312 = vmatpush1.bf16.msra.mxu0 %v934
    %1313 = vmatprep.subr.bf16.mxu0 %v931
    %1314 = vmatpush1.bf16.msra.mxu0 %v930
    %1315 = vmatprep.subr.bf16.mxu0 %v927
    %1316 = vmatpush1.bf16.msra.mxu0 %v926
    %1317 = vmatprep.subr.bf16.mxu0 %v923
    %1318 = vmatpush1.bf16.msra.mxu0 %v922
    %1319 = vmatprep.subr.bf16.mxu0 %v983
    %1320 = vmatpush2.bf16.msra.mxu0 %v982
    %1321 = vmatprep.subr.bf16.mxu0 %v979
    %1322 = vmatpush2.bf16.msra.mxu0 %v978
    %1323 = vmatprep.subr.bf16.mxu0 %v975
    %1324 = vmatpush2.bf16.msra.mxu0 %v974
    %1325 = vmatprep.subr.bf16.mxu0 %v971
    %1326 = vmatpush2.bf16.msra.mxu0 %v970
    %1327 = vmatprep.subr.bf16.mxu0 %v967
    %1328 = vmatpush2.bf16.msra.mxu0 %v966
    %1329 = vmatprep.subr.bf16.mxu0 %v963
    %1330 = vmatpush2.bf16.msra.mxu0 %v962
    %1331 = vmatprep.subr.bf16.mxu0 %v959
    %1332 = vmatpush2.bf16.msra.mxu0 %v958
    %1333 = vmatprep.subr.bf16.mxu0 %v955
    %1334 = vmatpush2.bf16.msra.mxu0 %v954
    %1335 = vmatprep.mubr.bf16.mxu0 %v32
    %1336 = vmatmul.mubr.bf16.gmra.mxu0 %v31
    %v1337 = vpop.f32.mrf.mxu0
    %v1338 = vadd.f32 %v1297, %v1337
    %v1339 = vpop.f32.mrf.mxu0
    %v1340 = vadd.f32 %v1299, %v1339
    %v1341 = vpop.f32.mrf.mxu0
    %v1342 = vpop.f32.mrf.mxu0
    %1343 = vdwg.mxu0
    %1344 = vmatprep.subr.bf16.mxu0 %v1015
    %1345 = vmatpush1.bf16.msra.mxu0 %v1014
    %1346 = vmatprep.subr.bf16.mxu0 %v1011
    %1347 = vmatpush1.bf16.msra.mxu0 %v1010
    %1348 = vmatprep.subr.bf16.mxu0 %v1007
    %1349 = vmatpush1.bf16.msra.mxu0 %v1006
    %1350 = vmatprep.subr.bf16.mxu0 %v1003
    %1351 = vmatpush1.bf16.msra.mxu0 %v1002
    %1352 = vmatprep.subr.bf16.mxu0 %v999
    %1353 = vmatpush1.bf16.msra.mxu0 %v998
    %1354 = vmatprep.subr.bf16.mxu0 %v995
    %1355 = vmatpush1.bf16.msra.mxu0 %v994
    %1356 = vmatprep.subr.bf16.mxu0 %v991
    %1357 = vmatpush1.bf16.msra.mxu0 %v990
    %1358 = vmatprep.subr.bf16.mxu0 %v987
    %1359 = vmatpush1.bf16.msra.mxu0 %v986
    %1360 = vmatprep.subr.bf16.mxu0 %v1047
    %1361 = vmatpush2.bf16.msra.mxu0 %v1046
    %1362 = vmatprep.subr.bf16.mxu0 %v1043
    %1363 = vmatpush2.bf16.msra.mxu0 %v1042
    %1364 = vmatprep.subr.bf16.mxu0 %v1039
    %1365 = vmatpush2.bf16.msra.mxu0 %v1038
    %1366 = vmatprep.subr.bf16.mxu0 %v1035
    %1367 = vmatpush2.bf16.msra.mxu0 %v1034
    %1368 = vmatprep.subr.bf16.mxu0 %v1031
    %1369 = vmatpush2.bf16.msra.mxu0 %v1030
    %1370 = vmatprep.subr.bf16.mxu0 %v1027
    %1371 = vmatpush2.bf16.msra.mxu0 %v1026
    %1372 = vmatprep.subr.bf16.mxu0 %v1023
    %1373 = vmatpush2.bf16.msra.mxu0 %v1022
    %1374 = vmatprep.subr.bf16.mxu0 %v1019
    %1375 = vmatpush2.bf16.msra.mxu0 %v1018
    %1376 = vmatprep.mubr.bf16.mxu0 %v34
    %1377 = vmatmul.mubr.bf16.gmra.mxu0 %v33
    %v1378 = vpop.f32.mrf.mxu0
    %v1379 = vadd.f32 %v1338, %v1378
    %v1380 = vpop.f32.mrf.mxu0
    %v1381 = vadd.f32 %v1340, %v1380
    %v1382 = vpop.f32.mrf.mxu0
    %v1383 = vpop.f32.mrf.mxu0
    %1384 = vdwg.mxu0
    %1385 = vmatprep.subr.bf16.mxu0 0
    %1386 = vmatpush1.bf16.msra.mxu0 0
    %1387 = vmatprep.subr.bf16.mxu0 0
    %1388 = vmatpush1.bf16.msra.mxu0 0
    %1389 = vmatprep.subr.bf16.mxu0 0
    %1390 = vmatpush1.bf16.msra.mxu0 0
    %1391 = vmatprep.subr.bf16.mxu0 0
    %1392 = vmatpush1.bf16.msra.mxu0 0
    %1393 = vmatprep.subr.bf16.mxu0 0
    %1394 = vmatpush1.bf16.msra.mxu0 0
    %1395 = vmatprep.subr.bf16.mxu0 0
    %1396 = vmatpush1.bf16.msra.mxu0 0
    %1397 = vmatprep.subr.bf16.mxu0 %v1055
    %1398 = vmatpush1.bf16.msra.mxu0 %v1054
    %1399 = vmatprep.subr.bf16.mxu0 %v1051
    %1400 = vmatpush1.bf16.msra.mxu0 %v1050
    %1401 = vmatprep.subr.bf16.mxu0 0
    %1402 = vmatpush2.bf16.msra.mxu0 0
    %1403 = vmatprep.subr.bf16.mxu0 0
    %1404 = vmatpush2.bf16.msra.mxu0 0
    %1405 = vmatprep.subr.bf16.mxu0 0
    %1406 = vmatpush2.bf16.msra.mxu0 0
    %1407 = vmatprep.subr.bf16.mxu0 0
    %1408 = vmatpush2.bf16.msra.mxu0 0
    %1409 = vmatprep.subr.bf16.mxu0 0
    %1410 = vmatpush2.bf16.msra.mxu0 0
    %1411 = vmatprep.subr.bf16.mxu0 0
    %1412 = vmatpush2.bf16.msra.mxu0 0
    %1413 = vmatprep.subr.bf16.mxu0 0
    %1414 = vmatpush2.bf16.msra.mxu0 0
    %1415 = vmatprep.subr.bf16.mxu0 0
    %1416 = vmatpush2.bf16.msra.mxu0 0
    %1417 = vmatprep.mubr.bf16.mxu0 0
    %1418 = vmatmul.mubr.bf16.gmra.mxu0 %v1260
    %v1419 = vpop.f32.mrf.mxu0
    %v1420 = vadd.f32 %v1379, %v1419
    %v1421 = vpop.f32.mrf.mxu0
    %v1422 = vadd.f32 %v1381, %v1421
    %v1423 = vpop.f32.mrf.mxu0
    %v1424 = vpop.f32.mrf.mxu0
    %1425 = vdwg.mxu0
    %1426 = vmatprep.subr.bf16.mxu0 %v889
    %1427 = vmatpush1.bf16.msra.mxu0 %v888
    %1428 = vmatprep.subr.bf16.mxu0 %v885
    %1429 = vmatpush1.bf16.msra.mxu0 %v884
    %1430 = vmatprep.subr.bf16.mxu0 %v881
    %1431 = vmatpush1.bf16.msra.mxu0 %v880
    %1432 = vmatprep.subr.bf16.mxu0 %v877
    %1433 = vmatpush1.bf16.msra.mxu0 %v876
    %1434 = vmatprep.subr.bf16.mxu0 %v873
    %1435 = vmatpush1.bf16.msra.mxu0 %v872
    %1436 = vmatprep.subr.bf16.mxu0 %v869
    %1437 = vmatpush1.bf16.msra.mxu0 %v868
    %1438 = vmatprep.subr.bf16.mxu0 %v865
    %1439 = vmatpush1.bf16.msra.mxu0 %v864
    %1440 = vmatprep.subr.bf16.mxu0 %v861
    %1441 = vmatpush1.bf16.msra.mxu0 %v860
    %1442 = vmatprep.subr.bf16.mxu0 %v921
    %1443 = vmatpush2.bf16.msra.mxu0 %v920
    %1444 = vmatprep.subr.bf16.mxu0 %v917
    %1445 = vmatpush2.bf16.msra.mxu0 %v916
    %1446 = vmatprep.subr.bf16.mxu0 %v913
    %1447 = vmatpush2.bf16.msra.mxu0 %v912
    %1448 = vmatprep.subr.bf16.mxu0 %v909
    %1449 = vmatpush2.bf16.msra.mxu0 %v908
    %1450 = vmatprep.subr.bf16.mxu0 %v905
    %1451 = vmatpush2.bf16.msra.mxu0 %v904
    %1452 = vmatprep.subr.bf16.mxu0 %v901
    %1453 = vmatpush2.bf16.msra.mxu0 %v900
    %1454 = vmatprep.subr.bf16.mxu0 %v897
    %1455 = vmatpush2.bf16.msra.mxu0 %v896
    %1456 = vmatprep.subr.bf16.mxu0 %v893
    %1457 = vmatpush2.bf16.msra.mxu0 %v892
    %1458 = vmatprep.mubr.bf16.mxu0 %v30
    %1459 = vmatmul.mubr.bf16.gmra.mxu0 %v29
    %v1460 = vpop.f32.mrf.mxu0
    %v1461 = vadd.f32 %v249, %v1460
    %v1462 = vpop.f32.mrf.mxu0
    %v1463 = vadd.f32 %v253, %v1462
    %v1464 = vpop.f32.mrf.mxu0
    %v1465 = vpop.f32.mrf.mxu0
    %1466 = vdwg.mxu0
    %1467 = vmatprep.subr.bf16.mxu0 %v953
    %1468 = vmatpush1.bf16.msra.mxu0 %v952
    %1469 = vmatprep.subr.bf16.mxu0 %v949
    %1470 = vmatpush1.bf16.msra.mxu0 %v948
    %1471 = vmatprep.subr.bf16.mxu0 %v945
    %1472 = vmatpush1.bf16.msra.mxu0 %v944
    %1473 = vmatprep.subr.bf16.mxu0 %v941
    %1474 = vmatpush1.bf16.msra.mxu0 %v940
    %1475 = vmatprep.subr.bf16.mxu0 %v937
    %1476 = vmatpush1.bf16.msra.mxu0 %v936
    %1477 = vmatprep.subr.bf16.mxu0 %v933
    %1478 = vmatpush1.bf16.msra.mxu0 %v932
    %1479 = vmatprep.subr.bf16.mxu0 %v929
    %1480 = vmatpush1.bf16.msra.mxu0 %v928
    %1481 = vmatprep.subr.bf16.mxu0 %v925
    %1482 = vmatpush1.bf16.msra.mxu0 %v924
    %1483 = vmatprep.subr.bf16.mxu0 %v985
    %1484 = vmatpush2.bf16.msra.mxu0 %v984
    %1485 = vmatprep.subr.bf16.mxu0 %v981
    %1486 = vmatpush2.bf16.msra.mxu0 %v980
    %1487 = vmatprep.subr.bf16.mxu0 %v977
    %1488 = vmatpush2.bf16.msra.mxu0 %v976
    %1489 = vmatprep.subr.bf16.mxu0 %v973
    %1490 = vmatpush2.bf16.msra.mxu0 %v972
    %1491 = vmatprep.subr.bf16.mxu0 %v969
    %1492 = vmatpush2.bf16.msra.mxu0 %v968
    %1493 = vmatprep.subr.bf16.mxu0 %v965
    %1494 = vmatpush2.bf16.msra.mxu0 %v964
    %1495 = vmatprep.subr.bf16.mxu0 %v961
    %1496 = vmatpush2.bf16.msra.mxu0 %v960
    %1497 = vmatprep.subr.bf16.mxu0 %v957
    %1498 = vmatpush2.bf16.msra.mxu0 %v956
    %1499 = vmatprep.mubr.bf16.mxu0 %v32
    %1500 = vmatmul.mubr.bf16.gmra.mxu0 %v31
    %v1501 = vpop.f32.mrf.mxu0
    %v1502 = vadd.f32 %v1461, %v1501
    %v1503 = vpop.f32.mrf.mxu0
    %v1504 = vadd.f32 %v1463, %v1503
    %v1505 = vpop.f32.mrf.mxu0
    %v1506 = vpop.f32.mrf.mxu0
    %1507 = vdwg.mxu0
    %1508 = vmatprep.subr.bf16.mxu0 %v1017
    %1509 = vmatpush1.bf16.msra.mxu0 %v1016
    %1510 = vmatprep.subr.bf16.mxu0 %v1013
    %1511 = vmatpush1.bf16.msra.mxu0 %v1012
    %1512 = vmatprep.subr.bf16.mxu0 %v1009
    %1513 = vmatpush1.bf16.msra.mxu0 %v1008
    %1514 = vmatprep.subr.bf16.mxu0 %v1005
    %1515 = vmatpush1.bf16.msra.mxu0 %v1004
    %1516 = vmatprep.subr.bf16.mxu0 %v1001
    %1517 = vmatpush1.bf16.msra.mxu0 %v1000
    %1518 = vmatprep.subr.bf16.mxu0 %v997
    %1519 = vmatpush1.bf16.msra.mxu0 %v996
    %1520 = vmatprep.subr.bf16.mxu0 %v993
    %1521 = vmatpush1.bf16.msra.mxu0 %v992
    %1522 = vmatprep.subr.bf16.mxu0 %v989
    %1523 = vmatpush1.bf16.msra.mxu0 %v988
    %1524 = vmatprep.subr.bf16.mxu0 %v1049
    %1525 = vmatpush2.bf16.msra.mxu0 %v1048
    %1526 = vmatprep.subr.bf16.mxu0 %v1045
    %1527 = vmatpush2.bf16.msra.mxu0 %v1044
    %1528 = vmatprep.subr.bf16.mxu0 %v1041
    %1529 = vmatpush2.bf16.msra.mxu0 %v1040
    %1530 = vmatprep.subr.bf16.mxu0 %v1037
    %1531 = vmatpush2.bf16.msra.mxu0 %v1036
    %1532 = vmatprep.subr.bf16.mxu0 %v1033
    %1533 = vmatpush2.bf16.msra.mxu0 %v1032
    %1534 = vmatprep.subr.bf16.mxu0 %v1029
    %1535 = vmatpush2.bf16.msra.mxu0 %v1028
    %1536 = vmatprep.subr.bf16.mxu0 %v1025
    %1537 = vmatpush2.bf16.msra.mxu0 %v1024
    %1538 = vmatprep.subr.bf16.mxu0 %v1021
    %1539 = vmatpush2.bf16.msra.mxu0 %v1020
    %1540 = vmatprep.mubr.bf16.mxu0 %v34
    %1541 = vmatmul.mubr.bf16.gmra.mxu0 %v33
    %v1542 = vpop.f32.mrf.mxu0
    %v1543 = vadd.f32 %v1502, %v1542
    %v1544 = vpop.f32.mrf.mxu0
    %v1545 = vadd.f32 %v1504, %v1544
    %v1546 = vpop.f32.mrf.mxu0
    %v1547 = vpop.f32.mrf.mxu0
    %1548 = vdwg.mxu0
    %1549 = vmatprep.subr.bf16.mxu0 0
    %1550 = vmatpush1.bf16.msra.mxu0 0
    %1551 = vmatprep.subr.bf16.mxu0 0
    %1552 = vmatpush1.bf16.msra.mxu0 0
    %1553 = vmatprep.subr.bf16.mxu0 0
    %1554 = vmatpush1.bf16.msra.mxu0 0
    %1555 = vmatprep.subr.bf16.mxu0 0
    %1556 = vmatpush1.bf16.msra.mxu0 0
    %1557 = vmatprep.subr.bf16.mxu0 0
    %1558 = vmatpush1.bf16.msra.mxu0 0
    %1559 = vmatprep.subr.bf16.mxu0 0
    %1560 = vmatpush1.bf16.msra.mxu0 0
    %1561 = vmatprep.subr.bf16.mxu0 %v1057
    %1562 = vmatpush1.bf16.msra.mxu0 %v1056
    %1563 = vmatprep.subr.bf16.mxu0 %v1053
    %1564 = vmatpush1.bf16.msra.mxu0 %v1052
    %1565 = vmatprep.subr.bf16.mxu0 0
    %1566 = vmatpush2.bf16.msra.mxu0 0
    %1567 = vmatprep.subr.bf16.mxu0 0
    %1568 = vmatpush2.bf16.msra.mxu0 0
    %1569 = vmatprep.subr.bf16.mxu0 0
    %1570 = vmatpush2.bf16.msra.mxu0 0
    %1571 = vmatprep.subr.bf16.mxu0 0
    %1572 = vmatpush2.bf16.msra.mxu0 0
    %1573 = vmatprep.subr.bf16.mxu0 0
    %1574 = vmatpush2.bf16.msra.mxu0 0
    %1575 = vmatprep.subr.bf16.mxu0 0
    %1576 = vmatpush2.bf16.msra.mxu0 0
    %1577 = vmatprep.subr.bf16.mxu0 0
    %1578 = vmatpush2.bf16.msra.mxu0 0
    %1579 = vmatprep.subr.bf16.mxu0 0
    %1580 = vmatpush2.bf16.msra.mxu0 0
    %1581 = vmatprep.mubr.bf16.mxu0 0
    %1582 = vmatmul.mubr.bf16.gmra.mxu0 %v1260
    %v1583 = vpop.f32.mrf.mxu0
    %v1584 = vadd.f32 %v1543, %v1583
    %v1585 = vpop.f32.mrf.mxu0
    %v1586 = vadd.f32 %v1545, %v1585
    %v1587 = vpop.f32.mrf.mxu0
    %v1588 = vpop.f32.mrf.mxu0
    %1589 = vdwg.mxu0
    %v1590 = vmax.f32 %v1420, 0.0
    %v1591 = vmax.f32 %v1422, 0.0
    %v1592 = vmax.f32 %v1584, 0.0
    %v1593 = vmax.f32 %v1586, 0.0
    %v1594 = vpack.c.bf16 %v1590, %v1590
    %v1595 = vpack.c.bf16 %v1591, %v1591
    %v1596 = vpack.c.bf16 %v1592, %v1592
    %v1597 = vpack.c.bf16 %v1593, %v1593
    %v1598 = vld [vmem:[%s3] sm:$0xf]
    %v1599 = vld [vmem:[%s3 + $0x4] sm:$0xf]
    %v1600 = vld [vmem:[%s3 + $0x8] sm:$0xf]
    %v1601 = vld [vmem:[%s3 + $0xc] sm:$0xf]
    %v1602 = vld [vmem:[%s3 + $0x10] sm:$0xf]
    %v1603 = vld [vmem:[%s3 + $0x14] sm:$0xf]
    %v1604 = vld [vmem:[%s3 + $0x18] sm:$0xf]
    %v1605 = vld [vmem:[%s3 + $0x1c] sm:$0xf]
    %v1606 = vld [vmem:[%s3 + $0x20] sm:$0xf]
    %v1607 = vld [vmem:[%s3 + $0x24] sm:$0xf]
    %v1608 = vld [vmem:[%s3 + $0x28] sm:$0xf]
    %v1609 = vld [vmem:[%s3 + $0x2c] sm:$0xf]
    %v1610 = vld [vmem:[%s3 + $0x30] sm:$0xf]
    %v1611 = vld [vmem:[%s3 + $0x34] sm:$0xf]
    %v1612 = vld [vmem:[%s3 + $0x38] sm:$0xf]
    %v1613 = vld [vmem:[%s3 + $0x3c] sm:$0xf]
    %v1614 = vld [vmem:[%s3 + $0x40] sm:$0xf]
    %v1615 = vld [vmem:[%s3 + $0x44] sm:$0xf]
    %v1616 = vld [vmem:[%s3 + $0x48] sm:$0xf]
    %v1617 = vld [vmem:[%s3 + $0x4c] sm:$0xf]
    %v1618 = vld [vmem:[%s3 + $0x50] sm:$0xf]
    %v1619 = vld [vmem:[%s3 + $0x54] sm:$0xf]
    %v1620 = vld [vmem:[%s3 + $0x58] sm:$0xf]
    %v1621 = vld [vmem:[%s3 + $0x5c] sm:$0xf]
    %v1622 = vld [vmem:[%s3 + $0x60] sm:$0xf]
    %v1623 = vld [vmem:[%s3 + $0x64] sm:$0xf]
    %v1624 = vld [vmem:[%s3 + $0x68] sm:$0xf]
    %v1625 = vld [vmem:[%s3 + $0x6c] sm:$0xf]
    %v1626 = vld [vmem:[%s3 + $0x70] sm:$0xf]
    %v1627 = vld [vmem:[%s3 + $0x74] sm:$0xf]
    %v1628 = vld [vmem:[%s3 + $0x78] sm:$0xf]
    %v1629 = vld [vmem:[%s3 + $0x7c] sm:$0xf]
    %v1630 = vld [vmem:[%s3 + $0x80] sm:$0xf]
    %v1631 = vld [vmem:[%s3 + $0x84] sm:$0xf]
    %v1632 = vld [vmem:[%s3 + $0x88] sm:$0xf]
    %v1633 = vld [vmem:[%s3 + $0x8c] sm:$0xf]
    %v1634 = vld [vmem:[%s3 + $0x90] sm:$0xf]
    %v1635 = vld [vmem:[%s3 + $0x94] sm:$0xf]
    %v1636 = vld [vmem:[%s3 + $0x98] sm:$0xf]
    %v1637 = vld [vmem:[%s3 + $0x9c] sm:$0xf]
    %v1638 = vld [vmem:[%s3 + $0xa0] sm:$0xf]
    %v1639 = vld [vmem:[%s3 + $0xa4] sm:$0xf]
    %v1640 = vld [vmem:[%s3 + $0xa8] sm:$0xf]
    %v1641 = vld [vmem:[%s3 + $0xac] sm:$0xf]
    %v1642 = vld [vmem:[%s3 + $0xb0] sm:$0xf]
    %v1643 = vld [vmem:[%s3 + $0xb4] sm:$0xf]
    %v1644 = vld [vmem:[%s3 + $0xb8] sm:$0xf]
    %v1645 = vld [vmem:[%s3 + $0xbc] sm:$0xf]
    %v1646 = vld [vmem:[%s3 + $0xc0] sm:$0xf]
    %v1647 = vld [vmem:[%s3 + $0xc4] sm:$0xf]
    %v1648 = vld [vmem:[%s3 + $0xc8] sm:$0xf]
    %v1649 = vld [vmem:[%s3 + $0xcc] sm:$0xf]
    %v1650 = vld [vmem:[%s3 + $0xd0] sm:$0xf]
    %v1651 = vld [vmem:[%s3 + $0xd4] sm:$0xf]
    %v1652 = vld [vmem:[%s3 + $0xd8] sm:$0xf]
    %v1653 = vld [vmem:[%s3 + $0xdc] sm:$0xf]
    %v1654 = vld [vmem:[%s3 + $0xe0] sm:$0xf]
    %v1655 = vld [vmem:[%s3 + $0xe4] sm:$0xf]
    %v1656 = vld [vmem:[%s3 + $0xe8] sm:$0xf]
    %v1657 = vld [vmem:[%s3 + $0xec] sm:$0xf]
    %v1658 = vld [vmem:[%s3 + $0xf0] sm:$0xf]
    %v1659 = vld [vmem:[%s3 + $0xf4] sm:$0xf]
    %v1660 = vld [vmem:[%s3 + $0xf8] sm:$0x3]
    %v1661 = vld [vmem:[%s4] sm:$0x1]
    %v1663 = vlaneseq
    %v1664 = vshrl.u32 %v1663, 7
    %v1665 = vsub.s32 0, %v1664
    %v1666 = vrot.slane %v1661, %v1665
    %v1731 = vunpack.c.l.b16 %v1598
    %v1732 = vunpack.c.l.b16 %v1599
    %v1733 = vunpack.c.l.b16 %v1600
    %v1734 = vunpack.c.l.b16 %v1601
    %v1735 = vunpack.c.l.b16 %v1602
    %v1736 = vunpack.c.l.b16 %v1603
    %v1737 = vunpack.c.l.b16 %v1604
    %v1738 = vunpack.c.l.b16 %v1605
    %v1739 = vunpack.c.l.b16 %v1606
    %v1740 = vunpack.c.l.b16 %v1607
    %v1741 = vunpack.c.l.b16 %v1608
    %v1742 = vunpack.c.l.b16 %v1609
    %v1743 = vunpack.c.l.b16 %v1610
    %v1744 = vunpack.c.l.b16 %v1611
    %v1745 = vunpack.c.l.b16 %v1612
    %v1746 = vunpack.c.l.b16 %v1613
    %v1747 = vunpack.c.l.b16 %v1614
    %v1748 = vunpack.c.l.b16 %v1615
    %v1749 = vunpack.c.l.b16 %v1616
    %v1750 = vunpack.c.l.b16 %v1617
    %v1751 = vunpack.c.l.b16 %v1618
    %v1752 = vunpack.c.l.b16 %v1619
    %v1753 = vunpack.c.l.b16 %v1620
    %v1754 = vunpack.c.l.b16 %v1621
    %v1755 = vunpack.c.l.b16 %v1622
    %v1756 = vunpack.c.l.b16 %v1623
    %v1757 = vunpack.c.l.b16 %v1624
    %v1758 = vunpack.c.l.b16 %v1625
    %v1759 = vunpack.c.l.b16 %v1626
    %v1760 = vunpack.c.l.b16 %v1627
    %v1761 = vunpack.c.l.b16 %v1628
    %v1762 = vunpack.c.l.b16 %v1629
    %v1763 = vunpack.c.l.b16 %v1630
    %v1764 = vunpack.c.l.b16 %v1631
    %v1765 = vunpack.c.l.b16 %v1632
    %v1766 = vunpack.c.l.b16 %v1633
    %v1767 = vunpack.c.l.b16 %v1634
    %v1768 = vunpack.c.l.b16 %v1635
    %v1769 = vunpack.c.l.b16 %v1636
    %v1770 = vunpack.c.l.b16 %v1637
    %v1771 = vunpack.c.l.b16 %v1638
    %v1772 = vunpack.c.l.b16 %v1639
    %v1773 = vunpack.c.l.b16 %v1640
    %v1774 = vunpack.c.l.b16 %v1641
    %v1775 = vunpack.c.l.b16 %v1642
    %v1776 = vunpack.c.l.b16 %v1643
    %v1777 = vunpack.c.l.b16 %v1644
    %v1778 = vunpack.c.l.b16 %v1645
    %v1779 = vunpack.c.l.b16 %v1646
    %v1780 = vunpack.c.l.b16 %v1647
    %v1781 = vunpack.c.l.b16 %v1648
    %v1782 = vunpack.c.l.b16 %v1649
    %v1783 = vunpack.c.l.b16 %v1650
    %v1784 = vunpack.c.l.b16 %v1651
    %v1785 = vunpack.c.l.b16 %v1652
    %v1786 = vunpack.c.l.b16 %v1653
    %v1787 = vunpack.c.l.b16 %v1654
    %v1788 = vunpack.c.l.b16 %v1655
    %v1789 = vunpack.c.l.b16 %v1656
    %v1790 = vunpack.c.l.b16 %v1657
    %v1791 = vunpack.c.l.b16 %v1658
    %v1792 = vunpack.c.l.b16 %v1659
    %v1793 = vunpack.c.l.b16 %v1660
    %v1794 = vpack.c.b16 %v1732, %v1731
    %v1795 = vpack.c.b16 %v1734, %v1733
    %v1796 = vpack.c.b16 %v1736, %v1735
    %v1797 = vpack.c.b16 %v1738, %v1737
    %v1798 = vpack.c.b16 %v1740, %v1739
    %v1799 = vpack.c.b16 %v1742, %v1741
    %v1800 = vpack.c.b16 %v1744, %v1743
    %v1801 = vpack.c.b16 %v1746, %v1745
    %v1802 = vpack.c.b16 %v1748, %v1747
    %v1803 = vpack.c.b16 %v1750, %v1749
    %v1804 = vpack.c.b16 %v1752, %v1751
    %v1805 = vpack.c.b16 %v1754, %v1753
    %v1806 = vpack.c.b16 %v1756, %v1755
    %v1807 = vpack.c.b16 %v1758, %v1757
    %v1808 = vpack.c.b16 %v1760, %v1759
    %v1809 = vpack.c.b16 %v1762, %v1761
    %v1810 = vpack.c.b16 %v1764, %v1763
    %v1811 = vpack.c.b16 %v1766, %v1765
    %v1812 = vpack.c.b16 %v1768, %v1767
    %v1813 = vpack.c.b16 %v1770, %v1769
    %v1814 = vpack.c.b16 %v1772, %v1771
    %v1815 = vpack.c.b16 %v1774, %v1773
    %v1816 = vpack.c.b16 %v1776, %v1775
    %v1817 = vpack.c.b16 %v1778, %v1777
    %v1818 = vpack.c.b16 %v1780, %v1779
    %v1819 = vpack.c.b16 %v1782, %v1781
    %v1820 = vpack.c.b16 %v1784, %v1783
    %v1821 = vpack.c.b16 %v1786, %v1785
    %v1822 = vpack.c.b16 %v1788, %v1787
    %v1823 = vpack.c.b16 %v1790, %v1789
    %v1824 = vpack.c.b16 %v1792, %v1791
    %v1825 = vpack.c.b16 %v1793, %v1793
    %vm1857 = vcmask 949248
    %v1859 = vsel %vm1857, %v1597, 0
    %vm1861 = vcmask 1041408
    %v1863 = vsel %vm1861, %v1825, 0
    %1865 = vmatprep.subr.bf16.mxu0 0
    %1866 = vmatpush1.bf16.msra.mxu0 %v1801
    %1867 = vmatprep.subr.bf16.mxu0 0
    %1868 = vmatpush1.bf16.msra.mxu0 %v1800
    %1869 = vmatprep.subr.bf16.mxu0 0
    %1870 = vmatpush1.bf16.msra.mxu0 %v1799
    %1871 = vmatprep.subr.bf16.mxu0 0
    %1872 = vmatpush1.bf16.msra.mxu0 %v1798
    %1873 = vmatprep.subr.bf16.mxu0 0
    %1874 = vmatpush1.bf16.msra.mxu0 %v1797
    %1875 = vmatprep.subr.bf16.mxu0 0
    %1876 = vmatpush1.bf16.msra.mxu0 %v1796
    %1877 = vmatprep.subr.bf16.mxu0 0
    %1878 = vmatpush1.bf16.msra.mxu0 %v1795
    %1879 = vmatprep.subr.bf16.mxu0 0
    %1880 = vmatpush1.bf16.msra.mxu0 %v1794
    %1881 = vmatprep.subr.bf16.mxu0 0
    %1882 = vmatpush2.bf16.msra.mxu0 %v1809
    %1883 = vmatprep.subr.bf16.mxu0 0
    %1884 = vmatpush2.bf16.msra.mxu0 %v1808
    %1885 = vmatprep.subr.bf16.mxu0 0
    %1886 = vmatpush2.bf16.msra.mxu0 %v1807
    %1887 = vmatprep.subr.bf16.mxu0 0
    %1888 = vmatpush2.bf16.msra.mxu0 %v1806
    %1889 = vmatprep.subr.bf16.mxu0 0
    %1890 = vmatpush2.bf16.msra.mxu0 %v1805
    %1891 = vmatprep.subr.bf16.mxu0 0
    %1892 = vmatpush2.bf16.msra.mxu0 %v1804
    %1893 = vmatprep.subr.bf16.mxu0 0
    %1894 = vmatpush2.bf16.msra.mxu0 %v1803
    %1895 = vmatprep.subr.bf16.mxu0 0
    %1896 = vmatpush2.bf16.msra.mxu0 %v1802
    %1897 = vmatprep.mubr.bf16.mxu0 %v1595
    %1898 = vmatmul.mubr.bf16.gmra.mxu0 %v1594
    %v1899 = vpop.f32.mrf.mxu0
    %v1900 = vadd.f32 %v1666, %v1899
    %v1901 = vpop.f32.mrf.mxu0
    %v1902 = vpop.f32.mrf.mxu0
    %v1903 = vpop.f32.mrf.mxu0
    %1904 = vdwg.mxu0
    %1905 = vmatprep.subr.bf16.mxu0 0
    %1906 = vmatpush1.bf16.msra.mxu0 %v1817
    %1907 = vmatprep.subr.bf16.mxu0 0
    %1908 = vmatpush1.bf16.msra.mxu0 %v1816
    %1909 = vmatprep.subr.bf16.mxu0 0
    %1910 = vmatpush1.bf16.msra.mxu0 %v1815
    %1911 = vmatprep.subr.bf16.mxu0 0
    %1912 = vmatpush1.bf16.msra.mxu0 %v1814
    %1913 = vmatprep.subr.bf16.mxu0 0
    %1914 = vmatpush1.bf16.msra.mxu0 %v1813
    %1915 = vmatprep.subr.bf16.mxu0 0
    %1916 = vmatpush1.bf16.msra.mxu0 %v1812
    %1917 = vmatprep.subr.bf16.mxu0 0
    %1918 = vmatpush1.bf16.msra.mxu0 %v1811
    %1919 = vmatprep.subr.bf16.mxu0 0
    %1920 = vmatpush1.bf16.msra.mxu0 %v1810
    %1921 = vmatprep.subr.bf16.mxu0 0
    %1922 = vmatpush2.bf16.msra.mxu0 %v1863
    %1923 = vmatprep.subr.bf16.mxu0 0
    %1924 = vmatpush2.bf16.msra.mxu0 %v1824
    %1925 = vmatprep.subr.bf16.mxu0 0
    %1926 = vmatpush2.bf16.msra.mxu0 %v1823
    %1927 = vmatprep.subr.bf16.mxu0 0
    %1928 = vmatpush2.bf16.msra.mxu0 %v1822
    %1929 = vmatprep.subr.bf16.mxu0 0
    %1930 = vmatpush2.bf16.msra.mxu0 %v1821
    %1931 = vmatprep.subr.bf16.mxu0 0
    %1932 = vmatpush2.bf16.msra.mxu0 %v1820
    %1933 = vmatprep.subr.bf16.mxu0 0
    %1934 = vmatpush2.bf16.msra.mxu0 %v1819
    %1935 = vmatprep.subr.bf16.mxu0 0
    %1936 = vmatpush2.bf16.msra.mxu0 %v1818
    %1937 = vmatprep.mubr.bf16.mxu0 %v1859
    %1938 = vmatmul.mubr.bf16.gmra.mxu0 %v1596
    %v1939 = vpop.f32.mrf.mxu0
    %v1940 = vadd.f32 %v1900, %v1939
    %v1941 = vpop.f32.mrf.mxu0
    %v1942 = vpop.f32.mrf.mxu0
    %v1943 = vpop.f32.mrf.mxu0
    %1944 = vdwg.mxu0
    %vm1945 = vcmask 80896
    %v1946 = vsel %vm1945, %v1940, -inf
    %1947 = vmax.xlane.f32.xlu0 %v1946
    %v1948 = vpop.xlane.xlu0 %1947
    %v1949 = vsub.f32 %v1940, %v1948
    %v1950 = vmul.f32 %v1949, 1.442695
    %v1951 = vpow.pop %v1950
    %v1952 = vsel %vm1945, %v1951, 0.0
    %1953 = vadd.xlane.f32.xlu0 %v1952
    %v1954 = vpop.xlane.xlu0 %1953
    %v1955 = vlog2.pop %v1954
    %v1956 = vmul.f32 %v1955, 0.6931472
    %v1957 = vsub.f32 %v1949, %v1956
    %1958 = vst.msk [vmem:[#allocation2] sm:$0xff] %vm1945, %v1957
    // Predicated region
    $region22: #{mlmodel_cnn_forward.5} parent=1 // pred_check
      _
    $region23: #{mlmodel_cnn_forward.5} parent=1 // pred_check_branch
      %1960 = sbr.rel (0) target = $region25
    $region24: #{mlmodel_cnn_forward.5} parent=1 // pred_region
      %s1962 = ssub.s32 128, 128
      %1963 = vsyncadd [#allocation3], %s1962
      %s1965 = sshll.u32 [#allocation2], 4
      %s1966 = int_to_ptr.vmem [resolvable:$true] %s1965
      %1968 = dma.vmem_to_hbm [thread:$0]  %s1966, 128, %s5, [#allocation3]
    $region25: #{mlmodel_cnn_forward.5} parent=1 // pred_fallthru
      _
    // Predicated region
    $region26: #{mlmodel_cnn_forward.5} parent=1 // pred_check
      _
    $region27: #{mlmodel_cnn_forward.5} parent=1 // pred_check_branch
      %1970 = sbr.rel (0) target = $region29
    $region28: #{mlmodel_cnn_forward.5} parent=1 // pred_region
      %1971 = dma.done [#allocation3], 128
    $region29: #{mlmodel_cnn_forward.5} parent=1 // pred_fallthru
      _
    %1972 = vsyncpa [#allocation3], 1

</llo_original>
